<compile_context>
chip_gen: v5e
topology: v5e:2x2
jax: 0.10.0
libtpu: 0.0.40
codegen_flags: <defaults>
</compile_context>

<pallas_src>
import functools
import math

import jax
import jax.numpy as jnp
from jax.experimental import pallas as pl
from jax.experimental.pallas import tpu as pltpu


# ---------------------------------------------------------------------------
# Fused AttentionBlock kernel
# ---------------------------------------------------------------------------
def _attn_block_kernel(
    x_ref, g_ref, wq_ref, wk_ref, wv_ref, bq_ref, bk_ref, bv_ref, wp_ref, bp_ref,
    o_ref, *, norm_scale, attn_scale, q_chunk,
):
    x = x_ref[...]                                   # (bt, L, C) f32
    bt, L, C = x.shape
    x2 = x.reshape(bt * L, C)

    # RMS_norm: F.normalize(x, dim=channel) * sqrt(C) * gamma   (eps = 1e-12)
    ss = jnp.sum(x2 * x2, axis=-1, keepdims=True)
    inv = jax.lax.rsqrt(jnp.maximum(ss, 1e-24))      # == 1 / max(||x||_2, 1e-12)
    y = (x2 * inv * norm_scale * g_ref[...]).astype(jnp.bfloat16)

    # 1x1-conv QKV projection, bf16 operands / f32 accumulation, bias in f32.
    def _proj(w_ref, b_ref):
        r = jnp.dot(y, w_ref[...], preferred_element_type=jnp.float32) + b_ref[...]
        return r.astype(jnp.bfloat16).reshape(bt, L, C)

    q = _proj(wq_ref, bq_ref)
    k = _proj(wk_ref, bk_ref)
    v = _proj(wv_ref, bv_ref)

    wp = wp_ref[...]                                 # (C, C) bf16
    bp = bp_ref[...]                                 # (1, C) f32

    # Single-head attention over the spatial positions of each frame, processed
    # in query chunks to bound the (q_chunk, L) score block in VMEM.  The proj
    # matmul and the residual add are fused into the same epilogue.
    for start in range(0, L, q_chunk):
        size = min(q_chunk, L - start)
        qc = q[:, start:start + size, :]
        s = jnp.einsum("bqc,bkc->bqk", qc, k,
                       preferred_element_type=jnp.float32) * attn_scale
        s = s - jnp.max(s, axis=-1, keepdims=True)
        p = jnp.exp(s)
        p = (p * pl.reciprocal(jnp.sum(p, axis=-1, keepdims=True),
                               approx=True)).astype(jnp.bfloat16)
        attn = jnp.einsum("bqk,bkc->bqc", p, v,
                          preferred_element_type=jnp.float32)
        proj = (jnp.dot(attn.astype(jnp.bfloat16).reshape(bt * size, C), wp,
                        preferred_element_type=jnp.float32) + bp)
        o_ref[:, start:start + size, :] = (
            proj.reshape(bt, size, C) + x[:, start:start + size, :]
        ).astype(o_ref.dtype)


def _pick_bt_tile(bt, L, C, q_chunk, budget_bytes=20 * 1024 * 1024):
    """Largest divisor of B*T whose per-step working set fits the VMEM budget."""
    qc = min(q_chunk, L)
    # rough per-frame working set: f32 x/out/attn/proj + bf16 y/q/k/v + f32 scores
    per_frame = 16 * L * C + 8 * qc * L
    cap = max(1, budget_bytes // max(per_frame, 1))
    t = int(min(bt, cap))
    while t > 1 and bt % t:
        t -= 1
    return max(t, 1)


def attention_block(x_ncthw, params, *, q_chunk=512,
                    vmem_limit_bytes=48 * 1024 * 1024):
    """AttentionBlock forward.  x: (B, C, T, H, W) -> (B, C, T, H, W)."""
    B, C, T, H, W = x_ncthw.shape
    L = H * W
    BT = B * T

    # channels-last, one frame per row-group: (B*T, H*W, C)
    x = jnp.transpose(x_ncthw, (0, 2, 3, 4, 1)).reshape(BT, L, C).astype(jnp.float32)

    gamma = params["gamma"].reshape(1, C).astype(jnp.float32)
    w_qkv = params["w_qkv"].astype(jnp.bfloat16)           # (C, 3C)
    wq, wk, wv = w_qkv[:, :C], w_qkv[:, C:2 * C], w_qkv[:, 2 * C:]
    b_qkv = params["b_qkv"].astype(jnp.float32)
    bq = b_qkv[:C].reshape(1, C)
    bk = b_qkv[C:2 * C].reshape(1, C)
    bv = b_qkv[2 * C:].reshape(1, C)
    wp = params["w_proj"].astype(jnp.bfloat16)              # (C, C)
    bp = params["b_proj"].reshape(1, C).astype(jnp.float32)

    q_chunk = int(max(8, min(q_chunk, L)))
    bt_tile = _pick_bt_tile(BT, L, C, q_chunk)

    kern = functools.partial(
        _attn_block_kernel,
        norm_scale=float(math.sqrt(C)),
        attn_scale=float(1.0 / math.sqrt(C)),
        q_chunk=q_chunk,
    )

    def vec_spec():
        return pl.BlockSpec((1, C), lambda i: (0, 0))

    def mat_spec():
        return pl.BlockSpec((C, C), lambda i: (0, 0))

    out = pl.pallas_call(
        kern,
        out_shape=jax.ShapeDtypeStruct((BT, L, C), jnp.float32),
        grid_spec=pltpu.PrefetchScalarGridSpec(
            num_scalar_prefetch=0,
            grid=(BT // bt_tile,),
            in_specs=[
                pl.BlockSpec((bt_tile, L, C), lambda i: (i, 0, 0)),  # x
                vec_spec(),                                          # gamma
                mat_spec(), mat_spec(), mat_spec(),                  # wq, wk, wv
                vec_spec(), vec_spec(), vec_spec(),                  # bq, bk, bv
                mat_spec(),                                          # w_proj
                vec_spec(),                                          # b_proj
            ],
            out_specs=pl.BlockSpec((bt_tile, L, C), lambda i: (i, 0, 0)),
        ),
        compiler_params=pltpu.CompilerParams(
            dimension_semantics=("parallel",),
            vmem_limit_bytes=vmem_limit_bytes,
        ),
    )(x, gamma, wq, wk, wv, bq, bk, bv, wp, bp)

    out = out.reshape(B, T, H, W, C)
    return jnp.transpose(out, (0, 4, 1, 2, 3)).astype(x_ncthw.dtype)


# ---------------------------------------------------------------------------
# Plain-JAX reference (f32) and synthetic parameters
# ---------------------------------------------------------------------------
def attention_block_ref(x_ncthw, params):
    B, C, T, H, W = x_ncthw.shape
    L = H * W
    x = jnp.transpose(x_ncthw, (0, 2, 3, 4, 1)).reshape(B * T, L, C).astype(jnp.float32)
    g = params["gamma"].reshape(1, 1, C)
    nrm = jnp.sqrt(jnp.sum(x * x, axis=-1, keepdims=True))
    y = x / jnp.maximum(nrm, 1e-12) * math.sqrt(C) * g
    qkv = jnp.einsum("blc,cd->bld", y, params["w_qkv"]) + params["b_qkv"]
    q, k, v = qkv[..., :C], qkv[..., C:2 * C], qkv[..., 2 * C:]
    s = jnp.einsum("bqc,bkc->bqk", q, k) / math.sqrt(C)
    p = jax.nn.softmax(s, axis=-1)
    o = jnp.einsum("bqk,bkc->bqc", p, v)
    o = jnp.einsum("blc,cd->bld", o, params["w_proj"]) + params["b_proj"]
    out = o + x
    return jnp.transpose(out.reshape(B, T, H, W, C), (0, 4, 1, 2, 3))


def init_attention_block_params(key, dim):
    kq, kbq, kp, kbp, kg = jax.random.split(key, 5)
    return {
        "gamma": 1.0 + 0.05 * jax.random.normal(kg, (dim,), jnp.float32),
        "w_qkv": jax.random.normal(kq, (dim, 3 * dim), jnp.float32) / math.sqrt(dim),
        "b_qkv": 0.02 * jax.random.normal(kbq, (3 * dim,), jnp.float32),
        "w_proj": jax.random.normal(kp, (dim, dim), jnp.float32) / math.sqrt(dim),
        "b_proj": 0.02 * jax.random.normal(kbp, (dim,), jnp.float32),
    }


if __name__ == "__main__":
    key = jax.random.PRNGKey(0)
    kp, kx = jax.random.split(key)

    B, C, T, H, W = 2, 128, 2, 16, 16
    params = init_attention_block_params(kp, C)
    x = jax.random.normal(kx, (B, C, T, H, W), jnp.float32)

    fwd = jax.jit(lambda xx: attention_block(xx, params))
    out = fwd(x)
    jax.block_until_ready(out)

    assert out.shape == (B, C, T, H, W), out.shape
    assert bool(jnp.all(jnp.isfinite(out)))

    # Loose tolerance: kernel uses bf16 MXU operands / approx reciprocal,
    # reference is pure f32.
    ref = attention_block_ref(x, params)
    max_err = float(jnp.max(jnp.abs(out - ref)))
    scale = float(jnp.max(jnp.abs(ref))) + 1e-6
    assert max_err / scale < 0.08, f"numerical mismatch: {max_err} vs scale {scale}"

    print("KERNEL_OK")
</pallas_src>

<mosaic_0001>
module attributes {stable_mosaic.version = 11 : i64} {
  func.func @_attn_block_kernel(%arg0: i32, %arg1: memref<4x256x128xf32, #tpu.memory_space<vmem>>, %arg2: memref<1x128xf32, #tpu.memory_space<vmem>>, %arg3: memref<128x128xbf16, #tpu.memory_space<vmem>>, %arg4: memref<128x128xbf16, #tpu.memory_space<vmem>>, %arg5: memref<128x128xbf16, #tpu.memory_space<vmem>>, %arg6: memref<1x128xf32, #tpu.memory_space<vmem>>, %arg7: memref<1x128xf32, #tpu.memory_space<vmem>>, %arg8: memref<1x128xf32, #tpu.memory_space<vmem>>, %arg9: memref<128x128xbf16, #tpu.memory_space<vmem>>, %arg10: memref<1x128xf32, #tpu.memory_space<vmem>>, %arg11: memref<4x256x128xf32, #tpu.memory_space<vmem>>) attributes {dimension_semantics = [#tpu.dimension_semantics<parallel>], iteration_bounds = array<i64: 1>, scalar_prefetch = 0 : i64, scratch_operands = 0 : i64, tpu.core_type = #tpu.core_type<tc>, window_params = [{transform_indices = @transform_0, window_bounds = array<i64: 4, 256, 128>}, {pipeline_mode = #tpu.pipeline_mode<synchronous>, transform_indices = @transform_1, window_bounds = array<i64: 1, 128>}, {pipeline_mode = #tpu.pipeline_mode<synchronous>, transform_indices = @transform_2, window_bounds = array<i64: 128, 128>}, {pipeline_mode = #tpu.pipeline_mode<synchronous>, transform_indices = @transform_3, window_bounds = array<i64: 128, 128>}, {pipeline_mode = #tpu.pipeline_mode<synchronous>, transform_indices = @transform_4, window_bounds = array<i64: 128, 128>}, {pipeline_mode = #tpu.pipeline_mode<synchronous>, transform_indices = @transform_5, window_bounds = array<i64: 1, 128>}, {pipeline_mode = #tpu.pipeline_mode<synchronous>, transform_indices = @transform_6, window_bounds = array<i64: 1, 128>}, {pipeline_mode = #tpu.pipeline_mode<synchronous>, transform_indices = @transform_7, window_bounds = array<i64: 1, 128>}, {pipeline_mode = #tpu.pipeline_mode<synchronous>, transform_indices = @transform_8, window_bounds = array<i64: 128, 128>}, {pipeline_mode = #tpu.pipeline_mode<synchronous>, transform_indices = @transform_9, window_bounds = array<i64: 1, 128>}, {transform_indices = @transform_10, window_bounds = array<i64: 4, 256, 128>}]} {
    %c0 = arith.constant 0 : index
    %c0_0 = arith.constant 0 : index
    %c0_1 = arith.constant 0 : index
    %0 = vector.load %arg1[%c0, %c0_0, %c0_1] : memref<4x256x128xf32, #tpu.memory_space<vmem>>, vector<4x256x128xf32>
    %1 = vector.shape_cast %0 : vector<4x256x128xf32> to vector<1024x128xf32>
    %2 = arith.mulf %1, %1 : vector<1024x128xf32>
    %cst = arith.constant dense<0.000000e+00> : vector<1024xf32>
    %3 = vector.multi_reduction <add>, %2, %cst [1] : vector<1024x128xf32> to vector<1024xf32>
    %4 = vector.shape_cast %3 : vector<1024xf32> to vector<1024x1xf32>
    %cst_2 = arith.constant 1.000000e-24 : f32
    %5 = vector.broadcast %cst_2 : f32 to vector<1024x1xf32>
    %6 = arith.maximumf %4, %5 : vector<1024x1xf32>
    %7 = math.rsqrt %6 : vector<1024x1xf32>
    %8 = vector.broadcast %7 : vector<1024x1xf32> to vector<1024x128xf32>
    %9 = arith.mulf %1, %8 : vector<1024x128xf32>
    %cst_3 = arith.constant 11.3137083 : f32
    %10 = vector.broadcast %cst_3 : f32 to vector<1024x128xf32>
    %11 = arith.mulf %9, %10 : vector<1024x128xf32>
    %c0_4 = arith.constant 0 : index
    %c0_5 = arith.constant 0 : index
    %12 = vector.load %arg2[%c0_4, %c0_5] : memref<1x128xf32, #tpu.memory_space<vmem>>, vector<1x128xf32>
    %13 = vector.broadcast %12 : vector<1x128xf32> to vector<1024x128xf32>
    %14 = arith.mulf %11, %13 : vector<1024x128xf32>
    %15 = arith.truncf %14 : vector<1024x128xf32> to vector<1024x128xbf16>
    %c0_6 = arith.constant 0 : index
    %c0_7 = arith.constant 0 : index
    %16 = vector.load %arg3[%c0_6, %c0_7] : memref<128x128xbf16, #tpu.memory_space<vmem>>, vector<128x128xbf16>
    %cst_8 = arith.constant dense<0.000000e+00> : vector<1024x128xf32>
    %17 = tpu.matmul %15, %16, %cst_8 {dimension_numbers = #tpu.dot_dimension_numbers<[1], [0], [0], [1], [0, 0, 1, 1], [], []>} : vector<1024x128xbf16>, vector<128x128xbf16>, vector<1024x128xf32> -> vector<1024x128xf32>
    %c0_9 = arith.constant 0 : index
    %c0_10 = arith.constant 0 : index
    %18 = vector.load %arg6[%c0_9, %c0_10] : memref<1x128xf32, #tpu.memory_space<vmem>>, vector<1x128xf32>
    %19 = vector.broadcast %18 : vector<1x128xf32> to vector<1024x128xf32>
    %20 = arith.addf %17, %19 : vector<1024x128xf32>
    %21 = arith.truncf %20 : vector<1024x128xf32> to vector<1024x128xbf16>
    %22 = vector.shape_cast %21 : vector<1024x128xbf16> to vector<4x256x128xbf16>
    %c0_11 = arith.constant 0 : index
    %c0_12 = arith.constant 0 : index
    %23 = vector.load %arg4[%c0_11, %c0_12] : memref<128x128xbf16, #tpu.memory_space<vmem>>, vector<128x128xbf16>
    %cst_13 = arith.constant dense<0.000000e+00> : vector<1024x128xf32>
    %24 = tpu.matmul %15, %23, %cst_13 {dimension_numbers = #tpu.dot_dimension_numbers<[1], [0], [0], [1], [0, 0, 1, 1], [], []>} : vector<1024x128xbf16>, vector<128x128xbf16>, vector<1024x128xf32> -> vector<1024x128xf32>
    %c0_14 = arith.constant 0 : index
    %c0_15 = arith.constant 0 : index
    %25 = vector.load %arg7[%c0_14, %c0_15] : memref<1x128xf32, #tpu.memory_space<vmem>>, vector<1x128xf32>
    %26 = vector.broadcast %25 : vector<1x128xf32> to vector<1024x128xf32>
    %27 = arith.addf %24, %26 : vector<1024x128xf32>
    %28 = arith.truncf %27 : vector<1024x128xf32> to vector<1024x128xbf16>
    %29 = vector.shape_cast %28 : vector<1024x128xbf16> to vector<4x256x128xbf16>
    %c0_16 = arith.constant 0 : index
    %c0_17 = arith.constant 0 : index
    %30 = vector.load %arg5[%c0_16, %c0_17] : memref<128x128xbf16, #tpu.memory_space<vmem>>, vector<128x128xbf16>
    %cst_18 = arith.constant dense<0.000000e+00> : vector<1024x128xf32>
    %31 = tpu.matmul %15, %30, %cst_18 {dimension_numbers = #tpu.dot_dimension_numbers<[1], [0], [0], [1], [0, 0, 1, 1], [], []>} : vector<1024x128xbf16>, vector<128x128xbf16>, vector<1024x128xf32> -> vector<1024x128xf32>
    %c0_19 = arith.constant 0 : index
    %c0_20 = arith.constant 0 : index
    %32 = vector.load %arg8[%c0_19, %c0_20] : memref<1x128xf32, #tpu.memory_space<vmem>>, vector<1x128xf32>
    %33 = vector.broadcast %32 : vector<1x128xf32> to vector<1024x128xf32>
    %34 = arith.addf %31, %33 : vector<1024x128xf32>
    %35 = arith.truncf %34 : vector<1024x128xf32> to vector<1024x128xbf16>
    %36 = vector.shape_cast %35 : vector<1024x128xbf16> to vector<4x256x128xbf16>
    %c0_21 = arith.constant 0 : index
    %c0_22 = arith.constant 0 : index
    %37 = vector.load %arg9[%c0_21, %c0_22] : memref<128x128xbf16, #tpu.memory_space<vmem>>, vector<128x128xbf16>
    %c0_23 = arith.constant 0 : index
    %c0_24 = arith.constant 0 : index
    %38 = vector.load %arg10[%c0_23, %c0_24] : memref<1x128xf32, #tpu.memory_space<vmem>>, vector<1x128xf32>
    "tpu.trace_start"() <{level = 10 : i32, message = "bqc,bkc->bqk"}> : () -> ()
    %cst_25 = arith.constant dense<0.000000e+00> : vector<4x256x256xf32>
    %39 = tpu.matmul %22, %29, %cst_25 {dimension_numbers = #tpu.dot_dimension_numbers<[2], [2], [1], [1], [0, 0, 0, 1, 1, 1], [0], [0]>} : vector<4x256x128xbf16>, vector<4x256x128xbf16>, vector<4x256x256xf32> -> vector<4x256x256xf32>
    "tpu.trace_stop"() : () -> ()
    %cst_26 = arith.constant 0.0883883461 : f32
    %40 = vector.broadcast %cst_26 : f32 to vector<4x256x256xf32>
    %41 = arith.mulf %39, %40 : vector<4x256x256xf32>
    %cst_27 = arith.constant dense<0xFF800000> : vector<4x256xf32>
    %42 = vector.multi_reduction <maximumf>, %41, %cst_27 [2] : vector<4x256x256xf32> to vector<4x256xf32>
    %43 = vector.shape_cast %42 : vector<4x256xf32> to vector<4x256x1xf32>
    %44 = vector.broadcast %43 : vector<4x256x1xf32> to vector<4x256x256xf32>
    %45 = arith.subf %41, %44 : vector<4x256x256xf32>
    %46 = math.exp %45 : vector<4x256x256xf32>
    %cst_28 = arith.constant dense<0.000000e+00> : vector<4x256xf32>
    %47 = vector.multi_reduction <add>, %46, %cst_28 [2] : vector<4x256x256xf32> to vector<4x256xf32>
    %48 = vector.shape_cast %47 : vector<4x256xf32> to vector<4x256x1xf32>
    %49 = tpu.reciprocal %48 {approx = true} : vector<4x256x1xf32> -> vector<4x256x1xf32>
    %50 = vector.broadcast %49 : vector<4x256x1xf32> to vector<4x256x256xf32>
    %51 = arith.mulf %46, %50 : vector<4x256x256xf32>
    %52 = arith.truncf %51 : vector<4x256x256xf32> to vector<4x256x256xbf16>
    "tpu.trace_start"() <{level = 10 : i32, message = "bqk,bkc->bqc"}> : () -> ()
    %cst_29 = arith.constant dense<0.000000e+00> : vector<4x256x128xf32>
    %53 = tpu.matmul %52, %36, %cst_29 {dimension_numbers = #tpu.dot_dimension_numbers<[2], [1], [1], [2], [0, 0, 0, 1, 1, 2], [0], [0]>} : vector<4x256x256xbf16>, vector<4x256x128xbf16>, vector<4x256x128xf32> -> vector<4x256x128xf32>
    "tpu.trace_stop"() : () -> ()
    %54 = arith.truncf %53 : vector<4x256x128xf32> to vector<4x256x128xbf16>
    %55 = vector.shape_cast %54 : vector<4x256x128xbf16> to vector<1024x128xbf16>
    %cst_30 = arith.constant dense<0.000000e+00> : vector<1024x128xf32>
    %56 = tpu.matmul %55, %37, %cst_30 {dimension_numbers = #tpu.dot_dimension_numbers<[1], [0], [0], [1], [0, 0, 1, 1], [], []>} : vector<1024x128xbf16>, vector<128x128xbf16>, vector<1024x128xf32> -> vector<1024x128xf32>
    %57 = vector.broadcast %38 : vector<1x128xf32> to vector<1024x128xf32>
    %58 = arith.addf %56, %57 : vector<1024x128xf32>
    %59 = vector.shape_cast %58 : vector<1024x128xf32> to vector<4x256x128xf32>
    %60 = arith.addf %59, %0 : vector<4x256x128xf32>
    %c0_31 = arith.constant 0 : index
    %c0_32 = arith.constant 0 : index
    %c0_33 = arith.constant 0 : index
    %61 = vector.load %arg11[%c0_31, %c0_32, %c0_33] : memref<4x256x128xf32, #tpu.memory_space<vmem>>, vector<4x256x128xf32>
    tpu.vector_store %arg11[%c0_31, %c0_32, %c0_33], %60 {strides = array<i32>} : memref<4x256x128xf32, #tpu.memory_space<vmem>>, vector<4x256x128xf32>,
    return
  }
  func.func @transform_0(%arg0: i32) -> (i32, i32, i32) {
    %c0_i32 = arith.constant 0 : i32
    %c0_i32_0 = arith.constant 0 : i32
    %c0_i32_1 = arith.constant 0 : i32
    return %arg0, %c0_i32, %c0_i32_0 : i32, i32, i32
  }
  func.func @transform_1(%arg0: i32) -> (i32, i32) {
    %c0_i32 = arith.constant 0 : i32
    %c0_i32_0 = arith.constant 0 : i32
    %c0_i32_1 = arith.constant 0 : i32
    return %c0_i32, %c0_i32_0 : i32, i32
  }
  func.func @transform_2(%arg0: i32) -> (i32, i32) {
    %c0_i32 = arith.constant 0 : i32
    %c0_i32_0 = arith.constant 0 : i32
    %c0_i32_1 = arith.constant 0 : i32
    return %c0_i32, %c0_i32_0 : i32, i32
  }
  func.func @transform_3(%arg0: i32) -> (i32, i32) {
    %c0_i32 = arith.constant 0 : i32
    %c0_i32_0 = arith.constant 0 : i32
    %c0_i32_1 = arith.constant 0 : i32
    return %c0_i32, %c0_i32_0 : i32, i32
  }
  func.func @transform_4(%arg0: i32) -> (i32, i32) {
    %c0_i32 = arith.constant 0 : i32
    %c0_i32_0 = arith.constant 0 : i32
    %c0_i32_1 = arith.constant 0 : i32
    return %c0_i32, %c0_i32_0 : i32, i32
  }
  func.func @transform_5(%arg0: i32) -> (i32, i32) {
    %c0_i32 = arith.constant 0 : i32
    %c0_i32_0 = arith.constant 0 : i32
    %c0_i32_1 = arith.constant 0 : i32
    return %c0_i32, %c0_i32_0 : i32, i32
  }
  func.func @transform_6(%arg0: i32) -> (i32, i32) {
    %c0_i32 = arith.constant 0 : i32
    %c0_i32_0 = arith.constant 0 : i32
    %c0_i32_1 = arith.constant 0 : i32
    return %c0_i32, %c0_i32_0 : i32, i32
  }
  func.func @transform_7(%arg0: i32) -> (i32, i32) {
    %c0_i32 = arith.constant 0 : i32
    %c0_i32_0 = arith.constant 0 : i32
    %c0_i32_1 = arith.constant 0 : i32
    return %c0_i32, %c0_i32_0 : i32, i32
  }
  func.func @transform_8(%arg0: i32) -> (i32, i32) {
    %c0_i32 = arith.constant 0 : i32
    %c0_i32_0 = arith.constant 0 : i32
    %c0_i32_1 = arith.constant 0 : i32
    return %c0_i32, %c0_i32_0 : i32, i32
  }
  func.func @transform_9(%arg0: i32) -> (i32, i32) {
    %c0_i32 = arith.constant 0 : i32
    %c0_i32_0 = arith.constant 0 : i32
    %c0_i32_1 = arith.constant 0 : i32
    return %c0_i32, %c0_i32_0 : i32, i32
  }
  func.func @transform_10(%arg0: i32) -> (i32, i32, i32) {
    %c0_i32 = arith.constant 0 : i32
    %c0_i32_0 = arith.constant 0 : i32
    %c0_i32_1 = arith.constant 0 : i32
    return %arg0, %c0_i32, %c0_i32_0 : i32, i32, i32
  }
}

</mosaic_0001>

<llo_original>
// kernel: _lambda_.1
$region0: #{_lambda_.1}
  #allocation0 [shape = 'u32[]', space=smem, size = 0x4, offset = 0x4, fixed_abs, tag = 'smem constant byte address 0x4 - core index']
  #allocation1 [shape = 'u32[72,128]{1,0:T(1,128)}', space=vmem, size = 0x9000, scoped, tag = 'internal scratch']
  %s0 = inlined_call_operand.hbm [shape: f32[4,256,128], index: 0, kind: input, shape index: {}]
  %s1 = inlined_call_operand.vmem [shape: f32[1,128], index: 1, kind: input, shape index: {}]
  %s2 = inlined_call_operand.hbm [shape: bf16[128,128], index: 2, kind: input, shape index: {}]
  %s3 = inlined_call_operand.hbm [shape: bf16[128,128], index: 3, kind: input, shape index: {}]
  %s4 = inlined_call_operand.hbm [shape: bf16[128,128], index: 4, kind: input, shape index: {}]
  %s5 = inlined_call_operand.vmem [shape: f32[1,128], index: 5, kind: input, shape index: {}]
  %s6 = inlined_call_operand.vmem [shape: f32[1,128], index: 6, kind: input, shape index: {}]
  %s7 = inlined_call_operand.hbm [shape: f32[1,128], index: 7, kind: input, shape index: {}]
  %s8 = inlined_call_operand.hbm [shape: bf16[128,128], index: 8, kind: input, shape index: {}]
  %s9 = inlined_call_operand.hbm [shape: f32[1,128], index: 9, kind: input, shape index: {}]
  %s10 = inlined_call_operand.hbm [shape: f32[4,256,128], index: 10, kind: output, shape index: {}]
  %s11 = sld [smem:[#allocation0]]
  $region78: #{_lambda_.1} parent=0
    _
  %s13 = ssub.s32 1, %s11
  %s14 = scalar_select 0, %s13, %s11
  $region1: #{_lambda_.1} parent=0
    #allocation2 [shape = 'u8[524288]{0}', space=vmem, size = 0x80000, scoped, tag = 'input window, operand 0, single buffered']
    #allocation3 [shape = 's32[1]{0}', space=sflag, size = 0x4, scoped, tag = 'scoped memory for _lambda_.1']
    #allocation4 [shape = 's32[1]{0}', space=sflag, size = 0x4, scoped, tag = 'scoped memory for _lambda_.1']
    #allocation5 [shape = 'u8[32768]{0}', space=vmem, size = 0x8000, scoped, tag = 'input window, operand 2, single buffered']
    #allocation6 [shape = 's32[1]{0}', space=sflag, size = 0x4, scoped, tag = 'scoped memory for _lambda_.1']
    #allocation7 [shape = 'u8[32768]{0}', space=vmem, size = 0x8000, scoped, tag = 'input window, operand 3, single buffered']
    #allocation8 [shape = 'u8[32768]{0}', space=vmem, size = 0x8000, scoped, tag = 'input window, operand 4, single buffered']
    #allocation9 [shape = 's32[1]{0}', space=sflag, size = 0x4, scoped, tag = 'scoped memory for _lambda_.1']
    #allocation10 [shape = 'u8[512]{0}', space=vmem, size = 0x400, scoped, tag = 'input window, operand 7, single buffered']
    #allocation11 [shape = 'u8[32768]{0}', space=vmem, size = 0x8000, scoped, tag = 'input window, operand 8, single buffered']
    #allocation12 [shape = 's32[1]{0}', space=sflag, size = 0x4, scoped, tag = 'scoped memory for _lambda_.1']
    #allocation13 [shape = 'u8[512]{0}', space=vmem, size = 0x400, scoped, tag = 'input window, operand 9, single buffered']
    #allocation14 [shape = 'u8[524288]{0}', space=vmem, size = 0x80000, scoped, tag = 'output window, operand 0, single buffered']
    %15 = vsyncpa [#allocation3], 0
    %16 = vsyncpa [#allocation6], 0
    %17 = vsyncpa [#allocation9], 0
    %18 = vsyncpa [#allocation12], 0
    %19 = vsyncpa [#allocation4], 0
    // Predicated region
    $region2: #{_lambda_.1} parent=1 // pred_check
      _
    $region3: #{_lambda_.1} parent=1 // pred_check_branch
      %21 = sbr.rel (0) target = $region5
    $region4: #{_lambda_.1} parent=1 // pred_region
      %23 = vsyncadd [#allocation3], 0
      %s24 = sshll.u32 %s0, 4
      %s25 = int_to_ptr.hbm [resolvable:$true] %s24
      %s26 = sshll.u32 [#allocation2], 4
      %s27 = int_to_ptr.vmem [resolvable:$true] %s26
      %32 = dma.hbm_to_vmem [thread:$0]  %s25, 16384, %s27, [#allocation3], 128, 128, 8
    $region5: #{_lambda_.1} parent=1 // pred_fallthru
      _
    // Predicated region
    $region6: #{_lambda_.1} parent=1 // pred_check
      _
    $region7: #{_lambda_.1} parent=1 // pred_check_branch
      %34 = sbr.rel (0) target = $region9
    $region8: #{_lambda_.1} parent=1 // pred_region
      _
    $region9: #{_lambda_.1} parent=1 // pred_fallthru
      _
    // Predicated region
    $region10: #{_lambda_.1} parent=1 // pred_check
      _
    $region11: #{_lambda_.1} parent=1 // pred_check_branch
      %36 = sbr.rel (0) target = $region13
    $region12: #{_lambda_.1} parent=1 // pred_region
      %38 = vsyncadd [#allocation6], 0
      %s39 = sshll.u32 %s2, 4
      %s40 = int_to_ptr.hbm [resolvable:$true] %s39
      %s41 = sshll.u32 [#allocation5], 4
      %s42 = int_to_ptr.vmem [resolvable:$true] %s41
      %47 = dma.hbm_to_vmem [thread:$0]  %s40, 1024, %s42, [#allocation6], 64, 64, 4
    $region13: #{_lambda_.1} parent=1 // pred_fallthru
      _
    // Predicated region
    $region14: #{_lambda_.1} parent=1 // pred_check
      _
    $region15: #{_lambda_.1} parent=1 // pred_check_branch
      %49 = sbr.rel (0) target = $region17
    $region16: #{_lambda_.1} parent=1 // pred_region
      %51 = vsyncadd [#allocation6], 0
      %s52 = sshll.u32 %s3, 4
      %s53 = int_to_ptr.hbm [resolvable:$true] %s52
      %s54 = sshll.u32 [#allocation7], 4
      %s55 = int_to_ptr.vmem [resolvable:$true] %s54
      %60 = dma.hbm_to_vmem [thread:$0]  %s53, 1024, %s55, [#allocation6], 64, 64, 4
    $region17: #{_lambda_.1} parent=1 // pred_fallthru
      _
    // Predicated region
    $region18: #{_lambda_.1} parent=1 // pred_check
      _
    $region19: #{_lambda_.1} parent=1 // pred_check_branch
      %62 = sbr.rel (0) target = $region21
    $region20: #{_lambda_.1} parent=1 // pred_region
      %64 = vsyncadd [#allocation9], 0
      %s65 = sshll.u32 %s4, 4
      %s66 = int_to_ptr.hbm [resolvable:$true] %s65
      %s67 = sshll.u32 [#allocation8], 4
      %s68 = int_to_ptr.vmem [resolvable:$true] %s67
      %73 = dma.hbm_to_vmem [thread:$0]  %s66, 1024, %s68, [#allocation9], 64, 64, 4
    $region21: #{_lambda_.1} parent=1 // pred_fallthru
      _
    // Predicated region
    $region22: #{_lambda_.1} parent=1 // pred_check
      _
    $region23: #{_lambda_.1} parent=1 // pred_check_branch
      %75 = sbr.rel (0) target = $region25
    $region24: #{_lambda_.1} parent=1 // pred_region
      _
    $region25: #{_lambda_.1} parent=1 // pred_fallthru
      _
    // Predicated region
    $region26: #{_lambda_.1} parent=1 // pred_check
      _
    $region27: #{_lambda_.1} parent=1 // pred_check_branch
      %77 = sbr.rel (0) target = $region29
    $region28: #{_lambda_.1} parent=1 // pred_region
      _
    $region29: #{_lambda_.1} parent=1 // pred_fallthru
      _
    // Predicated region
    $region30: #{_lambda_.1} parent=1 // pred_check
      _
    $region31: #{_lambda_.1} parent=1 // pred_check_branch
      %79 = sbr.rel (0) target = $region33
    $region32: #{_lambda_.1} parent=1 // pred_region
      %81 = vsyncadd [#allocation9], 0
      %s83 = sshll.u32 %s7, 4
      %s84 = int_to_ptr.hbm [resolvable:$true] %s83
      %s85 = sshll.u32 [#allocation10], 4
      %s86 = int_to_ptr.vmem [resolvable:$true] %s85
      %88 = dma.hbm_to_vmem [thread:$0]  %s84, 16, %s86, [#allocation9]
    $region33: #{_lambda_.1} parent=1 // pred_fallthru
      _
    // Predicated region
    $region34: #{_lambda_.1} parent=1 // pred_check
      _
    $region35: #{_lambda_.1} parent=1 // pred_check_branch
      %90 = sbr.rel (0) target = $region37
    $region36: #{_lambda_.1} parent=1 // pred_region
      %92 = vsyncadd [#allocation12], 0
      %s93 = sshll.u32 %s8, 4
      %s94 = int_to_ptr.hbm [resolvable:$true] %s93
      %s95 = sshll.u32 [#allocation11], 4
      %s96 = int_to_ptr.vmem [resolvable:$true] %s95
      %101 = dma.hbm_to_vmem [thread:$0]  %s94, 1024, %s96, [#allocation12], 64, 64, 4
    $region37: #{_lambda_.1} parent=1 // pred_fallthru
      _
    // Predicated region
    $region38: #{_lambda_.1} parent=1 // pred_check
      _
    $region39: #{_lambda_.1} parent=1 // pred_check_branch
      %103 = sbr.rel (0) target = $region41
    $region40: #{_lambda_.1} parent=1 // pred_region
      %105 = vsyncadd [#allocation12], 0
      %s107 = sshll.u32 %s9, 4
      %s108 = int_to_ptr.hbm [resolvable:$true] %s107
      %s109 = sshll.u32 [#allocation13], 4
      %s110 = int_to_ptr.vmem [resolvable:$true] %s109
      %112 = dma.hbm_to_vmem [thread:$0]  %s108, 16, %s110, [#allocation12]
    $region41: #{_lambda_.1} parent=1 // pred_fallthru
      _
    // Predicated region
    $region42: #{_lambda_.1} parent=1 // pred_check
      _
    $region43: #{_lambda_.1} parent=1 // pred_check_branch
      %114 = sbr.rel (0) target = $region45
    $region44: #{_lambda_.1} parent=1 // pred_region
      %116 = dma.done [#allocation3], 16384
    $region45: #{_lambda_.1} parent=1 // pred_fallthru
      _
    // Predicated region
    $region46: #{_lambda_.1} parent=1 // pred_check
      _
    $region47: #{_lambda_.1} parent=1 // pred_check_branch
      %118 = sbr.rel (0) target = $region49
    $region48: #{_lambda_.1} parent=1 // pred_region
      %120 = dma.done [#allocation6], 1024
    $region49: #{_lambda_.1} parent=1 // pred_fallthru
      _
    // Predicated region
    $region50: #{_lambda_.1} parent=1 // pred_check
      _
    $region51: #{_lambda_.1} parent=1 // pred_check_branch
      %122 = sbr.rel (0) target = $region53
    $region52: #{_lambda_.1} parent=1 // pred_region
      %124 = dma.done [#allocation6], 1024
    $region53: #{_lambda_.1} parent=1 // pred_fallthru
      _
    // Predicated region
    $region54: #{_lambda_.1} parent=1 // pred_check
      _
    $region55: #{_lambda_.1} parent=1 // pred_check_branch
      %126 = sbr.rel (0) target = $region57
    $region56: #{_lambda_.1} parent=1 // pred_region
      %128 = dma.done [#allocation9], 1024
    $region57: #{_lambda_.1} parent=1 // pred_fallthru
      _
    // Predicated region
    $region58: #{_lambda_.1} parent=1 // pred_check
      _
    $region59: #{_lambda_.1} parent=1 // pred_check_branch
      %130 = sbr.rel (0) target = $region61
    $region60: #{_lambda_.1} parent=1 // pred_region
      %132 = dma.done [#allocation9], 16
    $region61: #{_lambda_.1} parent=1 // pred_fallthru
      _
    // Predicated region
    $region62: #{_lambda_.1} parent=1 // pred_check
      _
    $region63: #{_lambda_.1} parent=1 // pred_check_branch
      %134 = sbr.rel (0) target = $region65
    $region64: #{_lambda_.1} parent=1 // pred_region
      %136 = dma.done [#allocation12], 1024
    $region65: #{_lambda_.1} parent=1 // pred_fallthru
      _
    // Predicated region
    $region66: #{_lambda_.1} parent=1 // pred_check
      _
    $region67: #{_lambda_.1} parent=1 // pred_check_branch
      %138 = sbr.rel (0) target = $region69
    $region68: #{_lambda_.1} parent=1 // pred_region
      %140 = dma.done [#allocation12], 16
    $region69: #{_lambda_.1} parent=1 // pred_fallthru
      _
    %v141 = vld [vmem:[#allocation2] sm:$0xff]
    %v142 = vld [vmem:[#allocation2 + $0x8] sm:$0xff]
    %v143 = vld [vmem:[#allocation2 + $0x10] sm:$0xff]
    %v144 = vld [vmem:[#allocation2 + $0x18] sm:$0xff]
    %v145 = vld [vmem:[#allocation2 + $0x20] sm:$0xff]
    %v146 = vld [vmem:[#allocation2 + $0x28] sm:$0xff]
    %v147 = vld [vmem:[#allocation2 + $0x30] sm:$0xff]
    %v148 = vld [vmem:[#allocation2 + $0x38] sm:$0xff]
    %v149 = vld [vmem:[#allocation2 + $0x40] sm:$0xff]
    %v150 = vld [vmem:[#allocation2 + $0x48] sm:$0xff]
    %v151 = vld [vmem:[#allocation2 + $0x50] sm:$0xff]
    %v152 = vld [vmem:[#allocation2 + $0x58] sm:$0xff]
    %v153 = vld [vmem:[#allocation2 + $0x60] sm:$0xff]
    %v154 = vld [vmem:[#allocation2 + $0x68] sm:$0xff]
    %v155 = vld [vmem:[#allocation2 + $0x70] sm:$0xff]
    %v156 = vld [vmem:[#allocation2 + $0x78] sm:$0xff]
    %v157 = vld [vmem:[#allocation2 + $0x80] sm:$0xff]
    %v158 = vld [vmem:[#allocation2 + $0x88] sm:$0xff]
    %v159 = vld [vmem:[#allocation2 + $0x90] sm:$0xff]
    %v160 = vld [vmem:[#allocation2 + $0x98] sm:$0xff]
    %v161 = vld [vmem:[#allocation2 + $0xa0] sm:$0xff]
    %v162 = vld [vmem:[#allocation2 + $0xa8] sm:$0xff]
    %v163 = vld [vmem:[#allocation2 + $0xb0] sm:$0xff]
    %v164 = vld [vmem:[#allocation2 + $0xb8] sm:$0xff]
    %v165 = vld [vmem:[#allocation2 + $0xc0] sm:$0xff]
    %v166 = vld [vmem:[#allocation2 + $0xc8] sm:$0xff]
    %v167 = vld [vmem:[#allocation2 + $0xd0] sm:$0xff]
    %v168 = vld [vmem:[#allocation2 + $0xd8] sm:$0xff]
    %v169 = vld [vmem:[#allocation2 + $0xe0] sm:$0xff]
    %v170 = vld [vmem:[#allocation2 + $0xe8] sm:$0xff]
    %v171 = vld [vmem:[#allocation2 + $0xf0] sm:$0xff]
    %v172 = vld [vmem:[#allocation2 + $0xf8] sm:$0xff]
    %v173 = vld [vmem:[#allocation2 + $0x100] sm:$0xff]
    %v174 = vld [vmem:[#allocation2 + $0x108] sm:$0xff]
    %v175 = vld [vmem:[#allocation2 + $0x110] sm:$0xff]
    %v176 = vld [vmem:[#allocation2 + $0x118] sm:$0xff]
    %v177 = vld [vmem:[#allocation2 + $0x120] sm:$0xff]
    %v178 = vld [vmem:[#allocation2 + $0x128] sm:$0xff]
    %v179 = vld [vmem:[#allocation2 + $0x130] sm:$0xff]
    %v180 = vld [vmem:[#allocation2 + $0x138] sm:$0xff]
    %v181 = vld [vmem:[#allocation2 + $0x140] sm:$0xff]
    %v182 = vld [vmem:[#allocation2 + $0x148] sm:$0xff]
    %v183 = vld [vmem:[#allocation2 + $0x150] sm:$0xff]
    %v184 = vld [vmem:[#allocation2 + $0x158] sm:$0xff]
    %v185 = vld [vmem:[#allocation2 + $0x160] sm:$0xff]
    %v186 = vld [vmem:[#allocation2 + $0x168] sm:$0xff]
    %v187 = vld [vmem:[#allocation2 + $0x170] sm:$0xff]
    %v188 = vld [vmem:[#allocation2 + $0x178] sm:$0xff]
    %v189 = vld [vmem:[#allocation2 + $0x180] sm:$0xff]
    %v190 = vld [vmem:[#allocation2 + $0x188] sm:$0xff]
    %v191 = vld [vmem:[#allocation2 + $0x190] sm:$0xff]
    %v192 = vld [vmem:[#allocation2 + $0x198] sm:$0xff]
    %v193 = vld [vmem:[#allocation2 + $0x1a0] sm:$0xff]
    %v194 = vld [vmem:[#allocation2 + $0x1a8] sm:$0xff]
    %v195 = vld [vmem:[#allocation2 + $0x1b0] sm:$0xff]
    %v196 = vld [vmem:[#allocation2 + $0x1b8] sm:$0xff]
    %v197 = vld [vmem:[#allocation2 + $0x1c0] sm:$0xff]
    %v198 = vld [vmem:[#allocation2 + $0x1c8] sm:$0xff]
    %v199 = vld [vmem:[#allocation2 + $0x1d0] sm:$0xff]
    %v200 = vld [vmem:[#allocation2 + $0x1d8] sm:$0xff]
    %v201 = vld [vmem:[#allocation2 + $0x1e0] sm:$0xff]
    %v202 = vld [vmem:[#allocation2 + $0x1e8] sm:$0xff]
    %v203 = vld [vmem:[#allocation2 + $0x1f0] sm:$0xff]
    %v204 = vld [vmem:[#allocation2 + $0x1f8] sm:$0xff]
    %v205 = vld [vmem:[#allocation2 + $0x200] sm:$0xff]
    %v206 = vld [vmem:[#allocation2 + $0x208] sm:$0xff]
    %v207 = vld [vmem:[#allocation2 + $0x210] sm:$0xff]
    %v208 = vld [vmem:[#allocation2 + $0x218] sm:$0xff]
    %v209 = vld [vmem:[#allocation2 + $0x220] sm:$0xff]
    %v210 = vld [vmem:[#allocation2 + $0x228] sm:$0xff]
    %v211 = vld [vmem:[#allocation2 + $0x230] sm:$0xff]
    %v212 = vld [vmem:[#allocation2 + $0x238] sm:$0xff]
    %v213 = vld [vmem:[#allocation2 + $0x240] sm:$0xff]
    %v214 = vld [vmem:[#allocation2 + $0x248] sm:$0xff]
    %v215 = vld [vmem:[#allocation2 + $0x250] sm:$0xff]
    %v216 = vld [vmem:[#allocation2 + $0x258] sm:$0xff]
    %v217 = vld [vmem:[#allocation2 + $0x260] sm:$0xff]
    %v218 = vld [vmem:[#allocation2 + $0x268] sm:$0xff]
    %v219 = vld [vmem:[#allocation2 + $0x270] sm:$0xff]
    %v220 = vld [vmem:[#allocation2 + $0x278] sm:$0xff]
    %v221 = vld [vmem:[#allocation2 + $0x280] sm:$0xff]
    %v222 = vld [vmem:[#allocation2 + $0x288] sm:$0xff]
    %v223 = vld [vmem:[#allocation2 + $0x290] sm:$0xff]
    %v224 = vld [vmem:[#allocation2 + $0x298] sm:$0xff]
    %v225 = vld [vmem:[#allocation2 + $0x2a0] sm:$0xff]
    %v226 = vld [vmem:[#allocation2 + $0x2a8] sm:$0xff]
    %v227 = vld [vmem:[#allocation2 + $0x2b0] sm:$0xff]
    %v228 = vld [vmem:[#allocation2 + $0x2b8] sm:$0xff]
    %v229 = vld [vmem:[#allocation2 + $0x2c0] sm:$0xff]
    %v230 = vld [vmem:[#allocation2 + $0x2c8] sm:$0xff]
    %v231 = vld [vmem:[#allocation2 + $0x2d0] sm:$0xff]
    %v232 = vld [vmem:[#allocation2 + $0x2d8] sm:$0xff]
    %v233 = vld [vmem:[#allocation2 + $0x2e0] sm:$0xff]
    %v234 = vld [vmem:[#allocation2 + $0x2e8] sm:$0xff]
    %v235 = vld [vmem:[#allocation2 + $0x2f0] sm:$0xff]
    %v236 = vld [vmem:[#allocation2 + $0x2f8] sm:$0xff]
    %v237 = vld [vmem:[#allocation2 + $0x300] sm:$0xff]
    %v238 = vld [vmem:[#allocation2 + $0x308] sm:$0xff]
    %v239 = vld [vmem:[#allocation2 + $0x310] sm:$0xff]
    %v240 = vld [vmem:[#allocation2 + $0x318] sm:$0xff]
    %v241 = vld [vmem:[#allocation2 + $0x320] sm:$0xff]
    %v242 = vld [vmem:[#allocation2 + $0x328] sm:$0xff]
    %v243 = vld [vmem:[#allocation2 + $0x330] sm:$0xff]
    %v244 = vld [vmem:[#allocation2 + $0x338] sm:$0xff]
    %v245 = vld [vmem:[#allocation2 + $0x340] sm:$0xff]
    %v246 = vld [vmem:[#allocation2 + $0x348] sm:$0xff]
    %v247 = vld [vmem:[#allocation2 + $0x350] sm:$0xff]
    %v248 = vld [vmem:[#allocation2 + $0x358] sm:$0xff]
    %v249 = vld [vmem:[#allocation2 + $0x360] sm:$0xff]
    %v250 = vld [vmem:[#allocation2 + $0x368] sm:$0xff]
    %v251 = vld [vmem:[#allocation2 + $0x370] sm:$0xff]
    %v252 = vld [vmem:[#allocation2 + $0x378] sm:$0xff]
    %v253 = vld [vmem:[#allocation2 + $0x380] sm:$0xff]
    %v254 = vld [vmem:[#allocation2 + $0x388] sm:$0xff]
    %v255 = vld [vmem:[#allocation2 + $0x390] sm:$0xff]
    %v256 = vld [vmem:[#allocation2 + $0x398] sm:$0xff]
    %v257 = vld [vmem:[#allocation2 + $0x3a0] sm:$0xff]
    %v258 = vld [vmem:[#allocation2 + $0x3a8] sm:$0xff]
    %v259 = vld [vmem:[#allocation2 + $0x3b0] sm:$0xff]
    %v260 = vld [vmem:[#allocation2 + $0x3b8] sm:$0xff]
    %v261 = vld [vmem:[#allocation2 + $0x3c0] sm:$0xff]
    %v262 = vld [vmem:[#allocation2 + $0x3c8] sm:$0xff]
    %v263 = vld [vmem:[#allocation2 + $0x3d0] sm:$0xff]
    %v264 = vld [vmem:[#allocation2 + $0x3d8] sm:$0xff]
    %v265 = vld [vmem:[#allocation2 + $0x3e0] sm:$0xff]
    %v266 = vld [vmem:[#allocation2 + $0x3e8] sm:$0xff]
    %v267 = vld [vmem:[#allocation2 + $0x3f0] sm:$0xff]
    %v268 = vld [vmem:[#allocation2 + $0x3f8] sm:$0xff]
    %v269 = vmul.f32 %v141, %v141
    %v270 = vmul.f32 %v142, %v142
    %v271 = vmul.f32 %v143, %v143
    %v272 = vmul.f32 %v144, %v144
    %v273 = vmul.f32 %v145, %v145
    %v274 = vmul.f32 %v146, %v146
    %v275 = vmul.f32 %v147, %v147
    %v276 = vmul.f32 %v148, %v148
    %v277 = vmul.f32 %v149, %v149
    %v278 = vmul.f32 %v150, %v150
    %v279 = vmul.f32 %v151, %v151
    %v280 = vmul.f32 %v152, %v152
    %v281 = vmul.f32 %v153, %v153
    %v282 = vmul.f32 %v154, %v154
    %v283 = vmul.f32 %v155, %v155
    %v284 = vmul.f32 %v156, %v156
    %v285 = vmul.f32 %v157, %v157
    %v286 = vmul.f32 %v158, %v158
    %v287 = vmul.f32 %v159, %v159
    %v288 = vmul.f32 %v160, %v160
    %v289 = vmul.f32 %v161, %v161
    %v290 = vmul.f32 %v162, %v162
    %v291 = vmul.f32 %v163, %v163
    %v292 = vmul.f32 %v164, %v164
    %v293 = vmul.f32 %v165, %v165
    %v294 = vmul.f32 %v166, %v166
    %v295 = vmul.f32 %v167, %v167
    %v296 = vmul.f32 %v168, %v168
    %v297 = vmul.f32 %v169, %v169
    %v298 = vmul.f32 %v170, %v170
    %v299 = vmul.f32 %v171, %v171
    %v300 = vmul.f32 %v172, %v172
    %v301 = vmul.f32 %v173, %v173
    %v302 = vmul.f32 %v174, %v174
    %v303 = vmul.f32 %v175, %v175
    %v304 = vmul.f32 %v176, %v176
    %v305 = vmul.f32 %v177, %v177
    %v306 = vmul.f32 %v178, %v178
    %v307 = vmul.f32 %v179, %v179
    %v308 = vmul.f32 %v180, %v180
    %v309 = vmul.f32 %v181, %v181
    %v310 = vmul.f32 %v182, %v182
    %v311 = vmul.f32 %v183, %v183
    %v312 = vmul.f32 %v184, %v184
    %v313 = vmul.f32 %v185, %v185
    %v314 = vmul.f32 %v186, %v186
    %v315 = vmul.f32 %v187, %v187
    %v316 = vmul.f32 %v188, %v188
    %v317 = vmul.f32 %v189, %v189
    %v318 = vmul.f32 %v190, %v190
    %v319 = vmul.f32 %v191, %v191
    %v320 = vmul.f32 %v192, %v192
    %v321 = vmul.f32 %v193, %v193
    %v322 = vmul.f32 %v194, %v194
    %v323 = vmul.f32 %v195, %v195
    %v324 = vmul.f32 %v196, %v196
    %v325 = vmul.f32 %v197, %v197
    %v326 = vmul.f32 %v198, %v198
    %v327 = vmul.f32 %v199, %v199
    %v328 = vmul.f32 %v200, %v200
    %v329 = vmul.f32 %v201, %v201
    %v330 = vmul.f32 %v202, %v202
    %v331 = vmul.f32 %v203, %v203
    %v332 = vmul.f32 %v204, %v204
    %v333 = vmul.f32 %v205, %v205
    %v334 = vmul.f32 %v206, %v206
    %v335 = vmul.f32 %v207, %v207
    %v336 = vmul.f32 %v208, %v208
    %v337 = vmul.f32 %v209, %v209
    %v338 = vmul.f32 %v210, %v210
    %v339 = vmul.f32 %v211, %v211
    %v340 = vmul.f32 %v212, %v212
    %v341 = vmul.f32 %v213, %v213
    %v342 = vmul.f32 %v214, %v214
    %v343 = vmul.f32 %v215, %v215
    %v344 = vmul.f32 %v216, %v216
    %v345 = vmul.f32 %v217, %v217
    %v346 = vmul.f32 %v218, %v218
    %v347 = vmul.f32 %v219, %v219
    %v348 = vmul.f32 %v220, %v220
    %v349 = vmul.f32 %v221, %v221
    %v350 = vmul.f32 %v222, %v222
    %v351 = vmul.f32 %v223, %v223
    %v352 = vmul.f32 %v224, %v224
    %v353 = vmul.f32 %v225, %v225
    %v354 = vmul.f32 %v226, %v226
    %v355 = vmul.f32 %v227, %v227
    %v356 = vmul.f32 %v228, %v228
    %v357 = vmul.f32 %v229, %v229
    %v358 = vmul.f32 %v230, %v230
    %v359 = vmul.f32 %v231, %v231
    %v360 = vmul.f32 %v232, %v232
    %v361 = vmul.f32 %v233, %v233
    %v362 = vmul.f32 %v234, %v234
    %v363 = vmul.f32 %v235, %v235
    %v364 = vmul.f32 %v236, %v236
    %v365 = vmul.f32 %v237, %v237
    %v366 = vmul.f32 %v238, %v238
    %v367 = vmul.f32 %v239, %v239
    %v368 = vmul.f32 %v240, %v240
    %v369 = vmul.f32 %v241, %v241
    %v370 = vmul.f32 %v242, %v242
    %v371 = vmul.f32 %v243, %v243
    %v372 = vmul.f32 %v244, %v244
    %v373 = vmul.f32 %v245, %v245
    %v374 = vmul.f32 %v246, %v246
    %v375 = vmul.f32 %v247, %v247
    %v376 = vmul.f32 %v248, %v248
    %v377 = vmul.f32 %v249, %v249
    %v378 = vmul.f32 %v250, %v250
    %v379 = vmul.f32 %v251, %v251
    %v380 = vmul.f32 %v252, %v252
    %v381 = vmul.f32 %v253, %v253
    %v382 = vmul.f32 %v254, %v254
    %v383 = vmul.f32 %v255, %v255
    %v384 = vmul.f32 %v256, %v256
    %v385 = vmul.f32 %v257, %v257
    %v386 = vmul.f32 %v258, %v258
    %v387 = vmul.f32 %v259, %v259
    %v388 = vmul.f32 %v260, %v260
    %v389 = vmul.f32 %v261, %v261
    %v390 = vmul.f32 %v262, %v262
    %v391 = vmul.f32 %v263, %v263
    %v392 = vmul.f32 %v264, %v264
    %v393 = vmul.f32 %v265, %v265
    %v394 = vmul.f32 %v266, %v266
    %v395 = vmul.f32 %v267, %v267
    %v396 = vmul.f32 %v268, %v268
    %397 = vadd.xlane.f32.xlu0 %v269
    %v398 = vpop.xlane.xlu0 %397
    %399 = vadd.xlane.f32.xlu0 %v270
    %v400 = vpop.xlane.xlu0 %399
    %401 = vadd.xlane.f32.xlu0 %v271
    %v402 = vpop.xlane.xlu0 %401
    %403 = vadd.xlane.f32.xlu0 %v272
    %v404 = vpop.xlane.xlu0 %403
    %405 = vadd.xlane.f32.xlu0 %v273
    %v406 = vpop.xlane.xlu0 %405
    %407 = vadd.xlane.f32.xlu0 %v274
    %v408 = vpop.xlane.xlu0 %407
    %409 = vadd.xlane.f32.xlu0 %v275
    %v410 = vpop.xlane.xlu0 %409
    %411 = vadd.xlane.f32.xlu0 %v276
    %v412 = vpop.xlane.xlu0 %411
    %413 = vadd.xlane.f32.xlu0 %v277
    %v414 = vpop.xlane.xlu0 %413
    %415 = vadd.xlane.f32.xlu0 %v278
    %v416 = vpop.xlane.xlu0 %415
    %417 = vadd.xlane.f32.xlu0 %v279
    %v418 = vpop.xlane.xlu0 %417
    %419 = vadd.xlane.f32.xlu0 %v280
    %v420 = vpop.xlane.xlu0 %419
    %421 = vadd.xlane.f32.xlu0 %v281
    %v422 = vpop.xlane.xlu0 %421
    %423 = vadd.xlane.f32.xlu0 %v282
    %v424 = vpop.xlane.xlu0 %423
    %425 = vadd.xlane.f32.xlu0 %v283
    %v426 = vpop.xlane.xlu0 %425
    %427 = vadd.xlane.f32.xlu0 %v284
    %v428 = vpop.xlane.xlu0 %427
    %429 = vadd.xlane.f32.xlu0 %v285
    %v430 = vpop.xlane.xlu0 %429
    %431 = vadd.xlane.f32.xlu0 %v286
    %v432 = vpop.xlane.xlu0 %431
    %433 = vadd.xlane.f32.xlu0 %v287
    %v434 = vpop.xlane.xlu0 %433
    %435 = vadd.xlane.f32.xlu0 %v288
    %v436 = vpop.xlane.xlu0 %435
    %437 = vadd.xlane.f32.xlu0 %v289
    %v438 = vpop.xlane.xlu0 %437
    %439 = vadd.xlane.f32.xlu0 %v290
    %v440 = vpop.xlane.xlu0 %439
    %441 = vadd.xlane.f32.xlu0 %v291
    %v442 = vpop.xlane.xlu0 %441
    %443 = vadd.xlane.f32.xlu0 %v292
    %v444 = vpop.xlane.xlu0 %443
    %445 = vadd.xlane.f32.xlu0 %v293
    %v446 = vpop.xlane.xlu0 %445
    %447 = vadd.xlane.f32.xlu0 %v294
    %v448 = vpop.xlane.xlu0 %447
    %449 = vadd.xlane.f32.xlu0 %v295
    %v450 = vpop.xlane.xlu0 %449
    %451 = vadd.xlane.f32.xlu0 %v296
    %v452 = vpop.xlane.xlu0 %451
    %453 = vadd.xlane.f32.xlu0 %v297
    %v454 = vpop.xlane.xlu0 %453
    %455 = vadd.xlane.f32.xlu0 %v298
    %v456 = vpop.xlane.xlu0 %455
    %457 = vadd.xlane.f32.xlu0 %v299
    %v458 = vpop.xlane.xlu0 %457
    %459 = vadd.xlane.f32.xlu0 %v300
    %v460 = vpop.xlane.xlu0 %459
    %461 = vadd.xlane.f32.xlu0 %v301
    %v462 = vpop.xlane.xlu0 %461
    %463 = vadd.xlane.f32.xlu0 %v302
    %v464 = vpop.xlane.xlu0 %463
    %465 = vadd.xlane.f32.xlu0 %v303
    %v466 = vpop.xlane.xlu0 %465
    %467 = vadd.xlane.f32.xlu0 %v304
    %v468 = vpop.xlane.xlu0 %467
    %469 = vadd.xlane.f32.xlu0 %v305
    %v470 = vpop.xlane.xlu0 %469
    %471 = vadd.xlane.f32.xlu0 %v306
    %v472 = vpop.xlane.xlu0 %471
    %473 = vadd.xlane.f32.xlu0 %v307
    %v474 = vpop.xlane.xlu0 %473
    %475 = vadd.xlane.f32.xlu0 %v308
    %v476 = vpop.xlane.xlu0 %475
    %477 = vadd.xlane.f32.xlu0 %v309
    %v478 = vpop.xlane.xlu0 %477
    %479 = vadd.xlane.f32.xlu0 %v310
    %v480 = vpop.xlane.xlu0 %479
    %481 = vadd.xlane.f32.xlu0 %v311
    %v482 = vpop.xlane.xlu0 %481
    %483 = vadd.xlane.f32.xlu0 %v312
    %v484 = vpop.xlane.xlu0 %483
    %485 = vadd.xlane.f32.xlu0 %v313
    %v486 = vpop.xlane.xlu0 %485
    %487 = vadd.xlane.f32.xlu0 %v314
    %v488 = vpop.xlane.xlu0 %487
    %489 = vadd.xlane.f32.xlu0 %v315
    %v490 = vpop.xlane.xlu0 %489
    %491 = vadd.xlane.f32.xlu0 %v316
    %v492 = vpop.xlane.xlu0 %491
    %493 = vadd.xlane.f32.xlu0 %v317
    %v494 = vpop.xlane.xlu0 %493
    %495 = vadd.xlane.f32.xlu0 %v318
    %v496 = vpop.xlane.xlu0 %495
    %497 = vadd.xlane.f32.xlu0 %v319
    %v498 = vpop.xlane.xlu0 %497
    %499 = vadd.xlane.f32.xlu0 %v320
    %v500 = vpop.xlane.xlu0 %499
    %501 = vadd.xlane.f32.xlu0 %v321
    %v502 = vpop.xlane.xlu0 %501
    %503 = vadd.xlane.f32.xlu0 %v322
    %v504 = vpop.xlane.xlu0 %503
    %505 = vadd.xlane.f32.xlu0 %v323
    %v506 = vpop.xlane.xlu0 %505
    %507 = vadd.xlane.f32.xlu0 %v324
    %v508 = vpop.xlane.xlu0 %507
    %509 = vadd.xlane.f32.xlu0 %v325
    %v510 = vpop.xlane.xlu0 %509
    %511 = vadd.xlane.f32.xlu0 %v326
    %v512 = vpop.xlane.xlu0 %511
    %513 = vadd.xlane.f32.xlu0 %v327
    %v514 = vpop.xlane.xlu0 %513
    %515 = vadd.xlane.f32.xlu0 %v328
    %v516 = vpop.xlane.xlu0 %515
    %517 = vadd.xlane.f32.xlu0 %v329
    %v518 = vpop.xlane.xlu0 %517
    %519 = vadd.xlane.f32.xlu0 %v330
    %v520 = vpop.xlane.xlu0 %519
    %521 = vadd.xlane.f32.xlu0 %v331
    %v522 = vpop.xlane.xlu0 %521
    %523 = vadd.xlane.f32.xlu0 %v332
    %v524 = vpop.xlane.xlu0 %523
    %525 = vadd.xlane.f32.xlu0 %v333
    %v526 = vpop.xlane.xlu0 %525
    %527 = vadd.xlane.f32.xlu0 %v334
    %v528 = vpop.xlane.xlu0 %527
    %529 = vadd.xlane.f32.xlu0 %v335
    %v530 = vpop.xlane.xlu0 %529
    %531 = vadd.xlane.f32.xlu0 %v336
    %v532 = vpop.xlane.xlu0 %531
    %533 = vadd.xlane.f32.xlu0 %v337
    %v534 = vpop.xlane.xlu0 %533
    %535 = vadd.xlane.f32.xlu0 %v338
    %v536 = vpop.xlane.xlu0 %535
    %537 = vadd.xlane.f32.xlu0 %v339
    %v538 = vpop.xlane.xlu0 %537
    %539 = vadd.xlane.f32.xlu0 %v340
    %v540 = vpop.xlane.xlu0 %539
    %541 = vadd.xlane.f32.xlu0 %v341
    %v542 = vpop.xlane.xlu0 %541
    %543 = vadd.xlane.f32.xlu0 %v342
    %v544 = vpop.xlane.xlu0 %543
    %545 = vadd.xlane.f32.xlu0 %v343
    %v546 = vpop.xlane.xlu0 %545
    %547 = vadd.xlane.f32.xlu0 %v344
    %v548 = vpop.xlane.xlu0 %547
    %549 = vadd.xlane.f32.xlu0 %v345
    %v550 = vpop.xlane.xlu0 %549
    %551 = vadd.xlane.f32.xlu0 %v346
    %v552 = vpop.xlane.xlu0 %551
    %553 = vadd.xlane.f32.xlu0 %v347
    %v554 = vpop.xlane.xlu0 %553
    %555 = vadd.xlane.f32.xlu0 %v348
    %v556 = vpop.xlane.xlu0 %555
    %557 = vadd.xlane.f32.xlu0 %v349
    %v558 = vpop.xlane.xlu0 %557
    %559 = vadd.xlane.f32.xlu0 %v350
    %v560 = vpop.xlane.xlu0 %559
    %561 = vadd.xlane.f32.xlu0 %v351
    %v562 = vpop.xlane.xlu0 %561
    %563 = vadd.xlane.f32.xlu0 %v352
    %v564 = vpop.xlane.xlu0 %563
    %565 = vadd.xlane.f32.xlu0 %v353
    %v566 = vpop.xlane.xlu0 %565
    %567 = vadd.xlane.f32.xlu0 %v354
    %v568 = vpop.xlane.xlu0 %567
    %569 = vadd.xlane.f32.xlu0 %v355
    %v570 = vpop.xlane.xlu0 %569
    %571 = vadd.xlane.f32.xlu0 %v356
    %v572 = vpop.xlane.xlu0 %571
    %573 = vadd.xlane.f32.xlu0 %v357
    %v574 = vpop.xlane.xlu0 %573
    %575 = vadd.xlane.f32.xlu0 %v358
    %v576 = vpop.xlane.xlu0 %575
    %577 = vadd.xlane.f32.xlu0 %v359
    %v578 = vpop.xlane.xlu0 %577
    %579 = vadd.xlane.f32.xlu0 %v360
    %v580 = vpop.xlane.xlu0 %579
    %581 = vadd.xlane.f32.xlu0 %v361
    %v582 = vpop.xlane.xlu0 %581
    %583 = vadd.xlane.f32.xlu0 %v362
    %v584 = vpop.xlane.xlu0 %583
    %585 = vadd.xlane.f32.xlu0 %v363
    %v586 = vpop.xlane.xlu0 %585
    %587 = vadd.xlane.f32.xlu0 %v364
    %v588 = vpop.xlane.xlu0 %587
    %589 = vadd.xlane.f32.xlu0 %v365
    %v590 = vpop.xlane.xlu0 %589
    %591 = vadd.xlane.f32.xlu0 %v366
    %v592 = vpop.xlane.xlu0 %591
    %593 = vadd.xlane.f32.xlu0 %v367
    %v594 = vpop.xlane.xlu0 %593
    %595 = vadd.xlane.f32.xlu0 %v368
    %v596 = vpop.xlane.xlu0 %595
    %597 = vadd.xlane.f32.xlu0 %v369
    %v598 = vpop.xlane.xlu0 %597
    %599 = vadd.xlane.f32.xlu0 %v370
    %v600 = vpop.xlane.xlu0 %599
    %601 = vadd.xlane.f32.xlu0 %v371
    %v602 = vpop.xlane.xlu0 %601
    %603 = vadd.xlane.f32.xlu0 %v372
    %v604 = vpop.xlane.xlu0 %603
    %605 = vadd.xlane.f32.xlu0 %v373
    %v606 = vpop.xlane.xlu0 %605
    %607 = vadd.xlane.f32.xlu0 %v374
    %v608 = vpop.xlane.xlu0 %607
    %609 = vadd.xlane.f32.xlu0 %v375
    %v610 = vpop.xlane.xlu0 %609
    %611 = vadd.xlane.f32.xlu0 %v376
    %v612 = vpop.xlane.xlu0 %611
    %613 = vadd.xlane.f32.xlu0 %v377
    %v614 = vpop.xlane.xlu0 %613
    %615 = vadd.xlane.f32.xlu0 %v378
    %v616 = vpop.xlane.xlu0 %615
    %617 = vadd.xlane.f32.xlu0 %v379
    %v618 = vpop.xlane.xlu0 %617
    %619 = vadd.xlane.f32.xlu0 %v380
    %v620 = vpop.xlane.xlu0 %619
    %621 = vadd.xlane.f32.xlu0 %v381
    %v622 = vpop.xlane.xlu0 %621
    %623 = vadd.xlane.f32.xlu0 %v382
    %v624 = vpop.xlane.xlu0 %623
    %625 = vadd.xlane.f32.xlu0 %v383
    %v626 = vpop.xlane.xlu0 %625
    %627 = vadd.xlane.f32.xlu0 %v384
    %v628 = vpop.xlane.xlu0 %627
    %629 = vadd.xlane.f32.xlu0 %v385
    %v630 = vpop.xlane.xlu0 %629
    %631 = vadd.xlane.f32.xlu0 %v386
    %v632 = vpop.xlane.xlu0 %631
    %633 = vadd.xlane.f32.xlu0 %v387
    %v634 = vpop.xlane.xlu0 %633
    %635 = vadd.xlane.f32.xlu0 %v388
    %v636 = vpop.xlane.xlu0 %635
    %637 = vadd.xlane.f32.xlu0 %v389
    %v638 = vpop.xlane.xlu0 %637
    %639 = vadd.xlane.f32.xlu0 %v390
    %v640 = vpop.xlane.xlu0 %639
    %641 = vadd.xlane.f32.xlu0 %v391
    %v642 = vpop.xlane.xlu0 %641
    %643 = vadd.xlane.f32.xlu0 %v392
    %v644 = vpop.xlane.xlu0 %643
    %645 = vadd.xlane.f32.xlu0 %v393
    %v646 = vpop.xlane.xlu0 %645
    %647 = vadd.xlane.f32.xlu0 %v394
    %v648 = vpop.xlane.xlu0 %647
    %649 = vadd.xlane.f32.xlu0 %v395
    %v650 = vpop.xlane.xlu0 %649
    %651 = vadd.xlane.f32.xlu0 %v396
    %v652 = vpop.xlane.xlu0 %651
    %v653 = vmax.f32 %v398, 1e-24
    %v654 = vmax.f32 %v400, 1e-24
    %v655 = vmax.f32 %v402, 1e-24
    %v656 = vmax.f32 %v404, 1e-24
    %v657 = vmax.f32 %v406, 1e-24
    %v658 = vmax.f32 %v408, 1e-24
    %v659 = vmax.f32 %v410, 1e-24
    %v660 = vmax.f32 %v412, 1e-24
    %v661 = vmax.f32 %v414, 1e-24
    %v662 = vmax.f32 %v416, 1e-24
    %v663 = vmax.f32 %v418, 1e-24
    %v664 = vmax.f32 %v420, 1e-24
    %v665 = vmax.f32 %v422, 1e-24
    %v666 = vmax.f32 %v424, 1e-24
    %v667 = vmax.f32 %v426, 1e-24
    %v668 = vmax.f32 %v428, 1e-24
    %v669 = vmax.f32 %v430, 1e-24
    %v670 = vmax.f32 %v432, 1e-24
    %v671 = vmax.f32 %v434, 1e-24
    %v672 = vmax.f32 %v436, 1e-24
    %v673 = vmax.f32 %v438, 1e-24
    %v674 = vmax.f32 %v440, 1e-24
    %v675 = vmax.f32 %v442, 1e-24
    %v676 = vmax.f32 %v444, 1e-24
    %v677 = vmax.f32 %v446, 1e-24
    %v678 = vmax.f32 %v448, 1e-24
    %v679 = vmax.f32 %v450, 1e-24
    %v680 = vmax.f32 %v452, 1e-24
    %v681 = vmax.f32 %v454, 1e-24
    %v682 = vmax.f32 %v456, 1e-24
    %v683 = vmax.f32 %v458, 1e-24
    %v684 = vmax.f32 %v460, 1e-24
    %v685 = vmax.f32 %v462, 1e-24
    %v686 = vmax.f32 %v464, 1e-24
    %v687 = vmax.f32 %v466, 1e-24
    %v688 = vmax.f32 %v468, 1e-24
    %v689 = vmax.f32 %v470, 1e-24
    %v690 = vmax.f32 %v472, 1e-24
    %v691 = vmax.f32 %v474, 1e-24
    %v692 = vmax.f32 %v476, 1e-24
    %v693 = vmax.f32 %v478, 1e-24
    %v694 = vmax.f32 %v480, 1e-24
    %v695 = vmax.f32 %v482, 1e-24
    %v696 = vmax.f32 %v484, 1e-24
    %v697 = vmax.f32 %v486, 1e-24
    %v698 = vmax.f32 %v488, 1e-24
    %v699 = vmax.f32 %v490, 1e-24
    %v700 = vmax.f32 %v492, 1e-24
    %v701 = vmax.f32 %v494, 1e-24
    %v702 = vmax.f32 %v496, 1e-24
    %v703 = vmax.f32 %v498, 1e-24
    %v704 = vmax.f32 %v500, 1e-24
    %v705 = vmax.f32 %v502, 1e-24
    %v706 = vmax.f32 %v504, 1e-24
    %v707 = vmax.f32 %v506, 1e-24
    %v708 = vmax.f32 %v508, 1e-24
    %v709 = vmax.f32 %v510, 1e-24
    %v710 = vmax.f32 %v512, 1e-24
    %v711 = vmax.f32 %v514, 1e-24
    %v712 = vmax.f32 %v516, 1e-24
    %v713 = vmax.f32 %v518, 1e-24
    %v714 = vmax.f32 %v520, 1e-24
    %v715 = vmax.f32 %v522, 1e-24
    %v716 = vmax.f32 %v524, 1e-24
    %v717 = vmax.f32 %v526, 1e-24
    %v718 = vmax.f32 %v528, 1e-24
    %v719 = vmax.f32 %v530, 1e-24
    %v720 = vmax.f32 %v532, 1e-24
    %v721 = vmax.f32 %v534, 1e-24
    %v722 = vmax.f32 %v536, 1e-24
    %v723 = vmax.f32 %v538, 1e-24
    %v724 = vmax.f32 %v540, 1e-24
    %v725 = vmax.f32 %v542, 1e-24
    %v726 = vmax.f32 %v544, 1e-24
    %v727 = vmax.f32 %v546, 1e-24
    %v728 = vmax.f32 %v548, 1e-24
    %v729 = vmax.f32 %v550, 1e-24
    %v730 = vmax.f32 %v552, 1e-24
    %v731 = vmax.f32 %v554, 1e-24
    %v732 = vmax.f32 %v556, 1e-24
    %v733 = vmax.f32 %v558, 1e-24
    %v734 = vmax.f32 %v560, 1e-24
    %v735 = vmax.f32 %v562, 1e-24
    %v736 = vmax.f32 %v564, 1e-24
    %v737 = vmax.f32 %v566, 1e-24
    %v738 = vmax.f32 %v568, 1e-24
    %v739 = vmax.f32 %v570, 1e-24
    %v740 = vmax.f32 %v572, 1e-24
    %v741 = vmax.f32 %v574, 1e-24
    %v742 = vmax.f32 %v576, 1e-24
    %v743 = vmax.f32 %v578, 1e-24
    %v744 = vmax.f32 %v580, 1e-24
    %v745 = vmax.f32 %v582, 1e-24
    %v746 = vmax.f32 %v584, 1e-24
    %v747 = vmax.f32 %v586, 1e-24
    %v748 = vmax.f32 %v588, 1e-24
    %v749 = vmax.f32 %v590, 1e-24
    %v750 = vmax.f32 %v592, 1e-24
    %v751 = vmax.f32 %v594, 1e-24
    %v752 = vmax.f32 %v596, 1e-24
    %v753 = vmax.f32 %v598, 1e-24
    %v754 = vmax.f32 %v600, 1e-24
    %v755 = vmax.f32 %v602, 1e-24
    %v756 = vmax.f32 %v604, 1e-24
    %v757 = vmax.f32 %v606, 1e-24
    %v758 = vmax.f32 %v608, 1e-24
    %v759 = vmax.f32 %v610, 1e-24
    %v760 = vmax.f32 %v612, 1e-24
    %v761 = vmax.f32 %v614, 1e-24
    %v762 = vmax.f32 %v616, 1e-24
    %v763 = vmax.f32 %v618, 1e-24
    %v764 = vmax.f32 %v620, 1e-24
    %v765 = vmax.f32 %v622, 1e-24
    %v766 = vmax.f32 %v624, 1e-24
    %v767 = vmax.f32 %v626, 1e-24
    %v768 = vmax.f32 %v628, 1e-24
    %v769 = vmax.f32 %v630, 1e-24
    %v770 = vmax.f32 %v632, 1e-24
    %v771 = vmax.f32 %v634, 1e-24
    %v772 = vmax.f32 %v636, 1e-24
    %v773 = vmax.f32 %v638, 1e-24
    %v774 = vmax.f32 %v640, 1e-24
    %v775 = vmax.f32 %v642, 1e-24
    %v776 = vmax.f32 %v644, 1e-24
    %v777 = vmax.f32 %v646, 1e-24
    %v778 = vmax.f32 %v648, 1e-24
    %v779 = vmax.f32 %v650, 1e-24
    %v780 = vmax.f32 %v652, 1e-24
    %v781 = vrsqrt.pop %v653
    %v782 = vmul.f32 %v781, %v653
    %v783 = vmul.f32 %v782, %v781
    %v784 = vmul.f32 0.5, %v783
    %v785 = vsub.f32 1.5, %v784
    %v786 = vmul.f32 %v781, %v785
    %vm787 = vweird.f32 %v653
    %vm788 = vweird.f32 %v781
    %vm789 = vmor %vm787, %vm788
    %v790 = vsel %vm789, %v781, %v786
    %v791 = vrsqrt.pop %v654
    %v792 = vmul.f32 %v791, %v654
    %v793 = vmul.f32 %v792, %v791
    %v794 = vmul.f32 0.5, %v793
    %v795 = vsub.f32 1.5, %v794
    %v796 = vmul.f32 %v791, %v795
    %vm797 = vweird.f32 %v654
    %vm798 = vweird.f32 %v791
    %vm799 = vmor %vm797, %vm798
    %v800 = vsel %vm799, %v791, %v796
    %v801 = vrsqrt.pop %v655
    %v802 = vmul.f32 %v801, %v655
    %v803 = vmul.f32 %v802, %v801
    %v804 = vmul.f32 0.5, %v803
    %v805 = vsub.f32 1.5, %v804
    %v806 = vmul.f32 %v801, %v805
    %vm807 = vweird.f32 %v655
    %vm808 = vweird.f32 %v801
    %vm809 = vmor %vm807, %vm808
    %v810 = vsel %vm809, %v801, %v806
    %v811 = vrsqrt.pop %v656
    %v812 = vmul.f32 %v811, %v656
    %v813 = vmul.f32 %v812, %v811
    %v814 = vmul.f32 0.5, %v813
    %v815 = vsub.f32 1.5, %v814
    %v816 = vmul.f32 %v811, %v815
    %vm817 = vweird.f32 %v656
    %vm818 = vweird.f32 %v811
    %vm819 = vmor %vm817, %vm818
    %v820 = vsel %vm819, %v811, %v816
    %v821 = vrsqrt.pop %v657
    %v822 = vmul.f32 %v821, %v657
    %v823 = vmul.f32 %v822, %v821
    %v824 = vmul.f32 0.5, %v823
    %v825 = vsub.f32 1.5, %v824
    %v826 = vmul.f32 %v821, %v825
    %vm827 = vweird.f32 %v657
    %vm828 = vweird.f32 %v821
    %vm829 = vmor %vm827, %vm828
    %v830 = vsel %vm829, %v821, %v826
    %v831 = vrsqrt.pop %v658
    %v832 = vmul.f32 %v831, %v658
    %v833 = vmul.f32 %v832, %v831
    %v834 = vmul.f32 0.5, %v833
    %v835 = vsub.f32 1.5, %v834
    %v836 = vmul.f32 %v831, %v835
    %vm837 = vweird.f32 %v658
    %vm838 = vweird.f32 %v831
    %vm839 = vmor %vm837, %vm838
    %v840 = vsel %vm839, %v831, %v836
    %v841 = vrsqrt.pop %v659
    %v842 = vmul.f32 %v841, %v659
    %v843 = vmul.f32 %v842, %v841
    %v844 = vmul.f32 0.5, %v843
    %v845 = vsub.f32 1.5, %v844
    %v846 = vmul.f32 %v841, %v845
    %vm847 = vweird.f32 %v659
    %vm848 = vweird.f32 %v841
    %vm849 = vmor %vm847, %vm848
    %v850 = vsel %vm849, %v841, %v846
    %v851 = vrsqrt.pop %v660
    %v852 = vmul.f32 %v851, %v660
    %v853 = vmul.f32 %v852, %v851
    %v854 = vmul.f32 0.5, %v853
    %v855 = vsub.f32 1.5, %v854
    %v856 = vmul.f32 %v851, %v855
    %vm857 = vweird.f32 %v660
    %vm858 = vweird.f32 %v851
    %vm859 = vmor %vm857, %vm858
    %v860 = vsel %vm859, %v851, %v856
    %v861 = vrsqrt.pop %v661
    %v862 = vmul.f32 %v861, %v661
    %v863 = vmul.f32 %v862, %v861
    %v864 = vmul.f32 0.5, %v863
    %v865 = vsub.f32 1.5, %v864
    %v866 = vmul.f32 %v861, %v865
    %vm867 = vweird.f32 %v661
    %vm868 = vweird.f32 %v861
    %vm869 = vmor %vm867, %vm868
    %v870 = vsel %vm869, %v861, %v866
    %v871 = vrsqrt.pop %v662
    %v872 = vmul.f32 %v871, %v662
    %v873 = vmul.f32 %v872, %v871
    %v874 = vmul.f32 0.5, %v873
    %v875 = vsub.f32 1.5, %v874
    %v876 = vmul.f32 %v871, %v875
    %vm877 = vweird.f32 %v662
    %vm878 = vweird.f32 %v871
    %vm879 = vmor %vm877, %vm878
    %v880 = vsel %vm879, %v871, %v876
    %v881 = vrsqrt.pop %v663
    %v882 = vmul.f32 %v881, %v663
    %v883 = vmul.f32 %v882, %v881
    %v884 = vmul.f32 0.5, %v883
    %v885 = vsub.f32 1.5, %v884
    %v886 = vmul.f32 %v881, %v885
    %vm887 = vweird.f32 %v663
    %vm888 = vweird.f32 %v881
    %vm889 = vmor %vm887, %vm888
    %v890 = vsel %vm889, %v881, %v886
    %v891 = vrsqrt.pop %v664
    %v892 = vmul.f32 %v891, %v664
    %v893 = vmul.f32 %v892, %v891
    %v894 = vmul.f32 0.5, %v893
    %v895 = vsub.f32 1.5, %v894
    %v896 = vmul.f32 %v891, %v895
    %vm897 = vweird.f32 %v664
    %vm898 = vweird.f32 %v891
    %vm899 = vmor %vm897, %vm898
    %v900 = vsel %vm899, %v891, %v896
    %v901 = vrsqrt.pop %v665
    %v902 = vmul.f32 %v901, %v665
    %v903 = vmul.f32 %v902, %v901
    %v904 = vmul.f32 0.5, %v903
    %v905 = vsub.f32 1.5, %v904
    %v906 = vmul.f32 %v901, %v905
    %vm907 = vweird.f32 %v665
    %vm908 = vweird.f32 %v901
    %vm909 = vmor %vm907, %vm908
    %v910 = vsel %vm909, %v901, %v906
    %v911 = vrsqrt.pop %v666
    %v912 = vmul.f32 %v911, %v666
    %v913 = vmul.f32 %v912, %v911
    %v914 = vmul.f32 0.5, %v913
    %v915 = vsub.f32 1.5, %v914
    %v916 = vmul.f32 %v911, %v915
    %vm917 = vweird.f32 %v666
    %vm918 = vweird.f32 %v911
    %vm919 = vmor %vm917, %vm918
    %v920 = vsel %vm919, %v911, %v916
    %v921 = vrsqrt.pop %v667
    %v922 = vmul.f32 %v921, %v667
    %v923 = vmul.f32 %v922, %v921
    %v924 = vmul.f32 0.5, %v923
    %v925 = vsub.f32 1.5, %v924
    %v926 = vmul.f32 %v921, %v925
    %vm927 = vweird.f32 %v667
    %vm928 = vweird.f32 %v921
    %vm929 = vmor %vm927, %vm928
    %v930 = vsel %vm929, %v921, %v926
    %v931 = vrsqrt.pop %v668
    %v932 = vmul.f32 %v931, %v668
    %v933 = vmul.f32 %v932, %v931
    %v934 = vmul.f32 0.5, %v933
    %v935 = vsub.f32 1.5, %v934
    %v936 = vmul.f32 %v931, %v935
    %vm937 = vweird.f32 %v668
    %vm938 = vweird.f32 %v931
    %vm939 = vmor %vm937, %vm938
    %v940 = vsel %vm939, %v931, %v936
    %v941 = vrsqrt.pop %v669
    %v942 = vmul.f32 %v941, %v669
    %v943 = vmul.f32 %v942, %v941
    %v944 = vmul.f32 0.5, %v943
    %v945 = vsub.f32 1.5, %v944
    %v946 = vmul.f32 %v941, %v945
    %vm947 = vweird.f32 %v669
    %vm948 = vweird.f32 %v941
    %vm949 = vmor %vm947, %vm948
    %v950 = vsel %vm949, %v941, %v946
    %v951 = vrsqrt.pop %v670
    %v952 = vmul.f32 %v951, %v670
    %v953 = vmul.f32 %v952, %v951
    %v954 = vmul.f32 0.5, %v953
    %v955 = vsub.f32 1.5, %v954
    %v956 = vmul.f32 %v951, %v955
    %vm957 = vweird.f32 %v670
    %vm958 = vweird.f32 %v951
    %vm959 = vmor %vm957, %vm958
    %v960 = vsel %vm959, %v951, %v956
    %v961 = vrsqrt.pop %v671
    %v962 = vmul.f32 %v961, %v671
    %v963 = vmul.f32 %v962, %v961
    %v964 = vmul.f32 0.5, %v963
    %v965 = vsub.f32 1.5, %v964
    %v966 = vmul.f32 %v961, %v965
    %vm967 = vweird.f32 %v671
    %vm968 = vweird.f32 %v961
    %vm969 = vmor %vm967, %vm968
    %v970 = vsel %vm969, %v961, %v966
    %v971 = vrsqrt.pop %v672
    %v972 = vmul.f32 %v971, %v672
    %v973 = vmul.f32 %v972, %v971
    %v974 = vmul.f32 0.5, %v973
    %v975 = vsub.f32 1.5, %v974
    %v976 = vmul.f32 %v971, %v975
    %vm977 = vweird.f32 %v672
    %vm978 = vweird.f32 %v971
    %vm979 = vmor %vm977, %vm978
    %v980 = vsel %vm979, %v971, %v976
    %v981 = vrsqrt.pop %v673
    %v982 = vmul.f32 %v981, %v673
    %v983 = vmul.f32 %v982, %v981
    %v984 = vmul.f32 0.5, %v983
    %v985 = vsub.f32 1.5, %v984
    %v986 = vmul.f32 %v981, %v985
    %vm987 = vweird.f32 %v673
    %vm988 = vweird.f32 %v981
    %vm989 = vmor %vm987, %vm988
    %v990 = vsel %vm989, %v981, %v986
    %v991 = vrsqrt.pop %v674
    %v992 = vmul.f32 %v991, %v674
    %v993 = vmul.f32 %v992, %v991
    %v994 = vmul.f32 0.5, %v993
    %v995 = vsub.f32 1.5, %v994
    %v996 = vmul.f32 %v991, %v995
    %vm997 = vweird.f32 %v674
    %vm998 = vweird.f32 %v991
    %vm999 = vmor %vm997, %vm998
    %v1000 = vsel %vm999, %v991, %v996
    %v1001 = vrsqrt.pop %v675
    %v1002 = vmul.f32 %v1001, %v675
    %v1003 = vmul.f32 %v1002, %v1001
    %v1004 = vmul.f32 0.5, %v1003
    %v1005 = vsub.f32 1.5, %v1004
    %v1006 = vmul.f32 %v1001, %v1005
    %vm1007 = vweird.f32 %v675
    %vm1008 = vweird.f32 %v1001
    %vm1009 = vmor %vm1007, %vm1008
    %v1010 = vsel %vm1009, %v1001, %v1006
    %v1011 = vrsqrt.pop %v676
    %v1012 = vmul.f32 %v1011, %v676
    %v1013 = vmul.f32 %v1012, %v1011
    %v1014 = vmul.f32 0.5, %v1013
    %v1015 = vsub.f32 1.5, %v1014
    %v1016 = vmul.f32 %v1011, %v1015
    %vm1017 = vweird.f32 %v676
    %vm1018 = vweird.f32 %v1011
    %vm1019 = vmor %vm1017, %vm1018
    %v1020 = vsel %vm1019, %v1011, %v1016
    %v1021 = vrsqrt.pop %v677
    %v1022 = vmul.f32 %v1021, %v677
    %v1023 = vmul.f32 %v1022, %v1021
    %v1024 = vmul.f32 0.5, %v1023
    %v1025 = vsub.f32 1.5, %v1024
    %v1026 = vmul.f32 %v1021, %v1025
    %vm1027 = vweird.f32 %v677
    %vm1028 = vweird.f32 %v1021
    %vm1029 = vmor %vm1027, %vm1028
    %v1030 = vsel %vm1029, %v1021, %v1026
    %v1031 = vrsqrt.pop %v678
    %v1032 = vmul.f32 %v1031, %v678
    %v1033 = vmul.f32 %v1032, %v1031
    %v1034 = vmul.f32 0.5, %v1033
    %v1035 = vsub.f32 1.5, %v1034
    %v1036 = vmul.f32 %v1031, %v1035
    %vm1037 = vweird.f32 %v678
    %vm1038 = vweird.f32 %v1031
    %vm1039 = vmor %vm1037, %vm1038
    %v1040 = vsel %vm1039, %v1031, %v1036
    %v1041 = vrsqrt.pop %v679
    %v1042 = vmul.f32 %v1041, %v679
    %v1043 = vmul.f32 %v1042, %v1041
    %v1044 = vmul.f32 0.5, %v1043
    %v1045 = vsub.f32 1.5, %v1044
    %v1046 = vmul.f32 %v1041, %v1045
    %vm1047 = vweird.f32 %v679
    %vm1048 = vweird.f32 %v1041
    %vm1049 = vmor %vm1047, %vm1048
    %v1050 = vsel %vm1049, %v1041, %v1046
    %v1051 = vrsqrt.pop %v680
    %v1052 = vmul.f32 %v1051, %v680
    %v1053 = vmul.f32 %v1052, %v1051
    %v1054 = vmul.f32 0.5, %v1053
    %v1055 = vsub.f32 1.5, %v1054
    %v1056 = vmul.f32 %v1051, %v1055
    %vm1057 = vweird.f32 %v680
    %vm1058 = vweird.f32 %v1051
    %vm1059 = vmor %vm1057, %vm1058
    %v1060 = vsel %vm1059, %v1051, %v1056
    %v1061 = vrsqrt.pop %v681
    %v1062 = vmul.f32 %v1061, %v681
    %v1063 = vmul.f32 %v1062, %v1061
    %v1064 = vmul.f32 0.5, %v1063
    %v1065 = vsub.f32 1.5, %v1064
    %v1066 = vmul.f32 %v1061, %v1065
    %vm1067 = vweird.f32 %v681
    %vm1068 = vweird.f32 %v1061
    %vm1069 = vmor %vm1067, %vm1068
    %v1070 = vsel %vm1069, %v1061, %v1066
    %v1071 = vrsqrt.pop %v682
    %v1072 = vmul.f32 %v1071, %v682
    %v1073 = vmul.f32 %v1072, %v1071
    %v1074 = vmul.f32 0.5, %v1073
    %v1075 = vsub.f32 1.5, %v1074
    %v1076 = vmul.f32 %v1071, %v1075
    %vm1077 = vweird.f32 %v682
    %vm1078 = vweird.f32 %v1071
    %vm1079 = vmor %vm1077, %vm1078
    %v1080 = vsel %vm1079, %v1071, %v1076
    %v1081 = vrsqrt.pop %v683
    %v1082 = vmul.f32 %v1081, %v683
    %v1083 = vmul.f32 %v1082, %v1081
    %v1084 = vmul.f32 0.5, %v1083
    %v1085 = vsub.f32 1.5, %v1084
    %v1086 = vmul.f32 %v1081, %v1085
    %vm1087 = vweird.f32 %v683
    %vm1088 = vweird.f32 %v1081
    %vm1089 = vmor %vm1087, %vm1088
    %v1090 = vsel %vm1089, %v1081, %v1086
    %v1091 = vrsqrt.pop %v684
    %v1092 = vmul.f32 %v1091, %v684
    %v1093 = vmul.f32 %v1092, %v1091
    %v1094 = vmul.f32 0.5, %v1093
    %v1095 = vsub.f32 1.5, %v1094
    %v1096 = vmul.f32 %v1091, %v1095
    %vm1097 = vweird.f32 %v684
    %vm1098 = vweird.f32 %v1091
    %vm1099 = vmor %vm1097, %vm1098
    %v1100 = vsel %vm1099, %v1091, %v1096
    %v1101 = vrsqrt.pop %v685
    %v1102 = vmul.f32 %v1101, %v685
    %v1103 = vmul.f32 %v1102, %v1101
    %v1104 = vmul.f32 0.5, %v1103
    %v1105 = vsub.f32 1.5, %v1104
    %v1106 = vmul.f32 %v1101, %v1105
    %vm1107 = vweird.f32 %v685
    %vm1108 = vweird.f32 %v1101
    %vm1109 = vmor %vm1107, %vm1108
    %v1110 = vsel %vm1109, %v1101, %v1106
    %v1111 = vrsqrt.pop %v686
    %v1112 = vmul.f32 %v1111, %v686
    %v1113 = vmul.f32 %v1112, %v1111
    %v1114 = vmul.f32 0.5, %v1113
    %v1115 = vsub.f32 1.5, %v1114
    %v1116 = vmul.f32 %v1111, %v1115
    %vm1117 = vweird.f32 %v686
    %vm1118 = vweird.f32 %v1111
    %vm1119 = vmor %vm1117, %vm1118
    %v1120 = vsel %vm1119, %v1111, %v1116
    %v1121 = vrsqrt.pop %v687
    %v1122 = vmul.f32 %v1121, %v687
    %v1123 = vmul.f32 %v1122, %v1121
    %v1124 = vmul.f32 0.5, %v1123
    %v1125 = vsub.f32 1.5, %v1124
    %v1126 = vmul.f32 %v1121, %v1125
    %vm1127 = vweird.f32 %v687
    %vm1128 = vweird.f32 %v1121
    %vm1129 = vmor %vm1127, %vm1128
    %v1130 = vsel %vm1129, %v1121, %v1126
    %v1131 = vrsqrt.pop %v688
    %v1132 = vmul.f32 %v1131, %v688
    %v1133 = vmul.f32 %v1132, %v1131
    %v1134 = vmul.f32 0.5, %v1133
    %v1135 = vsub.f32 1.5, %v1134
    %v1136 = vmul.f32 %v1131, %v1135
    %vm1137 = vweird.f32 %v688
    %vm1138 = vweird.f32 %v1131
    %vm1139 = vmor %vm1137, %vm1138
    %v1140 = vsel %vm1139, %v1131, %v1136
    %v1141 = vrsqrt.pop %v689
    %v1142 = vmul.f32 %v1141, %v689
    %v1143 = vmul.f32 %v1142, %v1141
    %v1144 = vmul.f32 0.5, %v1143
    %v1145 = vsub.f32 1.5, %v1144
    %v1146 = vmul.f32 %v1141, %v1145
    %vm1147 = vweird.f32 %v689
    %vm1148 = vweird.f32 %v1141
    %vm1149 = vmor %vm1147, %vm1148
    %v1150 = vsel %vm1149, %v1141, %v1146
    %v1151 = vrsqrt.pop %v690
    %v1152 = vmul.f32 %v1151, %v690
    %v1153 = vmul.f32 %v1152, %v1151
    %v1154 = vmul.f32 0.5, %v1153
    %v1155 = vsub.f32 1.5, %v1154
    %v1156 = vmul.f32 %v1151, %v1155
    %vm1157 = vweird.f32 %v690
    %vm1158 = vweird.f32 %v1151
    %vm1159 = vmor %vm1157, %vm1158
    %v1160 = vsel %vm1159, %v1151, %v1156
    %v1161 = vrsqrt.pop %v691
    %v1162 = vmul.f32 %v1161, %v691
    %v1163 = vmul.f32 %v1162, %v1161
    %v1164 = vmul.f32 0.5, %v1163
    %v1165 = vsub.f32 1.5, %v1164
    %v1166 = vmul.f32 %v1161, %v1165
    %vm1167 = vweird.f32 %v691
    %vm1168 = vweird.f32 %v1161
    %vm1169 = vmor %vm1167, %vm1168
    %v1170 = vsel %vm1169, %v1161, %v1166
    %v1171 = vrsqrt.pop %v692
    %v1172 = vmul.f32 %v1171, %v692
    %v1173 = vmul.f32 %v1172, %v1171
    %v1174 = vmul.f32 0.5, %v1173
    %v1175 = vsub.f32 1.5, %v1174
    %v1176 = vmul.f32 %v1171, %v1175
    %vm1177 = vweird.f32 %v692
    %vm1178 = vweird.f32 %v1171
    %vm1179 = vmor %vm1177, %vm1178
    %v1180 = vsel %vm1179, %v1171, %v1176
    %v1181 = vrsqrt.pop %v693
    %v1182 = vmul.f32 %v1181, %v693
    %v1183 = vmul.f32 %v1182, %v1181
    %v1184 = vmul.f32 0.5, %v1183
    %v1185 = vsub.f32 1.5, %v1184
    %v1186 = vmul.f32 %v1181, %v1185
    %vm1187 = vweird.f32 %v693
    %vm1188 = vweird.f32 %v1181
    %vm1189 = vmor %vm1187, %vm1188
    %v1190 = vsel %vm1189, %v1181, %v1186
    %v1191 = vrsqrt.pop %v694
    %v1192 = vmul.f32 %v1191, %v694
    %v1193 = vmul.f32 %v1192, %v1191
    %v1194 = vmul.f32 0.5, %v1193
    %v1195 = vsub.f32 1.5, %v1194
    %v1196 = vmul.f32 %v1191, %v1195
    %vm1197 = vweird.f32 %v694
    %vm1198 = vweird.f32 %v1191
    %vm1199 = vmor %vm1197, %vm1198
    %v1200 = vsel %vm1199, %v1191, %v1196
    %v1201 = vrsqrt.pop %v695
    %v1202 = vmul.f32 %v1201, %v695
    %v1203 = vmul.f32 %v1202, %v1201
    %v1204 = vmul.f32 0.5, %v1203
    %v1205 = vsub.f32 1.5, %v1204
    %v1206 = vmul.f32 %v1201, %v1205
    %vm1207 = vweird.f32 %v695
    %vm1208 = vweird.f32 %v1201
    %vm1209 = vmor %vm1207, %vm1208
    %v1210 = vsel %vm1209, %v1201, %v1206
    %v1211 = vrsqrt.pop %v696
    %v1212 = vmul.f32 %v1211, %v696
    %v1213 = vmul.f32 %v1212, %v1211
    %v1214 = vmul.f32 0.5, %v1213
    %v1215 = vsub.f32 1.5, %v1214
    %v1216 = vmul.f32 %v1211, %v1215
    %vm1217 = vweird.f32 %v696
    %vm1218 = vweird.f32 %v1211
    %vm1219 = vmor %vm1217, %vm1218
    %v1220 = vsel %vm1219, %v1211, %v1216
    %v1221 = vrsqrt.pop %v697
    %v1222 = vmul.f32 %v1221, %v697
    %v1223 = vmul.f32 %v1222, %v1221
    %v1224 = vmul.f32 0.5, %v1223
    %v1225 = vsub.f32 1.5, %v1224
    %v1226 = vmul.f32 %v1221, %v1225
    %vm1227 = vweird.f32 %v697
    %vm1228 = vweird.f32 %v1221
    %vm1229 = vmor %vm1227, %vm1228
    %v1230 = vsel %vm1229, %v1221, %v1226
    %v1231 = vrsqrt.pop %v698
    %v1232 = vmul.f32 %v1231, %v698
    %v1233 = vmul.f32 %v1232, %v1231
    %v1234 = vmul.f32 0.5, %v1233
    %v1235 = vsub.f32 1.5, %v1234
    %v1236 = vmul.f32 %v1231, %v1235
    %vm1237 = vweird.f32 %v698
    %vm1238 = vweird.f32 %v1231
    %vm1239 = vmor %vm1237, %vm1238
    %v1240 = vsel %vm1239, %v1231, %v1236
    %v1241 = vrsqrt.pop %v699
    %v1242 = vmul.f32 %v1241, %v699
    %v1243 = vmul.f32 %v1242, %v1241
    %v1244 = vmul.f32 0.5, %v1243
    %v1245 = vsub.f32 1.5, %v1244
    %v1246 = vmul.f32 %v1241, %v1245
    %vm1247 = vweird.f32 %v699
    %vm1248 = vweird.f32 %v1241
    %vm1249 = vmor %vm1247, %vm1248
    %v1250 = vsel %vm1249, %v1241, %v1246
    %v1251 = vrsqrt.pop %v700
    %v1252 = vmul.f32 %v1251, %v700
    %v1253 = vmul.f32 %v1252, %v1251
    %v1254 = vmul.f32 0.5, %v1253
    %v1255 = vsub.f32 1.5, %v1254
    %v1256 = vmul.f32 %v1251, %v1255
    %vm1257 = vweird.f32 %v700
    %vm1258 = vweird.f32 %v1251
    %vm1259 = vmor %vm1257, %vm1258
    %v1260 = vsel %vm1259, %v1251, %v1256
    %v1261 = vrsqrt.pop %v701
    %v1262 = vmul.f32 %v1261, %v701
    %v1263 = vmul.f32 %v1262, %v1261
    %v1264 = vmul.f32 0.5, %v1263
    %v1265 = vsub.f32 1.5, %v1264
    %v1266 = vmul.f32 %v1261, %v1265
    %vm1267 = vweird.f32 %v701
    %vm1268 = vweird.f32 %v1261
    %vm1269 = vmor %vm1267, %vm1268
    %v1270 = vsel %vm1269, %v1261, %v1266
    %v1271 = vrsqrt.pop %v702
    %v1272 = vmul.f32 %v1271, %v702
    %v1273 = vmul.f32 %v1272, %v1271
    %v1274 = vmul.f32 0.5, %v1273
    %v1275 = vsub.f32 1.5, %v1274
    %v1276 = vmul.f32 %v1271, %v1275
    %vm1277 = vweird.f32 %v702
    %vm1278 = vweird.f32 %v1271
    %vm1279 = vmor %vm1277, %vm1278
    %v1280 = vsel %vm1279, %v1271, %v1276
    %v1281 = vrsqrt.pop %v703
    %v1282 = vmul.f32 %v1281, %v703
    %v1283 = vmul.f32 %v1282, %v1281
    %v1284 = vmul.f32 0.5, %v1283
    %v1285 = vsub.f32 1.5, %v1284
    %v1286 = vmul.f32 %v1281, %v1285
    %vm1287 = vweird.f32 %v703
    %vm1288 = vweird.f32 %v1281
    %vm1289 = vmor %vm1287, %vm1288
    %v1290 = vsel %vm1289, %v1281, %v1286
    %v1291 = vrsqrt.pop %v704
    %v1292 = vmul.f32 %v1291, %v704
    %v1293 = vmul.f32 %v1292, %v1291
    %v1294 = vmul.f32 0.5, %v1293
    %v1295 = vsub.f32 1.5, %v1294
    %v1296 = vmul.f32 %v1291, %v1295
    %vm1297 = vweird.f32 %v704
    %vm1298 = vweird.f32 %v1291
    %vm1299 = vmor %vm1297, %vm1298
    %v1300 = vsel %vm1299, %v1291, %v1296
    %v1301 = vrsqrt.pop %v705
    %v1302 = vmul.f32 %v1301, %v705
    %v1303 = vmul.f32 %v1302, %v1301
    %v1304 = vmul.f32 0.5, %v1303
    %v1305 = vsub.f32 1.5, %v1304
    %v1306 = vmul.f32 %v1301, %v1305
    %vm1307 = vweird.f32 %v705
    %vm1308 = vweird.f32 %v1301
    %vm1309 = vmor %vm1307, %vm1308
    %v1310 = vsel %vm1309, %v1301, %v1306
    %v1311 = vrsqrt.pop %v706
    %v1312 = vmul.f32 %v1311, %v706
    %v1313 = vmul.f32 %v1312, %v1311
    %v1314 = vmul.f32 0.5, %v1313
    %v1315 = vsub.f32 1.5, %v1314
    %v1316 = vmul.f32 %v1311, %v1315
    %vm1317 = vweird.f32 %v706
    %vm1318 = vweird.f32 %v1311
    %vm1319 = vmor %vm1317, %vm1318
    %v1320 = vsel %vm1319, %v1311, %v1316
    %v1321 = vrsqrt.pop %v707
    %v1322 = vmul.f32 %v1321, %v707
    %v1323 = vmul.f32 %v1322, %v1321
    %v1324 = vmul.f32 0.5, %v1323
    %v1325 = vsub.f32 1.5, %v1324
    %v1326 = vmul.f32 %v1321, %v1325
    %vm1327 = vweird.f32 %v707
    %vm1328 = vweird.f32 %v1321
    %vm1329 = vmor %vm1327, %vm1328
    %v1330 = vsel %vm1329, %v1321, %v1326
    %v1331 = vrsqrt.pop %v708
    %v1332 = vmul.f32 %v1331, %v708
    %v1333 = vmul.f32 %v1332, %v1331
    %v1334 = vmul.f32 0.5, %v1333
    %v1335 = vsub.f32 1.5, %v1334
    %v1336 = vmul.f32 %v1331, %v1335
    %vm1337 = vweird.f32 %v708
    %vm1338 = vweird.f32 %v1331
    %vm1339 = vmor %vm1337, %vm1338
    %v1340 = vsel %vm1339, %v1331, %v1336
    %v1341 = vrsqrt.pop %v709
    %v1342 = vmul.f32 %v1341, %v709
    %v1343 = vmul.f32 %v1342, %v1341
    %v1344 = vmul.f32 0.5, %v1343
    %v1345 = vsub.f32 1.5, %v1344
    %v1346 = vmul.f32 %v1341, %v1345
    %vm1347 = vweird.f32 %v709
    %vm1348 = vweird.f32 %v1341
    %vm1349 = vmor %vm1347, %vm1348
    %v1350 = vsel %vm1349, %v1341, %v1346
    %v1351 = vrsqrt.pop %v710
    %v1352 = vmul.f32 %v1351, %v710
    %v1353 = vmul.f32 %v1352, %v1351
    %v1354 = vmul.f32 0.5, %v1353
    %v1355 = vsub.f32 1.5, %v1354
    %v1356 = vmul.f32 %v1351, %v1355
    %vm1357 = vweird.f32 %v710
    %vm1358 = vweird.f32 %v1351
    %vm1359 = vmor %vm1357, %vm1358
    %v1360 = vsel %vm1359, %v1351, %v1356
    %v1361 = vrsqrt.pop %v711
    %v1362 = vmul.f32 %v1361, %v711
    %v1363 = vmul.f32 %v1362, %v1361
    %v1364 = vmul.f32 0.5, %v1363
    %v1365 = vsub.f32 1.5, %v1364
    %v1366 = vmul.f32 %v1361, %v1365
    %vm1367 = vweird.f32 %v711
    %vm1368 = vweird.f32 %v1361
    %vm1369 = vmor %vm1367, %vm1368
    %v1370 = vsel %vm1369, %v1361, %v1366
    %v1371 = vrsqrt.pop %v712
    %v1372 = vmul.f32 %v1371, %v712
    %v1373 = vmul.f32 %v1372, %v1371
    %v1374 = vmul.f32 0.5, %v1373
    %v1375 = vsub.f32 1.5, %v1374
    %v1376 = vmul.f32 %v1371, %v1375
    %vm1377 = vweird.f32 %v712
    %vm1378 = vweird.f32 %v1371
    %vm1379 = vmor %vm1377, %vm1378
    %v1380 = vsel %vm1379, %v1371, %v1376
    %v1381 = vrsqrt.pop %v713
    %v1382 = vmul.f32 %v1381, %v713
    %v1383 = vmul.f32 %v1382, %v1381
    %v1384 = vmul.f32 0.5, %v1383
    %v1385 = vsub.f32 1.5, %v1384
    %v1386 = vmul.f32 %v1381, %v1385
    %vm1387 = vweird.f32 %v713
    %vm1388 = vweird.f32 %v1381
    %vm1389 = vmor %vm1387, %vm1388
    %v1390 = vsel %vm1389, %v1381, %v1386
    %v1391 = vrsqrt.pop %v714
    %v1392 = vmul.f32 %v1391, %v714
    %v1393 = vmul.f32 %v1392, %v1391
    %v1394 = vmul.f32 0.5, %v1393
    %v1395 = vsub.f32 1.5, %v1394
    %v1396 = vmul.f32 %v1391, %v1395
    %vm1397 = vweird.f32 %v714
    %vm1398 = vweird.f32 %v1391
    %vm1399 = vmor %vm1397, %vm1398
    %v1400 = vsel %vm1399, %v1391, %v1396
    %v1401 = vrsqrt.pop %v715
    %v1402 = vmul.f32 %v1401, %v715
    %v1403 = vmul.f32 %v1402, %v1401
    %v1404 = vmul.f32 0.5, %v1403
    %v1405 = vsub.f32 1.5, %v1404
    %v1406 = vmul.f32 %v1401, %v1405
    %vm1407 = vweird.f32 %v715
    %vm1408 = vweird.f32 %v1401
    %vm1409 = vmor %vm1407, %vm1408
    %v1410 = vsel %vm1409, %v1401, %v1406
    %v1411 = vrsqrt.pop %v716
    %v1412 = vmul.f32 %v1411, %v716
    %v1413 = vmul.f32 %v1412, %v1411
    %v1414 = vmul.f32 0.5, %v1413
    %v1415 = vsub.f32 1.5, %v1414
    %v1416 = vmul.f32 %v1411, %v1415
    %vm1417 = vweird.f32 %v716
    %vm1418 = vweird.f32 %v1411
    %vm1419 = vmor %vm1417, %vm1418
    %v1420 = vsel %vm1419, %v1411, %v1416
    %v1421 = vrsqrt.pop %v717
    %v1422 = vmul.f32 %v1421, %v717
    %v1423 = vmul.f32 %v1422, %v1421
    %v1424 = vmul.f32 0.5, %v1423
    %v1425 = vsub.f32 1.5, %v1424
    %v1426 = vmul.f32 %v1421, %v1425
    %vm1427 = vweird.f32 %v717
    %vm1428 = vweird.f32 %v1421
    %vm1429 = vmor %vm1427, %vm1428
    %v1430 = vsel %vm1429, %v1421, %v1426
    %v1431 = vrsqrt.pop %v718
    %v1432 = vmul.f32 %v1431, %v718
    %v1433 = vmul.f32 %v1432, %v1431
    %v1434 = vmul.f32 0.5, %v1433
    %v1435 = vsub.f32 1.5, %v1434
    %v1436 = vmul.f32 %v1431, %v1435
    %vm1437 = vweird.f32 %v718
    %vm1438 = vweird.f32 %v1431
    %vm1439 = vmor %vm1437, %vm1438
    %v1440 = vsel %vm1439, %v1431, %v1436
    %v1441 = vrsqrt.pop %v719
    %v1442 = vmul.f32 %v1441, %v719
    %v1443 = vmul.f32 %v1442, %v1441
    %v1444 = vmul.f32 0.5, %v1443
    %v1445 = vsub.f32 1.5, %v1444
    %v1446 = vmul.f32 %v1441, %v1445
    %vm1447 = vweird.f32 %v719
    %vm1448 = vweird.f32 %v1441
    %vm1449 = vmor %vm1447, %vm1448
    %v1450 = vsel %vm1449, %v1441, %v1446
    %v1451 = vrsqrt.pop %v720
    %v1452 = vmul.f32 %v1451, %v720
    %v1453 = vmul.f32 %v1452, %v1451
    %v1454 = vmul.f32 0.5, %v1453
    %v1455 = vsub.f32 1.5, %v1454
    %v1456 = vmul.f32 %v1451, %v1455
    %vm1457 = vweird.f32 %v720
    %vm1458 = vweird.f32 %v1451
    %vm1459 = vmor %vm1457, %vm1458
    %v1460 = vsel %vm1459, %v1451, %v1456
    %v1461 = vrsqrt.pop %v721
    %v1462 = vmul.f32 %v1461, %v721
    %v1463 = vmul.f32 %v1462, %v1461
    %v1464 = vmul.f32 0.5, %v1463
    %v1465 = vsub.f32 1.5, %v1464
    %v1466 = vmul.f32 %v1461, %v1465
    %vm1467 = vweird.f32 %v721
    %vm1468 = vweird.f32 %v1461
    %vm1469 = vmor %vm1467, %vm1468
    %v1470 = vsel %vm1469, %v1461, %v1466
    %v1471 = vrsqrt.pop %v722
    %v1472 = vmul.f32 %v1471, %v722
    %v1473 = vmul.f32 %v1472, %v1471
    %v1474 = vmul.f32 0.5, %v1473
    %v1475 = vsub.f32 1.5, %v1474
    %v1476 = vmul.f32 %v1471, %v1475
    %vm1477 = vweird.f32 %v722
    %vm1478 = vweird.f32 %v1471
    %vm1479 = vmor %vm1477, %vm1478
    %v1480 = vsel %vm1479, %v1471, %v1476
    %v1481 = vrsqrt.pop %v723
    %v1482 = vmul.f32 %v1481, %v723
    %v1483 = vmul.f32 %v1482, %v1481
    %v1484 = vmul.f32 0.5, %v1483
    %v1485 = vsub.f32 1.5, %v1484
    %v1486 = vmul.f32 %v1481, %v1485
    %vm1487 = vweird.f32 %v723
    %vm1488 = vweird.f32 %v1481
    %vm1489 = vmor %vm1487, %vm1488
    %v1490 = vsel %vm1489, %v1481, %v1486
    %v1491 = vrsqrt.pop %v724
    %v1492 = vmul.f32 %v1491, %v724
    %v1493 = vmul.f32 %v1492, %v1491
    %v1494 = vmul.f32 0.5, %v1493
    %v1495 = vsub.f32 1.5, %v1494
    %v1496 = vmul.f32 %v1491, %v1495
    %vm1497 = vweird.f32 %v724
    %vm1498 = vweird.f32 %v1491
    %vm1499 = vmor %vm1497, %vm1498
    %v1500 = vsel %vm1499, %v1491, %v1496
    %v1501 = vrsqrt.pop %v725
    %v1502 = vmul.f32 %v1501, %v725
    %v1503 = vmul.f32 %v1502, %v1501
    %v1504 = vmul.f32 0.5, %v1503
    %v1505 = vsub.f32 1.5, %v1504
    %v1506 = vmul.f32 %v1501, %v1505
    %vm1507 = vweird.f32 %v725
    %vm1508 = vweird.f32 %v1501
    %vm1509 = vmor %vm1507, %vm1508
    %v1510 = vsel %vm1509, %v1501, %v1506
    %v1511 = vrsqrt.pop %v726
    %v1512 = vmul.f32 %v1511, %v726
    %v1513 = vmul.f32 %v1512, %v1511
    %v1514 = vmul.f32 0.5, %v1513
    %v1515 = vsub.f32 1.5, %v1514
    %v1516 = vmul.f32 %v1511, %v1515
    %vm1517 = vweird.f32 %v726
    %vm1518 = vweird.f32 %v1511
    %vm1519 = vmor %vm1517, %vm1518
    %v1520 = vsel %vm1519, %v1511, %v1516
    %v1521 = vrsqrt.pop %v727
    %v1522 = vmul.f32 %v1521, %v727
    %v1523 = vmul.f32 %v1522, %v1521
    %v1524 = vmul.f32 0.5, %v1523
    %v1525 = vsub.f32 1.5, %v1524
    %v1526 = vmul.f32 %v1521, %v1525
    %vm1527 = vweird.f32 %v727
    %vm1528 = vweird.f32 %v1521
    %vm1529 = vmor %vm1527, %vm1528
    %v1530 = vsel %vm1529, %v1521, %v1526
    %v1531 = vrsqrt.pop %v728
    %v1532 = vmul.f32 %v1531, %v728
    %v1533 = vmul.f32 %v1532, %v1531
    %v1534 = vmul.f32 0.5, %v1533
    %v1535 = vsub.f32 1.5, %v1534
    %v1536 = vmul.f32 %v1531, %v1535
    %vm1537 = vweird.f32 %v728
    %vm1538 = vweird.f32 %v1531
    %vm1539 = vmor %vm1537, %vm1538
    %v1540 = vsel %vm1539, %v1531, %v1536
    %v1541 = vrsqrt.pop %v729
    %v1542 = vmul.f32 %v1541, %v729
    %v1543 = vmul.f32 %v1542, %v1541
    %v1544 = vmul.f32 0.5, %v1543
    %v1545 = vsub.f32 1.5, %v1544
    %v1546 = vmul.f32 %v1541, %v1545
    %vm1547 = vweird.f32 %v729
    %vm1548 = vweird.f32 %v1541
    %vm1549 = vmor %vm1547, %vm1548
    %v1550 = vsel %vm1549, %v1541, %v1546
    %v1551 = vrsqrt.pop %v730
    %v1552 = vmul.f32 %v1551, %v730
    %v1553 = vmul.f32 %v1552, %v1551
    %v1554 = vmul.f32 0.5, %v1553
    %v1555 = vsub.f32 1.5, %v1554
    %v1556 = vmul.f32 %v1551, %v1555
    %vm1557 = vweird.f32 %v730
    %vm1558 = vweird.f32 %v1551
    %vm1559 = vmor %vm1557, %vm1558
    %v1560 = vsel %vm1559, %v1551, %v1556
    %v1561 = vrsqrt.pop %v731
    %v1562 = vmul.f32 %v1561, %v731
    %v1563 = vmul.f32 %v1562, %v1561
    %v1564 = vmul.f32 0.5, %v1563
    %v1565 = vsub.f32 1.5, %v1564
    %v1566 = vmul.f32 %v1561, %v1565
    %vm1567 = vweird.f32 %v731
    %vm1568 = vweird.f32 %v1561
    %vm1569 = vmor %vm1567, %vm1568
    %v1570 = vsel %vm1569, %v1561, %v1566
    %v1571 = vrsqrt.pop %v732
    %v1572 = vmul.f32 %v1571, %v732
    %v1573 = vmul.f32 %v1572, %v1571
    %v1574 = vmul.f32 0.5, %v1573
    %v1575 = vsub.f32 1.5, %v1574
    %v1576 = vmul.f32 %v1571, %v1575
    %vm1577 = vweird.f32 %v732
    %vm1578 = vweird.f32 %v1571
    %vm1579 = vmor %vm1577, %vm1578
    %v1580 = vsel %vm1579, %v1571, %v1576
    %v1581 = vrsqrt.pop %v733
    %v1582 = vmul.f32 %v1581, %v733
    %v1583 = vmul.f32 %v1582, %v1581
    %v1584 = vmul.f32 0.5, %v1583
    %v1585 = vsub.f32 1.5, %v1584
    %v1586 = vmul.f32 %v1581, %v1585
    %vm1587 = vweird.f32 %v733
    %vm1588 = vweird.f32 %v1581
    %vm1589 = vmor %vm1587, %vm1588
    %v1590 = vsel %vm1589, %v1581, %v1586
    %v1591 = vrsqrt.pop %v734
    %v1592 = vmul.f32 %v1591, %v734
    %v1593 = vmul.f32 %v1592, %v1591
    %v1594 = vmul.f32 0.5, %v1593
    %v1595 = vsub.f32 1.5, %v1594
    %v1596 = vmul.f32 %v1591, %v1595
    %vm1597 = vweird.f32 %v734
    %vm1598 = vweird.f32 %v1591
    %vm1599 = vmor %vm1597, %vm1598
    %v1600 = vsel %vm1599, %v1591, %v1596
    %v1601 = vrsqrt.pop %v735
    %v1602 = vmul.f32 %v1601, %v735
    %v1603 = vmul.f32 %v1602, %v1601
    %v1604 = vmul.f32 0.5, %v1603
    %v1605 = vsub.f32 1.5, %v1604
    %v1606 = vmul.f32 %v1601, %v1605
    %vm1607 = vweird.f32 %v735
    %vm1608 = vweird.f32 %v1601
    %vm1609 = vmor %vm1607, %vm1608
    %v1610 = vsel %vm1609, %v1601, %v1606
    %v1611 = vrsqrt.pop %v736
    %v1612 = vmul.f32 %v1611, %v736
    %v1613 = vmul.f32 %v1612, %v1611
    %v1614 = vmul.f32 0.5, %v1613
    %v1615 = vsub.f32 1.5, %v1614
    %v1616 = vmul.f32 %v1611, %v1615
    %vm1617 = vweird.f32 %v736
    %vm1618 = vweird.f32 %v1611
    %vm1619 = vmor %vm1617, %vm1618
    %v1620 = vsel %vm1619, %v1611, %v1616
    %v1621 = vrsqrt.pop %v737
    %v1622 = vmul.f32 %v1621, %v737
    %v1623 = vmul.f32 %v1622, %v1621
    %v1624 = vmul.f32 0.5, %v1623
    %v1625 = vsub.f32 1.5, %v1624
    %v1626 = vmul.f32 %v1621, %v1625
    %vm1627 = vweird.f32 %v737
    %vm1628 = vweird.f32 %v1621
    %vm1629 = vmor %vm1627, %vm1628
    %v1630 = vsel %vm1629, %v1621, %v1626
    %v1631 = vrsqrt.pop %v738
    %v1632 = vmul.f32 %v1631, %v738
    %v1633 = vmul.f32 %v1632, %v1631
    %v1634 = vmul.f32 0.5, %v1633
    %v1635 = vsub.f32 1.5, %v1634
    %v1636 = vmul.f32 %v1631, %v1635
    %vm1637 = vweird.f32 %v738
    %vm1638 = vweird.f32 %v1631
    %vm1639 = vmor %vm1637, %vm1638
    %v1640 = vsel %vm1639, %v1631, %v1636
    %v1641 = vrsqrt.pop %v739
    %v1642 = vmul.f32 %v1641, %v739
    %v1643 = vmul.f32 %v1642, %v1641
    %v1644 = vmul.f32 0.5, %v1643
    %v1645 = vsub.f32 1.5, %v1644
    %v1646 = vmul.f32 %v1641, %v1645
    %vm1647 = vweird.f32 %v739
    %vm1648 = vweird.f32 %v1641
    %vm1649 = vmor %vm1647, %vm1648
    %v1650 = vsel %vm1649, %v1641, %v1646
    %v1651 = vrsqrt.pop %v740
    %v1652 = vmul.f32 %v1651, %v740
    %v1653 = vmul.f32 %v1652, %v1651
    %v1654 = vmul.f32 0.5, %v1653
    %v1655 = vsub.f32 1.5, %v1654
    %v1656 = vmul.f32 %v1651, %v1655
    %vm1657 = vweird.f32 %v740
    %vm1658 = vweird.f32 %v1651
    %vm1659 = vmor %vm1657, %vm1658
    %v1660 = vsel %vm1659, %v1651, %v1656
    %v1661 = vrsqrt.pop %v741
    %v1662 = vmul.f32 %v1661, %v741
    %v1663 = vmul.f32 %v1662, %v1661
    %v1664 = vmul.f32 0.5, %v1663
    %v1665 = vsub.f32 1.5, %v1664
    %v1666 = vmul.f32 %v1661, %v1665
    %vm1667 = vweird.f32 %v741
    %vm1668 = vweird.f32 %v1661
    %vm1669 = vmor %vm1667, %vm1668
    %v1670 = vsel %vm1669, %v1661, %v1666
    %v1671 = vrsqrt.pop %v742
    %v1672 = vmul.f32 %v1671, %v742
    %v1673 = vmul.f32 %v1672, %v1671
    %v1674 = vmul.f32 0.5, %v1673
    %v1675 = vsub.f32 1.5, %v1674
    %v1676 = vmul.f32 %v1671, %v1675
    %vm1677 = vweird.f32 %v742
    %vm1678 = vweird.f32 %v1671
    %vm1679 = vmor %vm1677, %vm1678
    %v1680 = vsel %vm1679, %v1671, %v1676
    %v1681 = vrsqrt.pop %v743
    %v1682 = vmul.f32 %v1681, %v743
    %v1683 = vmul.f32 %v1682, %v1681
    %v1684 = vmul.f32 0.5, %v1683
    %v1685 = vsub.f32 1.5, %v1684
    %v1686 = vmul.f32 %v1681, %v1685
    %vm1687 = vweird.f32 %v743
    %vm1688 = vweird.f32 %v1681
    %vm1689 = vmor %vm1687, %vm1688
    %v1690 = vsel %vm1689, %v1681, %v1686
    %v1691 = vrsqrt.pop %v744
    %v1692 = vmul.f32 %v1691, %v744
    %v1693 = vmul.f32 %v1692, %v1691
    %v1694 = vmul.f32 0.5, %v1693
    %v1695 = vsub.f32 1.5, %v1694
    %v1696 = vmul.f32 %v1691, %v1695
    %vm1697 = vweird.f32 %v744
    %vm1698 = vweird.f32 %v1691
    %vm1699 = vmor %vm1697, %vm1698
    %v1700 = vsel %vm1699, %v1691, %v1696
    %v1701 = vrsqrt.pop %v745
    %v1702 = vmul.f32 %v1701, %v745
    %v1703 = vmul.f32 %v1702, %v1701
    %v1704 = vmul.f32 0.5, %v1703
    %v1705 = vsub.f32 1.5, %v1704
    %v1706 = vmul.f32 %v1701, %v1705
    %vm1707 = vweird.f32 %v745
    %vm1708 = vweird.f32 %v1701
    %vm1709 = vmor %vm1707, %vm1708
    %v1710 = vsel %vm1709, %v1701, %v1706
    %v1711 = vrsqrt.pop %v746
    %v1712 = vmul.f32 %v1711, %v746
    %v1713 = vmul.f32 %v1712, %v1711
    %v1714 = vmul.f32 0.5, %v1713
    %v1715 = vsub.f32 1.5, %v1714
    %v1716 = vmul.f32 %v1711, %v1715
    %vm1717 = vweird.f32 %v746
    %vm1718 = vweird.f32 %v1711
    %vm1719 = vmor %vm1717, %vm1718
    %v1720 = vsel %vm1719, %v1711, %v1716
    %v1721 = vrsqrt.pop %v747
    %v1722 = vmul.f32 %v1721, %v747
    %v1723 = vmul.f32 %v1722, %v1721
    %v1724 = vmul.f32 0.5, %v1723
    %v1725 = vsub.f32 1.5, %v1724
    %v1726 = vmul.f32 %v1721, %v1725
    %vm1727 = vweird.f32 %v747
    %vm1728 = vweird.f32 %v1721
    %vm1729 = vmor %vm1727, %vm1728
    %v1730 = vsel %vm1729, %v1721, %v1726
    %v1731 = vrsqrt.pop %v748
    %v1732 = vmul.f32 %v1731, %v748
    %v1733 = vmul.f32 %v1732, %v1731
    %v1734 = vmul.f32 0.5, %v1733
    %v1735 = vsub.f32 1.5, %v1734
    %v1736 = vmul.f32 %v1731, %v1735
    %vm1737 = vweird.f32 %v748
    %vm1738 = vweird.f32 %v1731
    %vm1739 = vmor %vm1737, %vm1738
    %v1740 = vsel %vm1739, %v1731, %v1736
    %v1741 = vrsqrt.pop %v749
    %v1742 = vmul.f32 %v1741, %v749
    %v1743 = vmul.f32 %v1742, %v1741
    %v1744 = vmul.f32 0.5, %v1743
    %v1745 = vsub.f32 1.5, %v1744
    %v1746 = vmul.f32 %v1741, %v1745
    %vm1747 = vweird.f32 %v749
    %vm1748 = vweird.f32 %v1741
    %vm1749 = vmor %vm1747, %vm1748
    %v1750 = vsel %vm1749, %v1741, %v1746
    %v1751 = vrsqrt.pop %v750
    %v1752 = vmul.f32 %v1751, %v750
    %v1753 = vmul.f32 %v1752, %v1751
    %v1754 = vmul.f32 0.5, %v1753
    %v1755 = vsub.f32 1.5, %v1754
    %v1756 = vmul.f32 %v1751, %v1755
    %vm1757 = vweird.f32 %v750
    %vm1758 = vweird.f32 %v1751
    %vm1759 = vmor %vm1757, %vm1758
    %v1760 = vsel %vm1759, %v1751, %v1756
    %v1761 = vrsqrt.pop %v751
    %v1762 = vmul.f32 %v1761, %v751
    %v1763 = vmul.f32 %v1762, %v1761
    %v1764 = vmul.f32 0.5, %v1763
    %v1765 = vsub.f32 1.5, %v1764
    %v1766 = vmul.f32 %v1761, %v1765
    %vm1767 = vweird.f32 %v751
    %vm1768 = vweird.f32 %v1761
    %vm1769 = vmor %vm1767, %vm1768
    %v1770 = vsel %vm1769, %v1761, %v1766
    %v1771 = vrsqrt.pop %v752
    %v1772 = vmul.f32 %v1771, %v752
    %v1773 = vmul.f32 %v1772, %v1771
    %v1774 = vmul.f32 0.5, %v1773
    %v1775 = vsub.f32 1.5, %v1774
    %v1776 = vmul.f32 %v1771, %v1775
    %vm1777 = vweird.f32 %v752
    %vm1778 = vweird.f32 %v1771
    %vm1779 = vmor %vm1777, %vm1778
    %v1780 = vsel %vm1779, %v1771, %v1776
    %v1781 = vrsqrt.pop %v753
    %v1782 = vmul.f32 %v1781, %v753
    %v1783 = vmul.f32 %v1782, %v1781
    %v1784 = vmul.f32 0.5, %v1783
    %v1785 = vsub.f32 1.5, %v1784
    %v1786 = vmul.f32 %v1781, %v1785
    %vm1787 = vweird.f32 %v753
    %vm1788 = vweird.f32 %v1781
    %vm1789 = vmor %vm1787, %vm1788
    %v1790 = vsel %vm1789, %v1781, %v1786
    %v1791 = vrsqrt.pop %v754
    %v1792 = vmul.f32 %v1791, %v754
    %v1793 = vmul.f32 %v1792, %v1791
    %v1794 = vmul.f32 0.5, %v1793
    %v1795 = vsub.f32 1.5, %v1794
    %v1796 = vmul.f32 %v1791, %v1795
    %vm1797 = vweird.f32 %v754
    %vm1798 = vweird.f32 %v1791
    %vm1799 = vmor %vm1797, %vm1798
    %v1800 = vsel %vm1799, %v1791, %v1796
    %v1801 = vrsqrt.pop %v755
    %v1802 = vmul.f32 %v1801, %v755
    %v1803 = vmul.f32 %v1802, %v1801
    %v1804 = vmul.f32 0.5, %v1803
    %v1805 = vsub.f32 1.5, %v1804
    %v1806 = vmul.f32 %v1801, %v1805
    %vm1807 = vweird.f32 %v755
    %vm1808 = vweird.f32 %v1801
    %vm1809 = vmor %vm1807, %vm1808
    %v1810 = vsel %vm1809, %v1801, %v1806
    %v1811 = vrsqrt.pop %v756
    %v1812 = vmul.f32 %v1811, %v756
    %v1813 = vmul.f32 %v1812, %v1811
    %v1814 = vmul.f32 0.5, %v1813
    %v1815 = vsub.f32 1.5, %v1814
    %v1816 = vmul.f32 %v1811, %v1815
    %vm1817 = vweird.f32 %v756
    %vm1818 = vweird.f32 %v1811
    %vm1819 = vmor %vm1817, %vm1818
    %v1820 = vsel %vm1819, %v1811, %v1816
    %v1821 = vrsqrt.pop %v757
    %v1822 = vmul.f32 %v1821, %v757
    %v1823 = vmul.f32 %v1822, %v1821
    %v1824 = vmul.f32 0.5, %v1823
    %v1825 = vsub.f32 1.5, %v1824
    %v1826 = vmul.f32 %v1821, %v1825
    %vm1827 = vweird.f32 %v757
    %vm1828 = vweird.f32 %v1821
    %vm1829 = vmor %vm1827, %vm1828
    %v1830 = vsel %vm1829, %v1821, %v1826
    %v1831 = vrsqrt.pop %v758
    %v1832 = vmul.f32 %v1831, %v758
    %v1833 = vmul.f32 %v1832, %v1831
    %v1834 = vmul.f32 0.5, %v1833
    %v1835 = vsub.f32 1.5, %v1834
    %v1836 = vmul.f32 %v1831, %v1835
    %vm1837 = vweird.f32 %v758
    %vm1838 = vweird.f32 %v1831
    %vm1839 = vmor %vm1837, %vm1838
    %v1840 = vsel %vm1839, %v1831, %v1836
    %v1841 = vrsqrt.pop %v759
    %v1842 = vmul.f32 %v1841, %v759
    %v1843 = vmul.f32 %v1842, %v1841
    %v1844 = vmul.f32 0.5, %v1843
    %v1845 = vsub.f32 1.5, %v1844
    %v1846 = vmul.f32 %v1841, %v1845
    %vm1847 = vweird.f32 %v759
    %vm1848 = vweird.f32 %v1841
    %vm1849 = vmor %vm1847, %vm1848
    %v1850 = vsel %vm1849, %v1841, %v1846
    %v1851 = vrsqrt.pop %v760
    %v1852 = vmul.f32 %v1851, %v760
    %v1853 = vmul.f32 %v1852, %v1851
    %v1854 = vmul.f32 0.5, %v1853
    %v1855 = vsub.f32 1.5, %v1854
    %v1856 = vmul.f32 %v1851, %v1855
    %vm1857 = vweird.f32 %v760
    %vm1858 = vweird.f32 %v1851
    %vm1859 = vmor %vm1857, %vm1858
    %v1860 = vsel %vm1859, %v1851, %v1856
    %v1861 = vrsqrt.pop %v761
    %v1862 = vmul.f32 %v1861, %v761
    %v1863 = vmul.f32 %v1862, %v1861
    %v1864 = vmul.f32 0.5, %v1863
    %v1865 = vsub.f32 1.5, %v1864
    %v1866 = vmul.f32 %v1861, %v1865
    %vm1867 = vweird.f32 %v761
    %vm1868 = vweird.f32 %v1861
    %vm1869 = vmor %vm1867, %vm1868
    %v1870 = vsel %vm1869, %v1861, %v1866
    %v1871 = vrsqrt.pop %v762
    %v1872 = vmul.f32 %v1871, %v762
    %v1873 = vmul.f32 %v1872, %v1871
    %v1874 = vmul.f32 0.5, %v1873
    %v1875 = vsub.f32 1.5, %v1874
    %v1876 = vmul.f32 %v1871, %v1875
    %vm1877 = vweird.f32 %v762
    %vm1878 = vweird.f32 %v1871
    %vm1879 = vmor %vm1877, %vm1878
    %v1880 = vsel %vm1879, %v1871, %v1876
    %v1881 = vrsqrt.pop %v763
    %v1882 = vmul.f32 %v1881, %v763
    %v1883 = vmul.f32 %v1882, %v1881
    %v1884 = vmul.f32 0.5, %v1883
    %v1885 = vsub.f32 1.5, %v1884
    %v1886 = vmul.f32 %v1881, %v1885
    %vm1887 = vweird.f32 %v763
    %vm1888 = vweird.f32 %v1881
    %vm1889 = vmor %vm1887, %vm1888
    %v1890 = vsel %vm1889, %v1881, %v1886
    %v1891 = vrsqrt.pop %v764
    %v1892 = vmul.f32 %v1891, %v764
    %v1893 = vmul.f32 %v1892, %v1891
    %v1894 = vmul.f32 0.5, %v1893
    %v1895 = vsub.f32 1.5, %v1894
    %v1896 = vmul.f32 %v1891, %v1895
    %vm1897 = vweird.f32 %v764
    %vm1898 = vweird.f32 %v1891
    %vm1899 = vmor %vm1897, %vm1898
    %v1900 = vsel %vm1899, %v1891, %v1896
    %v1901 = vrsqrt.pop %v765
    %v1902 = vmul.f32 %v1901, %v765
    %v1903 = vmul.f32 %v1902, %v1901
    %v1904 = vmul.f32 0.5, %v1903
    %v1905 = vsub.f32 1.5, %v1904
    %v1906 = vmul.f32 %v1901, %v1905
    %vm1907 = vweird.f32 %v765
    %vm1908 = vweird.f32 %v1901
    %vm1909 = vmor %vm1907, %vm1908
    %v1910 = vsel %vm1909, %v1901, %v1906
    %v1911 = vrsqrt.pop %v766
    %v1912 = vmul.f32 %v1911, %v766
    %v1913 = vmul.f32 %v1912, %v1911
    %v1914 = vmul.f32 0.5, %v1913
    %v1915 = vsub.f32 1.5, %v1914
    %v1916 = vmul.f32 %v1911, %v1915
    %vm1917 = vweird.f32 %v766
    %vm1918 = vweird.f32 %v1911
    %vm1919 = vmor %vm1917, %vm1918
    %v1920 = vsel %vm1919, %v1911, %v1916
    %v1921 = vrsqrt.pop %v767
    %v1922 = vmul.f32 %v1921, %v767
    %v1923 = vmul.f32 %v1922, %v1921
    %v1924 = vmul.f32 0.5, %v1923
    %v1925 = vsub.f32 1.5, %v1924
    %v1926 = vmul.f32 %v1921, %v1925
    %vm1927 = vweird.f32 %v767
    %vm1928 = vweird.f32 %v1921
    %vm1929 = vmor %vm1927, %vm1928
    %v1930 = vsel %vm1929, %v1921, %v1926
    %v1931 = vrsqrt.pop %v768
    %v1932 = vmul.f32 %v1931, %v768
    %v1933 = vmul.f32 %v1932, %v1931
    %v1934 = vmul.f32 0.5, %v1933
    %v1935 = vsub.f32 1.5, %v1934
    %v1936 = vmul.f32 %v1931, %v1935
    %vm1937 = vweird.f32 %v768
    %vm1938 = vweird.f32 %v1931
    %vm1939 = vmor %vm1937, %vm1938
    %v1940 = vsel %vm1939, %v1931, %v1936
    %v1941 = vrsqrt.pop %v769
    %v1942 = vmul.f32 %v1941, %v769
    %v1943 = vmul.f32 %v1942, %v1941
    %v1944 = vmul.f32 0.5, %v1943
    %v1945 = vsub.f32 1.5, %v1944
    %v1946 = vmul.f32 %v1941, %v1945
    %vm1947 = vweird.f32 %v769
    %vm1948 = vweird.f32 %v1941
    %vm1949 = vmor %vm1947, %vm1948
    %v1950 = vsel %vm1949, %v1941, %v1946
    %v1951 = vrsqrt.pop %v770
    %v1952 = vmul.f32 %v1951, %v770
    %v1953 = vmul.f32 %v1952, %v1951
    %v1954 = vmul.f32 0.5, %v1953
    %v1955 = vsub.f32 1.5, %v1954
    %v1956 = vmul.f32 %v1951, %v1955
    %vm1957 = vweird.f32 %v770
    %vm1958 = vweird.f32 %v1951
    %vm1959 = vmor %vm1957, %vm1958
    %v1960 = vsel %vm1959, %v1951, %v1956
    %v1961 = vrsqrt.pop %v771
    %v1962 = vmul.f32 %v1961, %v771
    %v1963 = vmul.f32 %v1962, %v1961
    %v1964 = vmul.f32 0.5, %v1963
    %v1965 = vsub.f32 1.5, %v1964
    %v1966 = vmul.f32 %v1961, %v1965
    %vm1967 = vweird.f32 %v771
    %vm1968 = vweird.f32 %v1961
    %vm1969 = vmor %vm1967, %vm1968
    %v1970 = vsel %vm1969, %v1961, %v1966
    %v1971 = vrsqrt.pop %v772
    %v1972 = vmul.f32 %v1971, %v772
    %v1973 = vmul.f32 %v1972, %v1971
    %v1974 = vmul.f32 0.5, %v1973
    %v1975 = vsub.f32 1.5, %v1974
    %v1976 = vmul.f32 %v1971, %v1975
    %vm1977 = vweird.f32 %v772
    %vm1978 = vweird.f32 %v1971
    %vm1979 = vmor %vm1977, %vm1978
    %v1980 = vsel %vm1979, %v1971, %v1976
    %v1981 = vrsqrt.pop %v773
    %v1982 = vmul.f32 %v1981, %v773
    %v1983 = vmul.f32 %v1982, %v1981
    %v1984 = vmul.f32 0.5, %v1983
    %v1985 = vsub.f32 1.5, %v1984
    %v1986 = vmul.f32 %v1981, %v1985
    %vm1987 = vweird.f32 %v773
    %vm1988 = vweird.f32 %v1981
    %vm1989 = vmor %vm1987, %vm1988
    %v1990 = vsel %vm1989, %v1981, %v1986
    %v1991 = vrsqrt.pop %v774
    %v1992 = vmul.f32 %v1991, %v774
    %v1993 = vmul.f32 %v1992, %v1991
    %v1994 = vmul.f32 0.5, %v1993
    %v1995 = vsub.f32 1.5, %v1994
    %v1996 = vmul.f32 %v1991, %v1995
    %vm1997 = vweird.f32 %v774
    %vm1998 = vweird.f32 %v1991
    %vm1999 = vmor %vm1997, %vm1998
    %v2000 = vsel %vm1999, %v1991, %v1996
    %v2001 = vrsqrt.pop %v775
    %v2002 = vmul.f32 %v2001, %v775
    %v2003 = vmul.f32 %v2002, %v2001
    %v2004 = vmul.f32 0.5, %v2003
    %v2005 = vsub.f32 1.5, %v2004
    %v2006 = vmul.f32 %v2001, %v2005
    %vm2007 = vweird.f32 %v775
    %vm2008 = vweird.f32 %v2001
    %vm2009 = vmor %vm2007, %vm2008
    %v2010 = vsel %vm2009, %v2001, %v2006
    %v2011 = vrsqrt.pop %v776
    %v2012 = vmul.f32 %v2011, %v776
    %v2013 = vmul.f32 %v2012, %v2011
    %v2014 = vmul.f32 0.5, %v2013
    %v2015 = vsub.f32 1.5, %v2014
    %v2016 = vmul.f32 %v2011, %v2015
    %vm2017 = vweird.f32 %v776
    %vm2018 = vweird.f32 %v2011
    %vm2019 = vmor %vm2017, %vm2018
    %v2020 = vsel %vm2019, %v2011, %v2016
    %v2021 = vrsqrt.pop %v777
    %v2022 = vmul.f32 %v2021, %v777
    %v2023 = vmul.f32 %v2022, %v2021
    %v2024 = vmul.f32 0.5, %v2023
    %v2025 = vsub.f32 1.5, %v2024
    %v2026 = vmul.f32 %v2021, %v2025
    %vm2027 = vweird.f32 %v777
    %vm2028 = vweird.f32 %v2021
    %vm2029 = vmor %vm2027, %vm2028
    %v2030 = vsel %vm2029, %v2021, %v2026
    %v2031 = vrsqrt.pop %v778
    %v2032 = vmul.f32 %v2031, %v778
    %v2033 = vmul.f32 %v2032, %v2031
    %v2034 = vmul.f32 0.5, %v2033
    %v2035 = vsub.f32 1.5, %v2034
    %v2036 = vmul.f32 %v2031, %v2035
    %vm2037 = vweird.f32 %v778
    %vm2038 = vweird.f32 %v2031
    %vm2039 = vmor %vm2037, %vm2038
    %v2040 = vsel %vm2039, %v2031, %v2036
    %v2041 = vrsqrt.pop %v779
    %v2042 = vmul.f32 %v2041, %v779
    %v2043 = vmul.f32 %v2042, %v2041
    %v2044 = vmul.f32 0.5, %v2043
    %v2045 = vsub.f32 1.5, %v2044
    %v2046 = vmul.f32 %v2041, %v2045
    %vm2047 = vweird.f32 %v779
    %vm2048 = vweird.f32 %v2041
    %vm2049 = vmor %vm2047, %vm2048
    %v2050 = vsel %vm2049, %v2041, %v2046
    %v2051 = vrsqrt.pop %v780
    %v2052 = vmul.f32 %v2051, %v780
    %v2053 = vmul.f32 %v2052, %v2051
    %v2054 = vmul.f32 0.5, %v2053
    %v2055 = vsub.f32 1.5, %v2054
    %v2056 = vmul.f32 %v2051, %v2055
    %vm2057 = vweird.f32 %v780
    %vm2058 = vweird.f32 %v2051
    %vm2059 = vmor %vm2057, %vm2058
    %v2060 = vsel %vm2059, %v2051, %v2056
    %v2061 = vmul.f32 %v141, %v790
    %v2062 = vmul.f32 %v142, %v800
    %v2063 = vmul.f32 %v143, %v810
    %v2064 = vmul.f32 %v144, %v820
    %v2065 = vmul.f32 %v145, %v830
    %v2066 = vmul.f32 %v146, %v840
    %v2067 = vmul.f32 %v147, %v850
    %v2068 = vmul.f32 %v148, %v860
    %v2069 = vmul.f32 %v149, %v870
    %v2070 = vmul.f32 %v150, %v880
    %v2071 = vmul.f32 %v151, %v890
    %v2072 = vmul.f32 %v152, %v900
    %v2073 = vmul.f32 %v153, %v910
    %v2074 = vmul.f32 %v154, %v920
    %v2075 = vmul.f32 %v155, %v930
    %v2076 = vmul.f32 %v156, %v940
    %v2077 = vmul.f32 %v157, %v950
    %v2078 = vmul.f32 %v158, %v960
    %v2079 = vmul.f32 %v159, %v970
    %v2080 = vmul.f32 %v160, %v980
    %v2081 = vmul.f32 %v161, %v990
    %v2082 = vmul.f32 %v162, %v1000
    %v2083 = vmul.f32 %v163, %v1010
    %v2084 = vmul.f32 %v164, %v1020
    %v2085 = vmul.f32 %v165, %v1030
    %v2086 = vmul.f32 %v166, %v1040
    %v2087 = vmul.f32 %v167, %v1050
    %v2088 = vmul.f32 %v168, %v1060
    %v2089 = vmul.f32 %v169, %v1070
    %v2090 = vmul.f32 %v170, %v1080
    %v2091 = vmul.f32 %v171, %v1090
    %v2092 = vmul.f32 %v172, %v1100
    %v2093 = vmul.f32 %v173, %v1110
    %v2094 = vmul.f32 %v174, %v1120
    %v2095 = vmul.f32 %v175, %v1130
    %v2096 = vmul.f32 %v176, %v1140
    %v2097 = vmul.f32 %v177, %v1150
    %v2098 = vmul.f32 %v178, %v1160
    %v2099 = vmul.f32 %v179, %v1170
    %v2100 = vmul.f32 %v180, %v1180
    %v2101 = vmul.f32 %v181, %v1190
    %v2102 = vmul.f32 %v182, %v1200
    %v2103 = vmul.f32 %v183, %v1210
    %v2104 = vmul.f32 %v184, %v1220
    %v2105 = vmul.f32 %v185, %v1230
    %v2106 = vmul.f32 %v186, %v1240
    %v2107 = vmul.f32 %v187, %v1250
    %v2108 = vmul.f32 %v188, %v1260
    %v2109 = vmul.f32 %v189, %v1270
    %v2110 = vmul.f32 %v190, %v1280
    %v2111 = vmul.f32 %v191, %v1290
    %v2112 = vmul.f32 %v192, %v1300
    %v2113 = vmul.f32 %v193, %v1310
    %v2114 = vmul.f32 %v194, %v1320
    %v2115 = vmul.f32 %v195, %v1330
    %v2116 = vmul.f32 %v196, %v1340
    %v2117 = vmul.f32 %v197, %v1350
    %v2118 = vmul.f32 %v198, %v1360
    %v2119 = vmul.f32 %v199, %v1370
    %v2120 = vmul.f32 %v200, %v1380
    %v2121 = vmul.f32 %v201, %v1390
    %v2122 = vmul.f32 %v202, %v1400
    %v2123 = vmul.f32 %v203, %v1410
    %v2124 = vmul.f32 %v204, %v1420
    %v2125 = vmul.f32 %v205, %v1430
    %v2126 = vmul.f32 %v206, %v1440
    %v2127 = vmul.f32 %v207, %v1450
    %v2128 = vmul.f32 %v208, %v1460
    %v2129 = vmul.f32 %v209, %v1470
    %v2130 = vmul.f32 %v210, %v1480
    %v2131 = vmul.f32 %v211, %v1490
    %v2132 = vmul.f32 %v212, %v1500
    %v2133 = vmul.f32 %v213, %v1510
    %v2134 = vmul.f32 %v214, %v1520
    %v2135 = vmul.f32 %v215, %v1530
    %v2136 = vmul.f32 %v216, %v1540
    %v2137 = vmul.f32 %v217, %v1550
    %v2138 = vmul.f32 %v218, %v1560
    %v2139 = vmul.f32 %v219, %v1570
    %v2140 = vmul.f32 %v220, %v1580
    %v2141 = vmul.f32 %v221, %v1590
    %v2142 = vmul.f32 %v222, %v1600
    %v2143 = vmul.f32 %v223, %v1610
    %v2144 = vmul.f32 %v224, %v1620
    %v2145 = vmul.f32 %v225, %v1630
    %v2146 = vmul.f32 %v226, %v1640
    %v2147 = vmul.f32 %v227, %v1650
    %v2148 = vmul.f32 %v228, %v1660
    %v2149 = vmul.f32 %v229, %v1670
    %v2150 = vmul.f32 %v230, %v1680
    %v2151 = vmul.f32 %v231, %v1690
    %v2152 = vmul.f32 %v232, %v1700
    %v2153 = vmul.f32 %v233, %v1710
    %v2154 = vmul.f32 %v234, %v1720
    %v2155 = vmul.f32 %v235, %v1730
    %v2156 = vmul.f32 %v236, %v1740
    %v2157 = vmul.f32 %v237, %v1750
    %v2158 = vmul.f32 %v238, %v1760
    %v2159 = vmul.f32 %v239, %v1770
    %v2160 = vmul.f32 %v240, %v1780
    %v2161 = vmul.f32 %v241, %v1790
    %v2162 = vmul.f32 %v242, %v1800
    %v2163 = vmul.f32 %v243, %v1810
    %v2164 = vmul.f32 %v244, %v1820
    %v2165 = vmul.f32 %v245, %v1830
    %v2166 = vmul.f32 %v246, %v1840
    %v2167 = vmul.f32 %v247, %v1850
    %v2168 = vmul.f32 %v248, %v1860
    %v2169 = vmul.f32 %v249, %v1870
    %v2170 = vmul.f32 %v250, %v1880
    %v2171 = vmul.f32 %v251, %v1890
    %v2172 = vmul.f32 %v252, %v1900
    %v2173 = vmul.f32 %v253, %v1910
    %v2174 = vmul.f32 %v254, %v1920
    %v2175 = vmul.f32 %v255, %v1930
    %v2176 = vmul.f32 %v256, %v1940
    %v2177 = vmul.f32 %v257, %v1950
    %v2178 = vmul.f32 %v258, %v1960
    %v2179 = vmul.f32 %v259, %v1970
    %v2180 = vmul.f32 %v260, %v1980
    %v2181 = vmul.f32 %v261, %v1990
    %v2182 = vmul.f32 %v262, %v2000
    %v2183 = vmul.f32 %v263, %v2010
    %v2184 = vmul.f32 %v264, %v2020
    %v2185 = vmul.f32 %v265, %v2030
    %v2186 = vmul.f32 %v266, %v2040
    %v2187 = vmul.f32 %v267, %v2050
    %v2188 = vmul.f32 %v268, %v2060
    %v2189 = vmul.f32 %v2061, 11.313708
    %v2190 = vmul.f32 %v2062, 11.313708
    %v2191 = vmul.f32 %v2063, 11.313708
    %v2192 = vmul.f32 %v2064, 11.313708
    %v2193 = vmul.f32 %v2065, 11.313708
    %v2194 = vmul.f32 %v2066, 11.313708
    %v2195 = vmul.f32 %v2067, 11.313708
    %v2196 = vmul.f32 %v2068, 11.313708
    %v2197 = vmul.f32 %v2069, 11.313708
    %v2198 = vmul.f32 %v2070, 11.313708
    %v2199 = vmul.f32 %v2071, 11.313708
    %v2200 = vmul.f32 %v2072, 11.313708
    %v2201 = vmul.f32 %v2073, 11.313708
    %v2202 = vmul.f32 %v2074, 11.313708
    %v2203 = vmul.f32 %v2075, 11.313708
    %v2204 = vmul.f32 %v2076, 11.313708
    %v2205 = vmul.f32 %v2077, 11.313708
    %v2206 = vmul.f32 %v2078, 11.313708
    %v2207 = vmul.f32 %v2079, 11.313708
    %v2208 = vmul.f32 %v2080, 11.313708
    %v2209 = vmul.f32 %v2081, 11.313708
    %v2210 = vmul.f32 %v2082, 11.313708
    %v2211 = vmul.f32 %v2083, 11.313708
    %v2212 = vmul.f32 %v2084, 11.313708
    %v2213 = vmul.f32 %v2085, 11.313708
    %v2214 = vmul.f32 %v2086, 11.313708
    %v2215 = vmul.f32 %v2087, 11.313708
    %v2216 = vmul.f32 %v2088, 11.313708
    %v2217 = vmul.f32 %v2089, 11.313708
    %v2218 = vmul.f32 %v2090, 11.313708
    %v2219 = vmul.f32 %v2091, 11.313708
    %v2220 = vmul.f32 %v2092, 11.313708
    %v2221 = vmul.f32 %v2093, 11.313708
    %v2222 = vmul.f32 %v2094, 11.313708
    %v2223 = vmul.f32 %v2095, 11.313708
    %v2224 = vmul.f32 %v2096, 11.313708
    %v2225 = vmul.f32 %v2097, 11.313708
    %v2226 = vmul.f32 %v2098, 11.313708
    %v2227 = vmul.f32 %v2099, 11.313708
    %v2228 = vmul.f32 %v2100, 11.313708
    %v2229 = vmul.f32 %v2101, 11.313708
    %v2230 = vmul.f32 %v2102, 11.313708
    %v2231 = vmul.f32 %v2103, 11.313708
    %v2232 = vmul.f32 %v2104, 11.313708
    %v2233 = vmul.f32 %v2105, 11.313708
    %v2234 = vmul.f32 %v2106, 11.313708
    %v2235 = vmul.f32 %v2107, 11.313708
    %v2236 = vmul.f32 %v2108, 11.313708
    %v2237 = vmul.f32 %v2109, 11.313708
    %v2238 = vmul.f32 %v2110, 11.313708
    %v2239 = vmul.f32 %v2111, 11.313708
    %v2240 = vmul.f32 %v2112, 11.313708
    %v2241 = vmul.f32 %v2113, 11.313708
    %v2242 = vmul.f32 %v2114, 11.313708
    %v2243 = vmul.f32 %v2115, 11.313708
    %v2244 = vmul.f32 %v2116, 11.313708
    %v2245 = vmul.f32 %v2117, 11.313708
    %v2246 = vmul.f32 %v2118, 11.313708
    %v2247 = vmul.f32 %v2119, 11.313708
    %v2248 = vmul.f32 %v2120, 11.313708
    %v2249 = vmul.f32 %v2121, 11.313708
    %v2250 = vmul.f32 %v2122, 11.313708
    %v2251 = vmul.f32 %v2123, 11.313708
    %v2252 = vmul.f32 %v2124, 11.313708
    %v2253 = vmul.f32 %v2125, 11.313708
    %v2254 = vmul.f32 %v2126, 11.313708
    %v2255 = vmul.f32 %v2127, 11.313708
    %v2256 = vmul.f32 %v2128, 11.313708
    %v2257 = vmul.f32 %v2129, 11.313708
    %v2258 = vmul.f32 %v2130, 11.313708
    %v2259 = vmul.f32 %v2131, 11.313708
    %v2260 = vmul.f32 %v2132, 11.313708
    %v2261 = vmul.f32 %v2133, 11.313708
    %v2262 = vmul.f32 %v2134, 11.313708
    %v2263 = vmul.f32 %v2135, 11.313708
    %v2264 = vmul.f32 %v2136, 11.313708
    %v2265 = vmul.f32 %v2137, 11.313708
    %v2266 = vmul.f32 %v2138, 11.313708
    %v2267 = vmul.f32 %v2139, 11.313708
    %v2268 = vmul.f32 %v2140, 11.313708
    %v2269 = vmul.f32 %v2141, 11.313708
    %v2270 = vmul.f32 %v2142, 11.313708
    %v2271 = vmul.f32 %v2143, 11.313708
    %v2272 = vmul.f32 %v2144, 11.313708
    %v2273 = vmul.f32 %v2145, 11.313708
    %v2274 = vmul.f32 %v2146, 11.313708
    %v2275 = vmul.f32 %v2147, 11.313708
    %v2276 = vmul.f32 %v2148, 11.313708
    %v2277 = vmul.f32 %v2149, 11.313708
    %v2278 = vmul.f32 %v2150, 11.313708
    %v2279 = vmul.f32 %v2151, 11.313708
    %v2280 = vmul.f32 %v2152, 11.313708
    %v2281 = vmul.f32 %v2153, 11.313708
    %v2282 = vmul.f32 %v2154, 11.313708
    %v2283 = vmul.f32 %v2155, 11.313708
    %v2284 = vmul.f32 %v2156, 11.313708
    %v2285 = vmul.f32 %v2157, 11.313708
    %v2286 = vmul.f32 %v2158, 11.313708
    %v2287 = vmul.f32 %v2159, 11.313708
    %v2288 = vmul.f32 %v2160, 11.313708
    %v2289 = vmul.f32 %v2161, 11.313708
    %v2290 = vmul.f32 %v2162, 11.313708
    %v2291 = vmul.f32 %v2163, 11.313708
    %v2292 = vmul.f32 %v2164, 11.313708
    %v2293 = vmul.f32 %v2165, 11.313708
    %v2294 = vmul.f32 %v2166, 11.313708
    %v2295 = vmul.f32 %v2167, 11.313708
    %v2296 = vmul.f32 %v2168, 11.313708
    %v2297 = vmul.f32 %v2169, 11.313708
    %v2298 = vmul.f32 %v2170, 11.313708
    %v2299 = vmul.f32 %v2171, 11.313708
    %v2300 = vmul.f32 %v2172, 11.313708
    %v2301 = vmul.f32 %v2173, 11.313708
    %v2302 = vmul.f32 %v2174, 11.313708
    %v2303 = vmul.f32 %v2175, 11.313708
    %v2304 = vmul.f32 %v2176, 11.313708
    %v2305 = vmul.f32 %v2177, 11.313708
    %v2306 = vmul.f32 %v2178, 11.313708
    %v2307 = vmul.f32 %v2179, 11.313708
    %v2308 = vmul.f32 %v2180, 11.313708
    %v2309 = vmul.f32 %v2181, 11.313708
    %v2310 = vmul.f32 %v2182, 11.313708
    %v2311 = vmul.f32 %v2183, 11.313708
    %v2312 = vmul.f32 %v2184, 11.313708
    %v2313 = vmul.f32 %v2185, 11.313708
    %v2314 = vmul.f32 %v2186, 11.313708
    %v2315 = vmul.f32 %v2187, 11.313708
    %v2316 = vmul.f32 %v2188, 11.313708
    %v2317 = vld [vmem:[%s1] sm:$0x1]
    %v2319 = vperm.slane %v2317, 0
    %v2321 = vmul.f32 %v2189, %v2319
    %v2322 = vmul.f32 %v2190, %v2319
    %v2323 = vmul.f32 %v2191, %v2319
    %v2324 = vmul.f32 %v2192, %v2319
    %v2325 = vmul.f32 %v2193, %v2319
    %v2326 = vmul.f32 %v2194, %v2319
    %v2327 = vmul.f32 %v2195, %v2319
    %v2328 = vmul.f32 %v2196, %v2319
    %v2329 = vmul.f32 %v2197, %v2319
    %v2330 = vmul.f32 %v2198, %v2319
    %v2331 = vmul.f32 %v2199, %v2319
    %v2332 = vmul.f32 %v2200, %v2319
    %v2333 = vmul.f32 %v2201, %v2319
    %v2334 = vmul.f32 %v2202, %v2319
    %v2335 = vmul.f32 %v2203, %v2319
    %v2336 = vmul.f32 %v2204, %v2319
    %v2337 = vmul.f32 %v2205, %v2319
    %v2338 = vmul.f32 %v2206, %v2319
    %v2339 = vmul.f32 %v2207, %v2319
    %v2340 = vmul.f32 %v2208, %v2319
    %v2341 = vmul.f32 %v2209, %v2319
    %v2342 = vmul.f32 %v2210, %v2319
    %v2343 = vmul.f32 %v2211, %v2319
    %v2344 = vmul.f32 %v2212, %v2319
    %v2345 = vmul.f32 %v2213, %v2319
    %v2346 = vmul.f32 %v2214, %v2319
    %v2347 = vmul.f32 %v2215, %v2319
    %v2348 = vmul.f32 %v2216, %v2319
    %v2349 = vmul.f32 %v2217, %v2319
    %v2350 = vmul.f32 %v2218, %v2319
    %v2351 = vmul.f32 %v2219, %v2319
    %v2352 = vmul.f32 %v2220, %v2319
    %v2353 = vmul.f32 %v2221, %v2319
    %v2354 = vmul.f32 %v2222, %v2319
    %v2355 = vmul.f32 %v2223, %v2319
    %v2356 = vmul.f32 %v2224, %v2319
    %v2357 = vmul.f32 %v2225, %v2319
    %v2358 = vmul.f32 %v2226, %v2319
    %v2359 = vmul.f32 %v2227, %v2319
    %v2360 = vmul.f32 %v2228, %v2319
    %v2361 = vmul.f32 %v2229, %v2319
    %v2362 = vmul.f32 %v2230, %v2319
    %v2363 = vmul.f32 %v2231, %v2319
    %v2364 = vmul.f32 %v2232, %v2319
    %v2365 = vmul.f32 %v2233, %v2319
    %v2366 = vmul.f32 %v2234, %v2319
    %v2367 = vmul.f32 %v2235, %v2319
    %v2368 = vmul.f32 %v2236, %v2319
    %v2369 = vmul.f32 %v2237, %v2319
    %v2370 = vmul.f32 %v2238, %v2319
    %v2371 = vmul.f32 %v2239, %v2319
    %v2372 = vmul.f32 %v2240, %v2319
    %v2373 = vmul.f32 %v2241, %v2319
    %v2374 = vmul.f32 %v2242, %v2319
    %v2375 = vmul.f32 %v2243, %v2319
    %v2376 = vmul.f32 %v2244, %v2319
    %v2377 = vmul.f32 %v2245, %v2319
    %v2378 = vmul.f32 %v2246, %v2319
    %v2379 = vmul.f32 %v2247, %v2319
    %v2380 = vmul.f32 %v2248, %v2319
    %v2381 = vmul.f32 %v2249, %v2319
    %v2382 = vmul.f32 %v2250, %v2319
    %v2383 = vmul.f32 %v2251, %v2319
    %v2384 = vmul.f32 %v2252, %v2319
    %v2385 = vmul.f32 %v2253, %v2319
    %v2386 = vmul.f32 %v2254, %v2319
    %v2387 = vmul.f32 %v2255, %v2319
    %v2388 = vmul.f32 %v2256, %v2319
    %v2389 = vmul.f32 %v2257, %v2319
    %v2390 = vmul.f32 %v2258, %v2319
    %v2391 = vmul.f32 %v2259, %v2319
    %v2392 = vmul.f32 %v2260, %v2319
    %v2393 = vmul.f32 %v2261, %v2319
    %v2394 = vmul.f32 %v2262, %v2319
    %v2395 = vmul.f32 %v2263, %v2319
    %v2396 = vmul.f32 %v2264, %v2319
    %v2397 = vmul.f32 %v2265, %v2319
    %v2398 = vmul.f32 %v2266, %v2319
    %v2399 = vmul.f32 %v2267, %v2319
    %v2400 = vmul.f32 %v2268, %v2319
    %v2401 = vmul.f32 %v2269, %v2319
    %v2402 = vmul.f32 %v2270, %v2319
    %v2403 = vmul.f32 %v2271, %v2319
    %v2404 = vmul.f32 %v2272, %v2319
    %v2405 = vmul.f32 %v2273, %v2319
    %v2406 = vmul.f32 %v2274, %v2319
    %v2407 = vmul.f32 %v2275, %v2319
    %v2408 = vmul.f32 %v2276, %v2319
    %v2409 = vmul.f32 %v2277, %v2319
    %v2410 = vmul.f32 %v2278, %v2319
    %v2411 = vmul.f32 %v2279, %v2319
    %v2412 = vmul.f32 %v2280, %v2319
    %v2413 = vmul.f32 %v2281, %v2319
    %v2414 = vmul.f32 %v2282, %v2319
    %v2415 = vmul.f32 %v2283, %v2319
    %v2416 = vmul.f32 %v2284, %v2319
    %v2417 = vmul.f32 %v2285, %v2319
    %v2418 = vmul.f32 %v2286, %v2319
    %v2419 = vmul.f32 %v2287, %v2319
    %v2420 = vmul.f32 %v2288, %v2319
    %v2421 = vmul.f32 %v2289, %v2319
    %v2422 = vmul.f32 %v2290, %v2319
    %v2423 = vmul.f32 %v2291, %v2319
    %v2424 = vmul.f32 %v2292, %v2319
    %v2425 = vmul.f32 %v2293, %v2319
    %v2426 = vmul.f32 %v2294, %v2319
    %v2427 = vmul.f32 %v2295, %v2319
    %v2428 = vmul.f32 %v2296, %v2319
    %v2429 = vmul.f32 %v2297, %v2319
    %v2430 = vmul.f32 %v2298, %v2319
    %v2431 = vmul.f32 %v2299, %v2319
    %v2432 = vmul.f32 %v2300, %v2319
    %v2433 = vmul.f32 %v2301, %v2319
    %v2434 = vmul.f32 %v2302, %v2319
    %v2435 = vmul.f32 %v2303, %v2319
    %v2436 = vmul.f32 %v2304, %v2319
    %v2437 = vmul.f32 %v2305, %v2319
    %v2438 = vmul.f32 %v2306, %v2319
    %v2439 = vmul.f32 %v2307, %v2319
    %v2440 = vmul.f32 %v2308, %v2319
    %v2441 = vmul.f32 %v2309, %v2319
    %v2442 = vmul.f32 %v2310, %v2319
    %v2443 = vmul.f32 %v2311, %v2319
    %v2444 = vmul.f32 %v2312, %v2319
    %v2445 = vmul.f32 %v2313, %v2319
    %v2446 = vmul.f32 %v2314, %v2319
    %v2447 = vmul.f32 %v2315, %v2319
    %v2448 = vmul.f32 %v2316, %v2319
    %v2449 = vpack.c.bf16 %v2322, %v2321
    %v2450 = vpack.c.bf16 %v2324, %v2323
    %v2451 = vpack.c.bf16 %v2326, %v2325
    %v2452 = vpack.c.bf16 %v2328, %v2327
    %v2453 = vpack.c.bf16 %v2330, %v2329
    %v2454 = vpack.c.bf16 %v2332, %v2331
    %v2455 = vpack.c.bf16 %v2334, %v2333
    %v2456 = vpack.c.bf16 %v2336, %v2335
    %v2457 = vpack.c.bf16 %v2338, %v2337
    %v2458 = vpack.c.bf16 %v2340, %v2339
    %v2459 = vpack.c.bf16 %v2342, %v2341
    %v2460 = vpack.c.bf16 %v2344, %v2343
    %v2461 = vpack.c.bf16 %v2346, %v2345
    %v2462 = vpack.c.bf16 %v2348, %v2347
    %v2463 = vpack.c.bf16 %v2350, %v2349
    %v2464 = vpack.c.bf16 %v2352, %v2351
    %v2465 = vpack.c.bf16 %v2354, %v2353
    %v2466 = vpack.c.bf16 %v2356, %v2355
    %v2467 = vpack.c.bf16 %v2358, %v2357
    %v2468 = vpack.c.bf16 %v2360, %v2359
    %v2469 = vpack.c.bf16 %v2362, %v2361
    %v2470 = vpack.c.bf16 %v2364, %v2363
    %v2471 = vpack.c.bf16 %v2366, %v2365
    %v2472 = vpack.c.bf16 %v2368, %v2367
    %v2473 = vpack.c.bf16 %v2370, %v2369
    %v2474 = vpack.c.bf16 %v2372, %v2371
    %v2475 = vpack.c.bf16 %v2374, %v2373
    %v2476 = vpack.c.bf16 %v2376, %v2375
    %v2477 = vpack.c.bf16 %v2378, %v2377
    %v2478 = vpack.c.bf16 %v2380, %v2379
    %v2479 = vpack.c.bf16 %v2382, %v2381
    %v2480 = vpack.c.bf16 %v2384, %v2383
    %v2481 = vpack.c.bf16 %v2386, %v2385
    %v2482 = vpack.c.bf16 %v2388, %v2387
    %v2483 = vpack.c.bf16 %v2390, %v2389
    %v2484 = vpack.c.bf16 %v2392, %v2391
    %v2485 = vpack.c.bf16 %v2394, %v2393
    %v2486 = vpack.c.bf16 %v2396, %v2395
    %v2487 = vpack.c.bf16 %v2398, %v2397
    %v2488 = vpack.c.bf16 %v2400, %v2399
    %v2489 = vpack.c.bf16 %v2402, %v2401
    %v2490 = vpack.c.bf16 %v2404, %v2403
    %v2491 = vpack.c.bf16 %v2406, %v2405
    %v2492 = vpack.c.bf16 %v2408, %v2407
    %v2493 = vpack.c.bf16 %v2410, %v2409
    %v2494 = vpack.c.bf16 %v2412, %v2411
    %v2495 = vpack.c.bf16 %v2414, %v2413
    %v2496 = vpack.c.bf16 %v2416, %v2415
    %v2497 = vpack.c.bf16 %v2418, %v2417
    %v2498 = vpack.c.bf16 %v2420, %v2419
    %v2499 = vpack.c.bf16 %v2422, %v2421
    %v2500 = vpack.c.bf16 %v2424, %v2423
    %v2501 = vpack.c.bf16 %v2426, %v2425
    %v2502 = vpack.c.bf16 %v2428, %v2427
    %v2503 = vpack.c.bf16 %v2430, %v2429
    %v2504 = vpack.c.bf16 %v2432, %v2431
    %v2505 = vpack.c.bf16 %v2434, %v2433
    %v2506 = vpack.c.bf16 %v2436, %v2435
    %v2507 = vpack.c.bf16 %v2438, %v2437
    %v2508 = vpack.c.bf16 %v2440, %v2439
    %v2509 = vpack.c.bf16 %v2442, %v2441
    %v2510 = vpack.c.bf16 %v2444, %v2443
    %v2511 = vpack.c.bf16 %v2446, %v2445
    %v2512 = vpack.c.bf16 %v2448, %v2447
    %v2513 = vld [vmem:[#allocation5] sm:$0xf]
    %v2514 = vld [vmem:[#allocation5 + $0x4] sm:$0xf]
    %v2515 = vld [vmem:[#allocation5 + $0x8] sm:$0xf]
    %v2516 = vld [vmem:[#allocation5 + $0xc] sm:$0xf]
    %v2517 = vld [vmem:[#allocation5 + $0x10] sm:$0xf]
    %v2518 = vld [vmem:[#allocation5 + $0x14] sm:$0xf]
    %v2519 = vld [vmem:[#allocation5 + $0x18] sm:$0xf]
    %v2520 = vld [vmem:[#allocation5 + $0x1c] sm:$0xf]
    %v2521 = vld [vmem:[#allocation5 + $0x20] sm:$0xf]
    %v2522 = vld [vmem:[#allocation5 + $0x24] sm:$0xf]
    %v2523 = vld [vmem:[#allocation5 + $0x28] sm:$0xf]
    %v2524 = vld [vmem:[#allocation5 + $0x2c] sm:$0xf]
    %v2525 = vld [vmem:[#allocation5 + $0x30] sm:$0xf]
    %v2526 = vld [vmem:[#allocation5 + $0x34] sm:$0xf]
    %v2527 = vld [vmem:[#allocation5 + $0x38] sm:$0xf]
    %v2528 = vld [vmem:[#allocation5 + $0x3c] sm:$0xf]
    %v2529 = vld [vmem:[%s5] sm:$0x1]
    %v2531 = vperm.slane %v2529, 0
    %v2549 = vunpack.c.l.b16 %v2513
    %v2550 = vunpack.c.l.b16 %v2514
    %v2551 = vunpack.c.l.b16 %v2515
    %v2552 = vunpack.c.l.b16 %v2516
    %v2553 = vunpack.c.l.b16 %v2517
    %v2554 = vunpack.c.l.b16 %v2518
    %v2555 = vunpack.c.l.b16 %v2519
    %v2556 = vunpack.c.l.b16 %v2520
    %v2557 = vunpack.c.l.b16 %v2521
    %v2558 = vunpack.c.l.b16 %v2522
    %v2559 = vunpack.c.l.b16 %v2523
    %v2560 = vunpack.c.l.b16 %v2524
    %v2561 = vunpack.c.l.b16 %v2525
    %v2562 = vunpack.c.l.b16 %v2526
    %v2563 = vunpack.c.l.b16 %v2527
    %v2564 = vunpack.c.l.b16 %v2528
    %v2565 = vpack.c.b16 %v2550, %v2549
    %v2566 = vpack.c.b16 %v2552, %v2551
    %v2567 = vpack.c.b16 %v2554, %v2553
    %v2568 = vpack.c.b16 %v2556, %v2555
    %v2569 = vpack.c.b16 %v2558, %v2557
    %v2570 = vpack.c.b16 %v2560, %v2559
    %v2571 = vpack.c.b16 %v2562, %v2561
    %v2572 = vpack.c.b16 %v2564, %v2563
    %2581 = vmatpush.bf16.msra.mxu0 %v2572
    %2582 = vmatpush.bf16.msra.mxu0 %v2571
    %2583 = vmatpush.bf16.msra.mxu0 %v2570
    %2584 = vmatpush.bf16.msra.mxu0 %v2569
    %2585 = vmatpush.bf16.msra.mxu0 %v2568
    %2586 = vmatpush.bf16.msra.mxu0 %v2567
    %2587 = vmatpush.bf16.msra.mxu0 %v2566
    %2588 = vmatpush.bf16.msra.mxu0 %v2565
    %2589 = vmatmul.bf16.gmra.mxu0 %v2449
    %v2590 = vpop.f32.mrf.mxu0
    %v2591 = vadd.f32 %v2531, %v2590
    %v2592 = vpop.f32.mrf.mxu0
    %v2593 = vadd.f32 %v2531, %v2592
    %2594 = vmatmul.bf16.gmra.mxu0 %v2450
    %v2595 = vpop.f32.mrf.mxu0
    %v2596 = vadd.f32 %v2531, %v2595
    %v2597 = vpop.f32.mrf.mxu0
    %v2598 = vadd.f32 %v2531, %v2597
    %2599 = vmatmul.bf16.gmra.mxu0 %v2451
    %v2600 = vpop.f32.mrf.mxu0
    %v2601 = vadd.f32 %v2531, %v2600
    %v2602 = vpop.f32.mrf.mxu0
    %v2603 = vadd.f32 %v2531, %v2602
    %2604 = vmatmul.bf16.gmra.mxu0 %v2452
    %v2605 = vpop.f32.mrf.mxu0
    %v2606 = vadd.f32 %v2531, %v2605
    %v2607 = vpop.f32.mrf.mxu0
    %v2608 = vadd.f32 %v2531, %v2607
    %2609 = vmatmul.bf16.gmra.mxu0 %v2453
    %v2610 = vpop.f32.mrf.mxu0
    %v2611 = vadd.f32 %v2531, %v2610
    %v2612 = vpop.f32.mrf.mxu0
    %v2613 = vadd.f32 %v2531, %v2612
    %2614 = vmatmul.bf16.gmra.mxu0 %v2454
    %v2615 = vpop.f32.mrf.mxu0
    %v2616 = vadd.f32 %v2531, %v2615
    %v2617 = vpop.f32.mrf.mxu0
    %v2618 = vadd.f32 %v2531, %v2617
    %2619 = vmatmul.bf16.gmra.mxu0 %v2455
    %v2620 = vpop.f32.mrf.mxu0
    %v2621 = vadd.f32 %v2531, %v2620
    %v2622 = vpop.f32.mrf.mxu0
    %v2623 = vadd.f32 %v2531, %v2622
    %2624 = vmatmul.bf16.gmra.mxu0 %v2456
    %v2625 = vpop.f32.mrf.mxu0
    %v2626 = vadd.f32 %v2531, %v2625
    %v2627 = vpop.f32.mrf.mxu0
    %v2628 = vadd.f32 %v2531, %v2627
    %2629 = vmatmul.bf16.gmra.mxu0 %v2457
    %v2630 = vpop.f32.mrf.mxu0
    %v2631 = vadd.f32 %v2531, %v2630
    %v2632 = vpop.f32.mrf.mxu0
    %v2633 = vadd.f32 %v2531, %v2632
    %2634 = vmatmul.bf16.gmra.mxu0 %v2458
    %v2635 = vpop.f32.mrf.mxu0
    %v2636 = vadd.f32 %v2531, %v2635
    %v2637 = vpop.f32.mrf.mxu0
    %v2638 = vadd.f32 %v2531, %v2637
    %2639 = vmatmul.bf16.gmra.mxu0 %v2459
    %v2640 = vpop.f32.mrf.mxu0
    %v2641 = vadd.f32 %v2531, %v2640
    %v2642 = vpop.f32.mrf.mxu0
    %v2643 = vadd.f32 %v2531, %v2642
    %2644 = vmatmul.bf16.gmra.mxu0 %v2460
    %v2645 = vpop.f32.mrf.mxu0
    %v2646 = vadd.f32 %v2531, %v2645
    %v2647 = vpop.f32.mrf.mxu0
    %v2648 = vadd.f32 %v2531, %v2647
    %2649 = vmatmul.bf16.gmra.mxu0 %v2461
    %v2650 = vpop.f32.mrf.mxu0
    %v2651 = vadd.f32 %v2531, %v2650
    %v2652 = vpop.f32.mrf.mxu0
    %v2653 = vadd.f32 %v2531, %v2652
    %2654 = vmatmul.bf16.gmra.mxu0 %v2462
    %v2655 = vpop.f32.mrf.mxu0
    %v2656 = vadd.f32 %v2531, %v2655
    %v2657 = vpop.f32.mrf.mxu0
    %v2658 = vadd.f32 %v2531, %v2657
    %2659 = vmatmul.bf16.gmra.mxu0 %v2463
    %v2660 = vpop.f32.mrf.mxu0
    %v2661 = vadd.f32 %v2531, %v2660
    %v2662 = vpop.f32.mrf.mxu0
    %v2663 = vadd.f32 %v2531, %v2662
    %2664 = vmatmul.bf16.gmra.mxu0 %v2464
    %v2665 = vpop.f32.mrf.mxu0
    %v2666 = vadd.f32 %v2531, %v2665
    %v2667 = vpop.f32.mrf.mxu0
    %v2668 = vadd.f32 %v2531, %v2667
    %2669 = vmatmul.bf16.gmra.mxu0 %v2465
    %v2670 = vpop.f32.mrf.mxu0
    %v2671 = vadd.f32 %v2531, %v2670
    %v2672 = vpop.f32.mrf.mxu0
    %v2673 = vadd.f32 %v2531, %v2672
    %2674 = vmatmul.bf16.gmra.mxu0 %v2466
    %v2675 = vpop.f32.mrf.mxu0
    %v2676 = vadd.f32 %v2531, %v2675
    %v2677 = vpop.f32.mrf.mxu0
    %v2678 = vadd.f32 %v2531, %v2677
    %2679 = vmatmul.bf16.gmra.mxu0 %v2467
    %v2680 = vpop.f32.mrf.mxu0
    %v2681 = vadd.f32 %v2531, %v2680
    %v2682 = vpop.f32.mrf.mxu0
    %v2683 = vadd.f32 %v2531, %v2682
    %2684 = vmatmul.bf16.gmra.mxu0 %v2468
    %v2685 = vpop.f32.mrf.mxu0
    %v2686 = vadd.f32 %v2531, %v2685
    %v2687 = vpop.f32.mrf.mxu0
    %v2688 = vadd.f32 %v2531, %v2687
    %2689 = vmatmul.bf16.gmra.mxu0 %v2469
    %v2690 = vpop.f32.mrf.mxu0
    %v2691 = vadd.f32 %v2531, %v2690
    %v2692 = vpop.f32.mrf.mxu0
    %v2693 = vadd.f32 %v2531, %v2692
    %2694 = vmatmul.bf16.gmra.mxu0 %v2470
    %v2695 = vpop.f32.mrf.mxu0
    %v2696 = vadd.f32 %v2531, %v2695
    %v2697 = vpop.f32.mrf.mxu0
    %v2698 = vadd.f32 %v2531, %v2697
    %2699 = vmatmul.bf16.gmra.mxu0 %v2471
    %v2700 = vpop.f32.mrf.mxu0
    %v2701 = vadd.f32 %v2531, %v2700
    %v2702 = vpop.f32.mrf.mxu0
    %v2703 = vadd.f32 %v2531, %v2702
    %2704 = vmatmul.bf16.gmra.mxu0 %v2472
    %v2705 = vpop.f32.mrf.mxu0
    %v2706 = vadd.f32 %v2531, %v2705
    %v2707 = vpop.f32.mrf.mxu0
    %v2708 = vadd.f32 %v2531, %v2707
    %2709 = vmatmul.bf16.gmra.mxu0 %v2473
    %v2710 = vpop.f32.mrf.mxu0
    %v2711 = vadd.f32 %v2531, %v2710
    %v2712 = vpop.f32.mrf.mxu0
    %v2713 = vadd.f32 %v2531, %v2712
    %2714 = vmatmul.bf16.gmra.mxu0 %v2474
    %v2715 = vpop.f32.mrf.mxu0
    %v2716 = vadd.f32 %v2531, %v2715
    %v2717 = vpop.f32.mrf.mxu0
    %v2718 = vadd.f32 %v2531, %v2717
    %2719 = vmatmul.bf16.gmra.mxu0 %v2475
    %v2720 = vpop.f32.mrf.mxu0
    %v2721 = vadd.f32 %v2531, %v2720
    %v2722 = vpop.f32.mrf.mxu0
    %v2723 = vadd.f32 %v2531, %v2722
    %2724 = vmatmul.bf16.gmra.mxu0 %v2476
    %v2725 = vpop.f32.mrf.mxu0
    %v2726 = vadd.f32 %v2531, %v2725
    %v2727 = vpop.f32.mrf.mxu0
    %v2728 = vadd.f32 %v2531, %v2727
    %2729 = vmatmul.bf16.gmra.mxu0 %v2477
    %v2730 = vpop.f32.mrf.mxu0
    %v2731 = vadd.f32 %v2531, %v2730
    %v2732 = vpop.f32.mrf.mxu0
    %v2733 = vadd.f32 %v2531, %v2732
    %2734 = vmatmul.bf16.gmra.mxu0 %v2478
    %v2735 = vpop.f32.mrf.mxu0
    %v2736 = vadd.f32 %v2531, %v2735
    %v2737 = vpop.f32.mrf.mxu0
    %v2738 = vadd.f32 %v2531, %v2737
    %2739 = vmatmul.bf16.gmra.mxu0 %v2479
    %v2740 = vpop.f32.mrf.mxu0
    %v2741 = vadd.f32 %v2531, %v2740
    %v2742 = vpop.f32.mrf.mxu0
    %v2743 = vadd.f32 %v2531, %v2742
    %2744 = vmatmul.bf16.gmra.mxu0 %v2480
    %v2745 = vpop.f32.mrf.mxu0
    %v2746 = vadd.f32 %v2531, %v2745
    %v2747 = vpop.f32.mrf.mxu0
    %v2748 = vadd.f32 %v2531, %v2747
    %2749 = vmatmul.bf16.gmra.mxu0 %v2481
    %v2750 = vpop.f32.mrf.mxu0
    %v2751 = vadd.f32 %v2531, %v2750
    %v2752 = vpop.f32.mrf.mxu0
    %v2753 = vadd.f32 %v2531, %v2752
    %2754 = vmatmul.bf16.gmra.mxu0 %v2482
    %v2755 = vpop.f32.mrf.mxu0
    %v2756 = vadd.f32 %v2531, %v2755
    %v2757 = vpop.f32.mrf.mxu0
    %v2758 = vadd.f32 %v2531, %v2757
    %2759 = vmatmul.bf16.gmra.mxu0 %v2483
    %v2760 = vpop.f32.mrf.mxu0
    %v2761 = vadd.f32 %v2531, %v2760
    %v2762 = vpop.f32.mrf.mxu0
    %v2763 = vadd.f32 %v2531, %v2762
    %2764 = vmatmul.bf16.gmra.mxu0 %v2484
    %v2765 = vpop.f32.mrf.mxu0
    %v2766 = vadd.f32 %v2531, %v2765
    %v2767 = vpop.f32.mrf.mxu0
    %v2768 = vadd.f32 %v2531, %v2767
    %2769 = vmatmul.bf16.gmra.mxu0 %v2485
    %v2770 = vpop.f32.mrf.mxu0
    %v2771 = vadd.f32 %v2531, %v2770
    %v2772 = vpop.f32.mrf.mxu0
    %v2773 = vadd.f32 %v2531, %v2772
    %2774 = vmatmul.bf16.gmra.mxu0 %v2486
    %v2775 = vpop.f32.mrf.mxu0
    %v2776 = vadd.f32 %v2531, %v2775
    %v2777 = vpop.f32.mrf.mxu0
    %v2778 = vadd.f32 %v2531, %v2777
    %2779 = vmatmul.bf16.gmra.mxu0 %v2487
    %v2780 = vpop.f32.mrf.mxu0
    %v2781 = vadd.f32 %v2531, %v2780
    %v2782 = vpop.f32.mrf.mxu0
    %v2783 = vadd.f32 %v2531, %v2782
    %2784 = vmatmul.bf16.gmra.mxu0 %v2488
    %v2785 = vpop.f32.mrf.mxu0
    %v2786 = vadd.f32 %v2531, %v2785
    %v2787 = vpop.f32.mrf.mxu0
    %v2788 = vadd.f32 %v2531, %v2787
    %2789 = vmatmul.bf16.gmra.mxu0 %v2489
    %v2790 = vpop.f32.mrf.mxu0
    %v2791 = vadd.f32 %v2531, %v2790
    %v2792 = vpop.f32.mrf.mxu0
    %v2793 = vadd.f32 %v2531, %v2792
    %2794 = vmatmul.bf16.gmra.mxu0 %v2490
    %v2795 = vpop.f32.mrf.mxu0
    %v2796 = vadd.f32 %v2531, %v2795
    %v2797 = vpop.f32.mrf.mxu0
    %v2798 = vadd.f32 %v2531, %v2797
    %2799 = vmatmul.bf16.gmra.mxu0 %v2491
    %v2800 = vpop.f32.mrf.mxu0
    %v2801 = vadd.f32 %v2531, %v2800
    %v2802 = vpop.f32.mrf.mxu0
    %v2803 = vadd.f32 %v2531, %v2802
    %2804 = vmatmul.bf16.gmra.mxu0 %v2492
    %v2805 = vpop.f32.mrf.mxu0
    %v2806 = vadd.f32 %v2531, %v2805
    %v2807 = vpop.f32.mrf.mxu0
    %v2808 = vadd.f32 %v2531, %v2807
    %2809 = vmatmul.bf16.gmra.mxu0 %v2493
    %v2810 = vpop.f32.mrf.mxu0
    %v2811 = vadd.f32 %v2531, %v2810
    %v2812 = vpop.f32.mrf.mxu0
    %v2813 = vadd.f32 %v2531, %v2812
    %2814 = vmatmul.bf16.gmra.mxu0 %v2494
    %v2815 = vpop.f32.mrf.mxu0
    %v2816 = vadd.f32 %v2531, %v2815
    %v2817 = vpop.f32.mrf.mxu0
    %v2818 = vadd.f32 %v2531, %v2817
    %2819 = vmatmul.bf16.gmra.mxu0 %v2495
    %v2820 = vpop.f32.mrf.mxu0
    %v2821 = vadd.f32 %v2531, %v2820
    %v2822 = vpop.f32.mrf.mxu0
    %v2823 = vadd.f32 %v2531, %v2822
    %2824 = vmatmul.bf16.gmra.mxu0 %v2496
    %v2825 = vpop.f32.mrf.mxu0
    %v2826 = vadd.f32 %v2531, %v2825
    %v2827 = vpop.f32.mrf.mxu0
    %v2828 = vadd.f32 %v2531, %v2827
    %2829 = vmatmul.bf16.gmra.mxu0 %v2497
    %v2830 = vpop.f32.mrf.mxu0
    %v2831 = vadd.f32 %v2531, %v2830
    %v2832 = vpop.f32.mrf.mxu0
    %v2833 = vadd.f32 %v2531, %v2832
    %2834 = vmatmul.bf16.gmra.mxu0 %v2498
    %v2835 = vpop.f32.mrf.mxu0
    %v2836 = vadd.f32 %v2531, %v2835
    %v2837 = vpop.f32.mrf.mxu0
    %v2838 = vadd.f32 %v2531, %v2837
    %2839 = vmatmul.bf16.gmra.mxu0 %v2499
    %v2840 = vpop.f32.mrf.mxu0
    %v2841 = vadd.f32 %v2531, %v2840
    %v2842 = vpop.f32.mrf.mxu0
    %v2843 = vadd.f32 %v2531, %v2842
    %2844 = vmatmul.bf16.gmra.mxu0 %v2500
    %v2845 = vpop.f32.mrf.mxu0
    %v2846 = vadd.f32 %v2531, %v2845
    %v2847 = vpop.f32.mrf.mxu0
    %v2848 = vadd.f32 %v2531, %v2847
    %2849 = vmatmul.bf16.gmra.mxu0 %v2501
    %v2850 = vpop.f32.mrf.mxu0
    %v2851 = vadd.f32 %v2531, %v2850
    %v2852 = vpop.f32.mrf.mxu0
    %v2853 = vadd.f32 %v2531, %v2852
    %2854 = vmatmul.bf16.gmra.mxu0 %v2502
    %v2855 = vpop.f32.mrf.mxu0
    %v2856 = vadd.f32 %v2531, %v2855
    %v2857 = vpop.f32.mrf.mxu0
    %v2858 = vadd.f32 %v2531, %v2857
    %2859 = vmatmul.bf16.gmra.mxu0 %v2503
    %v2860 = vpop.f32.mrf.mxu0
    %v2861 = vadd.f32 %v2531, %v2860
    %v2862 = vpop.f32.mrf.mxu0
    %v2863 = vadd.f32 %v2531, %v2862
    %2864 = vmatmul.bf16.gmra.mxu0 %v2504
    %v2865 = vpop.f32.mrf.mxu0
    %v2866 = vadd.f32 %v2531, %v2865
    %v2867 = vpop.f32.mrf.mxu0
    %v2868 = vadd.f32 %v2531, %v2867
    %2869 = vmatmul.bf16.gmra.mxu0 %v2505
    %v2870 = vpop.f32.mrf.mxu0
    %v2871 = vadd.f32 %v2531, %v2870
    %v2872 = vpop.f32.mrf.mxu0
    %v2873 = vadd.f32 %v2531, %v2872
    %2874 = vmatmul.bf16.gmra.mxu0 %v2506
    %v2875 = vpop.f32.mrf.mxu0
    %v2876 = vadd.f32 %v2531, %v2875
    %v2877 = vpop.f32.mrf.mxu0
    %v2878 = vadd.f32 %v2531, %v2877
    %2879 = vmatmul.bf16.gmra.mxu0 %v2507
    %v2880 = vpop.f32.mrf.mxu0
    %v2881 = vadd.f32 %v2531, %v2880
    %v2882 = vpop.f32.mrf.mxu0
    %v2883 = vadd.f32 %v2531, %v2882
    %2884 = vmatmul.bf16.gmra.mxu0 %v2508
    %v2885 = vpop.f32.mrf.mxu0
    %v2886 = vadd.f32 %v2531, %v2885
    %v2887 = vpop.f32.mrf.mxu0
    %v2888 = vadd.f32 %v2531, %v2887
    %2889 = vmatmul.bf16.gmra.mxu0 %v2509
    %v2890 = vpop.f32.mrf.mxu0
    %v2891 = vadd.f32 %v2531, %v2890
    %v2892 = vpop.f32.mrf.mxu0
    %v2893 = vadd.f32 %v2531, %v2892
    %2894 = vmatmul.bf16.gmra.mxu0 %v2510
    %v2895 = vpop.f32.mrf.mxu0
    %v2896 = vadd.f32 %v2531, %v2895
    %v2897 = vpop.f32.mrf.mxu0
    %v2898 = vadd.f32 %v2531, %v2897
    %2899 = vmatmul.bf16.gmra.mxu0 %v2511
    %v2900 = vpop.f32.mrf.mxu0
    %v2901 = vadd.f32 %v2531, %v2900
    %v2902 = vpop.f32.mrf.mxu0
    %v2903 = vadd.f32 %v2531, %v2902
    %2904 = vmatmul.bf16.gmra.mxu0 %v2512
    %v2905 = vpop.f32.mrf.mxu0
    %v2906 = vadd.f32 %v2531, %v2905
    %v2907 = vpop.f32.mrf.mxu0
    %v2908 = vadd.f32 %v2531, %v2907
    %2909 = vdwg.mxu0
    %v2910 = vpack.c.bf16 %v2591, %v2591
    %v2911 = vpack.c.bf16 %v2593, %v2593
    %v2912 = vpack.c.bf16 %v2596, %v2596
    %v2913 = vpack.c.bf16 %v2598, %v2598
    %v2914 = vpack.c.bf16 %v2601, %v2601
    %v2915 = vpack.c.bf16 %v2603, %v2603
    %v2916 = vpack.c.bf16 %v2606, %v2606
    %v2917 = vpack.c.bf16 %v2608, %v2608
    %v2918 = vpack.c.bf16 %v2611, %v2611
    %v2919 = vpack.c.bf16 %v2613, %v2613
    %v2920 = vpack.c.bf16 %v2616, %v2616
    %v2921 = vpack.c.bf16 %v2618, %v2618
    %v2922 = vpack.c.bf16 %v2621, %v2621
    %v2923 = vpack.c.bf16 %v2623, %v2623
    %v2924 = vpack.c.bf16 %v2626, %v2626
    %v2925 = vpack.c.bf16 %v2628, %v2628
    %v2926 = vpack.c.bf16 %v2631, %v2631
    %v2927 = vpack.c.bf16 %v2633, %v2633
    %v2928 = vpack.c.bf16 %v2636, %v2636
    %v2929 = vpack.c.bf16 %v2638, %v2638
    %v2930 = vpack.c.bf16 %v2641, %v2641
    %v2931 = vpack.c.bf16 %v2643, %v2643
    %v2932 = vpack.c.bf16 %v2646, %v2646
    %v2933 = vpack.c.bf16 %v2648, %v2648
    %v2934 = vpack.c.bf16 %v2651, %v2651
    %v2935 = vpack.c.bf16 %v2653, %v2653
    %v2936 = vpack.c.bf16 %v2656, %v2656
    %v2937 = vpack.c.bf16 %v2658, %v2658
    %v2938 = vpack.c.bf16 %v2661, %v2661
    %v2939 = vpack.c.bf16 %v2663, %v2663
    %v2940 = vpack.c.bf16 %v2666, %v2666
    %v2941 = vpack.c.bf16 %v2668, %v2668
    %v2942 = vpack.c.bf16 %v2671, %v2671
    %v2943 = vpack.c.bf16 %v2673, %v2673
    %v2944 = vpack.c.bf16 %v2676, %v2676
    %v2945 = vpack.c.bf16 %v2678, %v2678
    %v2946 = vpack.c.bf16 %v2681, %v2681
    %v2947 = vpack.c.bf16 %v2683, %v2683
    %v2948 = vpack.c.bf16 %v2686, %v2686
    %v2949 = vpack.c.bf16 %v2688, %v2688
    %v2950 = vpack.c.bf16 %v2691, %v2691
    %v2951 = vpack.c.bf16 %v2693, %v2693
    %v2952 = vpack.c.bf16 %v2696, %v2696
    %v2953 = vpack.c.bf16 %v2698, %v2698
    %v2954 = vpack.c.bf16 %v2701, %v2701
    %v2955 = vpack.c.bf16 %v2703, %v2703
    %v2956 = vpack.c.bf16 %v2706, %v2706
    %v2957 = vpack.c.bf16 %v2708, %v2708
    %v2958 = vpack.c.bf16 %v2711, %v2711
    %v2959 = vpack.c.bf16 %v2713, %v2713
    %v2960 = vpack.c.bf16 %v2716, %v2716
    %v2961 = vpack.c.bf16 %v2718, %v2718
    %v2962 = vpack.c.bf16 %v2721, %v2721
    %v2963 = vpack.c.bf16 %v2723, %v2723
    %v2964 = vpack.c.bf16 %v2726, %v2726
    %v2965 = vpack.c.bf16 %v2728, %v2728
    %v2966 = vpack.c.bf16 %v2731, %v2731
    %v2967 = vpack.c.bf16 %v2733, %v2733
    %v2968 = vpack.c.bf16 %v2736, %v2736
    %v2969 = vpack.c.bf16 %v2738, %v2738
    %v2970 = vpack.c.bf16 %v2741, %v2741
    %v2971 = vpack.c.bf16 %v2743, %v2743
    %v2972 = vpack.c.bf16 %v2746, %v2746
    %v2973 = vpack.c.bf16 %v2748, %v2748
    %v2974 = vpack.c.bf16 %v2751, %v2751
    %v2975 = vpack.c.bf16 %v2753, %v2753
    %v2976 = vpack.c.bf16 %v2756, %v2756
    %v2977 = vpack.c.bf16 %v2758, %v2758
    %v2978 = vpack.c.bf16 %v2761, %v2761
    %v2979 = vpack.c.bf16 %v2763, %v2763
    %v2980 = vpack.c.bf16 %v2766, %v2766
    %v2981 = vpack.c.bf16 %v2768, %v2768
    %v2982 = vpack.c.bf16 %v2771, %v2771
    %v2983 = vpack.c.bf16 %v2773, %v2773
    %v2984 = vpack.c.bf16 %v2776, %v2776
    %v2985 = vpack.c.bf16 %v2778, %v2778
    %v2986 = vpack.c.bf16 %v2781, %v2781
    %v2987 = vpack.c.bf16 %v2783, %v2783
    %v2988 = vpack.c.bf16 %v2786, %v2786
    %v2989 = vpack.c.bf16 %v2788, %v2788
    %v2990 = vpack.c.bf16 %v2791, %v2791
    %v2991 = vpack.c.bf16 %v2793, %v2793
    %v2992 = vpack.c.bf16 %v2796, %v2796
    %v2993 = vpack.c.bf16 %v2798, %v2798
    %v2994 = vpack.c.bf16 %v2801, %v2801
    %v2995 = vpack.c.bf16 %v2803, %v2803
    %v2996 = vpack.c.bf16 %v2806, %v2806
    %v2997 = vpack.c.bf16 %v2808, %v2808
    %v2998 = vpack.c.bf16 %v2811, %v2811
    %v2999 = vpack.c.bf16 %v2813, %v2813
    %v3000 = vpack.c.bf16 %v2816, %v2816
    %v3001 = vpack.c.bf16 %v2818, %v2818
    %v3002 = vpack.c.bf16 %v2821, %v2821
    %v3003 = vpack.c.bf16 %v2823, %v2823
    %v3004 = vpack.c.bf16 %v2826, %v2826
    %v3005 = vpack.c.bf16 %v2828, %v2828
    %v3006 = vpack.c.bf16 %v2831, %v2831
    %v3007 = vpack.c.bf16 %v2833, %v2833
    %v3008 = vpack.c.bf16 %v2836, %v2836
    %v3009 = vpack.c.bf16 %v2838, %v2838
    %v3010 = vpack.c.bf16 %v2841, %v2841
    %v3011 = vpack.c.bf16 %v2843, %v2843
    %v3012 = vpack.c.bf16 %v2846, %v2846
    %v3013 = vpack.c.bf16 %v2848, %v2848
    %v3014 = vpack.c.bf16 %v2851, %v2851
    %v3015 = vpack.c.bf16 %v2853, %v2853
    %v3016 = vpack.c.bf16 %v2856, %v2856
    %v3017 = vpack.c.bf16 %v2858, %v2858
    %v3018 = vpack.c.bf16 %v2861, %v2861
    %v3019 = vpack.c.bf16 %v2863, %v2863
    %v3020 = vpack.c.bf16 %v2866, %v2866
    %v3021 = vpack.c.bf16 %v2868, %v2868
    %v3022 = vpack.c.bf16 %v2871, %v2871
    %v3023 = vpack.c.bf16 %v2873, %v2873
    %v3024 = vpack.c.bf16 %v2876, %v2876
    %v3025 = vpack.c.bf16 %v2878, %v2878
    %v3026 = vpack.c.bf16 %v2881, %v2881
    %v3027 = vpack.c.bf16 %v2883, %v2883
    %v3028 = vpack.c.bf16 %v2886, %v2886
    %v3029 = vpack.c.bf16 %v2888, %v2888
    %v3030 = vpack.c.bf16 %v2891, %v2891
    %v3031 = vpack.c.bf16 %v2893, %v2893
    %v3032 = vpack.c.bf16 %v2896, %v2896
    %v3033 = vpack.c.bf16 %v2898, %v2898
    %v3034 = vpack.c.bf16 %v2901, %v2901
    %v3035 = vpack.c.bf16 %v2903, %v2903
    %v3036 = vpack.c.bf16 %v2906, %v2906
    %v3037 = vpack.c.bf16 %v2908, %v2908
    %v3038 = vld [vmem:[#allocation7] sm:$0xf]
    %v3039 = vld [vmem:[#allocation7 + $0x4] sm:$0xf]
    %v3040 = vld [vmem:[#allocation7 + $0x8] sm:$0xf]
    %v3041 = vld [vmem:[#allocation7 + $0xc] sm:$0xf]
    %v3042 = vld [vmem:[#allocation7 + $0x10] sm:$0xf]
    %v3043 = vld [vmem:[#allocation7 + $0x14] sm:$0xf]
    %v3044 = vld [vmem:[#allocation7 + $0x18] sm:$0xf]
    %v3045 = vld [vmem:[#allocation7 + $0x1c] sm:$0xf]
    %v3046 = vld [vmem:[#allocation7 + $0x20] sm:$0xf]
    %v3047 = vld [vmem:[#allocation7 + $0x24] sm:$0xf]
    %v3048 = vld [vmem:[#allocation7 + $0x28] sm:$0xf]
    %v3049 = vld [vmem:[#allocation7 + $0x2c] sm:$0xf]
    %v3050 = vld [vmem:[#allocation7 + $0x30] sm:$0xf]
    %v3051 = vld [vmem:[#allocation7 + $0x34] sm:$0xf]
    %v3052 = vld [vmem:[#allocation7 + $0x38] sm:$0xf]
    %v3053 = vld [vmem:[#allocation7 + $0x3c] sm:$0xf]
    %v3054 = vld [vmem:[%s6] sm:$0x1]
    %v3056 = vperm.slane %v3054, 0
    %v3074 = vunpack.c.l.b16 %v3038
    %v3075 = vunpack.c.l.b16 %v3039
    %v3076 = vunpack.c.l.b16 %v3040
    %v3077 = vunpack.c.l.b16 %v3041
    %v3078 = vunpack.c.l.b16 %v3042
    %v3079 = vunpack.c.l.b16 %v3043
    %v3080 = vunpack.c.l.b16 %v3044
    %v3081 = vunpack.c.l.b16 %v3045
    %v3082 = vunpack.c.l.b16 %v3046
    %v3083 = vunpack.c.l.b16 %v3047
    %v3084 = vunpack.c.l.b16 %v3048
    %v3085 = vunpack.c.l.b16 %v3049
    %v3086 = vunpack.c.l.b16 %v3050
    %v3087 = vunpack.c.l.b16 %v3051
    %v3088 = vunpack.c.l.b16 %v3052
    %v3089 = vunpack.c.l.b16 %v3053
    %v3090 = vpack.c.b16 %v3075, %v3074
    %v3091 = vpack.c.b16 %v3077, %v3076
    %v3092 = vpack.c.b16 %v3079, %v3078
    %v3093 = vpack.c.b16 %v3081, %v3080
    %v3094 = vpack.c.b16 %v3083, %v3082
    %v3095 = vpack.c.b16 %v3085, %v3084
    %v3096 = vpack.c.b16 %v3087, %v3086
    %v3097 = vpack.c.b16 %v3089, %v3088
    %3106 = vmatpush.bf16.msra.mxu0 %v3097
    %3107 = vmatpush.bf16.msra.mxu0 %v3096
    %3108 = vmatpush.bf16.msra.mxu0 %v3095
    %3109 = vmatpush.bf16.msra.mxu0 %v3094
    %3110 = vmatpush.bf16.msra.mxu0 %v3093
    %3111 = vmatpush.bf16.msra.mxu0 %v3092
    %3112 = vmatpush.bf16.msra.mxu0 %v3091
    %3113 = vmatpush.bf16.msra.mxu0 %v3090
    %3114 = vmatmul.bf16.gmra.mxu0 %v2449
    %v3115 = vpop.f32.mrf.mxu0
    %v3116 = vadd.f32 %v3056, %v3115
    %v3117 = vpop.f32.mrf.mxu0
    %v3118 = vadd.f32 %v3056, %v3117
    %3119 = vmatmul.bf16.gmra.mxu0 %v2450
    %v3120 = vpop.f32.mrf.mxu0
    %v3121 = vadd.f32 %v3056, %v3120
    %v3122 = vpop.f32.mrf.mxu0
    %v3123 = vadd.f32 %v3056, %v3122
    %3124 = vmatmul.bf16.gmra.mxu0 %v2451
    %v3125 = vpop.f32.mrf.mxu0
    %v3126 = vadd.f32 %v3056, %v3125
    %v3127 = vpop.f32.mrf.mxu0
    %v3128 = vadd.f32 %v3056, %v3127
    %3129 = vmatmul.bf16.gmra.mxu0 %v2452
    %v3130 = vpop.f32.mrf.mxu0
    %v3131 = vadd.f32 %v3056, %v3130
    %v3132 = vpop.f32.mrf.mxu0
    %v3133 = vadd.f32 %v3056, %v3132
    %3134 = vmatmul.bf16.gmra.mxu0 %v2453
    %v3135 = vpop.f32.mrf.mxu0
    %v3136 = vadd.f32 %v3056, %v3135
    %v3137 = vpop.f32.mrf.mxu0
    %v3138 = vadd.f32 %v3056, %v3137
    %3139 = vmatmul.bf16.gmra.mxu0 %v2454
    %v3140 = vpop.f32.mrf.mxu0
    %v3141 = vadd.f32 %v3056, %v3140
    %v3142 = vpop.f32.mrf.mxu0
    %v3143 = vadd.f32 %v3056, %v3142
    %3144 = vmatmul.bf16.gmra.mxu0 %v2455
    %v3145 = vpop.f32.mrf.mxu0
    %v3146 = vadd.f32 %v3056, %v3145
    %v3147 = vpop.f32.mrf.mxu0
    %v3148 = vadd.f32 %v3056, %v3147
    %3149 = vmatmul.bf16.gmra.mxu0 %v2456
    %v3150 = vpop.f32.mrf.mxu0
    %v3151 = vadd.f32 %v3056, %v3150
    %v3152 = vpop.f32.mrf.mxu0
    %v3153 = vadd.f32 %v3056, %v3152
    %3154 = vmatmul.bf16.gmra.mxu0 %v2457
    %v3155 = vpop.f32.mrf.mxu0
    %v3156 = vadd.f32 %v3056, %v3155
    %v3157 = vpop.f32.mrf.mxu0
    %v3158 = vadd.f32 %v3056, %v3157
    %3159 = vmatmul.bf16.gmra.mxu0 %v2458
    %v3160 = vpop.f32.mrf.mxu0
    %v3161 = vadd.f32 %v3056, %v3160
    %v3162 = vpop.f32.mrf.mxu0
    %v3163 = vadd.f32 %v3056, %v3162
    %3164 = vmatmul.bf16.gmra.mxu0 %v2459
    %v3165 = vpop.f32.mrf.mxu0
    %v3166 = vadd.f32 %v3056, %v3165
    %v3167 = vpop.f32.mrf.mxu0
    %v3168 = vadd.f32 %v3056, %v3167
    %3169 = vmatmul.bf16.gmra.mxu0 %v2460
    %v3170 = vpop.f32.mrf.mxu0
    %v3171 = vadd.f32 %v3056, %v3170
    %v3172 = vpop.f32.mrf.mxu0
    %v3173 = vadd.f32 %v3056, %v3172
    %3174 = vmatmul.bf16.gmra.mxu0 %v2461
    %v3175 = vpop.f32.mrf.mxu0
    %v3176 = vadd.f32 %v3056, %v3175
    %v3177 = vpop.f32.mrf.mxu0
    %v3178 = vadd.f32 %v3056, %v3177
    %3179 = vmatmul.bf16.gmra.mxu0 %v2462
    %v3180 = vpop.f32.mrf.mxu0
    %v3181 = vadd.f32 %v3056, %v3180
    %v3182 = vpop.f32.mrf.mxu0
    %v3183 = vadd.f32 %v3056, %v3182
    %3184 = vmatmul.bf16.gmra.mxu0 %v2463
    %v3185 = vpop.f32.mrf.mxu0
    %v3186 = vadd.f32 %v3056, %v3185
    %v3187 = vpop.f32.mrf.mxu0
    %v3188 = vadd.f32 %v3056, %v3187
    %3189 = vmatmul.bf16.gmra.mxu0 %v2464
    %v3190 = vpop.f32.mrf.mxu0
    %v3191 = vadd.f32 %v3056, %v3190
    %v3192 = vpop.f32.mrf.mxu0
    %v3193 = vadd.f32 %v3056, %v3192
    %3194 = vmatmul.bf16.gmra.mxu0 %v2465
    %v3195 = vpop.f32.mrf.mxu0
    %v3196 = vadd.f32 %v3056, %v3195
    %v3197 = vpop.f32.mrf.mxu0
    %v3198 = vadd.f32 %v3056, %v3197
    %3199 = vmatmul.bf16.gmra.mxu0 %v2466
    %v3200 = vpop.f32.mrf.mxu0
    %v3201 = vadd.f32 %v3056, %v3200
    %v3202 = vpop.f32.mrf.mxu0
    %v3203 = vadd.f32 %v3056, %v3202
    %3204 = vmatmul.bf16.gmra.mxu0 %v2467
    %v3205 = vpop.f32.mrf.mxu0
    %v3206 = vadd.f32 %v3056, %v3205
    %v3207 = vpop.f32.mrf.mxu0
    %v3208 = vadd.f32 %v3056, %v3207
    %3209 = vmatmul.bf16.gmra.mxu0 %v2468
    %v3210 = vpop.f32.mrf.mxu0
    %v3211 = vadd.f32 %v3056, %v3210
    %v3212 = vpop.f32.mrf.mxu0
    %v3213 = vadd.f32 %v3056, %v3212
    %3214 = vmatmul.bf16.gmra.mxu0 %v2469
    %v3215 = vpop.f32.mrf.mxu0
    %v3216 = vadd.f32 %v3056, %v3215
    %v3217 = vpop.f32.mrf.mxu0
    %v3218 = vadd.f32 %v3056, %v3217
    %3219 = vmatmul.bf16.gmra.mxu0 %v2470
    %v3220 = vpop.f32.mrf.mxu0
    %v3221 = vadd.f32 %v3056, %v3220
    %v3222 = vpop.f32.mrf.mxu0
    %v3223 = vadd.f32 %v3056, %v3222
    %3224 = vmatmul.bf16.gmra.mxu0 %v2471
    %v3225 = vpop.f32.mrf.mxu0
    %v3226 = vadd.f32 %v3056, %v3225
    %v3227 = vpop.f32.mrf.mxu0
    %v3228 = vadd.f32 %v3056, %v3227
    %3229 = vmatmul.bf16.gmra.mxu0 %v2472
    %v3230 = vpop.f32.mrf.mxu0
    %v3231 = vadd.f32 %v3056, %v3230
    %v3232 = vpop.f32.mrf.mxu0
    %v3233 = vadd.f32 %v3056, %v3232
    %3234 = vmatmul.bf16.gmra.mxu0 %v2473
    %v3235 = vpop.f32.mrf.mxu0
    %v3236 = vadd.f32 %v3056, %v3235
    %v3237 = vpop.f32.mrf.mxu0
    %v3238 = vadd.f32 %v3056, %v3237
    %3239 = vmatmul.bf16.gmra.mxu0 %v2474
    %v3240 = vpop.f32.mrf.mxu0
    %v3241 = vadd.f32 %v3056, %v3240
    %v3242 = vpop.f32.mrf.mxu0
    %v3243 = vadd.f32 %v3056, %v3242
    %3244 = vmatmul.bf16.gmra.mxu0 %v2475
    %v3245 = vpop.f32.mrf.mxu0
    %v3246 = vadd.f32 %v3056, %v3245
    %v3247 = vpop.f32.mrf.mxu0
    %v3248 = vadd.f32 %v3056, %v3247
    %3249 = vmatmul.bf16.gmra.mxu0 %v2476
    %v3250 = vpop.f32.mrf.mxu0
    %v3251 = vadd.f32 %v3056, %v3250
    %v3252 = vpop.f32.mrf.mxu0
    %v3253 = vadd.f32 %v3056, %v3252
    %3254 = vmatmul.bf16.gmra.mxu0 %v2477
    %v3255 = vpop.f32.mrf.mxu0
    %v3256 = vadd.f32 %v3056, %v3255
    %v3257 = vpop.f32.mrf.mxu0
    %v3258 = vadd.f32 %v3056, %v3257
    %3259 = vmatmul.bf16.gmra.mxu0 %v2478
    %v3260 = vpop.f32.mrf.mxu0
    %v3261 = vadd.f32 %v3056, %v3260
    %v3262 = vpop.f32.mrf.mxu0
    %v3263 = vadd.f32 %v3056, %v3262
    %3264 = vmatmul.bf16.gmra.mxu0 %v2479
    %v3265 = vpop.f32.mrf.mxu0
    %v3266 = vadd.f32 %v3056, %v3265
    %v3267 = vpop.f32.mrf.mxu0
    %v3268 = vadd.f32 %v3056, %v3267
    %3269 = vmatmul.bf16.gmra.mxu0 %v2480
    %v3270 = vpop.f32.mrf.mxu0
    %v3271 = vadd.f32 %v3056, %v3270
    %v3272 = vpop.f32.mrf.mxu0
    %v3273 = vadd.f32 %v3056, %v3272
    %3274 = vmatmul.bf16.gmra.mxu0 %v2481
    %v3275 = vpop.f32.mrf.mxu0
    %v3276 = vadd.f32 %v3056, %v3275
    %v3277 = vpop.f32.mrf.mxu0
    %v3278 = vadd.f32 %v3056, %v3277
    %3279 = vmatmul.bf16.gmra.mxu0 %v2482
    %v3280 = vpop.f32.mrf.mxu0
    %v3281 = vadd.f32 %v3056, %v3280
    %v3282 = vpop.f32.mrf.mxu0
    %v3283 = vadd.f32 %v3056, %v3282
    %3284 = vmatmul.bf16.gmra.mxu0 %v2483
    %v3285 = vpop.f32.mrf.mxu0
    %v3286 = vadd.f32 %v3056, %v3285
    %v3287 = vpop.f32.mrf.mxu0
    %v3288 = vadd.f32 %v3056, %v3287
    %3289 = vmatmul.bf16.gmra.mxu0 %v2484
    %v3290 = vpop.f32.mrf.mxu0
    %v3291 = vadd.f32 %v3056, %v3290
    %v3292 = vpop.f32.mrf.mxu0
    %v3293 = vadd.f32 %v3056, %v3292
    %3294 = vmatmul.bf16.gmra.mxu0 %v2485
    %v3295 = vpop.f32.mrf.mxu0
    %v3296 = vadd.f32 %v3056, %v3295
    %v3297 = vpop.f32.mrf.mxu0
    %v3298 = vadd.f32 %v3056, %v3297
    %3299 = vmatmul.bf16.gmra.mxu0 %v2486
    %v3300 = vpop.f32.mrf.mxu0
    %v3301 = vadd.f32 %v3056, %v3300
    %v3302 = vpop.f32.mrf.mxu0
    %v3303 = vadd.f32 %v3056, %v3302
    %3304 = vmatmul.bf16.gmra.mxu0 %v2487
    %v3305 = vpop.f32.mrf.mxu0
    %v3306 = vadd.f32 %v3056, %v3305
    %v3307 = vpop.f32.mrf.mxu0
    %v3308 = vadd.f32 %v3056, %v3307
    %3309 = vmatmul.bf16.gmra.mxu0 %v2488
    %v3310 = vpop.f32.mrf.mxu0
    %v3311 = vadd.f32 %v3056, %v3310
    %v3312 = vpop.f32.mrf.mxu0
    %v3313 = vadd.f32 %v3056, %v3312
    %3314 = vmatmul.bf16.gmra.mxu0 %v2489
    %v3315 = vpop.f32.mrf.mxu0
    %v3316 = vadd.f32 %v3056, %v3315
    %v3317 = vpop.f32.mrf.mxu0
    %v3318 = vadd.f32 %v3056, %v3317
    %3319 = vmatmul.bf16.gmra.mxu0 %v2490
    %v3320 = vpop.f32.mrf.mxu0
    %v3321 = vadd.f32 %v3056, %v3320
    %v3322 = vpop.f32.mrf.mxu0
    %v3323 = vadd.f32 %v3056, %v3322
    %3324 = vmatmul.bf16.gmra.mxu0 %v2491
    %v3325 = vpop.f32.mrf.mxu0
    %v3326 = vadd.f32 %v3056, %v3325
    %v3327 = vpop.f32.mrf.mxu0
    %v3328 = vadd.f32 %v3056, %v3327
    %3329 = vmatmul.bf16.gmra.mxu0 %v2492
    %v3330 = vpop.f32.mrf.mxu0
    %v3331 = vadd.f32 %v3056, %v3330
    %v3332 = vpop.f32.mrf.mxu0
    %v3333 = vadd.f32 %v3056, %v3332
    %3334 = vmatmul.bf16.gmra.mxu0 %v2493
    %v3335 = vpop.f32.mrf.mxu0
    %v3336 = vadd.f32 %v3056, %v3335
    %v3337 = vpop.f32.mrf.mxu0
    %v3338 = vadd.f32 %v3056, %v3337
    %3339 = vmatmul.bf16.gmra.mxu0 %v2494
    %v3340 = vpop.f32.mrf.mxu0
    %v3341 = vadd.f32 %v3056, %v3340
    %v3342 = vpop.f32.mrf.mxu0
    %v3343 = vadd.f32 %v3056, %v3342
    %3344 = vmatmul.bf16.gmra.mxu0 %v2495
    %v3345 = vpop.f32.mrf.mxu0
    %v3346 = vadd.f32 %v3056, %v3345
    %v3347 = vpop.f32.mrf.mxu0
    %v3348 = vadd.f32 %v3056, %v3347
    %3349 = vmatmul.bf16.gmra.mxu0 %v2496
    %v3350 = vpop.f32.mrf.mxu0
    %v3351 = vadd.f32 %v3056, %v3350
    %v3352 = vpop.f32.mrf.mxu0
    %v3353 = vadd.f32 %v3056, %v3352
    %3354 = vmatmul.bf16.gmra.mxu0 %v2497
    %v3355 = vpop.f32.mrf.mxu0
    %v3356 = vadd.f32 %v3056, %v3355
    %v3357 = vpop.f32.mrf.mxu0
    %v3358 = vadd.f32 %v3056, %v3357
    %3359 = vmatmul.bf16.gmra.mxu0 %v2498
    %v3360 = vpop.f32.mrf.mxu0
    %v3361 = vadd.f32 %v3056, %v3360
    %v3362 = vpop.f32.mrf.mxu0
    %v3363 = vadd.f32 %v3056, %v3362
    %3364 = vmatmul.bf16.gmra.mxu0 %v2499
    %v3365 = vpop.f32.mrf.mxu0
    %v3366 = vadd.f32 %v3056, %v3365
    %v3367 = vpop.f32.mrf.mxu0
    %v3368 = vadd.f32 %v3056, %v3367
    %3369 = vmatmul.bf16.gmra.mxu0 %v2500
    %v3370 = vpop.f32.mrf.mxu0
    %v3371 = vadd.f32 %v3056, %v3370
    %v3372 = vpop.f32.mrf.mxu0
    %v3373 = vadd.f32 %v3056, %v3372
    %3374 = vmatmul.bf16.gmra.mxu0 %v2501
    %v3375 = vpop.f32.mrf.mxu0
    %v3376 = vadd.f32 %v3056, %v3375
    %v3377 = vpop.f32.mrf.mxu0
    %v3378 = vadd.f32 %v3056, %v3377
    %3379 = vmatmul.bf16.gmra.mxu0 %v2502
    %v3380 = vpop.f32.mrf.mxu0
    %v3381 = vadd.f32 %v3056, %v3380
    %v3382 = vpop.f32.mrf.mxu0
    %v3383 = vadd.f32 %v3056, %v3382
    %3384 = vmatmul.bf16.gmra.mxu0 %v2503
    %v3385 = vpop.f32.mrf.mxu0
    %v3386 = vadd.f32 %v3056, %v3385
    %v3387 = vpop.f32.mrf.mxu0
    %v3388 = vadd.f32 %v3056, %v3387
    %3389 = vmatmul.bf16.gmra.mxu0 %v2504
    %v3390 = vpop.f32.mrf.mxu0
    %v3391 = vadd.f32 %v3056, %v3390
    %v3392 = vpop.f32.mrf.mxu0
    %v3393 = vadd.f32 %v3056, %v3392
    %3394 = vmatmul.bf16.gmra.mxu0 %v2505
    %v3395 = vpop.f32.mrf.mxu0
    %v3396 = vadd.f32 %v3056, %v3395
    %v3397 = vpop.f32.mrf.mxu0
    %v3398 = vadd.f32 %v3056, %v3397
    %3399 = vmatmul.bf16.gmra.mxu0 %v2506
    %v3400 = vpop.f32.mrf.mxu0
    %v3401 = vadd.f32 %v3056, %v3400
    %v3402 = vpop.f32.mrf.mxu0
    %v3403 = vadd.f32 %v3056, %v3402
    %3404 = vmatmul.bf16.gmra.mxu0 %v2507
    %v3405 = vpop.f32.mrf.mxu0
    %v3406 = vadd.f32 %v3056, %v3405
    %v3407 = vpop.f32.mrf.mxu0
    %v3408 = vadd.f32 %v3056, %v3407
    %3409 = vmatmul.bf16.gmra.mxu0 %v2508
    %v3410 = vpop.f32.mrf.mxu0
    %v3411 = vadd.f32 %v3056, %v3410
    %v3412 = vpop.f32.mrf.mxu0
    %v3413 = vadd.f32 %v3056, %v3412
    %3414 = vmatmul.bf16.gmra.mxu0 %v2509
    %v3415 = vpop.f32.mrf.mxu0
    %v3416 = vadd.f32 %v3056, %v3415
    %v3417 = vpop.f32.mrf.mxu0
    %v3418 = vadd.f32 %v3056, %v3417
    %3419 = vmatmul.bf16.gmra.mxu0 %v2510
    %v3420 = vpop.f32.mrf.mxu0
    %v3421 = vadd.f32 %v3056, %v3420
    %v3422 = vpop.f32.mrf.mxu0
    %v3423 = vadd.f32 %v3056, %v3422
    %3424 = vmatmul.bf16.gmra.mxu0 %v2511
    %v3425 = vpop.f32.mrf.mxu0
    %v3426 = vadd.f32 %v3056, %v3425
    %v3427 = vpop.f32.mrf.mxu0
    %v3428 = vadd.f32 %v3056, %v3427
    %3429 = vmatmul.bf16.gmra.mxu0 %v2512
    %v3430 = vpop.f32.mrf.mxu0
    %v3431 = vadd.f32 %v3056, %v3430
    %v3432 = vpop.f32.mrf.mxu0
    %v3433 = vadd.f32 %v3056, %v3432
    %3434 = vdwg.mxu0
    %v3435 = vpack.c.bf16 %v3116, %v3116
    %v3436 = vpack.c.bf16 %v3118, %v3118
    %v3437 = vpack.c.bf16 %v3121, %v3121
    %v3438 = vpack.c.bf16 %v3123, %v3123
    %v3439 = vpack.c.bf16 %v3126, %v3126
    %v3440 = vpack.c.bf16 %v3128, %v3128
    %v3441 = vpack.c.bf16 %v3131, %v3131
    %v3442 = vpack.c.bf16 %v3133, %v3133
    %v3443 = vpack.c.bf16 %v3136, %v3136
    %v3444 = vpack.c.bf16 %v3138, %v3138
    %v3445 = vpack.c.bf16 %v3141, %v3141
    %v3446 = vpack.c.bf16 %v3143, %v3143
    %v3447 = vpack.c.bf16 %v3146, %v3146
    %v3448 = vpack.c.bf16 %v3148, %v3148
    %v3449 = vpack.c.bf16 %v3151, %v3151
    %v3450 = vpack.c.bf16 %v3153, %v3153
    %v3451 = vpack.c.bf16 %v3156, %v3156
    %v3452 = vpack.c.bf16 %v3158, %v3158
    %v3453 = vpack.c.bf16 %v3161, %v3161
    %v3454 = vpack.c.bf16 %v3163, %v3163
    %v3455 = vpack.c.bf16 %v3166, %v3166
    %v3456 = vpack.c.bf16 %v3168, %v3168
    %v3457 = vpack.c.bf16 %v3171, %v3171
    %v3458 = vpack.c.bf16 %v3173, %v3173
    %v3459 = vpack.c.bf16 %v3176, %v3176
    %v3460 = vpack.c.bf16 %v3178, %v3178
    %v3461 = vpack.c.bf16 %v3181, %v3181
    %v3462 = vpack.c.bf16 %v3183, %v3183
    %v3463 = vpack.c.bf16 %v3186, %v3186
    %v3464 = vpack.c.bf16 %v3188, %v3188
    %v3465 = vpack.c.bf16 %v3191, %v3191
    %v3466 = vpack.c.bf16 %v3193, %v3193
    %v3467 = vpack.c.bf16 %v3196, %v3196
    %v3468 = vpack.c.bf16 %v3198, %v3198
    %v3469 = vpack.c.bf16 %v3201, %v3201
    %v3470 = vpack.c.bf16 %v3203, %v3203
    %v3471 = vpack.c.bf16 %v3206, %v3206
    %v3472 = vpack.c.bf16 %v3208, %v3208
    %v3473 = vpack.c.bf16 %v3211, %v3211
    %v3474 = vpack.c.bf16 %v3213, %v3213
    %v3475 = vpack.c.bf16 %v3216, %v3216
    %v3476 = vpack.c.bf16 %v3218, %v3218
    %v3477 = vpack.c.bf16 %v3221, %v3221
    %v3478 = vpack.c.bf16 %v3223, %v3223
    %v3479 = vpack.c.bf16 %v3226, %v3226
    %v3480 = vpack.c.bf16 %v3228, %v3228
    %v3481 = vpack.c.bf16 %v3231, %v3231
    %v3482 = vpack.c.bf16 %v3233, %v3233
    %v3483 = vpack.c.bf16 %v3236, %v3236
    %v3484 = vpack.c.bf16 %v3238, %v3238
    %v3485 = vpack.c.bf16 %v3241, %v3241
    %v3486 = vpack.c.bf16 %v3243, %v3243
    %v3487 = vpack.c.bf16 %v3246, %v3246
    %v3488 = vpack.c.bf16 %v3248, %v3248
    %v3489 = vpack.c.bf16 %v3251, %v3251
    %v3490 = vpack.c.bf16 %v3253, %v3253
    %v3491 = vpack.c.bf16 %v3256, %v3256
    %v3492 = vpack.c.bf16 %v3258, %v3258
    %v3493 = vpack.c.bf16 %v3261, %v3261
    %v3494 = vpack.c.bf16 %v3263, %v3263
    %v3495 = vpack.c.bf16 %v3266, %v3266
    %v3496 = vpack.c.bf16 %v3268, %v3268
    %v3497 = vpack.c.bf16 %v3271, %v3271
    %v3498 = vpack.c.bf16 %v3273, %v3273
    %v3499 = vpack.c.bf16 %v3276, %v3276
    %v3500 = vpack.c.bf16 %v3278, %v3278
    %v3501 = vpack.c.bf16 %v3281, %v3281
    %v3502 = vpack.c.bf16 %v3283, %v3283
    %v3503 = vpack.c.bf16 %v3286, %v3286
    %v3504 = vpack.c.bf16 %v3288, %v3288
    %v3505 = vpack.c.bf16 %v3291, %v3291
    %v3506 = vpack.c.bf16 %v3293, %v3293
    %v3507 = vpack.c.bf16 %v3296, %v3296
    %v3508 = vpack.c.bf16 %v3298, %v3298
    %v3509 = vpack.c.bf16 %v3301, %v3301
    %v3510 = vpack.c.bf16 %v3303, %v3303
    %v3511 = vpack.c.bf16 %v3306, %v3306
    %v3512 = vpack.c.bf16 %v3308, %v3308
    %v3513 = vpack.c.bf16 %v3311, %v3311
    %v3514 = vpack.c.bf16 %v3313, %v3313
    %v3515 = vpack.c.bf16 %v3316, %v3316
    %v3516 = vpack.c.bf16 %v3318, %v3318
    %v3517 = vpack.c.bf16 %v3321, %v3321
    %v3518 = vpack.c.bf16 %v3323, %v3323
    %v3519 = vpack.c.bf16 %v3326, %v3326
    %v3520 = vpack.c.bf16 %v3328, %v3328
    %v3521 = vpack.c.bf16 %v3331, %v3331
    %v3522 = vpack.c.bf16 %v3333, %v3333
    %v3523 = vpack.c.bf16 %v3336, %v3336
    %v3524 = vpack.c.bf16 %v3338, %v3338
    %v3525 = vpack.c.bf16 %v3341, %v3341
    %v3526 = vpack.c.bf16 %v3343, %v3343
    %v3527 = vpack.c.bf16 %v3346, %v3346
    %v3528 = vpack.c.bf16 %v3348, %v3348
    %v3529 = vpack.c.bf16 %v3351, %v3351
    %v3530 = vpack.c.bf16 %v3353, %v3353
    %v3531 = vpack.c.bf16 %v3356, %v3356
    %v3532 = vpack.c.bf16 %v3358, %v3358
    %v3533 = vpack.c.bf16 %v3361, %v3361
    %v3534 = vpack.c.bf16 %v3363, %v3363
    %v3535 = vpack.c.bf16 %v3366, %v3366
    %v3536 = vpack.c.bf16 %v3368, %v3368
    %v3537 = vpack.c.bf16 %v3371, %v3371
    %v3538 = vpack.c.bf16 %v3373, %v3373
    %v3539 = vpack.c.bf16 %v3376, %v3376
    %v3540 = vpack.c.bf16 %v3378, %v3378
    %v3541 = vpack.c.bf16 %v3381, %v3381
    %v3542 = vpack.c.bf16 %v3383, %v3383
    %v3543 = vpack.c.bf16 %v3386, %v3386
    %v3544 = vpack.c.bf16 %v3388, %v3388
    %v3545 = vpack.c.bf16 %v3391, %v3391
    %v3546 = vpack.c.bf16 %v3393, %v3393
    %v3547 = vpack.c.bf16 %v3396, %v3396
    %v3548 = vpack.c.bf16 %v3398, %v3398
    %v3549 = vpack.c.bf16 %v3401, %v3401
    %v3550 = vpack.c.bf16 %v3403, %v3403
    %v3551 = vpack.c.bf16 %v3406, %v3406
    %v3552 = vpack.c.bf16 %v3408, %v3408
    %v3553 = vpack.c.bf16 %v3411, %v3411
    %v3554 = vpack.c.bf16 %v3413, %v3413
    %v3555 = vpack.c.bf16 %v3416, %v3416
    %v3556 = vpack.c.bf16 %v3418, %v3418
    %v3557 = vpack.c.bf16 %v3421, %v3421
    %v3558 = vpack.c.bf16 %v3423, %v3423
    %v3559 = vpack.c.bf16 %v3426, %v3426
    %v3560 = vpack.c.bf16 %v3428, %v3428
    %v3561 = vpack.c.bf16 %v3431, %v3431
    %v3562 = vpack.c.bf16 %v3433, %v3433
    %v3563 = vld [vmem:[#allocation8] sm:$0xf]
    %v3564 = vld [vmem:[#allocation8 + $0x4] sm:$0xf]
    %v3565 = vld [vmem:[#allocation8 + $0x8] sm:$0xf]
    %v3566 = vld [vmem:[#allocation8 + $0xc] sm:$0xf]
    %v3567 = vld [vmem:[#allocation8 + $0x10] sm:$0xf]
    %v3568 = vld [vmem:[#allocation8 + $0x14] sm:$0xf]
    %v3569 = vld [vmem:[#allocation8 + $0x18] sm:$0xf]
    %v3570 = vld [vmem:[#allocation8 + $0x1c] sm:$0xf]
    %v3571 = vld [vmem:[#allocation8 + $0x20] sm:$0xf]
    %v3572 = vld [vmem:[#allocation8 + $0x24] sm:$0xf]
    %v3573 = vld [vmem:[#allocation8 + $0x28] sm:$0xf]
    %v3574 = vld [vmem:[#allocation8 + $0x2c] sm:$0xf]
    %v3575 = vld [vmem:[#allocation8 + $0x30] sm:$0xf]
    %v3576 = vld [vmem:[#allocation8 + $0x34] sm:$0xf]
    %v3577 = vld [vmem:[#allocation8 + $0x38] sm:$0xf]
    %v3578 = vld [vmem:[#allocation8 + $0x3c] sm:$0xf]
    %v3579 = vld [vmem:[#allocation10] sm:$0x1]
    %v3581 = vperm.slane %v3579, 0
    %v3599 = vunpack.c.l.b16 %v3563
    %v3600 = vunpack.c.l.b16 %v3564
    %v3601 = vunpack.c.l.b16 %v3565
    %v3602 = vunpack.c.l.b16 %v3566
    %v3603 = vunpack.c.l.b16 %v3567
    %v3604 = vunpack.c.l.b16 %v3568
    %v3605 = vunpack.c.l.b16 %v3569
    %v3606 = vunpack.c.l.b16 %v3570
    %v3607 = vunpack.c.l.b16 %v3571
    %v3608 = vunpack.c.l.b16 %v3572
    %v3609 = vunpack.c.l.b16 %v3573
    %v3610 = vunpack.c.l.b16 %v3574
    %v3611 = vunpack.c.l.b16 %v3575
    %v3612 = vunpack.c.l.b16 %v3576
    %v3613 = vunpack.c.l.b16 %v3577
    %v3614 = vunpack.c.l.b16 %v3578
    %v3615 = vpack.c.b16 %v3600, %v3599
    %v3616 = vpack.c.b16 %v3602, %v3601
    %v3617 = vpack.c.b16 %v3604, %v3603
    %v3618 = vpack.c.b16 %v3606, %v3605
    %v3619 = vpack.c.b16 %v3608, %v3607
    %v3620 = vpack.c.b16 %v3610, %v3609
    %v3621 = vpack.c.b16 %v3612, %v3611
    %v3622 = vpack.c.b16 %v3614, %v3613
    %3631 = vmatpush.bf16.msra.mxu0 %v3622
    %3632 = vmatpush.bf16.msra.mxu0 %v3621
    %3633 = vmatpush.bf16.msra.mxu0 %v3620
    %3634 = vmatpush.bf16.msra.mxu0 %v3619
    %3635 = vmatpush.bf16.msra.mxu0 %v3618
    %3636 = vmatpush.bf16.msra.mxu0 %v3617
    %3637 = vmatpush.bf16.msra.mxu0 %v3616
    %3638 = vmatpush.bf16.msra.mxu0 %v3615
    %3639 = vmatmul.bf16.gmra.mxu0 %v2449
    %v3640 = vpop.f32.mrf.mxu0
    %v3641 = vadd.f32 %v3581, %v3640
    %v3642 = vpop.f32.mrf.mxu0
    %v3643 = vadd.f32 %v3581, %v3642
    %3644 = vmatmul.bf16.gmra.mxu0 %v2450
    %v3645 = vpop.f32.mrf.mxu0
    %v3646 = vadd.f32 %v3581, %v3645
    %v3647 = vpop.f32.mrf.mxu0
    %v3648 = vadd.f32 %v3581, %v3647
    %3649 = vmatmul.bf16.gmra.mxu0 %v2451
    %v3650 = vpop.f32.mrf.mxu0
    %v3651 = vadd.f32 %v3581, %v3650
    %v3652 = vpop.f32.mrf.mxu0
    %v3653 = vadd.f32 %v3581, %v3652
    %3654 = vmatmul.bf16.gmra.mxu0 %v2452
    %v3655 = vpop.f32.mrf.mxu0
    %v3656 = vadd.f32 %v3581, %v3655
    %v3657 = vpop.f32.mrf.mxu0
    %v3658 = vadd.f32 %v3581, %v3657
    %3659 = vmatmul.bf16.gmra.mxu0 %v2453
    %v3660 = vpop.f32.mrf.mxu0
    %v3661 = vadd.f32 %v3581, %v3660
    %v3662 = vpop.f32.mrf.mxu0
    %v3663 = vadd.f32 %v3581, %v3662
    %3664 = vmatmul.bf16.gmra.mxu0 %v2454
    %v3665 = vpop.f32.mrf.mxu0
    %v3666 = vadd.f32 %v3581, %v3665
    %v3667 = vpop.f32.mrf.mxu0
    %v3668 = vadd.f32 %v3581, %v3667
    %3669 = vmatmul.bf16.gmra.mxu0 %v2455
    %v3670 = vpop.f32.mrf.mxu0
    %v3671 = vadd.f32 %v3581, %v3670
    %v3672 = vpop.f32.mrf.mxu0
    %v3673 = vadd.f32 %v3581, %v3672
    %3674 = vmatmul.bf16.gmra.mxu0 %v2456
    %v3675 = vpop.f32.mrf.mxu0
    %v3676 = vadd.f32 %v3581, %v3675
    %v3677 = vpop.f32.mrf.mxu0
    %v3678 = vadd.f32 %v3581, %v3677
    %3679 = vmatmul.bf16.gmra.mxu0 %v2457
    %v3680 = vpop.f32.mrf.mxu0
    %v3681 = vadd.f32 %v3581, %v3680
    %v3682 = vpop.f32.mrf.mxu0
    %v3683 = vadd.f32 %v3581, %v3682
    %3684 = vmatmul.bf16.gmra.mxu0 %v2458
    %v3685 = vpop.f32.mrf.mxu0
    %v3686 = vadd.f32 %v3581, %v3685
    %v3687 = vpop.f32.mrf.mxu0
    %v3688 = vadd.f32 %v3581, %v3687
    %3689 = vmatmul.bf16.gmra.mxu0 %v2459
    %v3690 = vpop.f32.mrf.mxu0
    %v3691 = vadd.f32 %v3581, %v3690
    %v3692 = vpop.f32.mrf.mxu0
    %v3693 = vadd.f32 %v3581, %v3692
    %3694 = vmatmul.bf16.gmra.mxu0 %v2460
    %v3695 = vpop.f32.mrf.mxu0
    %v3696 = vadd.f32 %v3581, %v3695
    %v3697 = vpop.f32.mrf.mxu0
    %v3698 = vadd.f32 %v3581, %v3697
    %3699 = vmatmul.bf16.gmra.mxu0 %v2461
    %v3700 = vpop.f32.mrf.mxu0
    %v3701 = vadd.f32 %v3581, %v3700
    %v3702 = vpop.f32.mrf.mxu0
    %v3703 = vadd.f32 %v3581, %v3702
    %3704 = vmatmul.bf16.gmra.mxu0 %v2462
    %v3705 = vpop.f32.mrf.mxu0
    %v3706 = vadd.f32 %v3581, %v3705
    %v3707 = vpop.f32.mrf.mxu0
    %v3708 = vadd.f32 %v3581, %v3707
    %3709 = vmatmul.bf16.gmra.mxu0 %v2463
    %v3710 = vpop.f32.mrf.mxu0
    %v3711 = vadd.f32 %v3581, %v3710
    %v3712 = vpop.f32.mrf.mxu0
    %v3713 = vadd.f32 %v3581, %v3712
    %3714 = vmatmul.bf16.gmra.mxu0 %v2464
    %v3715 = vpop.f32.mrf.mxu0
    %v3716 = vadd.f32 %v3581, %v3715
    %v3717 = vpop.f32.mrf.mxu0
    %v3718 = vadd.f32 %v3581, %v3717
    %3719 = vmatmul.bf16.gmra.mxu0 %v2465
    %v3720 = vpop.f32.mrf.mxu0
    %v3721 = vadd.f32 %v3581, %v3720
    %v3722 = vpop.f32.mrf.mxu0
    %v3723 = vadd.f32 %v3581, %v3722
    %3724 = vmatmul.bf16.gmra.mxu0 %v2466
    %v3725 = vpop.f32.mrf.mxu0
    %v3726 = vadd.f32 %v3581, %v3725
    %v3727 = vpop.f32.mrf.mxu0
    %v3728 = vadd.f32 %v3581, %v3727
    %3729 = vmatmul.bf16.gmra.mxu0 %v2467
    %v3730 = vpop.f32.mrf.mxu0
    %v3731 = vadd.f32 %v3581, %v3730
    %v3732 = vpop.f32.mrf.mxu0
    %v3733 = vadd.f32 %v3581, %v3732
    %3734 = vmatmul.bf16.gmra.mxu0 %v2468
    %v3735 = vpop.f32.mrf.mxu0
    %v3736 = vadd.f32 %v3581, %v3735
    %v3737 = vpop.f32.mrf.mxu0
    %v3738 = vadd.f32 %v3581, %v3737
    %3739 = vmatmul.bf16.gmra.mxu0 %v2469
    %v3740 = vpop.f32.mrf.mxu0
    %v3741 = vadd.f32 %v3581, %v3740
    %v3742 = vpop.f32.mrf.mxu0
    %v3743 = vadd.f32 %v3581, %v3742
    %3744 = vmatmul.bf16.gmra.mxu0 %v2470
    %v3745 = vpop.f32.mrf.mxu0
    %v3746 = vadd.f32 %v3581, %v3745
    %v3747 = vpop.f32.mrf.mxu0
    %v3748 = vadd.f32 %v3581, %v3747
    %3749 = vmatmul.bf16.gmra.mxu0 %v2471
    %v3750 = vpop.f32.mrf.mxu0
    %v3751 = vadd.f32 %v3581, %v3750
    %v3752 = vpop.f32.mrf.mxu0
    %v3753 = vadd.f32 %v3581, %v3752
    %3754 = vmatmul.bf16.gmra.mxu0 %v2472
    %v3755 = vpop.f32.mrf.mxu0
    %v3756 = vadd.f32 %v3581, %v3755
    %v3757 = vpop.f32.mrf.mxu0
    %v3758 = vadd.f32 %v3581, %v3757
    %3759 = vmatmul.bf16.gmra.mxu0 %v2473
    %v3760 = vpop.f32.mrf.mxu0
    %v3761 = vadd.f32 %v3581, %v3760
    %v3762 = vpop.f32.mrf.mxu0
    %v3763 = vadd.f32 %v3581, %v3762
    %3764 = vmatmul.bf16.gmra.mxu0 %v2474
    %v3765 = vpop.f32.mrf.mxu0
    %v3766 = vadd.f32 %v3581, %v3765
    %v3767 = vpop.f32.mrf.mxu0
    %v3768 = vadd.f32 %v3581, %v3767
    %3769 = vmatmul.bf16.gmra.mxu0 %v2475
    %v3770 = vpop.f32.mrf.mxu0
    %v3771 = vadd.f32 %v3581, %v3770
    %v3772 = vpop.f32.mrf.mxu0
    %v3773 = vadd.f32 %v3581, %v3772
    %3774 = vmatmul.bf16.gmra.mxu0 %v2476
    %v3775 = vpop.f32.mrf.mxu0
    %v3776 = vadd.f32 %v3581, %v3775
    %v3777 = vpop.f32.mrf.mxu0
    %v3778 = vadd.f32 %v3581, %v3777
    %3779 = vmatmul.bf16.gmra.mxu0 %v2477
    %v3780 = vpop.f32.mrf.mxu0
    %v3781 = vadd.f32 %v3581, %v3780
    %v3782 = vpop.f32.mrf.mxu0
    %v3783 = vadd.f32 %v3581, %v3782
    %3784 = vmatmul.bf16.gmra.mxu0 %v2478
    %v3785 = vpop.f32.mrf.mxu0
    %v3786 = vadd.f32 %v3581, %v3785
    %v3787 = vpop.f32.mrf.mxu0
    %v3788 = vadd.f32 %v3581, %v3787
    %3789 = vmatmul.bf16.gmra.mxu0 %v2479
    %v3790 = vpop.f32.mrf.mxu0
    %v3791 = vadd.f32 %v3581, %v3790
    %v3792 = vpop.f32.mrf.mxu0
    %v3793 = vadd.f32 %v3581, %v3792
    %3794 = vmatmul.bf16.gmra.mxu0 %v2480
    %v3795 = vpop.f32.mrf.mxu0
    %v3796 = vadd.f32 %v3581, %v3795
    %v3797 = vpop.f32.mrf.mxu0
    %v3798 = vadd.f32 %v3581, %v3797
    %3799 = vmatmul.bf16.gmra.mxu0 %v2481
    %v3800 = vpop.f32.mrf.mxu0
    %v3801 = vadd.f32 %v3581, %v3800
    %v3802 = vpop.f32.mrf.mxu0
    %v3803 = vadd.f32 %v3581, %v3802
    %3804 = vmatmul.bf16.gmra.mxu0 %v2482
    %v3805 = vpop.f32.mrf.mxu0
    %v3806 = vadd.f32 %v3581, %v3805
    %v3807 = vpop.f32.mrf.mxu0
    %v3808 = vadd.f32 %v3581, %v3807
    %3809 = vmatmul.bf16.gmra.mxu0 %v2483
    %v3810 = vpop.f32.mrf.mxu0
    %v3811 = vadd.f32 %v3581, %v3810
    %v3812 = vpop.f32.mrf.mxu0
    %v3813 = vadd.f32 %v3581, %v3812
    %3814 = vmatmul.bf16.gmra.mxu0 %v2484
    %v3815 = vpop.f32.mrf.mxu0
    %v3816 = vadd.f32 %v3581, %v3815
    %v3817 = vpop.f32.mrf.mxu0
    %v3818 = vadd.f32 %v3581, %v3817
    %3819 = vmatmul.bf16.gmra.mxu0 %v2485
    %v3820 = vpop.f32.mrf.mxu0
    %v3821 = vadd.f32 %v3581, %v3820
    %v3822 = vpop.f32.mrf.mxu0
    %v3823 = vadd.f32 %v3581, %v3822
    %3824 = vmatmul.bf16.gmra.mxu0 %v2486
    %v3825 = vpop.f32.mrf.mxu0
    %v3826 = vadd.f32 %v3581, %v3825
    %v3827 = vpop.f32.mrf.mxu0
    %v3828 = vadd.f32 %v3581, %v3827
    %3829 = vmatmul.bf16.gmra.mxu0 %v2487
    %v3830 = vpop.f32.mrf.mxu0
    %v3831 = vadd.f32 %v3581, %v3830
    %v3832 = vpop.f32.mrf.mxu0
    %v3833 = vadd.f32 %v3581, %v3832
    %3834 = vmatmul.bf16.gmra.mxu0 %v2488
    %v3835 = vpop.f32.mrf.mxu0
    %v3836 = vadd.f32 %v3581, %v3835
    %v3837 = vpop.f32.mrf.mxu0
    %v3838 = vadd.f32 %v3581, %v3837
    %3839 = vmatmul.bf16.gmra.mxu0 %v2489
    %v3840 = vpop.f32.mrf.mxu0
    %v3841 = vadd.f32 %v3581, %v3840
    %v3842 = vpop.f32.mrf.mxu0
    %v3843 = vadd.f32 %v3581, %v3842
    %3844 = vmatmul.bf16.gmra.mxu0 %v2490
    %v3845 = vpop.f32.mrf.mxu0
    %v3846 = vadd.f32 %v3581, %v3845
    %v3847 = vpop.f32.mrf.mxu0
    %v3848 = vadd.f32 %v3581, %v3847
    %3849 = vmatmul.bf16.gmra.mxu0 %v2491
    %v3850 = vpop.f32.mrf.mxu0
    %v3851 = vadd.f32 %v3581, %v3850
    %v3852 = vpop.f32.mrf.mxu0
    %v3853 = vadd.f32 %v3581, %v3852
    %3854 = vmatmul.bf16.gmra.mxu0 %v2492
    %v3855 = vpop.f32.mrf.mxu0
    %v3856 = vadd.f32 %v3581, %v3855
    %v3857 = vpop.f32.mrf.mxu0
    %v3858 = vadd.f32 %v3581, %v3857
    %3859 = vmatmul.bf16.gmra.mxu0 %v2493
    %v3860 = vpop.f32.mrf.mxu0
    %v3861 = vadd.f32 %v3581, %v3860
    %v3862 = vpop.f32.mrf.mxu0
    %v3863 = vadd.f32 %v3581, %v3862
    %3864 = vmatmul.bf16.gmra.mxu0 %v2494
    %v3865 = vpop.f32.mrf.mxu0
    %v3866 = vadd.f32 %v3581, %v3865
    %v3867 = vpop.f32.mrf.mxu0
    %v3868 = vadd.f32 %v3581, %v3867
    %3869 = vmatmul.bf16.gmra.mxu0 %v2495
    %v3870 = vpop.f32.mrf.mxu0
    %v3871 = vadd.f32 %v3581, %v3870
    %v3872 = vpop.f32.mrf.mxu0
    %v3873 = vadd.f32 %v3581, %v3872
    %3874 = vmatmul.bf16.gmra.mxu0 %v2496
    %v3875 = vpop.f32.mrf.mxu0
    %v3876 = vadd.f32 %v3581, %v3875
    %v3877 = vpop.f32.mrf.mxu0
    %v3878 = vadd.f32 %v3581, %v3877
    %3879 = vmatmul.bf16.gmra.mxu0 %v2497
    %v3880 = vpop.f32.mrf.mxu0
    %v3881 = vadd.f32 %v3581, %v3880
    %v3882 = vpop.f32.mrf.mxu0
    %v3883 = vadd.f32 %v3581, %v3882
    %3884 = vmatmul.bf16.gmra.mxu0 %v2498
    %v3885 = vpop.f32.mrf.mxu0
    %v3886 = vadd.f32 %v3581, %v3885
    %v3887 = vpop.f32.mrf.mxu0
    %v3888 = vadd.f32 %v3581, %v3887
    %3889 = vmatmul.bf16.gmra.mxu0 %v2499
    %v3890 = vpop.f32.mrf.mxu0
    %v3891 = vadd.f32 %v3581, %v3890
    %v3892 = vpop.f32.mrf.mxu0
    %v3893 = vadd.f32 %v3581, %v3892
    %3894 = vmatmul.bf16.gmra.mxu0 %v2500
    %v3895 = vpop.f32.mrf.mxu0
    %v3896 = vadd.f32 %v3581, %v3895
    %v3897 = vpop.f32.mrf.mxu0
    %v3898 = vadd.f32 %v3581, %v3897
    %3899 = vmatmul.bf16.gmra.mxu0 %v2501
    %v3900 = vpop.f32.mrf.mxu0
    %v3901 = vadd.f32 %v3581, %v3900
    %v3902 = vpop.f32.mrf.mxu0
    %v3903 = vadd.f32 %v3581, %v3902
    %3904 = vmatmul.bf16.gmra.mxu0 %v2502
    %v3905 = vpop.f32.mrf.mxu0
    %v3906 = vadd.f32 %v3581, %v3905
    %v3907 = vpop.f32.mrf.mxu0
    %v3908 = vadd.f32 %v3581, %v3907
    %3909 = vmatmul.bf16.gmra.mxu0 %v2503
    %v3910 = vpop.f32.mrf.mxu0
    %v3911 = vadd.f32 %v3581, %v3910
    %v3912 = vpop.f32.mrf.mxu0
    %v3913 = vadd.f32 %v3581, %v3912
    %3914 = vmatmul.bf16.gmra.mxu0 %v2504
    %v3915 = vpop.f32.mrf.mxu0
    %v3916 = vadd.f32 %v3581, %v3915
    %v3917 = vpop.f32.mrf.mxu0
    %v3918 = vadd.f32 %v3581, %v3917
    %3919 = vmatmul.bf16.gmra.mxu0 %v2505
    %v3920 = vpop.f32.mrf.mxu0
    %v3921 = vadd.f32 %v3581, %v3920
    %v3922 = vpop.f32.mrf.mxu0
    %v3923 = vadd.f32 %v3581, %v3922
    %3924 = vmatmul.bf16.gmra.mxu0 %v2506
    %v3925 = vpop.f32.mrf.mxu0
    %v3926 = vadd.f32 %v3581, %v3925
    %v3927 = vpop.f32.mrf.mxu0
    %v3928 = vadd.f32 %v3581, %v3927
    %3929 = vmatmul.bf16.gmra.mxu0 %v2507
    %v3930 = vpop.f32.mrf.mxu0
    %v3931 = vadd.f32 %v3581, %v3930
    %v3932 = vpop.f32.mrf.mxu0
    %v3933 = vadd.f32 %v3581, %v3932
    %3934 = vmatmul.bf16.gmra.mxu0 %v2508
    %v3935 = vpop.f32.mrf.mxu0
    %v3936 = vadd.f32 %v3581, %v3935
    %v3937 = vpop.f32.mrf.mxu0
    %v3938 = vadd.f32 %v3581, %v3937
    %3939 = vmatmul.bf16.gmra.mxu0 %v2509
    %v3940 = vpop.f32.mrf.mxu0
    %v3941 = vadd.f32 %v3581, %v3940
    %v3942 = vpop.f32.mrf.mxu0
    %v3943 = vadd.f32 %v3581, %v3942
    %3944 = vmatmul.bf16.gmra.mxu0 %v2510
    %v3945 = vpop.f32.mrf.mxu0
    %v3946 = vadd.f32 %v3581, %v3945
    %v3947 = vpop.f32.mrf.mxu0
    %v3948 = vadd.f32 %v3581, %v3947
    %3949 = vmatmul.bf16.gmra.mxu0 %v2511
    %v3950 = vpop.f32.mrf.mxu0
    %v3951 = vadd.f32 %v3581, %v3950
    %v3952 = vpop.f32.mrf.mxu0
    %v3953 = vadd.f32 %v3581, %v3952
    %3954 = vmatmul.bf16.gmra.mxu0 %v2512
    %v3955 = vpop.f32.mrf.mxu0
    %v3956 = vadd.f32 %v3581, %v3955
    %v3957 = vpop.f32.mrf.mxu0
    %v3958 = vadd.f32 %v3581, %v3957
    %3959 = vdwg.mxu0
    %v3960 = vpack.c.bf16 %v3641, %v3641
    %v3961 = vpack.c.bf16 %v3643, %v3643
    %v3962 = vpack.c.bf16 %v3646, %v3646
    %v3963 = vpack.c.bf16 %v3648, %v3648
    %v3964 = vpack.c.bf16 %v3651, %v3651
    %v3965 = vpack.c.bf16 %v3653, %v3653
    %v3966 = vpack.c.bf16 %v3656, %v3656
    %v3967 = vpack.c.bf16 %v3658, %v3658
    %v3968 = vpack.c.bf16 %v3661, %v3661
    %v3969 = vpack.c.bf16 %v3663, %v3663
    %v3970 = vpack.c.bf16 %v3666, %v3666
    %v3971 = vpack.c.bf16 %v3668, %v3668
    %v3972 = vpack.c.bf16 %v3671, %v3671
    %v3973 = vpack.c.bf16 %v3673, %v3673
    %v3974 = vpack.c.bf16 %v3676, %v3676
    %v3975 = vpack.c.bf16 %v3678, %v3678
    %v3976 = vpack.c.bf16 %v3681, %v3681
    %v3977 = vpack.c.bf16 %v3683, %v3683
    %v3978 = vpack.c.bf16 %v3686, %v3686
    %v3979 = vpack.c.bf16 %v3688, %v3688
    %v3980 = vpack.c.bf16 %v3691, %v3691
    %v3981 = vpack.c.bf16 %v3693, %v3693
    %v3982 = vpack.c.bf16 %v3696, %v3696
    %v3983 = vpack.c.bf16 %v3698, %v3698
    %v3984 = vpack.c.bf16 %v3701, %v3701
    %v3985 = vpack.c.bf16 %v3703, %v3703
    %v3986 = vpack.c.bf16 %v3706, %v3706
    %v3987 = vpack.c.bf16 %v3708, %v3708
    %v3988 = vpack.c.bf16 %v3711, %v3711
    %v3989 = vpack.c.bf16 %v3713, %v3713
    %v3990 = vpack.c.bf16 %v3716, %v3716
    %v3991 = vpack.c.bf16 %v3718, %v3718
    %v3992 = vpack.c.bf16 %v3721, %v3721
    %v3993 = vpack.c.bf16 %v3723, %v3723
    %v3994 = vpack.c.bf16 %v3726, %v3726
    %v3995 = vpack.c.bf16 %v3728, %v3728
    %v3996 = vpack.c.bf16 %v3731, %v3731
    %v3997 = vpack.c.bf16 %v3733, %v3733
    %v3998 = vpack.c.bf16 %v3736, %v3736
    %v3999 = vpack.c.bf16 %v3738, %v3738
    %v4000 = vpack.c.bf16 %v3741, %v3741
    %v4001 = vpack.c.bf16 %v3743, %v3743
    %v4002 = vpack.c.bf16 %v3746, %v3746
    %v4003 = vpack.c.bf16 %v3748, %v3748
    %v4004 = vpack.c.bf16 %v3751, %v3751
    %v4005 = vpack.c.bf16 %v3753, %v3753
    %v4006 = vpack.c.bf16 %v3756, %v3756
    %v4007 = vpack.c.bf16 %v3758, %v3758
    %v4008 = vpack.c.bf16 %v3761, %v3761
    %v4009 = vpack.c.bf16 %v3763, %v3763
    %v4010 = vpack.c.bf16 %v3766, %v3766
    %v4011 = vpack.c.bf16 %v3768, %v3768
    %v4012 = vpack.c.bf16 %v3771, %v3771
    %v4013 = vpack.c.bf16 %v3773, %v3773
    %v4014 = vpack.c.bf16 %v3776, %v3776
    %v4015 = vpack.c.bf16 %v3778, %v3778
    %v4016 = vpack.c.bf16 %v3781, %v3781
    %v4017 = vpack.c.bf16 %v3783, %v3783
    %v4018 = vpack.c.bf16 %v3786, %v3786
    %v4019 = vpack.c.bf16 %v3788, %v3788
    %v4020 = vpack.c.bf16 %v3791, %v3791
    %v4021 = vpack.c.bf16 %v3793, %v3793
    %v4022 = vpack.c.bf16 %v3796, %v3796
    %v4023 = vpack.c.bf16 %v3798, %v3798
    %v4024 = vpack.c.bf16 %v3801, %v3801
    %v4025 = vpack.c.bf16 %v3803, %v3803
    %v4026 = vpack.c.bf16 %v3806, %v3806
    %v4027 = vpack.c.bf16 %v3808, %v3808
    %v4028 = vpack.c.bf16 %v3811, %v3811
    %v4029 = vpack.c.bf16 %v3813, %v3813
    %v4030 = vpack.c.bf16 %v3816, %v3816
    %v4031 = vpack.c.bf16 %v3818, %v3818
    %v4032 = vpack.c.bf16 %v3821, %v3821
    %v4033 = vpack.c.bf16 %v3823, %v3823
    %v4034 = vpack.c.bf16 %v3826, %v3826
    %v4035 = vpack.c.bf16 %v3828, %v3828
    %v4036 = vpack.c.bf16 %v3831, %v3831
    %v4037 = vpack.c.bf16 %v3833, %v3833
    %v4038 = vpack.c.bf16 %v3836, %v3836
    %v4039 = vpack.c.bf16 %v3838, %v3838
    %v4040 = vpack.c.bf16 %v3841, %v3841
    %v4041 = vpack.c.bf16 %v3843, %v3843
    %v4042 = vpack.c.bf16 %v3846, %v3846
    %v4043 = vpack.c.bf16 %v3848, %v3848
    %v4044 = vpack.c.bf16 %v3851, %v3851
    %v4045 = vpack.c.bf16 %v3853, %v3853
    %v4046 = vpack.c.bf16 %v3856, %v3856
    %v4047 = vpack.c.bf16 %v3858, %v3858
    %v4048 = vpack.c.bf16 %v3861, %v3861
    %v4049 = vpack.c.bf16 %v3863, %v3863
    %v4050 = vpack.c.bf16 %v3866, %v3866
    %v4051 = vpack.c.bf16 %v3868, %v3868
    %v4052 = vpack.c.bf16 %v3871, %v3871
    %v4053 = vpack.c.bf16 %v3873, %v3873
    %v4054 = vpack.c.bf16 %v3876, %v3876
    %v4055 = vpack.c.bf16 %v3878, %v3878
    %v4056 = vpack.c.bf16 %v3881, %v3881
    %v4057 = vpack.c.bf16 %v3883, %v3883
    %v4058 = vpack.c.bf16 %v3886, %v3886
    %v4059 = vpack.c.bf16 %v3888, %v3888
    %v4060 = vpack.c.bf16 %v3891, %v3891
    %v4061 = vpack.c.bf16 %v3893, %v3893
    %v4062 = vpack.c.bf16 %v3896, %v3896
    %v4063 = vpack.c.bf16 %v3898, %v3898
    %v4064 = vpack.c.bf16 %v3901, %v3901
    %v4065 = vpack.c.bf16 %v3903, %v3903
    %v4066 = vpack.c.bf16 %v3906, %v3906
    %v4067 = vpack.c.bf16 %v3908, %v3908
    %v4068 = vpack.c.bf16 %v3911, %v3911
    %v4069 = vpack.c.bf16 %v3913, %v3913
    %v4070 = vpack.c.bf16 %v3916, %v3916
    %v4071 = vpack.c.bf16 %v3918, %v3918
    %v4072 = vpack.c.bf16 %v3921, %v3921
    %v4073 = vpack.c.bf16 %v3923, %v3923
    %v4074 = vpack.c.bf16 %v3926, %v3926
    %v4075 = vpack.c.bf16 %v3928, %v3928
    %v4076 = vpack.c.bf16 %v3931, %v3931
    %v4077 = vpack.c.bf16 %v3933, %v3933
    %v4078 = vpack.c.bf16 %v3936, %v3936
    %v4079 = vpack.c.bf16 %v3938, %v3938
    %v4080 = vpack.c.bf16 %v3941, %v3941
    %v4081 = vpack.c.bf16 %v3943, %v3943
    %v4082 = vpack.c.bf16 %v3946, %v3946
    %v4083 = vpack.c.bf16 %v3948, %v3948
    %v4084 = vpack.c.bf16 %v3951, %v3951
    %v4085 = vpack.c.bf16 %v3953, %v3953
    %v4086 = vpack.c.bf16 %v3956, %v3956
    %v4087 = vpack.c.bf16 %v3958, %v3958
    %v4088 = vld [vmem:[#allocation11] sm:$0xf]
    %v4089 = vld [vmem:[#allocation11 + $0x4] sm:$0xf]
    %v4090 = vld [vmem:[#allocation11 + $0x8] sm:$0xf]
    %v4091 = vld [vmem:[#allocation11 + $0xc] sm:$0xf]
    %v4092 = vld [vmem:[#allocation11 + $0x10] sm:$0xf]
    %v4093 = vld [vmem:[#allocation11 + $0x14] sm:$0xf]
    %v4094 = vld [vmem:[#allocation11 + $0x18] sm:$0xf]
    %v4095 = vld [vmem:[#allocation11 + $0x1c] sm:$0xf]
    %v4096 = vld [vmem:[#allocation11 + $0x20] sm:$0xf]
    %v4097 = vld [vmem:[#allocation11 + $0x24] sm:$0xf]
    %v4098 = vld [vmem:[#allocation11 + $0x28] sm:$0xf]
    %v4099 = vld [vmem:[#allocation11 + $0x2c] sm:$0xf]
    %v4100 = vld [vmem:[#allocation11 + $0x30] sm:$0xf]
    %v4101 = vld [vmem:[#allocation11 + $0x34] sm:$0xf]
    %v4102 = vld [vmem:[#allocation11 + $0x38] sm:$0xf]
    %v4103 = vld [vmem:[#allocation11 + $0x3c] sm:$0xf]
    %v4104 = vld [vmem:[#allocation13] sm:$0x1]
    %v4137 = vunpack.c.l.b16 %v2910
    %v4138 = vunpack.c.l.b16 %v2911
    %v4139 = vunpack.c.l.b16 %v2912
    %v4140 = vunpack.c.l.b16 %v2913
    %v4141 = vunpack.c.l.b16 %v2914
    %v4142 = vunpack.c.l.b16 %v2915
    %v4143 = vunpack.c.l.b16 %v2916
    %v4144 = vunpack.c.l.b16 %v2917
    %v4145 = vunpack.c.l.b16 %v2918
    %v4146 = vunpack.c.l.b16 %v2919
    %v4147 = vunpack.c.l.b16 %v2920
    %v4148 = vunpack.c.l.b16 %v2921
    %v4149 = vunpack.c.l.b16 %v2922
    %v4150 = vunpack.c.l.b16 %v2923
    %v4151 = vunpack.c.l.b16 %v2924
    %v4152 = vunpack.c.l.b16 %v2925
    %v4153 = vunpack.c.l.b16 %v2926
    %v4154 = vunpack.c.l.b16 %v2927
    %v4155 = vunpack.c.l.b16 %v2928
    %v4156 = vunpack.c.l.b16 %v2929
    %v4157 = vunpack.c.l.b16 %v2930
    %v4158 = vunpack.c.l.b16 %v2931
    %v4159 = vunpack.c.l.b16 %v2932
    %v4160 = vunpack.c.l.b16 %v2933
    %v4161 = vunpack.c.l.b16 %v2934
    %v4162 = vunpack.c.l.b16 %v2935
    %v4163 = vunpack.c.l.b16 %v2936
    %v4164 = vunpack.c.l.b16 %v2937
    %v4165 = vunpack.c.l.b16 %v2938
    %v4166 = vunpack.c.l.b16 %v2939
    %v4167 = vunpack.c.l.b16 %v2940
    %v4168 = vunpack.c.l.b16 %v2941
    %v4169 = vpack.c.b16 %v4138, %v4137
    %v4170 = vpack.c.b16 %v4140, %v4139
    %v4171 = vpack.c.b16 %v4142, %v4141
    %v4172 = vpack.c.b16 %v4144, %v4143
    %v4173 = vpack.c.b16 %v4146, %v4145
    %v4174 = vpack.c.b16 %v4148, %v4147
    %v4175 = vpack.c.b16 %v4150, %v4149
    %v4176 = vpack.c.b16 %v4152, %v4151
    %v4177 = vpack.c.b16 %v4154, %v4153
    %v4178 = vpack.c.b16 %v4156, %v4155
    %v4179 = vpack.c.b16 %v4158, %v4157
    %v4180 = vpack.c.b16 %v4160, %v4159
    %v4181 = vpack.c.b16 %v4162, %v4161
    %v4182 = vpack.c.b16 %v4164, %v4163
    %v4183 = vpack.c.b16 %v4166, %v4165
    %v4184 = vpack.c.b16 %v4168, %v4167
    %v4233 = vunpack.c.l.b16 %v3435
    %v4234 = vunpack.c.l.b16 %v3436
    %v4235 = vunpack.c.l.b16 %v3437
    %v4236 = vunpack.c.l.b16 %v3438
    %v4237 = vunpack.c.l.b16 %v3439
    %v4238 = vunpack.c.l.b16 %v3440
    %v4239 = vunpack.c.l.b16 %v3441
    %v4240 = vunpack.c.l.b16 %v3442
    %v4241 = vunpack.c.l.b16 %v3443
    %v4242 = vunpack.c.l.b16 %v3444
    %v4243 = vunpack.c.l.b16 %v3445
    %v4244 = vunpack.c.l.b16 %v3446
    %v4245 = vunpack.c.l.b16 %v3447
    %v4246 = vunpack.c.l.b16 %v3448
    %v4247 = vunpack.c.l.b16 %v3449
    %v4248 = vunpack.c.l.b16 %v3450
    %v4249 = vunpack.c.l.b16 %v3451
    %v4250 = vunpack.c.l.b16 %v3452
    %v4251 = vunpack.c.l.b16 %v3453
    %v4252 = vunpack.c.l.b16 %v3454
    %v4253 = vunpack.c.l.b16 %v3455
    %v4254 = vunpack.c.l.b16 %v3456
    %v4255 = vunpack.c.l.b16 %v3457
    %v4256 = vunpack.c.l.b16 %v3458
    %v4257 = vunpack.c.l.b16 %v3459
    %v4258 = vunpack.c.l.b16 %v3460
    %v4259 = vunpack.c.l.b16 %v3461
    %v4260 = vunpack.c.l.b16 %v3462
    %v4261 = vunpack.c.l.b16 %v3463
    %v4262 = vunpack.c.l.b16 %v3464
    %v4263 = vunpack.c.l.b16 %v3465
    %v4264 = vunpack.c.l.b16 %v3466
    %v4265 = vpack.c.b16 %v4234, %v4233
    %v4266 = vpack.c.b16 %v4236, %v4235
    %v4267 = vpack.c.b16 %v4238, %v4237
    %v4268 = vpack.c.b16 %v4240, %v4239
    %v4269 = vpack.c.b16 %v4242, %v4241
    %v4270 = vpack.c.b16 %v4244, %v4243
    %v4271 = vpack.c.b16 %v4246, %v4245
    %v4272 = vpack.c.b16 %v4248, %v4247
    %v4273 = vpack.c.b16 %v4250, %v4249
    %v4274 = vpack.c.b16 %v4252, %v4251
    %v4275 = vpack.c.b16 %v4254, %v4253
    %v4276 = vpack.c.b16 %v4256, %v4255
    %v4277 = vpack.c.b16 %v4258, %v4257
    %v4278 = vpack.c.b16 %v4260, %v4259
    %v4279 = vpack.c.b16 %v4262, %v4261
    %v4280 = vpack.c.b16 %v4264, %v4263
    %4297 = vmatpush.bf16.xpose.msra.mxu0 %v4272
    %4298 = vmatpush.bf16.xpose.msra.mxu0 %v4271
    %4299 = vmatpush.bf16.xpose.msra.mxu0 %v4270
    %4300 = vmatpush.bf16.xpose.msra.mxu0 %v4269
    %4301 = vmatpush.bf16.xpose.msra.mxu0 %v4268
    %4302 = vmatpush.bf16.xpose.msra.mxu0 %v4267
    %4303 = vmatpush.bf16.xpose.msra.mxu0 %v4266
    %4304 = vmatpush.bf16.xpose.msra.mxu0 %v4265
    %4305 = vmatmul.bf16.gmra.mxu0 %v4169
    %v4306 = vpop.f32.mrf.mxu0
    %v4307 = vadd.f32 0.0, %v4306
    %v4308 = vpop.f32.mrf.mxu0
    %v4309 = vadd.f32 0.0, %v4308
    %4310 = vmatmul.bf16.gmra.mxu0 %v4170
    %v4311 = vpop.f32.mrf.mxu0
    %v4312 = vadd.f32 0.0, %v4311
    %v4313 = vpop.f32.mrf.mxu0
    %v4314 = vadd.f32 0.0, %v4313
    %4315 = vmatmul.bf16.gmra.mxu0 %v4171
    %v4316 = vpop.f32.mrf.mxu0
    %v4317 = vadd.f32 0.0, %v4316
    %v4318 = vpop.f32.mrf.mxu0
    %v4319 = vadd.f32 0.0, %v4318
    %4320 = vmatmul.bf16.gmra.mxu0 %v4172
    %v4321 = vpop.f32.mrf.mxu0
    %v4322 = vadd.f32 0.0, %v4321
    %v4323 = vpop.f32.mrf.mxu0
    %v4324 = vadd.f32 0.0, %v4323
    %4325 = vmatmul.bf16.gmra.mxu0 %v4173
    %v4326 = vpop.f32.mrf.mxu0
    %v4327 = vadd.f32 0.0, %v4326
    %v4328 = vpop.f32.mrf.mxu0
    %v4329 = vadd.f32 0.0, %v4328
    %4330 = vmatmul.bf16.gmra.mxu0 %v4174
    %v4331 = vpop.f32.mrf.mxu0
    %v4332 = vadd.f32 0.0, %v4331
    %v4333 = vpop.f32.mrf.mxu0
    %v4334 = vadd.f32 0.0, %v4333
    %4335 = vmatmul.bf16.gmra.mxu0 %v4175
    %v4336 = vpop.f32.mrf.mxu0
    %v4337 = vadd.f32 0.0, %v4336
    %v4338 = vpop.f32.mrf.mxu0
    %v4339 = vadd.f32 0.0, %v4338
    %4340 = vmatmul.bf16.gmra.mxu0 %v4176
    %v4341 = vpop.f32.mrf.mxu0
    %v4342 = vadd.f32 0.0, %v4341
    %v4343 = vpop.f32.mrf.mxu0
    %v4344 = vadd.f32 0.0, %v4343
    %4345 = vmatmul.bf16.gmra.mxu0 %v4177
    %v4346 = vpop.f32.mrf.mxu0
    %v4347 = vadd.f32 0.0, %v4346
    %v4348 = vpop.f32.mrf.mxu0
    %v4349 = vadd.f32 0.0, %v4348
    %4350 = vmatmul.bf16.gmra.mxu0 %v4178
    %v4351 = vpop.f32.mrf.mxu0
    %v4352 = vadd.f32 0.0, %v4351
    %v4353 = vpop.f32.mrf.mxu0
    %v4354 = vadd.f32 0.0, %v4353
    %4355 = vmatmul.bf16.gmra.mxu0 %v4179
    %v4356 = vpop.f32.mrf.mxu0
    %v4357 = vadd.f32 0.0, %v4356
    %v4358 = vpop.f32.mrf.mxu0
    %v4359 = vadd.f32 0.0, %v4358
    %4360 = vmatmul.bf16.gmra.mxu0 %v4180
    %v4361 = vpop.f32.mrf.mxu0
    %v4362 = vadd.f32 0.0, %v4361
    %v4363 = vpop.f32.mrf.mxu0
    %v4364 = vadd.f32 0.0, %v4363
    %4365 = vmatmul.bf16.gmra.mxu0 %v4181
    %v4366 = vpop.f32.mrf.mxu0
    %v4367 = vadd.f32 0.0, %v4366
    %v4368 = vpop.f32.mrf.mxu0
    %v4369 = vadd.f32 0.0, %v4368
    %4370 = vmatmul.bf16.gmra.mxu0 %v4182
    %v4371 = vpop.f32.mrf.mxu0
    %v4372 = vadd.f32 0.0, %v4371
    %v4373 = vpop.f32.mrf.mxu0
    %v4374 = vadd.f32 0.0, %v4373
    %4375 = vmatmul.bf16.gmra.mxu0 %v4183
    %v4376 = vpop.f32.mrf.mxu0
    %v4377 = vadd.f32 0.0, %v4376
    %v4378 = vpop.f32.mrf.mxu0
    %v4379 = vadd.f32 0.0, %v4378
    %4380 = vmatmul.bf16.gmra.mxu0 %v4184
    %v4381 = vpop.f32.mrf.mxu0
    %v4382 = vadd.f32 0.0, %v4381
    %v4383 = vpop.f32.mrf.mxu0
    %v4384 = vadd.f32 0.0, %v4383
    %4385 = vdwg.mxu0
    %4386 = vmatpush.bf16.xpose.msra.mxu0 %v4280
    %4387 = vmatpush.bf16.xpose.msra.mxu0 %v4279
    %4388 = vmatpush.bf16.xpose.msra.mxu0 %v4278
    %4389 = vmatpush.bf16.xpose.msra.mxu0 %v4277
    %4390 = vmatpush.bf16.xpose.msra.mxu0 %v4276
    %4391 = vmatpush.bf16.xpose.msra.mxu0 %v4275
    %4392 = vmatpush.bf16.xpose.msra.mxu0 %v4274
    %4393 = vmatpush.bf16.xpose.msra.mxu0 %v4273
    %4394 = vmatmul.bf16.gmra.mxu0 %v4169
    %v4395 = vpop.f32.mrf.mxu0
    %v4396 = vadd.f32 0.0, %v4395
    %v4397 = vpop.f32.mrf.mxu0
    %v4398 = vadd.f32 0.0, %v4397
    %4399 = vmatmul.bf16.gmra.mxu0 %v4170
    %v4400 = vpop.f32.mrf.mxu0
    %v4401 = vadd.f32 0.0, %v4400
    %v4402 = vpop.f32.mrf.mxu0
    %v4403 = vadd.f32 0.0, %v4402
    %4404 = vmatmul.bf16.gmra.mxu0 %v4171
    %v4405 = vpop.f32.mrf.mxu0
    %v4406 = vadd.f32 0.0, %v4405
    %v4407 = vpop.f32.mrf.mxu0
    %v4408 = vadd.f32 0.0, %v4407
    %4409 = vmatmul.bf16.gmra.mxu0 %v4172
    %v4410 = vpop.f32.mrf.mxu0
    %v4411 = vadd.f32 0.0, %v4410
    %v4412 = vpop.f32.mrf.mxu0
    %v4413 = vadd.f32 0.0, %v4412
    %4414 = vmatmul.bf16.gmra.mxu0 %v4173
    %v4415 = vpop.f32.mrf.mxu0
    %v4416 = vadd.f32 0.0, %v4415
    %v4417 = vpop.f32.mrf.mxu0
    %v4418 = vadd.f32 0.0, %v4417
    %4419 = vmatmul.bf16.gmra.mxu0 %v4174
    %v4420 = vpop.f32.mrf.mxu0
    %v4421 = vadd.f32 0.0, %v4420
    %v4422 = vpop.f32.mrf.mxu0
    %v4423 = vadd.f32 0.0, %v4422
    %4424 = vmatmul.bf16.gmra.mxu0 %v4175
    %v4425 = vpop.f32.mrf.mxu0
    %v4426 = vadd.f32 0.0, %v4425
    %v4427 = vpop.f32.mrf.mxu0
    %v4428 = vadd.f32 0.0, %v4427
    %4429 = vmatmul.bf16.gmra.mxu0 %v4176
    %v4430 = vpop.f32.mrf.mxu0
    %v4431 = vadd.f32 0.0, %v4430
    %v4432 = vpop.f32.mrf.mxu0
    %v4433 = vadd.f32 0.0, %v4432
    %4434 = vmatmul.bf16.gmra.mxu0 %v4177
    %v4435 = vpop.f32.mrf.mxu0
    %v4436 = vadd.f32 0.0, %v4435
    %v4437 = vpop.f32.mrf.mxu0
    %v4438 = vadd.f32 0.0, %v4437
    %4439 = vmatmul.bf16.gmra.mxu0 %v4178
    %v4440 = vpop.f32.mrf.mxu0
    %v4441 = vadd.f32 0.0, %v4440
    %v4442 = vpop.f32.mrf.mxu0
    %v4443 = vadd.f32 0.0, %v4442
    %4444 = vmatmul.bf16.gmra.mxu0 %v4179
    %v4445 = vpop.f32.mrf.mxu0
    %v4446 = vadd.f32 0.0, %v4445
    %v4447 = vpop.f32.mrf.mxu0
    %v4448 = vadd.f32 0.0, %v4447
    %4449 = vmatmul.bf16.gmra.mxu0 %v4180
    %v4450 = vpop.f32.mrf.mxu0
    %v4451 = vadd.f32 0.0, %v4450
    %v4452 = vpop.f32.mrf.mxu0
    %v4453 = vadd.f32 0.0, %v4452
    %4454 = vmatmul.bf16.gmra.mxu0 %v4181
    %v4455 = vpop.f32.mrf.mxu0
    %v4456 = vadd.f32 0.0, %v4455
    %v4457 = vpop.f32.mrf.mxu0
    %v4458 = vadd.f32 0.0, %v4457
    %4459 = vmatmul.bf16.gmra.mxu0 %v4182
    %v4460 = vpop.f32.mrf.mxu0
    %v4461 = vadd.f32 0.0, %v4460
    %v4462 = vpop.f32.mrf.mxu0
    %v4463 = vadd.f32 0.0, %v4462
    %4464 = vmatmul.bf16.gmra.mxu0 %v4183
    %v4465 = vpop.f32.mrf.mxu0
    %v4466 = vadd.f32 0.0, %v4465
    %v4467 = vpop.f32.mrf.mxu0
    %v4468 = vadd.f32 0.0, %v4467
    %4469 = vmatmul.bf16.gmra.mxu0 %v4184
    %v4470 = vpop.f32.mrf.mxu0
    %v4471 = vadd.f32 0.0, %v4470
    %v4472 = vpop.f32.mrf.mxu0
    %v4473 = vadd.f32 0.0, %v4472
    %4474 = vdwg.mxu0
    %v4507 = vunpack.c.l.b16 %v2942
    %v4508 = vunpack.c.l.b16 %v2943
    %v4509 = vunpack.c.l.b16 %v2944
    %v4510 = vunpack.c.l.b16 %v2945
    %v4511 = vunpack.c.l.b16 %v2946
    %v4512 = vunpack.c.l.b16 %v2947
    %v4513 = vunpack.c.l.b16 %v2948
    %v4514 = vunpack.c.l.b16 %v2949
    %v4515 = vunpack.c.l.b16 %v2950
    %v4516 = vunpack.c.l.b16 %v2951
    %v4517 = vunpack.c.l.b16 %v2952
    %v4518 = vunpack.c.l.b16 %v2953
    %v4519 = vunpack.c.l.b16 %v2954
    %v4520 = vunpack.c.l.b16 %v2955
    %v4521 = vunpack.c.l.b16 %v2956
    %v4522 = vunpack.c.l.b16 %v2957
    %v4523 = vunpack.c.l.b16 %v2958
    %v4524 = vunpack.c.l.b16 %v2959
    %v4525 = vunpack.c.l.b16 %v2960
    %v4526 = vunpack.c.l.b16 %v2961
    %v4527 = vunpack.c.l.b16 %v2962
    %v4528 = vunpack.c.l.b16 %v2963
    %v4529 = vunpack.c.l.b16 %v2964
    %v4530 = vunpack.c.l.b16 %v2965
    %v4531 = vunpack.c.l.b16 %v2966
    %v4532 = vunpack.c.l.b16 %v2967
    %v4533 = vunpack.c.l.b16 %v2968
    %v4534 = vunpack.c.l.b16 %v2969
    %v4535 = vunpack.c.l.b16 %v2970
    %v4536 = vunpack.c.l.b16 %v2971
    %v4537 = vunpack.c.l.b16 %v2972
    %v4538 = vunpack.c.l.b16 %v2973
    %v4539 = vpack.c.b16 %v4508, %v4507
    %v4540 = vpack.c.b16 %v4510, %v4509
    %v4541 = vpack.c.b16 %v4512, %v4511
    %v4542 = vpack.c.b16 %v4514, %v4513
    %v4543 = vpack.c.b16 %v4516, %v4515
    %v4544 = vpack.c.b16 %v4518, %v4517
    %v4545 = vpack.c.b16 %v4520, %v4519
    %v4546 = vpack.c.b16 %v4522, %v4521
    %v4547 = vpack.c.b16 %v4524, %v4523
    %v4548 = vpack.c.b16 %v4526, %v4525
    %v4549 = vpack.c.b16 %v4528, %v4527
    %v4550 = vpack.c.b16 %v4530, %v4529
    %v4551 = vpack.c.b16 %v4532, %v4531
    %v4552 = vpack.c.b16 %v4534, %v4533
    %v4553 = vpack.c.b16 %v4536, %v4535
    %v4554 = vpack.c.b16 %v4538, %v4537
    %v4603 = vunpack.c.l.b16 %v3467
    %v4604 = vunpack.c.l.b16 %v3468
    %v4605 = vunpack.c.l.b16 %v3469
    %v4606 = vunpack.c.l.b16 %v3470
    %v4607 = vunpack.c.l.b16 %v3471
    %v4608 = vunpack.c.l.b16 %v3472
    %v4609 = vunpack.c.l.b16 %v3473
    %v4610 = vunpack.c.l.b16 %v3474
    %v4611 = vunpack.c.l.b16 %v3475
    %v4612 = vunpack.c.l.b16 %v3476
    %v4613 = vunpack.c.l.b16 %v3477
    %v4614 = vunpack.c.l.b16 %v3478
    %v4615 = vunpack.c.l.b16 %v3479
    %v4616 = vunpack.c.l.b16 %v3480
    %v4617 = vunpack.c.l.b16 %v3481
    %v4618 = vunpack.c.l.b16 %v3482
    %v4619 = vunpack.c.l.b16 %v3483
    %v4620 = vunpack.c.l.b16 %v3484
    %v4621 = vunpack.c.l.b16 %v3485
    %v4622 = vunpack.c.l.b16 %v3486
    %v4623 = vunpack.c.l.b16 %v3487
    %v4624 = vunpack.c.l.b16 %v3488
    %v4625 = vunpack.c.l.b16 %v3489
    %v4626 = vunpack.c.l.b16 %v3490
    %v4627 = vunpack.c.l.b16 %v3491
    %v4628 = vunpack.c.l.b16 %v3492
    %v4629 = vunpack.c.l.b16 %v3493
    %v4630 = vunpack.c.l.b16 %v3494
    %v4631 = vunpack.c.l.b16 %v3495
    %v4632 = vunpack.c.l.b16 %v3496
    %v4633 = vunpack.c.l.b16 %v3497
    %v4634 = vunpack.c.l.b16 %v3498
    %v4635 = vpack.c.b16 %v4604, %v4603
    %v4636 = vpack.c.b16 %v4606, %v4605
    %v4637 = vpack.c.b16 %v4608, %v4607
    %v4638 = vpack.c.b16 %v4610, %v4609
    %v4639 = vpack.c.b16 %v4612, %v4611
    %v4640 = vpack.c.b16 %v4614, %v4613
    %v4641 = vpack.c.b16 %v4616, %v4615
    %v4642 = vpack.c.b16 %v4618, %v4617
    %v4643 = vpack.c.b16 %v4620, %v4619
    %v4644 = vpack.c.b16 %v4622, %v4621
    %v4645 = vpack.c.b16 %v4624, %v4623
    %v4646 = vpack.c.b16 %v4626, %v4625
    %v4647 = vpack.c.b16 %v4628, %v4627
    %v4648 = vpack.c.b16 %v4630, %v4629
    %v4649 = vpack.c.b16 %v4632, %v4631
    %v4650 = vpack.c.b16 %v4634, %v4633
    %4667 = vmatpush.bf16.xpose.msra.mxu0 %v4642
    %4668 = vmatpush.bf16.xpose.msra.mxu0 %v4641
    %4669 = vmatpush.bf16.xpose.msra.mxu0 %v4640
    %4670 = vmatpush.bf16.xpose.msra.mxu0 %v4639
    %4671 = vmatpush.bf16.xpose.msra.mxu0 %v4638
    %4672 = vmatpush.bf16.xpose.msra.mxu0 %v4637
    %4673 = vmatpush.bf16.xpose.msra.mxu0 %v4636
    %4674 = vmatpush.bf16.xpose.msra.mxu0 %v4635
    %4675 = vmatmul.bf16.gmra.mxu0 %v4539
    %v4676 = vpop.f32.mrf.mxu0
    %v4677 = vadd.f32 0.0, %v4676
    %v4678 = vpop.f32.mrf.mxu0
    %v4679 = vadd.f32 0.0, %v4678
    %4680 = vmatmul.bf16.gmra.mxu0 %v4540
    %v4681 = vpop.f32.mrf.mxu0
    %v4682 = vadd.f32 0.0, %v4681
    %v4683 = vpop.f32.mrf.mxu0
    %v4684 = vadd.f32 0.0, %v4683
    %4685 = vmatmul.bf16.gmra.mxu0 %v4541
    %v4686 = vpop.f32.mrf.mxu0
    %v4687 = vadd.f32 0.0, %v4686
    %v4688 = vpop.f32.mrf.mxu0
    %v4689 = vadd.f32 0.0, %v4688
    %4690 = vmatmul.bf16.gmra.mxu0 %v4542
    %v4691 = vpop.f32.mrf.mxu0
    %v4692 = vadd.f32 0.0, %v4691
    %v4693 = vpop.f32.mrf.mxu0
    %v4694 = vadd.f32 0.0, %v4693
    %4695 = vmatmul.bf16.gmra.mxu0 %v4543
    %v4696 = vpop.f32.mrf.mxu0
    %v4697 = vadd.f32 0.0, %v4696
    %v4698 = vpop.f32.mrf.mxu0
    %v4699 = vadd.f32 0.0, %v4698
    %4700 = vmatmul.bf16.gmra.mxu0 %v4544
    %v4701 = vpop.f32.mrf.mxu0
    %v4702 = vadd.f32 0.0, %v4701
    %v4703 = vpop.f32.mrf.mxu0
    %v4704 = vadd.f32 0.0, %v4703
    %4705 = vmatmul.bf16.gmra.mxu0 %v4545
    %v4706 = vpop.f32.mrf.mxu0
    %v4707 = vadd.f32 0.0, %v4706
    %v4708 = vpop.f32.mrf.mxu0
    %v4709 = vadd.f32 0.0, %v4708
    %4710 = vmatmul.bf16.gmra.mxu0 %v4546
    %v4711 = vpop.f32.mrf.mxu0
    %v4712 = vadd.f32 0.0, %v4711
    %v4713 = vpop.f32.mrf.mxu0
    %v4714 = vadd.f32 0.0, %v4713
    %4715 = vmatmul.bf16.gmra.mxu0 %v4547
    %v4716 = vpop.f32.mrf.mxu0
    %v4717 = vadd.f32 0.0, %v4716
    %v4718 = vpop.f32.mrf.mxu0
    %v4719 = vadd.f32 0.0, %v4718
    %4720 = vmatmul.bf16.gmra.mxu0 %v4548
    %v4721 = vpop.f32.mrf.mxu0
    %v4722 = vadd.f32 0.0, %v4721
    %v4723 = vpop.f32.mrf.mxu0
    %v4724 = vadd.f32 0.0, %v4723
    %4725 = vmatmul.bf16.gmra.mxu0 %v4549
    %v4726 = vpop.f32.mrf.mxu0
    %v4727 = vadd.f32 0.0, %v4726
    %v4728 = vpop.f32.mrf.mxu0
    %v4729 = vadd.f32 0.0, %v4728
    %4730 = vmatmul.bf16.gmra.mxu0 %v4550
    %v4731 = vpop.f32.mrf.mxu0
    %v4732 = vadd.f32 0.0, %v4731
    %v4733 = vpop.f32.mrf.mxu0
    %v4734 = vadd.f32 0.0, %v4733
    %4735 = vmatmul.bf16.gmra.mxu0 %v4551
    %v4736 = vpop.f32.mrf.mxu0
    %v4737 = vadd.f32 0.0, %v4736
    %v4738 = vpop.f32.mrf.mxu0
    %v4739 = vadd.f32 0.0, %v4738
    %4740 = vmatmul.bf16.gmra.mxu0 %v4552
    %v4741 = vpop.f32.mrf.mxu0
    %v4742 = vadd.f32 0.0, %v4741
    %v4743 = vpop.f32.mrf.mxu0
    %v4744 = vadd.f32 0.0, %v4743
    %4745 = vmatmul.bf16.gmra.mxu0 %v4553
    %v4746 = vpop.f32.mrf.mxu0
    %v4747 = vadd.f32 0.0, %v4746
    %v4748 = vpop.f32.mrf.mxu0
    %v4749 = vadd.f32 0.0, %v4748
    %4750 = vmatmul.bf16.gmra.mxu0 %v4554
    %v4751 = vpop.f32.mrf.mxu0
    %v4752 = vadd.f32 0.0, %v4751
    %v4753 = vpop.f32.mrf.mxu0
    %v4754 = vadd.f32 0.0, %v4753
    %4755 = vdwg.mxu0
    %4756 = vmatpush.bf16.xpose.msra.mxu0 %v4650
    %4757 = vmatpush.bf16.xpose.msra.mxu0 %v4649
    %4758 = vmatpush.bf16.xpose.msra.mxu0 %v4648
    %4759 = vmatpush.bf16.xpose.msra.mxu0 %v4647
    %4760 = vmatpush.bf16.xpose.msra.mxu0 %v4646
    %4761 = vmatpush.bf16.xpose.msra.mxu0 %v4645
    %4762 = vmatpush.bf16.xpose.msra.mxu0 %v4644
    %4763 = vmatpush.bf16.xpose.msra.mxu0 %v4643
    %4764 = vmatmul.bf16.gmra.mxu0 %v4539
    %v4765 = vpop.f32.mrf.mxu0
    %v4766 = vadd.f32 0.0, %v4765
    %v4767 = vpop.f32.mrf.mxu0
    %v4768 = vadd.f32 0.0, %v4767
    %4769 = vmatmul.bf16.gmra.mxu0 %v4540
    %v4770 = vpop.f32.mrf.mxu0
    %v4771 = vadd.f32 0.0, %v4770
    %v4772 = vpop.f32.mrf.mxu0
    %v4773 = vadd.f32 0.0, %v4772
    %4774 = vmatmul.bf16.gmra.mxu0 %v4541
    %v4775 = vpop.f32.mrf.mxu0
    %v4776 = vadd.f32 0.0, %v4775
    %v4777 = vpop.f32.mrf.mxu0
    %v4778 = vadd.f32 0.0, %v4777
    %4779 = vmatmul.bf16.gmra.mxu0 %v4542
    %v4780 = vpop.f32.mrf.mxu0
    %v4781 = vadd.f32 0.0, %v4780
    %v4782 = vpop.f32.mrf.mxu0
    %v4783 = vadd.f32 0.0, %v4782
    %4784 = vmatmul.bf16.gmra.mxu0 %v4543
    %v4785 = vpop.f32.mrf.mxu0
    %v4786 = vadd.f32 0.0, %v4785
    %v4787 = vpop.f32.mrf.mxu0
    %v4788 = vadd.f32 0.0, %v4787
    %4789 = vmatmul.bf16.gmra.mxu0 %v4544
    %v4790 = vpop.f32.mrf.mxu0
    %v4791 = vadd.f32 0.0, %v4790
    %v4792 = vpop.f32.mrf.mxu0
    %v4793 = vadd.f32 0.0, %v4792
    %4794 = vmatmul.bf16.gmra.mxu0 %v4545
    %v4795 = vpop.f32.mrf.mxu0
    %v4796 = vadd.f32 0.0, %v4795
    %v4797 = vpop.f32.mrf.mxu0
    %v4798 = vadd.f32 0.0, %v4797
    %4799 = vmatmul.bf16.gmra.mxu0 %v4546
    %v4800 = vpop.f32.mrf.mxu0
    %v4801 = vadd.f32 0.0, %v4800
    %v4802 = vpop.f32.mrf.mxu0
    %v4803 = vadd.f32 0.0, %v4802
    %4804 = vmatmul.bf16.gmra.mxu0 %v4547
    %v4805 = vpop.f32.mrf.mxu0
    %v4806 = vadd.f32 0.0, %v4805
    %v4807 = vpop.f32.mrf.mxu0
    %v4808 = vadd.f32 0.0, %v4807
    %4809 = vmatmul.bf16.gmra.mxu0 %v4548
    %v4810 = vpop.f32.mrf.mxu0
    %v4811 = vadd.f32 0.0, %v4810
    %v4812 = vpop.f32.mrf.mxu0
    %v4813 = vadd.f32 0.0, %v4812
    %4814 = vmatmul.bf16.gmra.mxu0 %v4549
    %v4815 = vpop.f32.mrf.mxu0
    %v4816 = vadd.f32 0.0, %v4815
    %v4817 = vpop.f32.mrf.mxu0
    %v4818 = vadd.f32 0.0, %v4817
    %4819 = vmatmul.bf16.gmra.mxu0 %v4550
    %v4820 = vpop.f32.mrf.mxu0
    %v4821 = vadd.f32 0.0, %v4820
    %v4822 = vpop.f32.mrf.mxu0
    %v4823 = vadd.f32 0.0, %v4822
    %4824 = vmatmul.bf16.gmra.mxu0 %v4551
    %v4825 = vpop.f32.mrf.mxu0
    %v4826 = vadd.f32 0.0, %v4825
    %v4827 = vpop.f32.mrf.mxu0
    %v4828 = vadd.f32 0.0, %v4827
    %4829 = vmatmul.bf16.gmra.mxu0 %v4552
    %v4830 = vpop.f32.mrf.mxu0
    %v4831 = vadd.f32 0.0, %v4830
    %v4832 = vpop.f32.mrf.mxu0
    %v4833 = vadd.f32 0.0, %v4832
    %4834 = vmatmul.bf16.gmra.mxu0 %v4553
    %v4835 = vpop.f32.mrf.mxu0
    %v4836 = vadd.f32 0.0, %v4835
    %v4837 = vpop.f32.mrf.mxu0
    %v4838 = vadd.f32 0.0, %v4837
    %4839 = vmatmul.bf16.gmra.mxu0 %v4554
    %v4840 = vpop.f32.mrf.mxu0
    %v4841 = vadd.f32 0.0, %v4840
    %v4842 = vpop.f32.mrf.mxu0
    %v4843 = vadd.f32 0.0, %v4842
    %4844 = vdwg.mxu0
    %v4877 = vunpack.c.l.b16 %v2974
    %v4878 = vunpack.c.l.b16 %v2975
    %v4879 = vunpack.c.l.b16 %v2976
    %v4880 = vunpack.c.l.b16 %v2977
    %v4881 = vunpack.c.l.b16 %v2978
    %v4882 = vunpack.c.l.b16 %v2979
    %v4883 = vunpack.c.l.b16 %v2980
    %v4884 = vunpack.c.l.b16 %v2981
    %v4885 = vunpack.c.l.b16 %v2982
    %v4886 = vunpack.c.l.b16 %v2983
    %v4887 = vunpack.c.l.b16 %v2984
    %v4888 = vunpack.c.l.b16 %v2985
    %v4889 = vunpack.c.l.b16 %v2986
    %v4890 = vunpack.c.l.b16 %v2987
    %v4891 = vunpack.c.l.b16 %v2988
    %v4892 = vunpack.c.l.b16 %v2989
    %v4893 = vunpack.c.l.b16 %v2990
    %v4894 = vunpack.c.l.b16 %v2991
    %v4895 = vunpack.c.l.b16 %v2992
    %v4896 = vunpack.c.l.b16 %v2993
    %v4897 = vunpack.c.l.b16 %v2994
    %v4898 = vunpack.c.l.b16 %v2995
    %v4899 = vunpack.c.l.b16 %v2996
    %v4900 = vunpack.c.l.b16 %v2997
    %v4901 = vunpack.c.l.b16 %v2998
    %v4902 = vunpack.c.l.b16 %v2999
    %v4903 = vunpack.c.l.b16 %v3000
    %v4904 = vunpack.c.l.b16 %v3001
    %v4905 = vunpack.c.l.b16 %v3002
    %v4906 = vunpack.c.l.b16 %v3003
    %v4907 = vunpack.c.l.b16 %v3004
    %v4908 = vunpack.c.l.b16 %v3005
    %v4909 = vpack.c.b16 %v4878, %v4877
    %v4910 = vpack.c.b16 %v4880, %v4879
    %v4911 = vpack.c.b16 %v4882, %v4881
    %v4912 = vpack.c.b16 %v4884, %v4883
    %v4913 = vpack.c.b16 %v4886, %v4885
    %v4914 = vpack.c.b16 %v4888, %v4887
    %v4915 = vpack.c.b16 %v4890, %v4889
    %v4916 = vpack.c.b16 %v4892, %v4891
    %v4917 = vpack.c.b16 %v4894, %v4893
    %v4918 = vpack.c.b16 %v4896, %v4895
    %v4919 = vpack.c.b16 %v4898, %v4897
    %v4920 = vpack.c.b16 %v4900, %v4899
    %v4921 = vpack.c.b16 %v4902, %v4901
    %v4922 = vpack.c.b16 %v4904, %v4903
    %v4923 = vpack.c.b16 %v4906, %v4905
    %v4924 = vpack.c.b16 %v4908, %v4907
    %v4973 = vunpack.c.l.b16 %v3499
    %v4974 = vunpack.c.l.b16 %v3500
    %v4975 = vunpack.c.l.b16 %v3501
    %v4976 = vunpack.c.l.b16 %v3502
    %v4977 = vunpack.c.l.b16 %v3503
    %v4978 = vunpack.c.l.b16 %v3504
    %v4979 = vunpack.c.l.b16 %v3505
    %v4980 = vunpack.c.l.b16 %v3506
    %v4981 = vunpack.c.l.b16 %v3507
    %v4982 = vunpack.c.l.b16 %v3508
    %v4983 = vunpack.c.l.b16 %v3509
    %v4984 = vunpack.c.l.b16 %v3510
    %v4985 = vunpack.c.l.b16 %v3511
    %v4986 = vunpack.c.l.b16 %v3512
    %v4987 = vunpack.c.l.b16 %v3513
    %v4988 = vunpack.c.l.b16 %v3514
    %v4989 = vunpack.c.l.b16 %v3515
    %v4990 = vunpack.c.l.b16 %v3516
    %v4991 = vunpack.c.l.b16 %v3517
    %v4992 = vunpack.c.l.b16 %v3518
    %v4993 = vunpack.c.l.b16 %v3519
    %v4994 = vunpack.c.l.b16 %v3520
    %v4995 = vunpack.c.l.b16 %v3521
    %v4996 = vunpack.c.l.b16 %v3522
    %v4997 = vunpack.c.l.b16 %v3523
    %v4998 = vunpack.c.l.b16 %v3524
    %v4999 = vunpack.c.l.b16 %v3525
    %v5000 = vunpack.c.l.b16 %v3526
    %v5001 = vunpack.c.l.b16 %v3527
    %v5002 = vunpack.c.l.b16 %v3528
    %v5003 = vunpack.c.l.b16 %v3529
    %v5004 = vunpack.c.l.b16 %v3530
    %v5005 = vpack.c.b16 %v4974, %v4973
    %v5006 = vpack.c.b16 %v4976, %v4975
    %v5007 = vpack.c.b16 %v4978, %v4977
    %v5008 = vpack.c.b16 %v4980, %v4979
    %v5009 = vpack.c.b16 %v4982, %v4981
    %v5010 = vpack.c.b16 %v4984, %v4983
    %v5011 = vpack.c.b16 %v4986, %v4985
    %v5012 = vpack.c.b16 %v4988, %v4987
    %v5013 = vpack.c.b16 %v4990, %v4989
    %v5014 = vpack.c.b16 %v4992, %v4991
    %v5015 = vpack.c.b16 %v4994, %v4993
    %v5016 = vpack.c.b16 %v4996, %v4995
    %v5017 = vpack.c.b16 %v4998, %v4997
    %v5018 = vpack.c.b16 %v5000, %v4999
    %v5019 = vpack.c.b16 %v5002, %v5001
    %v5020 = vpack.c.b16 %v5004, %v5003
    %5037 = vmatpush.bf16.xpose.msra.mxu0 %v5012
    %5038 = vmatpush.bf16.xpose.msra.mxu0 %v5011
    %5039 = vmatpush.bf16.xpose.msra.mxu0 %v5010
    %5040 = vmatpush.bf16.xpose.msra.mxu0 %v5009
    %5041 = vmatpush.bf16.xpose.msra.mxu0 %v5008
    %5042 = vmatpush.bf16.xpose.msra.mxu0 %v5007
    %5043 = vmatpush.bf16.xpose.msra.mxu0 %v5006
    %5044 = vmatpush.bf16.xpose.msra.mxu0 %v5005
    %5045 = vmatmul.bf16.gmra.mxu0 %v4909
    %v5046 = vpop.f32.mrf.mxu0
    %v5047 = vadd.f32 0.0, %v5046
    %v5048 = vpop.f32.mrf.mxu0
    %v5049 = vadd.f32 0.0, %v5048
    %5050 = vmatmul.bf16.gmra.mxu0 %v4910
    %v5051 = vpop.f32.mrf.mxu0
    %v5052 = vadd.f32 0.0, %v5051
    %v5053 = vpop.f32.mrf.mxu0
    %v5054 = vadd.f32 0.0, %v5053
    %5055 = vmatmul.bf16.gmra.mxu0 %v4911
    %v5056 = vpop.f32.mrf.mxu0
    %v5057 = vadd.f32 0.0, %v5056
    %v5058 = vpop.f32.mrf.mxu0
    %v5059 = vadd.f32 0.0, %v5058
    %5060 = vmatmul.bf16.gmra.mxu0 %v4912
    %v5061 = vpop.f32.mrf.mxu0
    %v5062 = vadd.f32 0.0, %v5061
    %v5063 = vpop.f32.mrf.mxu0
    %v5064 = vadd.f32 0.0, %v5063
    %5065 = vmatmul.bf16.gmra.mxu0 %v4913
    %v5066 = vpop.f32.mrf.mxu0
    %v5067 = vadd.f32 0.0, %v5066
    %v5068 = vpop.f32.mrf.mxu0
    %v5069 = vadd.f32 0.0, %v5068
    %5070 = vmatmul.bf16.gmra.mxu0 %v4914
    %v5071 = vpop.f32.mrf.mxu0
    %v5072 = vadd.f32 0.0, %v5071
    %v5073 = vpop.f32.mrf.mxu0
    %v5074 = vadd.f32 0.0, %v5073
    %5075 = vmatmul.bf16.gmra.mxu0 %v4915
    %v5076 = vpop.f32.mrf.mxu0
    %v5077 = vadd.f32 0.0, %v5076
    %v5078 = vpop.f32.mrf.mxu0
    %v5079 = vadd.f32 0.0, %v5078
    %5080 = vmatmul.bf16.gmra.mxu0 %v4916
    %v5081 = vpop.f32.mrf.mxu0
    %v5082 = vadd.f32 0.0, %v5081
    %v5083 = vpop.f32.mrf.mxu0
    %v5084 = vadd.f32 0.0, %v5083
    %5085 = vmatmul.bf16.gmra.mxu0 %v4917
    %v5086 = vpop.f32.mrf.mxu0
    %v5087 = vadd.f32 0.0, %v5086
    %v5088 = vpop.f32.mrf.mxu0
    %v5089 = vadd.f32 0.0, %v5088
    %5090 = vmatmul.bf16.gmra.mxu0 %v4918
    %v5091 = vpop.f32.mrf.mxu0
    %v5092 = vadd.f32 0.0, %v5091
    %v5093 = vpop.f32.mrf.mxu0
    %v5094 = vadd.f32 0.0, %v5093
    %5095 = vmatmul.bf16.gmra.mxu0 %v4919
    %v5096 = vpop.f32.mrf.mxu0
    %v5097 = vadd.f32 0.0, %v5096
    %v5098 = vpop.f32.mrf.mxu0
    %v5099 = vadd.f32 0.0, %v5098
    %5100 = vmatmul.bf16.gmra.mxu0 %v4920
    %v5101 = vpop.f32.mrf.mxu0
    %v5102 = vadd.f32 0.0, %v5101
    %v5103 = vpop.f32.mrf.mxu0
    %v5104 = vadd.f32 0.0, %v5103
    %5105 = vmatmul.bf16.gmra.mxu0 %v4921
    %v5106 = vpop.f32.mrf.mxu0
    %v5107 = vadd.f32 0.0, %v5106
    %v5108 = vpop.f32.mrf.mxu0
    %v5109 = vadd.f32 0.0, %v5108
    %5110 = vmatmul.bf16.gmra.mxu0 %v4922
    %v5111 = vpop.f32.mrf.mxu0
    %v5112 = vadd.f32 0.0, %v5111
    %v5113 = vpop.f32.mrf.mxu0
    %v5114 = vadd.f32 0.0, %v5113
    %5115 = vmatmul.bf16.gmra.mxu0 %v4923
    %v5116 = vpop.f32.mrf.mxu0
    %v5117 = vadd.f32 0.0, %v5116
    %v5118 = vpop.f32.mrf.mxu0
    %v5119 = vadd.f32 0.0, %v5118
    %5120 = vmatmul.bf16.gmra.mxu0 %v4924
    %v5121 = vpop.f32.mrf.mxu0
    %v5122 = vadd.f32 0.0, %v5121
    %v5123 = vpop.f32.mrf.mxu0
    %v5124 = vadd.f32 0.0, %v5123
    %5125 = vdwg.mxu0
    %5126 = vmatpush.bf16.xpose.msra.mxu0 %v5020
    %5127 = vmatpush.bf16.xpose.msra.mxu0 %v5019
    %5128 = vmatpush.bf16.xpose.msra.mxu0 %v5018
    %5129 = vmatpush.bf16.xpose.msra.mxu0 %v5017
    %5130 = vmatpush.bf16.xpose.msra.mxu0 %v5016
    %5131 = vmatpush.bf16.xpose.msra.mxu0 %v5015
    %5132 = vmatpush.bf16.xpose.msra.mxu0 %v5014
    %5133 = vmatpush.bf16.xpose.msra.mxu0 %v5013
    %5134 = vmatmul.bf16.gmra.mxu0 %v4909
    %v5135 = vpop.f32.mrf.mxu0
    %v5136 = vadd.f32 0.0, %v5135
    %v5137 = vpop.f32.mrf.mxu0
    %v5138 = vadd.f32 0.0, %v5137
    %5139 = vmatmul.bf16.gmra.mxu0 %v4910
    %v5140 = vpop.f32.mrf.mxu0
    %v5141 = vadd.f32 0.0, %v5140
    %v5142 = vpop.f32.mrf.mxu0
    %v5143 = vadd.f32 0.0, %v5142
    %5144 = vmatmul.bf16.gmra.mxu0 %v4911
    %v5145 = vpop.f32.mrf.mxu0
    %v5146 = vadd.f32 0.0, %v5145
    %v5147 = vpop.f32.mrf.mxu0
    %v5148 = vadd.f32 0.0, %v5147
    %5149 = vmatmul.bf16.gmra.mxu0 %v4912
    %v5150 = vpop.f32.mrf.mxu0
    %v5151 = vadd.f32 0.0, %v5150
    %v5152 = vpop.f32.mrf.mxu0
    %v5153 = vadd.f32 0.0, %v5152
    %5154 = vmatmul.bf16.gmra.mxu0 %v4913
    %v5155 = vpop.f32.mrf.mxu0
    %v5156 = vadd.f32 0.0, %v5155
    %v5157 = vpop.f32.mrf.mxu0
    %v5158 = vadd.f32 0.0, %v5157
    %5159 = vmatmul.bf16.gmra.mxu0 %v4914
    %v5160 = vpop.f32.mrf.mxu0
    %v5161 = vadd.f32 0.0, %v5160
    %v5162 = vpop.f32.mrf.mxu0
    %v5163 = vadd.f32 0.0, %v5162
    %5164 = vmatmul.bf16.gmra.mxu0 %v4915
    %v5165 = vpop.f32.mrf.mxu0
    %v5166 = vadd.f32 0.0, %v5165
    %v5167 = vpop.f32.mrf.mxu0
    %v5168 = vadd.f32 0.0, %v5167
    %5169 = vmatmul.bf16.gmra.mxu0 %v4916
    %v5170 = vpop.f32.mrf.mxu0
    %v5171 = vadd.f32 0.0, %v5170
    %v5172 = vpop.f32.mrf.mxu0
    %v5173 = vadd.f32 0.0, %v5172
    %5174 = vmatmul.bf16.gmra.mxu0 %v4917
    %v5175 = vpop.f32.mrf.mxu0
    %v5176 = vadd.f32 0.0, %v5175
    %v5177 = vpop.f32.mrf.mxu0
    %v5178 = vadd.f32 0.0, %v5177
    %5179 = vmatmul.bf16.gmra.mxu0 %v4918
    %v5180 = vpop.f32.mrf.mxu0
    %v5181 = vadd.f32 0.0, %v5180
    %v5182 = vpop.f32.mrf.mxu0
    %v5183 = vadd.f32 0.0, %v5182
    %5184 = vmatmul.bf16.gmra.mxu0 %v4919
    %v5185 = vpop.f32.mrf.mxu0
    %v5186 = vadd.f32 0.0, %v5185
    %v5187 = vpop.f32.mrf.mxu0
    %v5188 = vadd.f32 0.0, %v5187
    %5189 = vmatmul.bf16.gmra.mxu0 %v4920
    %v5190 = vpop.f32.mrf.mxu0
    %v5191 = vadd.f32 0.0, %v5190
    %v5192 = vpop.f32.mrf.mxu0
    %v5193 = vadd.f32 0.0, %v5192
    %5194 = vmatmul.bf16.gmra.mxu0 %v4921
    %v5195 = vpop.f32.mrf.mxu0
    %v5196 = vadd.f32 0.0, %v5195
    %v5197 = vpop.f32.mrf.mxu0
    %v5198 = vadd.f32 0.0, %v5197
    %5199 = vmatmul.bf16.gmra.mxu0 %v4922
    %v5200 = vpop.f32.mrf.mxu0
    %v5201 = vadd.f32 0.0, %v5200
    %v5202 = vpop.f32.mrf.mxu0
    %v5203 = vadd.f32 0.0, %v5202
    %5204 = vmatmul.bf16.gmra.mxu0 %v4923
    %v5205 = vpop.f32.mrf.mxu0
    %v5206 = vadd.f32 0.0, %v5205
    %v5207 = vpop.f32.mrf.mxu0
    %v5208 = vadd.f32 0.0, %v5207
    %5209 = vmatmul.bf16.gmra.mxu0 %v4924
    %v5210 = vpop.f32.mrf.mxu0
    %v5211 = vadd.f32 0.0, %v5210
    %v5212 = vpop.f32.mrf.mxu0
    %v5213 = vadd.f32 0.0, %v5212
    %5214 = vdwg.mxu0
    %v5247 = vunpack.c.l.b16 %v3006
    %v5248 = vunpack.c.l.b16 %v3007
    %v5249 = vunpack.c.l.b16 %v3008
    %v5250 = vunpack.c.l.b16 %v3009
    %v5251 = vunpack.c.l.b16 %v3010
    %v5252 = vunpack.c.l.b16 %v3011
    %v5253 = vunpack.c.l.b16 %v3012
    %v5254 = vunpack.c.l.b16 %v3013
    %v5255 = vunpack.c.l.b16 %v3014
    %v5256 = vunpack.c.l.b16 %v3015
    %v5257 = vunpack.c.l.b16 %v3016
    %v5258 = vunpack.c.l.b16 %v3017
    %v5259 = vunpack.c.l.b16 %v3018
    %v5260 = vunpack.c.l.b16 %v3019
    %v5261 = vunpack.c.l.b16 %v3020
    %v5262 = vunpack.c.l.b16 %v3021
    %v5263 = vunpack.c.l.b16 %v3022
    %v5264 = vunpack.c.l.b16 %v3023
    %v5265 = vunpack.c.l.b16 %v3024
    %v5266 = vunpack.c.l.b16 %v3025
    %v5267 = vunpack.c.l.b16 %v3026
    %v5268 = vunpack.c.l.b16 %v3027
    %v5269 = vunpack.c.l.b16 %v3028
    %v5270 = vunpack.c.l.b16 %v3029
    %v5271 = vunpack.c.l.b16 %v3030
    %v5272 = vunpack.c.l.b16 %v3031
    %v5273 = vunpack.c.l.b16 %v3032
    %v5274 = vunpack.c.l.b16 %v3033
    %v5275 = vunpack.c.l.b16 %v3034
    %v5276 = vunpack.c.l.b16 %v3035
    %v5277 = vunpack.c.l.b16 %v3036
    %v5278 = vunpack.c.l.b16 %v3037
    %v5279 = vpack.c.b16 %v5248, %v5247
    %v5280 = vpack.c.b16 %v5250, %v5249
    %v5281 = vpack.c.b16 %v5252, %v5251
    %v5282 = vpack.c.b16 %v5254, %v5253
    %v5283 = vpack.c.b16 %v5256, %v5255
    %v5284 = vpack.c.b16 %v5258, %v5257
    %v5285 = vpack.c.b16 %v5260, %v5259
    %v5286 = vpack.c.b16 %v5262, %v5261
    %v5287 = vpack.c.b16 %v5264, %v5263
    %v5288 = vpack.c.b16 %v5266, %v5265
    %v5289 = vpack.c.b16 %v5268, %v5267
    %v5290 = vpack.c.b16 %v5270, %v5269
    %v5291 = vpack.c.b16 %v5272, %v5271
    %v5292 = vpack.c.b16 %v5274, %v5273
    %v5293 = vpack.c.b16 %v5276, %v5275
    %v5294 = vpack.c.b16 %v5278, %v5277
    %v5343 = vunpack.c.l.b16 %v3531
    %v5344 = vunpack.c.l.b16 %v3532
    %v5345 = vunpack.c.l.b16 %v3533
    %v5346 = vunpack.c.l.b16 %v3534
    %v5347 = vunpack.c.l.b16 %v3535
    %v5348 = vunpack.c.l.b16 %v3536
    %v5349 = vunpack.c.l.b16 %v3537
    %v5350 = vunpack.c.l.b16 %v3538
    %v5351 = vunpack.c.l.b16 %v3539
    %v5352 = vunpack.c.l.b16 %v3540
    %v5353 = vunpack.c.l.b16 %v3541
    %v5354 = vunpack.c.l.b16 %v3542
    %v5355 = vunpack.c.l.b16 %v3543
    %v5356 = vunpack.c.l.b16 %v3544
    %v5357 = vunpack.c.l.b16 %v3545
    %v5358 = vunpack.c.l.b16 %v3546
    %v5359 = vunpack.c.l.b16 %v3547
    %v5360 = vunpack.c.l.b16 %v3548
    %v5361 = vunpack.c.l.b16 %v3549
    %v5362 = vunpack.c.l.b16 %v3550
    %v5363 = vunpack.c.l.b16 %v3551
    %v5364 = vunpack.c.l.b16 %v3552
    %v5365 = vunpack.c.l.b16 %v3553
    %v5366 = vunpack.c.l.b16 %v3554
    %v5367 = vunpack.c.l.b16 %v3555
    %v5368 = vunpack.c.l.b16 %v3556
    %v5369 = vunpack.c.l.b16 %v3557
    %v5370 = vunpack.c.l.b16 %v3558
    %v5371 = vunpack.c.l.b16 %v3559
    %v5372 = vunpack.c.l.b16 %v3560
    %v5373 = vunpack.c.l.b16 %v3561
    %v5374 = vunpack.c.l.b16 %v3562
    %v5375 = vpack.c.b16 %v5344, %v5343
    %v5376 = vpack.c.b16 %v5346, %v5345
    %v5377 = vpack.c.b16 %v5348, %v5347
    %v5378 = vpack.c.b16 %v5350, %v5349
    %v5379 = vpack.c.b16 %v5352, %v5351
    %v5380 = vpack.c.b16 %v5354, %v5353
    %v5381 = vpack.c.b16 %v5356, %v5355
    %v5382 = vpack.c.b16 %v5358, %v5357
    %v5383 = vpack.c.b16 %v5360, %v5359
    %v5384 = vpack.c.b16 %v5362, %v5361
    %v5385 = vpack.c.b16 %v5364, %v5363
    %v5386 = vpack.c.b16 %v5366, %v5365
    %v5387 = vpack.c.b16 %v5368, %v5367
    %v5388 = vpack.c.b16 %v5370, %v5369
    %v5389 = vpack.c.b16 %v5372, %v5371
    %v5390 = vpack.c.b16 %v5374, %v5373
    %5407 = vmatpush.bf16.xpose.msra.mxu0 %v5382
    %5408 = vmatpush.bf16.xpose.msra.mxu0 %v5381
    %5409 = vmatpush.bf16.xpose.msra.mxu0 %v5380
    %5410 = vmatpush.bf16.xpose.msra.mxu0 %v5379
    %5411 = vmatpush.bf16.xpose.msra.mxu0 %v5378
    %5412 = vmatpush.bf16.xpose.msra.mxu0 %v5377
    %5413 = vmatpush.bf16.xpose.msra.mxu0 %v5376
    %5414 = vmatpush.bf16.xpose.msra.mxu0 %v5375
    %5415 = vmatmul.bf16.gmra.mxu0 %v5279
    %v5416 = vpop.f32.mrf.mxu0
    %v5417 = vadd.f32 0.0, %v5416
    %v5418 = vpop.f32.mrf.mxu0
    %v5419 = vadd.f32 0.0, %v5418
    %5420 = vmatmul.bf16.gmra.mxu0 %v5280
    %v5421 = vpop.f32.mrf.mxu0
    %v5422 = vadd.f32 0.0, %v5421
    %v5423 = vpop.f32.mrf.mxu0
    %v5424 = vadd.f32 0.0, %v5423
    %5425 = vmatmul.bf16.gmra.mxu0 %v5281
    %v5426 = vpop.f32.mrf.mxu0
    %v5427 = vadd.f32 0.0, %v5426
    %v5428 = vpop.f32.mrf.mxu0
    %v5429 = vadd.f32 0.0, %v5428
    %5430 = vmatmul.bf16.gmra.mxu0 %v5282
    %v5431 = vpop.f32.mrf.mxu0
    %v5432 = vadd.f32 0.0, %v5431
    %v5433 = vpop.f32.mrf.mxu0
    %v5434 = vadd.f32 0.0, %v5433
    %5435 = vmatmul.bf16.gmra.mxu0 %v5283
    %v5436 = vpop.f32.mrf.mxu0
    %v5437 = vadd.f32 0.0, %v5436
    %v5438 = vpop.f32.mrf.mxu0
    %v5439 = vadd.f32 0.0, %v5438
    %5440 = vmatmul.bf16.gmra.mxu0 %v5284
    %v5441 = vpop.f32.mrf.mxu0
    %v5442 = vadd.f32 0.0, %v5441
    %v5443 = vpop.f32.mrf.mxu0
    %v5444 = vadd.f32 0.0, %v5443
    %5445 = vmatmul.bf16.gmra.mxu0 %v5285
    %v5446 = vpop.f32.mrf.mxu0
    %v5447 = vadd.f32 0.0, %v5446
    %v5448 = vpop.f32.mrf.mxu0
    %v5449 = vadd.f32 0.0, %v5448
    %5450 = vmatmul.bf16.gmra.mxu0 %v5286
    %v5451 = vpop.f32.mrf.mxu0
    %v5452 = vadd.f32 0.0, %v5451
    %v5453 = vpop.f32.mrf.mxu0
    %v5454 = vadd.f32 0.0, %v5453
    %5455 = vmatmul.bf16.gmra.mxu0 %v5287
    %v5456 = vpop.f32.mrf.mxu0
    %v5457 = vadd.f32 0.0, %v5456
    %v5458 = vpop.f32.mrf.mxu0
    %v5459 = vadd.f32 0.0, %v5458
    %5460 = vmatmul.bf16.gmra.mxu0 %v5288
    %v5461 = vpop.f32.mrf.mxu0
    %v5462 = vadd.f32 0.0, %v5461
    %v5463 = vpop.f32.mrf.mxu0
    %v5464 = vadd.f32 0.0, %v5463
    %5465 = vmatmul.bf16.gmra.mxu0 %v5289
    %v5466 = vpop.f32.mrf.mxu0
    %v5467 = vadd.f32 0.0, %v5466
    %v5468 = vpop.f32.mrf.mxu0
    %v5469 = vadd.f32 0.0, %v5468
    %5470 = vmatmul.bf16.gmra.mxu0 %v5290
    %v5471 = vpop.f32.mrf.mxu0
    %v5472 = vadd.f32 0.0, %v5471
    %v5473 = vpop.f32.mrf.mxu0
    %v5474 = vadd.f32 0.0, %v5473
    %5475 = vmatmul.bf16.gmra.mxu0 %v5291
    %v5476 = vpop.f32.mrf.mxu0
    %v5477 = vadd.f32 0.0, %v5476
    %v5478 = vpop.f32.mrf.mxu0
    %v5479 = vadd.f32 0.0, %v5478
    %5480 = vmatmul.bf16.gmra.mxu0 %v5292
    %v5481 = vpop.f32.mrf.mxu0
    %v5482 = vadd.f32 0.0, %v5481
    %v5483 = vpop.f32.mrf.mxu0
    %v5484 = vadd.f32 0.0, %v5483
    %5485 = vmatmul.bf16.gmra.mxu0 %v5293
    %v5486 = vpop.f32.mrf.mxu0
    %v5487 = vadd.f32 0.0, %v5486
    %v5488 = vpop.f32.mrf.mxu0
    %v5489 = vadd.f32 0.0, %v5488
    %5490 = vmatmul.bf16.gmra.mxu0 %v5294
    %v5491 = vpop.f32.mrf.mxu0
    %v5492 = vadd.f32 0.0, %v5491
    %v5493 = vpop.f32.mrf.mxu0
    %v5494 = vadd.f32 0.0, %v5493
    %5495 = vdwg.mxu0
    %5496 = vmatpush.bf16.xpose.msra.mxu0 %v5390
    %5497 = vmatpush.bf16.xpose.msra.mxu0 %v5389
    %5498 = vmatpush.bf16.xpose.msra.mxu0 %v5388
    %5499 = vmatpush.bf16.xpose.msra.mxu0 %v5387
    %5500 = vmatpush.bf16.xpose.msra.mxu0 %v5386
    %5501 = vmatpush.bf16.xpose.msra.mxu0 %v5385
    %5502 = vmatpush.bf16.xpose.msra.mxu0 %v5384
    %5503 = vmatpush.bf16.xpose.msra.mxu0 %v5383
    %5504 = vmatmul.bf16.gmra.mxu0 %v5279
    %v5505 = vpop.f32.mrf.mxu0
    %v5506 = vadd.f32 0.0, %v5505
    %v5507 = vpop.f32.mrf.mxu0
    %v5508 = vadd.f32 0.0, %v5507
    %5509 = vmatmul.bf16.gmra.mxu0 %v5280
    %v5510 = vpop.f32.mrf.mxu0
    %v5511 = vadd.f32 0.0, %v5510
    %v5512 = vpop.f32.mrf.mxu0
    %v5513 = vadd.f32 0.0, %v5512
    %5514 = vmatmul.bf16.gmra.mxu0 %v5281
    %v5515 = vpop.f32.mrf.mxu0
    %v5516 = vadd.f32 0.0, %v5515
    %v5517 = vpop.f32.mrf.mxu0
    %v5518 = vadd.f32 0.0, %v5517
    %5519 = vmatmul.bf16.gmra.mxu0 %v5282
    %v5520 = vpop.f32.mrf.mxu0
    %v5521 = vadd.f32 0.0, %v5520
    %v5522 = vpop.f32.mrf.mxu0
    %v5523 = vadd.f32 0.0, %v5522
    %5524 = vmatmul.bf16.gmra.mxu0 %v5283
    %v5525 = vpop.f32.mrf.mxu0
    %v5526 = vadd.f32 0.0, %v5525
    %v5527 = vpop.f32.mrf.mxu0
    %v5528 = vadd.f32 0.0, %v5527
    %5529 = vmatmul.bf16.gmra.mxu0 %v5284
    %v5530 = vpop.f32.mrf.mxu0
    %v5531 = vadd.f32 0.0, %v5530
    %v5532 = vpop.f32.mrf.mxu0
    %v5533 = vadd.f32 0.0, %v5532
    %5534 = vmatmul.bf16.gmra.mxu0 %v5285
    %v5535 = vpop.f32.mrf.mxu0
    %v5536 = vadd.f32 0.0, %v5535
    %v5537 = vpop.f32.mrf.mxu0
    %v5538 = vadd.f32 0.0, %v5537
    %5539 = vmatmul.bf16.gmra.mxu0 %v5286
    %v5540 = vpop.f32.mrf.mxu0
    %v5541 = vadd.f32 0.0, %v5540
    %v5542 = vpop.f32.mrf.mxu0
    %v5543 = vadd.f32 0.0, %v5542
    %5544 = vmatmul.bf16.gmra.mxu0 %v5287
    %v5545 = vpop.f32.mrf.mxu0
    %v5546 = vadd.f32 0.0, %v5545
    %v5547 = vpop.f32.mrf.mxu0
    %v5548 = vadd.f32 0.0, %v5547
    %5549 = vmatmul.bf16.gmra.mxu0 %v5288
    %v5550 = vpop.f32.mrf.mxu0
    %v5551 = vadd.f32 0.0, %v5550
    %v5552 = vpop.f32.mrf.mxu0
    %v5553 = vadd.f32 0.0, %v5552
    %5554 = vmatmul.bf16.gmra.mxu0 %v5289
    %v5555 = vpop.f32.mrf.mxu0
    %v5556 = vadd.f32 0.0, %v5555
    %v5557 = vpop.f32.mrf.mxu0
    %v5558 = vadd.f32 0.0, %v5557
    %5559 = vmatmul.bf16.gmra.mxu0 %v5290
    %v5560 = vpop.f32.mrf.mxu0
    %v5561 = vadd.f32 0.0, %v5560
    %v5562 = vpop.f32.mrf.mxu0
    %v5563 = vadd.f32 0.0, %v5562
    %5564 = vmatmul.bf16.gmra.mxu0 %v5291
    %v5565 = vpop.f32.mrf.mxu0
    %v5566 = vadd.f32 0.0, %v5565
    %v5567 = vpop.f32.mrf.mxu0
    %v5568 = vadd.f32 0.0, %v5567
    %5569 = vmatmul.bf16.gmra.mxu0 %v5292
    %v5570 = vpop.f32.mrf.mxu0
    %v5571 = vadd.f32 0.0, %v5570
    %v5572 = vpop.f32.mrf.mxu0
    %v5573 = vadd.f32 0.0, %v5572
    %5574 = vmatmul.bf16.gmra.mxu0 %v5293
    %v5575 = vpop.f32.mrf.mxu0
    %v5576 = vadd.f32 0.0, %v5575
    %v5577 = vpop.f32.mrf.mxu0
    %v5578 = vadd.f32 0.0, %v5577
    %5579 = vmatmul.bf16.gmra.mxu0 %v5294
    %v5580 = vpop.f32.mrf.mxu0
    %v5581 = vadd.f32 0.0, %v5580
    %v5582 = vpop.f32.mrf.mxu0
    %v5583 = vadd.f32 0.0, %v5582
    %5584 = vdwg.mxu0
    %v5585 = vmul.f32 %v4307, 0.088388346
    %v5586 = vmul.f32 %v4396, 0.088388346
    %v5587 = vmul.f32 %v4309, 0.088388346
    %v5588 = vmul.f32 %v4398, 0.088388346
    %v5589 = vmul.f32 %v4312, 0.088388346
    %v5590 = vmul.f32 %v4401, 0.088388346
    %v5591 = vmul.f32 %v4314, 0.088388346
    %v5592 = vmul.f32 %v4403, 0.088388346
    %v5593 = vmul.f32 %v4317, 0.088388346
    %v5594 = vmul.f32 %v4406, 0.088388346
    %v5595 = vmul.f32 %v4319, 0.088388346
    %v5596 = vmul.f32 %v4408, 0.088388346
    %v5597 = vmul.f32 %v4322, 0.088388346
    %v5598 = vmul.f32 %v4411, 0.088388346
    %v5599 = vmul.f32 %v4324, 0.088388346
    %v5600 = vmul.f32 %v4413, 0.088388346
    %v5601 = vmul.f32 %v4327, 0.088388346
    %v5602 = vmul.f32 %v4416, 0.088388346
    %v5603 = vmul.f32 %v4329, 0.088388346
    %v5604 = vmul.f32 %v4418, 0.088388346
    %v5605 = vmul.f32 %v4332, 0.088388346
    %v5606 = vmul.f32 %v4421, 0.088388346
    %v5607 = vmul.f32 %v4334, 0.088388346
    %v5608 = vmul.f32 %v4423, 0.088388346
    %v5609 = vmul.f32 %v4337, 0.088388346
    %v5610 = vmul.f32 %v4426, 0.088388346
    %v5611 = vmul.f32 %v4339, 0.088388346
    %v5612 = vmul.f32 %v4428, 0.088388346
    %v5613 = vmul.f32 %v4342, 0.088388346
    %v5614 = vmul.f32 %v4431, 0.088388346
    %v5615 = vmul.f32 %v4344, 0.088388346
    %v5616 = vmul.f32 %v4433, 0.088388346
    %v5617 = vmul.f32 %v4347, 0.088388346
    %v5618 = vmul.f32 %v4436, 0.088388346
    %v5619 = vmul.f32 %v4349, 0.088388346
    %v5620 = vmul.f32 %v4438, 0.088388346
    %v5621 = vmul.f32 %v4352, 0.088388346
    %v5622 = vmul.f32 %v4441, 0.088388346
    %v5623 = vmul.f32 %v4354, 0.088388346
    %v5624 = vmul.f32 %v4443, 0.088388346
    %v5625 = vmul.f32 %v4357, 0.088388346
    %v5626 = vmul.f32 %v4446, 0.088388346
    %v5627 = vmul.f32 %v4359, 0.088388346
    %v5628 = vmul.f32 %v4448, 0.088388346
    %v5629 = vmul.f32 %v4362, 0.088388346
    %v5630 = vmul.f32 %v4451, 0.088388346
    %v5631 = vmul.f32 %v4364, 0.088388346
    %v5632 = vmul.f32 %v4453, 0.088388346
    %v5633 = vmul.f32 %v4367, 0.088388346
    %v5634 = vmul.f32 %v4456, 0.088388346
    %v5635 = vmul.f32 %v4369, 0.088388346
    %v5636 = vmul.f32 %v4458, 0.088388346
    %v5637 = vmul.f32 %v4372, 0.088388346
    %v5638 = vmul.f32 %v4461, 0.088388346
    %v5639 = vmul.f32 %v4374, 0.088388346
    %v5640 = vmul.f32 %v4463, 0.088388346
    %v5641 = vmul.f32 %v4377, 0.088388346
    %v5642 = vmul.f32 %v4466, 0.088388346
    %v5643 = vmul.f32 %v4379, 0.088388346
    %v5644 = vmul.f32 %v4468, 0.088388346
    %v5645 = vmul.f32 %v4382, 0.088388346
    %v5646 = vmul.f32 %v4471, 0.088388346
    %v5647 = vmul.f32 %v4384, 0.088388346
    %v5648 = vmul.f32 %v4473, 0.088388346
    %v5649 = vmul.f32 %v4677, 0.088388346
    %v5650 = vmul.f32 %v4766, 0.088388346
    %v5651 = vmul.f32 %v4679, 0.088388346
    %v5652 = vmul.f32 %v4768, 0.088388346
    %v5653 = vmul.f32 %v4682, 0.088388346
    %v5654 = vmul.f32 %v4771, 0.088388346
    %v5655 = vmul.f32 %v4684, 0.088388346
    %v5656 = vmul.f32 %v4773, 0.088388346
    %v5657 = vmul.f32 %v4687, 0.088388346
    %v5658 = vmul.f32 %v4776, 0.088388346
    %v5659 = vmul.f32 %v4689, 0.088388346
    %v5660 = vmul.f32 %v4778, 0.088388346
    %v5661 = vmul.f32 %v4692, 0.088388346
    %v5662 = vmul.f32 %v4781, 0.088388346
    %v5663 = vmul.f32 %v4694, 0.088388346
    %v5664 = vmul.f32 %v4783, 0.088388346
    %v5665 = vmul.f32 %v4697, 0.088388346
    %v5666 = vmul.f32 %v4786, 0.088388346
    %v5667 = vmul.f32 %v4699, 0.088388346
    %v5668 = vmul.f32 %v4788, 0.088388346
    %v5669 = vmul.f32 %v4702, 0.088388346
    %v5670 = vmul.f32 %v4791, 0.088388346
    %v5671 = vmul.f32 %v4704, 0.088388346
    %v5672 = vmul.f32 %v4793, 0.088388346
    %v5673 = vmul.f32 %v4707, 0.088388346
    %v5674 = vmul.f32 %v4796, 0.088388346
    %v5675 = vmul.f32 %v4709, 0.088388346
    %v5676 = vmul.f32 %v4798, 0.088388346
    %v5677 = vmul.f32 %v4712, 0.088388346
    %v5678 = vmul.f32 %v4801, 0.088388346
    %v5679 = vmul.f32 %v4714, 0.088388346
    %v5680 = vmul.f32 %v4803, 0.088388346
    %v5681 = vmul.f32 %v4717, 0.088388346
    %v5682 = vmul.f32 %v4806, 0.088388346
    %v5683 = vmul.f32 %v4719, 0.088388346
    %v5684 = vmul.f32 %v4808, 0.088388346
    %v5685 = vmul.f32 %v4722, 0.088388346
    %v5686 = vmul.f32 %v4811, 0.088388346
    %v5687 = vmul.f32 %v4724, 0.088388346
    %v5688 = vmul.f32 %v4813, 0.088388346
    %v5689 = vmul.f32 %v4727, 0.088388346
    %v5690 = vmul.f32 %v4816, 0.088388346
    %v5691 = vmul.f32 %v4729, 0.088388346
    %v5692 = vmul.f32 %v4818, 0.088388346
    %v5693 = vmul.f32 %v4732, 0.088388346
    %v5694 = vmul.f32 %v4821, 0.088388346
    %v5695 = vmul.f32 %v4734, 0.088388346
    %v5696 = vmul.f32 %v4823, 0.088388346
    %v5697 = vmul.f32 %v4737, 0.088388346
    %v5698 = vmul.f32 %v4826, 0.088388346
    %v5699 = vmul.f32 %v4739, 0.088388346
    %v5700 = vmul.f32 %v4828, 0.088388346
    %v5701 = vmul.f32 %v4742, 0.088388346
    %v5702 = vmul.f32 %v4831, 0.088388346
    %v5703 = vmul.f32 %v4744, 0.088388346
    %v5704 = vmul.f32 %v4833, 0.088388346
    %v5705 = vmul.f32 %v4747, 0.088388346
    %v5706 = vmul.f32 %v4836, 0.088388346
    %v5707 = vmul.f32 %v4749, 0.088388346
    %v5708 = vmul.f32 %v4838, 0.088388346
    %v5709 = vmul.f32 %v4752, 0.088388346
    %v5710 = vmul.f32 %v4841, 0.088388346
    %v5711 = vmul.f32 %v4754, 0.088388346
    %v5712 = vmul.f32 %v4843, 0.088388346
    %v5713 = vmul.f32 %v5047, 0.088388346
    %v5714 = vmul.f32 %v5136, 0.088388346
    %v5715 = vmul.f32 %v5049, 0.088388346
    %v5716 = vmul.f32 %v5138, 0.088388346
    %v5717 = vmul.f32 %v5052, 0.088388346
    %v5718 = vmul.f32 %v5141, 0.088388346
    %v5719 = vmul.f32 %v5054, 0.088388346
    %v5720 = vmul.f32 %v5143, 0.088388346
    %v5721 = vmul.f32 %v5057, 0.088388346
    %v5722 = vmul.f32 %v5146, 0.088388346
    %v5723 = vmul.f32 %v5059, 0.088388346
    %v5724 = vmul.f32 %v5148, 0.088388346
    %v5725 = vmul.f32 %v5062, 0.088388346
    %v5726 = vmul.f32 %v5151, 0.088388346
    %v5727 = vmul.f32 %v5064, 0.088388346
    %v5728 = vmul.f32 %v5153, 0.088388346
    %v5729 = vmul.f32 %v5067, 0.088388346
    %v5730 = vmul.f32 %v5156, 0.088388346
    %v5731 = vmul.f32 %v5069, 0.088388346
    %v5732 = vmul.f32 %v5158, 0.088388346
    %v5733 = vmul.f32 %v5072, 0.088388346
    %v5734 = vmul.f32 %v5161, 0.088388346
    %v5735 = vmul.f32 %v5074, 0.088388346
    %v5736 = vmul.f32 %v5163, 0.088388346
    %v5737 = vmul.f32 %v5077, 0.088388346
    %v5738 = vmul.f32 %v5166, 0.088388346
    %v5739 = vmul.f32 %v5079, 0.088388346
    %v5740 = vmul.f32 %v5168, 0.088388346
    %v5741 = vmul.f32 %v5082, 0.088388346
    %v5742 = vmul.f32 %v5171, 0.088388346
    %v5743 = vmul.f32 %v5084, 0.088388346
    %v5744 = vmul.f32 %v5173, 0.088388346
    %v5745 = vmul.f32 %v5087, 0.088388346
    %v5746 = vmul.f32 %v5176, 0.088388346
    %v5747 = vmul.f32 %v5089, 0.088388346
    %v5748 = vmul.f32 %v5178, 0.088388346
    %v5749 = vmul.f32 %v5092, 0.088388346
    %v5750 = vmul.f32 %v5181, 0.088388346
    %v5751 = vmul.f32 %v5094, 0.088388346
    %v5752 = vmul.f32 %v5183, 0.088388346
    %v5753 = vmul.f32 %v5097, 0.088388346
    %v5754 = vmul.f32 %v5186, 0.088388346
    %v5755 = vmul.f32 %v5099, 0.088388346
    %v5756 = vmul.f32 %v5188, 0.088388346
    %v5757 = vmul.f32 %v5102, 0.088388346
    %v5758 = vmul.f32 %v5191, 0.088388346
    %v5759 = vmul.f32 %v5104, 0.088388346
    %v5760 = vmul.f32 %v5193, 0.088388346
    %v5761 = vmul.f32 %v5107, 0.088388346
    %v5762 = vmul.f32 %v5196, 0.088388346
    %v5763 = vmul.f32 %v5109, 0.088388346
    %v5764 = vmul.f32 %v5198, 0.088388346
    %v5765 = vmul.f32 %v5112, 0.088388346
    %v5766 = vmul.f32 %v5201, 0.088388346
    %v5767 = vmul.f32 %v5114, 0.088388346
    %v5768 = vmul.f32 %v5203, 0.088388346
    %v5769 = vmul.f32 %v5117, 0.088388346
    %v5770 = vmul.f32 %v5206, 0.088388346
    %v5771 = vmul.f32 %v5119, 0.088388346
    %v5772 = vmul.f32 %v5208, 0.088388346
    %v5773 = vmul.f32 %v5122, 0.088388346
    %v5774 = vmul.f32 %v5211, 0.088388346
    %v5775 = vmul.f32 %v5124, 0.088388346
    %v5776 = vmul.f32 %v5213, 0.088388346
    %v5777 = vmul.f32 %v5417, 0.088388346
    %v5778 = vmul.f32 %v5506, 0.088388346
    %v5779 = vmul.f32 %v5419, 0.088388346
    %v5780 = vmul.f32 %v5508, 0.088388346
    %v5781 = vmul.f32 %v5422, 0.088388346
    %v5782 = vmul.f32 %v5511, 0.088388346
    %v5783 = vmul.f32 %v5424, 0.088388346
    %v5784 = vmul.f32 %v5513, 0.088388346
    %v5785 = vmul.f32 %v5427, 0.088388346
    %v5786 = vmul.f32 %v5516, 0.088388346
    %v5787 = vmul.f32 %v5429, 0.088388346
    %v5788 = vmul.f32 %v5518, 0.088388346
    %v5789 = vmul.f32 %v5432, 0.088388346
    %v5790 = vmul.f32 %v5521, 0.088388346
    %v5791 = vmul.f32 %v5434, 0.088388346
    %v5792 = vmul.f32 %v5523, 0.088388346
    %v5793 = vmul.f32 %v5437, 0.088388346
    %v5794 = vmul.f32 %v5526, 0.088388346
    %v5795 = vmul.f32 %v5439, 0.088388346
    %v5796 = vmul.f32 %v5528, 0.088388346
    %v5797 = vmul.f32 %v5442, 0.088388346
    %v5798 = vmul.f32 %v5531, 0.088388346
    %v5799 = vmul.f32 %v5444, 0.088388346
    %v5800 = vmul.f32 %v5533, 0.088388346
    %v5801 = vmul.f32 %v5447, 0.088388346
    %v5802 = vmul.f32 %v5536, 0.088388346
    %v5803 = vmul.f32 %v5449, 0.088388346
    %v5804 = vmul.f32 %v5538, 0.088388346
    %v5805 = vmul.f32 %v5452, 0.088388346
    %v5806 = vmul.f32 %v5541, 0.088388346
    %v5807 = vmul.f32 %v5454, 0.088388346
    %v5808 = vmul.f32 %v5543, 0.088388346
    %v5809 = vmul.f32 %v5457, 0.088388346
    %v5810 = vmul.f32 %v5546, 0.088388346
    %v5811 = vmul.f32 %v5459, 0.088388346
    %v5812 = vmul.f32 %v5548, 0.088388346
    %v5813 = vmul.f32 %v5462, 0.088388346
    %v5814 = vmul.f32 %v5551, 0.088388346
    %v5815 = vmul.f32 %v5464, 0.088388346
    %v5816 = vmul.f32 %v5553, 0.088388346
    %v5817 = vmul.f32 %v5467, 0.088388346
    %v5818 = vmul.f32 %v5556, 0.088388346
    %v5819 = vmul.f32 %v5469, 0.088388346
    %v5820 = vmul.f32 %v5558, 0.088388346
    %v5821 = vmul.f32 %v5472, 0.088388346
    %v5822 = vmul.f32 %v5561, 0.088388346
    %v5823 = vmul.f32 %v5474, 0.088388346
    %v5824 = vmul.f32 %v5563, 0.088388346
    %v5825 = vmul.f32 %v5477, 0.088388346
    %v5826 = vmul.f32 %v5566, 0.088388346
    %v5827 = vmul.f32 %v5479, 0.088388346
    %v5828 = vmul.f32 %v5568, 0.088388346
    %v5829 = vmul.f32 %v5482, 0.088388346
    %v5830 = vmul.f32 %v5571, 0.088388346
    %v5831 = vmul.f32 %v5484, 0.088388346
    %v5832 = vmul.f32 %v5573, 0.088388346
    %v5833 = vmul.f32 %v5487, 0.088388346
    %v5834 = vmul.f32 %v5576, 0.088388346
    %v5835 = vmul.f32 %v5489, 0.088388346
    %v5836 = vmul.f32 %v5578, 0.088388346
    %v5837 = vmul.f32 %v5492, 0.088388346
    %v5838 = vmul.f32 %v5581, 0.088388346
    %v5839 = vmul.f32 %v5494, 0.088388346
    %v5840 = vmul.f32 %v5583, 0.088388346
    %v5841 = vmax.f32 %v5585, %v5586
    %5842 = vmax.xlane.f32.xlu0 %v5841
    %v5843 = vpop.xlane.xlu0 %5842
    %v5844 = vmax.f32 %v5587, %v5588
    %5845 = vmax.xlane.f32.xlu0 %v5844
    %v5846 = vpop.xlane.xlu0 %5845
    %v5847 = vmax.f32 %v5589, %v5590
    %5848 = vmax.xlane.f32.xlu0 %v5847
    %v5849 = vpop.xlane.xlu0 %5848
    %v5850 = vmax.f32 %v5591, %v5592
    %5851 = vmax.xlane.f32.xlu0 %v5850
    %v5852 = vpop.xlane.xlu0 %5851
    %v5853 = vmax.f32 %v5593, %v5594
    %5854 = vmax.xlane.f32.xlu0 %v5853
    %v5855 = vpop.xlane.xlu0 %5854
    %v5856 = vmax.f32 %v5595, %v5596
    %5857 = vmax.xlane.f32.xlu0 %v5856
    %v5858 = vpop.xlane.xlu0 %5857
    %v5859 = vmax.f32 %v5597, %v5598
    %5860 = vmax.xlane.f32.xlu0 %v5859
    %v5861 = vpop.xlane.xlu0 %5860
    %v5862 = vmax.f32 %v5599, %v5600
    %5863 = vmax.xlane.f32.xlu0 %v5862
    %v5864 = vpop.xlane.xlu0 %5863
    %v5865 = vmax.f32 %v5601, %v5602
    %5866 = vmax.xlane.f32.xlu0 %v5865
    %v5867 = vpop.xlane.xlu0 %5866
    %v5868 = vmax.f32 %v5603, %v5604
    %5869 = vmax.xlane.f32.xlu0 %v5868
    %v5870 = vpop.xlane.xlu0 %5869
    %v5871 = vmax.f32 %v5605, %v5606
    %5872 = vmax.xlane.f32.xlu0 %v5871
    %v5873 = vpop.xlane.xlu0 %5872
    %v5874 = vmax.f32 %v5607, %v5608
    %5875 = vmax.xlane.f32.xlu0 %v5874
    %v5876 = vpop.xlane.xlu0 %5875
    %v5877 = vmax.f32 %v5609, %v5610
    %5878 = vmax.xlane.f32.xlu0 %v5877
    %v5879 = vpop.xlane.xlu0 %5878
    %v5880 = vmax.f32 %v5611, %v5612
    %5881 = vmax.xlane.f32.xlu0 %v5880
    %v5882 = vpop.xlane.xlu0 %5881
    %v5883 = vmax.f32 %v5613, %v5614
    %5884 = vmax.xlane.f32.xlu0 %v5883
    %v5885 = vpop.xlane.xlu0 %5884
    %v5886 = vmax.f32 %v5615, %v5616
    %5887 = vmax.xlane.f32.xlu0 %v5886
    %v5888 = vpop.xlane.xlu0 %5887
    %v5889 = vmax.f32 %v5617, %v5618
    %5890 = vmax.xlane.f32.xlu0 %v5889
    %v5891 = vpop.xlane.xlu0 %5890
    %v5892 = vmax.f32 %v5619, %v5620
    %5893 = vmax.xlane.f32.xlu0 %v5892
    %v5894 = vpop.xlane.xlu0 %5893
    %v5895 = vmax.f32 %v5621, %v5622
    %5896 = vmax.xlane.f32.xlu0 %v5895
    %v5897 = vpop.xlane.xlu0 %5896
    %v5898 = vmax.f32 %v5623, %v5624
    %5899 = vmax.xlane.f32.xlu0 %v5898
    %v5900 = vpop.xlane.xlu0 %5899
    %v5901 = vmax.f32 %v5625, %v5626
    %5902 = vmax.xlane.f32.xlu0 %v5901
    %v5903 = vpop.xlane.xlu0 %5902
    %v5904 = vmax.f32 %v5627, %v5628
    %5905 = vmax.xlane.f32.xlu0 %v5904
    %v5906 = vpop.xlane.xlu0 %5905
    %v5907 = vmax.f32 %v5629, %v5630
    %5908 = vmax.xlane.f32.xlu0 %v5907
    %v5909 = vpop.xlane.xlu0 %5908
    %v5910 = vmax.f32 %v5631, %v5632
    %5911 = vmax.xlane.f32.xlu0 %v5910
    %v5912 = vpop.xlane.xlu0 %5911
    %v5913 = vmax.f32 %v5633, %v5634
    %5914 = vmax.xlane.f32.xlu0 %v5913
    %v5915 = vpop.xlane.xlu0 %5914
    %v5916 = vmax.f32 %v5635, %v5636
    %5917 = vmax.xlane.f32.xlu0 %v5916
    %v5918 = vpop.xlane.xlu0 %5917
    %v5919 = vmax.f32 %v5637, %v5638
    %5920 = vmax.xlane.f32.xlu0 %v5919
    %v5921 = vpop.xlane.xlu0 %5920
    %v5922 = vmax.f32 %v5639, %v5640
    %5923 = vmax.xlane.f32.xlu0 %v5922
    %v5924 = vpop.xlane.xlu0 %5923
    %v5925 = vmax.f32 %v5641, %v5642
    %5926 = vmax.xlane.f32.xlu0 %v5925
    %v5927 = vpop.xlane.xlu0 %5926
    %v5928 = vmax.f32 %v5643, %v5644
    %5929 = vmax.xlane.f32.xlu0 %v5928
    %v5930 = vpop.xlane.xlu0 %5929
    %v5931 = vmax.f32 %v5645, %v5646
    %5932 = vmax.xlane.f32.xlu0 %v5931
    %v5933 = vpop.xlane.xlu0 %5932
    %v5934 = vmax.f32 %v5647, %v5648
    %5935 = vmax.xlane.f32.xlu0 %v5934
    %v5936 = vpop.xlane.xlu0 %5935
    %v5937 = vmax.f32 %v5649, %v5650
    %5938 = vmax.xlane.f32.xlu0 %v5937
    %v5939 = vpop.xlane.xlu0 %5938
    %v5940 = vmax.f32 %v5651, %v5652
    %5941 = vmax.xlane.f32.xlu0 %v5940
    %v5942 = vpop.xlane.xlu0 %5941
    %v5943 = vmax.f32 %v5653, %v5654
    %5944 = vmax.xlane.f32.xlu0 %v5943
    %v5945 = vpop.xlane.xlu0 %5944
    %v5946 = vmax.f32 %v5655, %v5656
    %5947 = vmax.xlane.f32.xlu0 %v5946
    %v5948 = vpop.xlane.xlu0 %5947
    %v5949 = vmax.f32 %v5657, %v5658
    %5950 = vmax.xlane.f32.xlu0 %v5949
    %v5951 = vpop.xlane.xlu0 %5950
    %v5952 = vmax.f32 %v5659, %v5660
    %5953 = vmax.xlane.f32.xlu0 %v5952
    %v5954 = vpop.xlane.xlu0 %5953
    %v5955 = vmax.f32 %v5661, %v5662
    %5956 = vmax.xlane.f32.xlu0 %v5955
    %v5957 = vpop.xlane.xlu0 %5956
    %v5958 = vmax.f32 %v5663, %v5664
    %5959 = vmax.xlane.f32.xlu0 %v5958
    %v5960 = vpop.xlane.xlu0 %5959
    %v5961 = vmax.f32 %v5665, %v5666
    %5962 = vmax.xlane.f32.xlu0 %v5961
    %v5963 = vpop.xlane.xlu0 %5962
    %v5964 = vmax.f32 %v5667, %v5668
    %5965 = vmax.xlane.f32.xlu0 %v5964
    %v5966 = vpop.xlane.xlu0 %5965
    %v5967 = vmax.f32 %v5669, %v5670
    %5968 = vmax.xlane.f32.xlu0 %v5967
    %v5969 = vpop.xlane.xlu0 %5968
    %v5970 = vmax.f32 %v5671, %v5672
    %5971 = vmax.xlane.f32.xlu0 %v5970
    %v5972 = vpop.xlane.xlu0 %5971
    %v5973 = vmax.f32 %v5673, %v5674
    %5974 = vmax.xlane.f32.xlu0 %v5973
    %v5975 = vpop.xlane.xlu0 %5974
    %v5976 = vmax.f32 %v5675, %v5676
    %5977 = vmax.xlane.f32.xlu0 %v5976
    %v5978 = vpop.xlane.xlu0 %5977
    %v5979 = vmax.f32 %v5677, %v5678
    %5980 = vmax.xlane.f32.xlu0 %v5979
    %v5981 = vpop.xlane.xlu0 %5980
    %v5982 = vmax.f32 %v5679, %v5680
    %5983 = vmax.xlane.f32.xlu0 %v5982
    %v5984 = vpop.xlane.xlu0 %5983
    %v5985 = vmax.f32 %v5681, %v5682
    %5986 = vmax.xlane.f32.xlu0 %v5985
    %v5987 = vpop.xlane.xlu0 %5986
    %v5988 = vmax.f32 %v5683, %v5684
    %5989 = vmax.xlane.f32.xlu0 %v5988
    %v5990 = vpop.xlane.xlu0 %5989
    %v5991 = vmax.f32 %v5685, %v5686
    %5992 = vmax.xlane.f32.xlu0 %v5991
    %v5993 = vpop.xlane.xlu0 %5992
    %v5994 = vmax.f32 %v5687, %v5688
    %5995 = vmax.xlane.f32.xlu0 %v5994
    %v5996 = vpop.xlane.xlu0 %5995
    %v5997 = vmax.f32 %v5689, %v5690
    %5998 = vmax.xlane.f32.xlu0 %v5997
    %v5999 = vpop.xlane.xlu0 %5998
    %v6000 = vmax.f32 %v5691, %v5692
    %6001 = vmax.xlane.f32.xlu0 %v6000
    %v6002 = vpop.xlane.xlu0 %6001
    %v6003 = vmax.f32 %v5693, %v5694
    %6004 = vmax.xlane.f32.xlu0 %v6003
    %v6005 = vpop.xlane.xlu0 %6004
    %v6006 = vmax.f32 %v5695, %v5696
    %6007 = vmax.xlane.f32.xlu0 %v6006
    %v6008 = vpop.xlane.xlu0 %6007
    %v6009 = vmax.f32 %v5697, %v5698
    %6010 = vmax.xlane.f32.xlu0 %v6009
    %v6011 = vpop.xlane.xlu0 %6010
    %v6012 = vmax.f32 %v5699, %v5700
    %6013 = vmax.xlane.f32.xlu0 %v6012
    %v6014 = vpop.xlane.xlu0 %6013
    %v6015 = vmax.f32 %v5701, %v5702
    %6016 = vmax.xlane.f32.xlu0 %v6015
    %v6017 = vpop.xlane.xlu0 %6016
    %v6018 = vmax.f32 %v5703, %v5704
    %6019 = vmax.xlane.f32.xlu0 %v6018
    %v6020 = vpop.xlane.xlu0 %6019
    %v6021 = vmax.f32 %v5705, %v5706
    %6022 = vmax.xlane.f32.xlu0 %v6021
    %v6023 = vpop.xlane.xlu0 %6022
    %v6024 = vmax.f32 %v5707, %v5708
    %6025 = vmax.xlane.f32.xlu0 %v6024
    %v6026 = vpop.xlane.xlu0 %6025
    %v6027 = vmax.f32 %v5709, %v5710
    %6028 = vmax.xlane.f32.xlu0 %v6027
    %v6029 = vpop.xlane.xlu0 %6028
    %v6030 = vmax.f32 %v5711, %v5712
    %6031 = vmax.xlane.f32.xlu0 %v6030
    %v6032 = vpop.xlane.xlu0 %6031
    %v6033 = vmax.f32 %v5713, %v5714
    %6034 = vmax.xlane.f32.xlu0 %v6033
    %v6035 = vpop.xlane.xlu0 %6034
    %v6036 = vmax.f32 %v5715, %v5716
    %6037 = vmax.xlane.f32.xlu0 %v6036
    %v6038 = vpop.xlane.xlu0 %6037
    %v6039 = vmax.f32 %v5717, %v5718
    %6040 = vmax.xlane.f32.xlu0 %v6039
    %v6041 = vpop.xlane.xlu0 %6040
    %v6042 = vmax.f32 %v5719, %v5720
    %6043 = vmax.xlane.f32.xlu0 %v6042
    %v6044 = vpop.xlane.xlu0 %6043
    %v6045 = vmax.f32 %v5721, %v5722
    %6046 = vmax.xlane.f32.xlu0 %v6045
    %v6047 = vpop.xlane.xlu0 %6046
    %v6048 = vmax.f32 %v5723, %v5724
    %6049 = vmax.xlane.f32.xlu0 %v6048
    %v6050 = vpop.xlane.xlu0 %6049
    %v6051 = vmax.f32 %v5725, %v5726
    %6052 = vmax.xlane.f32.xlu0 %v6051
    %v6053 = vpop.xlane.xlu0 %6052
    %v6054 = vmax.f32 %v5727, %v5728
    %6055 = vmax.xlane.f32.xlu0 %v6054
    %v6056 = vpop.xlane.xlu0 %6055
    %v6057 = vmax.f32 %v5729, %v5730
    %6058 = vmax.xlane.f32.xlu0 %v6057
    %v6059 = vpop.xlane.xlu0 %6058
    %v6060 = vmax.f32 %v5731, %v5732
    %6061 = vmax.xlane.f32.xlu0 %v6060
    %v6062 = vpop.xlane.xlu0 %6061
    %v6063 = vmax.f32 %v5733, %v5734
    %6064 = vmax.xlane.f32.xlu0 %v6063
    %v6065 = vpop.xlane.xlu0 %6064
    %v6066 = vmax.f32 %v5735, %v5736
    %6067 = vmax.xlane.f32.xlu0 %v6066
    %v6068 = vpop.xlane.xlu0 %6067
    %v6069 = vmax.f32 %v5737, %v5738
    %6070 = vmax.xlane.f32.xlu0 %v6069
    %v6071 = vpop.xlane.xlu0 %6070
    %v6072 = vmax.f32 %v5739, %v5740
    %6073 = vmax.xlane.f32.xlu0 %v6072
    %v6074 = vpop.xlane.xlu0 %6073
    %v6075 = vmax.f32 %v5741, %v5742
    %6076 = vmax.xlane.f32.xlu0 %v6075
    %v6077 = vpop.xlane.xlu0 %6076
    %v6078 = vmax.f32 %v5743, %v5744
    %6079 = vmax.xlane.f32.xlu0 %v6078
    %v6080 = vpop.xlane.xlu0 %6079
    %v6081 = vmax.f32 %v5745, %v5746
    %6082 = vmax.xlane.f32.xlu0 %v6081
    %v6083 = vpop.xlane.xlu0 %6082
    %v6084 = vmax.f32 %v5747, %v5748
    %6085 = vmax.xlane.f32.xlu0 %v6084
    %v6086 = vpop.xlane.xlu0 %6085
    %v6087 = vmax.f32 %v5749, %v5750
    %6088 = vmax.xlane.f32.xlu0 %v6087
    %v6089 = vpop.xlane.xlu0 %6088
    %v6090 = vmax.f32 %v5751, %v5752
    %6091 = vmax.xlane.f32.xlu0 %v6090
    %v6092 = vpop.xlane.xlu0 %6091
    %v6093 = vmax.f32 %v5753, %v5754
    %6094 = vmax.xlane.f32.xlu0 %v6093
    %v6095 = vpop.xlane.xlu0 %6094
    %v6096 = vmax.f32 %v5755, %v5756
    %6097 = vmax.xlane.f32.xlu0 %v6096
    %v6098 = vpop.xlane.xlu0 %6097
    %v6099 = vmax.f32 %v5757, %v5758
    %6100 = vmax.xlane.f32.xlu0 %v6099
    %v6101 = vpop.xlane.xlu0 %6100
    %v6102 = vmax.f32 %v5759, %v5760
    %6103 = vmax.xlane.f32.xlu0 %v6102
    %v6104 = vpop.xlane.xlu0 %6103
    %v6105 = vmax.f32 %v5761, %v5762
    %6106 = vmax.xlane.f32.xlu0 %v6105
    %v6107 = vpop.xlane.xlu0 %6106
    %v6108 = vmax.f32 %v5763, %v5764
    %6109 = vmax.xlane.f32.xlu0 %v6108
    %v6110 = vpop.xlane.xlu0 %6109
    %v6111 = vmax.f32 %v5765, %v5766
    %6112 = vmax.xlane.f32.xlu0 %v6111
    %v6113 = vpop.xlane.xlu0 %6112
    %v6114 = vmax.f32 %v5767, %v5768
    %6115 = vmax.xlane.f32.xlu0 %v6114
    %v6116 = vpop.xlane.xlu0 %6115
    %v6117 = vmax.f32 %v5769, %v5770
    %6118 = vmax.xlane.f32.xlu0 %v6117
    %v6119 = vpop.xlane.xlu0 %6118
    %v6120 = vmax.f32 %v5771, %v5772
    %6121 = vmax.xlane.f32.xlu0 %v6120
    %v6122 = vpop.xlane.xlu0 %6121
    %v6123 = vmax.f32 %v5773, %v5774
    %6124 = vmax.xlane.f32.xlu0 %v6123
    %v6125 = vpop.xlane.xlu0 %6124
    %v6126 = vmax.f32 %v5775, %v5776
    %6127 = vmax.xlane.f32.xlu0 %v6126
    %v6128 = vpop.xlane.xlu0 %6127
    %v6129 = vmax.f32 %v5777, %v5778
    %6130 = vmax.xlane.f32.xlu0 %v6129
    %v6131 = vpop.xlane.xlu0 %6130
    %v6132 = vmax.f32 %v5779, %v5780
    %6133 = vmax.xlane.f32.xlu0 %v6132
    %v6134 = vpop.xlane.xlu0 %6133
    %v6135 = vmax.f32 %v5781, %v5782
    %6136 = vmax.xlane.f32.xlu0 %v6135
    %v6137 = vpop.xlane.xlu0 %6136
    %v6138 = vmax.f32 %v5783, %v5784
    %6139 = vmax.xlane.f32.xlu0 %v6138
    %v6140 = vpop.xlane.xlu0 %6139
    %v6141 = vmax.f32 %v5785, %v5786
    %6142 = vmax.xlane.f32.xlu0 %v6141
    %v6143 = vpop.xlane.xlu0 %6142
    %v6144 = vmax.f32 %v5787, %v5788
    %6145 = vmax.xlane.f32.xlu0 %v6144
    %v6146 = vpop.xlane.xlu0 %6145
    %v6147 = vmax.f32 %v5789, %v5790
    %6148 = vmax.xlane.f32.xlu0 %v6147
    %v6149 = vpop.xlane.xlu0 %6148
    %v6150 = vmax.f32 %v5791, %v5792
    %6151 = vmax.xlane.f32.xlu0 %v6150
    %v6152 = vpop.xlane.xlu0 %6151
    %v6153 = vmax.f32 %v5793, %v5794
    %6154 = vmax.xlane.f32.xlu0 %v6153
    %v6155 = vpop.xlane.xlu0 %6154
    %v6156 = vmax.f32 %v5795, %v5796
    %6157 = vmax.xlane.f32.xlu0 %v6156
    %v6158 = vpop.xlane.xlu0 %6157
    %v6159 = vmax.f32 %v5797, %v5798
    %6160 = vmax.xlane.f32.xlu0 %v6159
    %v6161 = vpop.xlane.xlu0 %6160
    %v6162 = vmax.f32 %v5799, %v5800
    %6163 = vmax.xlane.f32.xlu0 %v6162
    %v6164 = vpop.xlane.xlu0 %6163
    %v6165 = vmax.f32 %v5801, %v5802
    %6166 = vmax.xlane.f32.xlu0 %v6165
    %v6167 = vpop.xlane.xlu0 %6166
    %v6168 = vmax.f32 %v5803, %v5804
    %6169 = vmax.xlane.f32.xlu0 %v6168
    %v6170 = vpop.xlane.xlu0 %6169
    %v6171 = vmax.f32 %v5805, %v5806
    %6172 = vmax.xlane.f32.xlu0 %v6171
    %v6173 = vpop.xlane.xlu0 %6172
    %v6174 = vmax.f32 %v5807, %v5808
    %6175 = vmax.xlane.f32.xlu0 %v6174
    %v6176 = vpop.xlane.xlu0 %6175
    %v6177 = vmax.f32 %v5809, %v5810
    %6178 = vmax.xlane.f32.xlu0 %v6177
    %v6179 = vpop.xlane.xlu0 %6178
    %v6180 = vmax.f32 %v5811, %v5812
    %6181 = vmax.xlane.f32.xlu0 %v6180
    %v6182 = vpop.xlane.xlu0 %6181
    %v6183 = vmax.f32 %v5813, %v5814
    %6184 = vmax.xlane.f32.xlu0 %v6183
    %v6185 = vpop.xlane.xlu0 %6184
    %v6186 = vmax.f32 %v5815, %v5816
    %6187 = vmax.xlane.f32.xlu0 %v6186
    %v6188 = vpop.xlane.xlu0 %6187
    %v6189 = vmax.f32 %v5817, %v5818
    %6190 = vmax.xlane.f32.xlu0 %v6189
    %v6191 = vpop.xlane.xlu0 %6190
    %v6192 = vmax.f32 %v5819, %v5820
    %6193 = vmax.xlane.f32.xlu0 %v6192
    %v6194 = vpop.xlane.xlu0 %6193
    %v6195 = vmax.f32 %v5821, %v5822
    %6196 = vmax.xlane.f32.xlu0 %v6195
    %v6197 = vpop.xlane.xlu0 %6196
    %v6198 = vmax.f32 %v5823, %v5824
    %6199 = vmax.xlane.f32.xlu0 %v6198
    %v6200 = vpop.xlane.xlu0 %6199
    %v6201 = vmax.f32 %v5825, %v5826
    %6202 = vmax.xlane.f32.xlu0 %v6201
    %v6203 = vpop.xlane.xlu0 %6202
    %v6204 = vmax.f32 %v5827, %v5828
    %6205 = vmax.xlane.f32.xlu0 %v6204
    %v6206 = vpop.xlane.xlu0 %6205
    %v6207 = vmax.f32 %v5829, %v5830
    %6208 = vmax.xlane.f32.xlu0 %v6207
    %v6209 = vpop.xlane.xlu0 %6208
    %v6210 = vmax.f32 %v5831, %v5832
    %6211 = vmax.xlane.f32.xlu0 %v6210
    %v6212 = vpop.xlane.xlu0 %6211
    %v6213 = vmax.f32 %v5833, %v5834
    %6214 = vmax.xlane.f32.xlu0 %v6213
    %v6215 = vpop.xlane.xlu0 %6214
    %v6216 = vmax.f32 %v5835, %v5836
    %6217 = vmax.xlane.f32.xlu0 %v6216
    %v6218 = vpop.xlane.xlu0 %6217
    %v6219 = vmax.f32 %v5837, %v5838
    %6220 = vmax.xlane.f32.xlu0 %v6219
    %v6221 = vpop.xlane.xlu0 %6220
    %v6222 = vmax.f32 %v5839, %v5840
    %6223 = vmax.xlane.f32.xlu0 %v6222
    %v6224 = vpop.xlane.xlu0 %6223
    %v6225 = vsub.f32 %v5585, %v5843
    %v6226 = vsub.f32 %v5586, %v5843
    %v6227 = vsub.f32 %v5587, %v5846
    %v6228 = vsub.f32 %v5588, %v5846
    %v6229 = vsub.f32 %v5589, %v5849
    %v6230 = vsub.f32 %v5590, %v5849
    %v6231 = vsub.f32 %v5591, %v5852
    %v6232 = vsub.f32 %v5592, %v5852
    %v6233 = vsub.f32 %v5593, %v5855
    %v6234 = vsub.f32 %v5594, %v5855
    %v6235 = vsub.f32 %v5595, %v5858
    %v6236 = vsub.f32 %v5596, %v5858
    %v6237 = vsub.f32 %v5597, %v5861
    %v6238 = vsub.f32 %v5598, %v5861
    %v6239 = vsub.f32 %v5599, %v5864
    %v6240 = vsub.f32 %v5600, %v5864
    %v6241 = vsub.f32 %v5601, %v5867
    %v6242 = vsub.f32 %v5602, %v5867
    %v6243 = vsub.f32 %v5603, %v5870
    %v6244 = vsub.f32 %v5604, %v5870
    %v6245 = vsub.f32 %v5605, %v5873
    %v6246 = vsub.f32 %v5606, %v5873
    %v6247 = vsub.f32 %v5607, %v5876
    %v6248 = vsub.f32 %v5608, %v5876
    %v6249 = vsub.f32 %v5609, %v5879
    %v6250 = vsub.f32 %v5610, %v5879
    %v6251 = vsub.f32 %v5611, %v5882
    %v6252 = vsub.f32 %v5612, %v5882
    %v6253 = vsub.f32 %v5613, %v5885
    %v6254 = vsub.f32 %v5614, %v5885
    %v6255 = vsub.f32 %v5615, %v5888
    %v6256 = vsub.f32 %v5616, %v5888
    %v6257 = vsub.f32 %v5617, %v5891
    %v6258 = vsub.f32 %v5618, %v5891
    %v6259 = vsub.f32 %v5619, %v5894
    %v6260 = vsub.f32 %v5620, %v5894
    %v6261 = vsub.f32 %v5621, %v5897
    %v6262 = vsub.f32 %v5622, %v5897
    %v6263 = vsub.f32 %v5623, %v5900
    %v6264 = vsub.f32 %v5624, %v5900
    %v6265 = vsub.f32 %v5625, %v5903
    %v6266 = vsub.f32 %v5626, %v5903
    %v6267 = vsub.f32 %v5627, %v5906
    %v6268 = vsub.f32 %v5628, %v5906
    %v6269 = vsub.f32 %v5629, %v5909
    %v6270 = vsub.f32 %v5630, %v5909
    %v6271 = vsub.f32 %v5631, %v5912
    %v6272 = vsub.f32 %v5632, %v5912
    %v6273 = vsub.f32 %v5633, %v5915
    %v6274 = vsub.f32 %v5634, %v5915
    %v6275 = vsub.f32 %v5635, %v5918
    %v6276 = vsub.f32 %v5636, %v5918
    %v6277 = vsub.f32 %v5637, %v5921
    %v6278 = vsub.f32 %v5638, %v5921
    %v6279 = vsub.f32 %v5639, %v5924
    %v6280 = vsub.f32 %v5640, %v5924
    %v6281 = vsub.f32 %v5641, %v5927
    %v6282 = vsub.f32 %v5642, %v5927
    %v6283 = vsub.f32 %v5643, %v5930
    %v6284 = vsub.f32 %v5644, %v5930
    %v6285 = vsub.f32 %v5645, %v5933
    %v6286 = vsub.f32 %v5646, %v5933
    %v6287 = vsub.f32 %v5647, %v5936
    %v6288 = vsub.f32 %v5648, %v5936
    %v6289 = vsub.f32 %v5649, %v5939
    %v6290 = vsub.f32 %v5650, %v5939
    %v6291 = vsub.f32 %v5651, %v5942
    %v6292 = vsub.f32 %v5652, %v5942
    %v6293 = vsub.f32 %v5653, %v5945
    %v6294 = vsub.f32 %v5654, %v5945
    %v6295 = vsub.f32 %v5655, %v5948
    %v6296 = vsub.f32 %v5656, %v5948
    %v6297 = vsub.f32 %v5657, %v5951
    %v6298 = vsub.f32 %v5658, %v5951
    %v6299 = vsub.f32 %v5659, %v5954
    %v6300 = vsub.f32 %v5660, %v5954
    %v6301 = vsub.f32 %v5661, %v5957
    %v6302 = vsub.f32 %v5662, %v5957
    %v6303 = vsub.f32 %v5663, %v5960
    %v6304 = vsub.f32 %v5664, %v5960
    %v6305 = vsub.f32 %v5665, %v5963
    %v6306 = vsub.f32 %v5666, %v5963
    %v6307 = vsub.f32 %v5667, %v5966
    %v6308 = vsub.f32 %v5668, %v5966
    %v6309 = vsub.f32 %v5669, %v5969
    %v6310 = vsub.f32 %v5670, %v5969
    %v6311 = vsub.f32 %v5671, %v5972
    %v6312 = vsub.f32 %v5672, %v5972
    %v6313 = vsub.f32 %v5673, %v5975
    %v6314 = vsub.f32 %v5674, %v5975
    %v6315 = vsub.f32 %v5675, %v5978
    %v6316 = vsub.f32 %v5676, %v5978
    %v6317 = vsub.f32 %v5677, %v5981
    %v6318 = vsub.f32 %v5678, %v5981
    %v6319 = vsub.f32 %v5679, %v5984
    %v6320 = vsub.f32 %v5680, %v5984
    %v6321 = vsub.f32 %v5681, %v5987
    %v6322 = vsub.f32 %v5682, %v5987
    %v6323 = vsub.f32 %v5683, %v5990
    %v6324 = vsub.f32 %v5684, %v5990
    %v6325 = vsub.f32 %v5685, %v5993
    %v6326 = vsub.f32 %v5686, %v5993
    %v6327 = vsub.f32 %v5687, %v5996
    %v6328 = vsub.f32 %v5688, %v5996
    %v6329 = vsub.f32 %v5689, %v5999
    %v6330 = vsub.f32 %v5690, %v5999
    %v6331 = vsub.f32 %v5691, %v6002
    %v6332 = vsub.f32 %v5692, %v6002
    %v6333 = vsub.f32 %v5693, %v6005
    %v6334 = vsub.f32 %v5694, %v6005
    %v6335 = vsub.f32 %v5695, %v6008
    %v6336 = vsub.f32 %v5696, %v6008
    %v6337 = vsub.f32 %v5697, %v6011
    %v6338 = vsub.f32 %v5698, %v6011
    %v6339 = vsub.f32 %v5699, %v6014
    %v6340 = vsub.f32 %v5700, %v6014
    %v6341 = vsub.f32 %v5701, %v6017
    %v6342 = vsub.f32 %v5702, %v6017
    %v6343 = vsub.f32 %v5703, %v6020
    %v6344 = vsub.f32 %v5704, %v6020
    %v6345 = vsub.f32 %v5705, %v6023
    %v6346 = vsub.f32 %v5706, %v6023
    %v6347 = vsub.f32 %v5707, %v6026
    %v6348 = vsub.f32 %v5708, %v6026
    %v6349 = vsub.f32 %v5709, %v6029
    %v6350 = vsub.f32 %v5710, %v6029
    %v6351 = vsub.f32 %v5711, %v6032
    %v6352 = vsub.f32 %v5712, %v6032
    %v6353 = vsub.f32 %v5713, %v6035
    %v6354 = vsub.f32 %v5714, %v6035
    %v6355 = vsub.f32 %v5715, %v6038
    %v6356 = vsub.f32 %v5716, %v6038
    %v6357 = vsub.f32 %v5717, %v6041
    %v6358 = vsub.f32 %v5718, %v6041
    %v6359 = vsub.f32 %v5719, %v6044
    %v6360 = vsub.f32 %v5720, %v6044
    %v6361 = vsub.f32 %v5721, %v6047
    %v6362 = vsub.f32 %v5722, %v6047
    %v6363 = vsub.f32 %v5723, %v6050
    %v6364 = vsub.f32 %v5724, %v6050
    %v6365 = vsub.f32 %v5725, %v6053
    %v6366 = vsub.f32 %v5726, %v6053
    %v6367 = vsub.f32 %v5727, %v6056
    %v6368 = vsub.f32 %v5728, %v6056
    %v6369 = vsub.f32 %v5729, %v6059
    %v6370 = vsub.f32 %v5730, %v6059
    %v6371 = vsub.f32 %v5731, %v6062
    %v6372 = vsub.f32 %v5732, %v6062
    %v6373 = vsub.f32 %v5733, %v6065
    %v6374 = vsub.f32 %v5734, %v6065
    %v6375 = vsub.f32 %v5735, %v6068
    %v6376 = vsub.f32 %v5736, %v6068
    %v6377 = vsub.f32 %v5737, %v6071
    %v6378 = vsub.f32 %v5738, %v6071
    %v6379 = vsub.f32 %v5739, %v6074
    %v6380 = vsub.f32 %v5740, %v6074
    %v6381 = vsub.f32 %v5741, %v6077
    %v6382 = vsub.f32 %v5742, %v6077
    %v6383 = vsub.f32 %v5743, %v6080
    %v6384 = vsub.f32 %v5744, %v6080
    %v6385 = vsub.f32 %v5745, %v6083
    %v6386 = vsub.f32 %v5746, %v6083
    %v6387 = vsub.f32 %v5747, %v6086
    %v6388 = vsub.f32 %v5748, %v6086
    %v6389 = vsub.f32 %v5749, %v6089
    %v6390 = vsub.f32 %v5750, %v6089
    %v6391 = vsub.f32 %v5751, %v6092
    %v6392 = vsub.f32 %v5752, %v6092
    %v6393 = vsub.f32 %v5753, %v6095
    %v6394 = vsub.f32 %v5754, %v6095
    %v6395 = vsub.f32 %v5755, %v6098
    %v6396 = vsub.f32 %v5756, %v6098
    %v6397 = vsub.f32 %v5757, %v6101
    %v6398 = vsub.f32 %v5758, %v6101
    %v6399 = vsub.f32 %v5759, %v6104
    %v6400 = vsub.f32 %v5760, %v6104
    %v6401 = vsub.f32 %v5761, %v6107
    %v6402 = vsub.f32 %v5762, %v6107
    %v6403 = vsub.f32 %v5763, %v6110
    %v6404 = vsub.f32 %v5764, %v6110
    %v6405 = vsub.f32 %v5765, %v6113
    %v6406 = vsub.f32 %v5766, %v6113
    %v6407 = vsub.f32 %v5767, %v6116
    %v6408 = vsub.f32 %v5768, %v6116
    %v6409 = vsub.f32 %v5769, %v6119
    %v6410 = vsub.f32 %v5770, %v6119
    %v6411 = vsub.f32 %v5771, %v6122
    %v6412 = vsub.f32 %v5772, %v6122
    %v6413 = vsub.f32 %v5773, %v6125
    %v6414 = vsub.f32 %v5774, %v6125
    %v6415 = vsub.f32 %v5775, %v6128
    %v6416 = vsub.f32 %v5776, %v6128
    %v6417 = vsub.f32 %v5777, %v6131
    %v6418 = vsub.f32 %v5778, %v6131
    %v6419 = vsub.f32 %v5779, %v6134
    %v6420 = vsub.f32 %v5780, %v6134
    %v6421 = vsub.f32 %v5781, %v6137
    %v6422 = vsub.f32 %v5782, %v6137
    %v6423 = vsub.f32 %v5783, %v6140
    %v6424 = vsub.f32 %v5784, %v6140
    %v6425 = vsub.f32 %v5785, %v6143
    %v6426 = vsub.f32 %v5786, %v6143
    %v6427 = vsub.f32 %v5787, %v6146
    %v6428 = vsub.f32 %v5788, %v6146
    %v6429 = vsub.f32 %v5789, %v6149
    %v6430 = vsub.f32 %v5790, %v6149
    %v6431 = vsub.f32 %v5791, %v6152
    %v6432 = vsub.f32 %v5792, %v6152
    %v6433 = vsub.f32 %v5793, %v6155
    %v6434 = vsub.f32 %v5794, %v6155
    %v6435 = vsub.f32 %v5795, %v6158
    %v6436 = vsub.f32 %v5796, %v6158
    %v6437 = vsub.f32 %v5797, %v6161
    %v6438 = vsub.f32 %v5798, %v6161
    %v6439 = vsub.f32 %v5799, %v6164
    %v6440 = vsub.f32 %v5800, %v6164
    %v6441 = vsub.f32 %v5801, %v6167
    %v6442 = vsub.f32 %v5802, %v6167
    %v6443 = vsub.f32 %v5803, %v6170
    %v6444 = vsub.f32 %v5804, %v6170
    %v6445 = vsub.f32 %v5805, %v6173
    %v6446 = vsub.f32 %v5806, %v6173
    %v6447 = vsub.f32 %v5807, %v6176
    %v6448 = vsub.f32 %v5808, %v6176
    %v6449 = vsub.f32 %v5809, %v6179
    %v6450 = vsub.f32 %v5810, %v6179
    %v6451 = vsub.f32 %v5811, %v6182
    %v6452 = vsub.f32 %v5812, %v6182
    %v6453 = vsub.f32 %v5813, %v6185
    %v6454 = vsub.f32 %v5814, %v6185
    %v6455 = vsub.f32 %v5815, %v6188
    %v6456 = vsub.f32 %v5816, %v6188
    %v6457 = vsub.f32 %v5817, %v6191
    %v6458 = vsub.f32 %v5818, %v6191
    %v6459 = vsub.f32 %v5819, %v6194
    %v6460 = vsub.f32 %v5820, %v6194
    %v6461 = vsub.f32 %v5821, %v6197
    %v6462 = vsub.f32 %v5822, %v6197
    %v6463 = vsub.f32 %v5823, %v6200
    %v6464 = vsub.f32 %v5824, %v6200
    %v6465 = vsub.f32 %v5825, %v6203
    %v6466 = vsub.f32 %v5826, %v6203
    %v6467 = vsub.f32 %v5827, %v6206
    %v6468 = vsub.f32 %v5828, %v6206
    %v6469 = vsub.f32 %v5829, %v6209
    %v6470 = vsub.f32 %v5830, %v6209
    %v6471 = vsub.f32 %v5831, %v6212
    %v6472 = vsub.f32 %v5832, %v6212
    %v6473 = vsub.f32 %v5833, %v6215
    %v6474 = vsub.f32 %v5834, %v6215
    %v6475 = vsub.f32 %v5835, %v6218
    %v6476 = vsub.f32 %v5836, %v6218
    %v6477 = vsub.f32 %v5837, %v6221
    %v6478 = vsub.f32 %v5838, %v6221
    %v6479 = vsub.f32 %v5839, %v6224
    %v6480 = vsub.f32 %v5840, %v6224
    %v6481 = vmul.f32 %v6225, 1.442695
    %v6482 = vpow.pop %v6481
    %v6483 = vmul.f32 %v6226, 1.442695
    %v6484 = vpow.pop %v6483
    %v6485 = vmul.f32 %v6227, 1.442695
    %v6486 = vpow.pop %v6485
    %v6487 = vmul.f32 %v6228, 1.442695
    %v6488 = vpow.pop %v6487
    %v6489 = vmul.f32 %v6229, 1.442695
    %v6490 = vpow.pop %v6489
    %v6491 = vmul.f32 %v6230, 1.442695
    %v6492 = vpow.pop %v6491
    %v6493 = vmul.f32 %v6231, 1.442695
    %v6494 = vpow.pop %v6493
    %v6495 = vmul.f32 %v6232, 1.442695
    %v6496 = vpow.pop %v6495
    %v6497 = vmul.f32 %v6233, 1.442695
    %v6498 = vpow.pop %v6497
    %v6499 = vmul.f32 %v6234, 1.442695
    %v6500 = vpow.pop %v6499
    %v6501 = vmul.f32 %v6235, 1.442695
    %v6502 = vpow.pop %v6501
    %v6503 = vmul.f32 %v6236, 1.442695
    %v6504 = vpow.pop %v6503
    %v6505 = vmul.f32 %v6237, 1.442695
    %v6506 = vpow.pop %v6505
    %v6507 = vmul.f32 %v6238, 1.442695
    %v6508 = vpow.pop %v6507
    %v6509 = vmul.f32 %v6239, 1.442695
    %v6510 = vpow.pop %v6509
    %v6511 = vmul.f32 %v6240, 1.442695
    %v6512 = vpow.pop %v6511
    %v6513 = vmul.f32 %v6241, 1.442695
    %v6514 = vpow.pop %v6513
    %v6515 = vmul.f32 %v6242, 1.442695
    %v6516 = vpow.pop %v6515
    %v6517 = vmul.f32 %v6243, 1.442695
    %v6518 = vpow.pop %v6517
    %v6519 = vmul.f32 %v6244, 1.442695
    %v6520 = vpow.pop %v6519
    %v6521 = vmul.f32 %v6245, 1.442695
    %v6522 = vpow.pop %v6521
    %v6523 = vmul.f32 %v6246, 1.442695
    %v6524 = vpow.pop %v6523
    %v6525 = vmul.f32 %v6247, 1.442695
    %v6526 = vpow.pop %v6525
    %v6527 = vmul.f32 %v6248, 1.442695
    %v6528 = vpow.pop %v6527
    %v6529 = vmul.f32 %v6249, 1.442695
    %v6530 = vpow.pop %v6529
    %v6531 = vmul.f32 %v6250, 1.442695
    %v6532 = vpow.pop %v6531
    %v6533 = vmul.f32 %v6251, 1.442695
    %v6534 = vpow.pop %v6533
    %v6535 = vmul.f32 %v6252, 1.442695
    %v6536 = vpow.pop %v6535
    %v6537 = vmul.f32 %v6253, 1.442695
    %v6538 = vpow.pop %v6537
    %v6539 = vmul.f32 %v6254, 1.442695
    %v6540 = vpow.pop %v6539
    %v6541 = vmul.f32 %v6255, 1.442695
    %v6542 = vpow.pop %v6541
    %v6543 = vmul.f32 %v6256, 1.442695
    %v6544 = vpow.pop %v6543
    %v6545 = vmul.f32 %v6257, 1.442695
    %v6546 = vpow.pop %v6545
    %v6547 = vmul.f32 %v6258, 1.442695
    %v6548 = vpow.pop %v6547
    %v6549 = vmul.f32 %v6259, 1.442695
    %v6550 = vpow.pop %v6549
    %v6551 = vmul.f32 %v6260, 1.442695
    %v6552 = vpow.pop %v6551
    %v6553 = vmul.f32 %v6261, 1.442695
    %v6554 = vpow.pop %v6553
    %v6555 = vmul.f32 %v6262, 1.442695
    %v6556 = vpow.pop %v6555
    %v6557 = vmul.f32 %v6263, 1.442695
    %v6558 = vpow.pop %v6557
    %v6559 = vmul.f32 %v6264, 1.442695
    %v6560 = vpow.pop %v6559
    %v6561 = vmul.f32 %v6265, 1.442695
    %v6562 = vpow.pop %v6561
    %v6563 = vmul.f32 %v6266, 1.442695
    %v6564 = vpow.pop %v6563
    %v6565 = vmul.f32 %v6267, 1.442695
    %v6566 = vpow.pop %v6565
    %v6567 = vmul.f32 %v6268, 1.442695
    %v6568 = vpow.pop %v6567
    %v6569 = vmul.f32 %v6269, 1.442695
    %v6570 = vpow.pop %v6569
    %v6571 = vmul.f32 %v6270, 1.442695
    %v6572 = vpow.pop %v6571
    %v6573 = vmul.f32 %v6271, 1.442695
    %v6574 = vpow.pop %v6573
    %v6575 = vmul.f32 %v6272, 1.442695
    %v6576 = vpow.pop %v6575
    %v6577 = vmul.f32 %v6273, 1.442695
    %v6578 = vpow.pop %v6577
    %v6579 = vmul.f32 %v6274, 1.442695
    %v6580 = vpow.pop %v6579
    %v6581 = vmul.f32 %v6275, 1.442695
    %v6582 = vpow.pop %v6581
    %v6583 = vmul.f32 %v6276, 1.442695
    %v6584 = vpow.pop %v6583
    %v6585 = vmul.f32 %v6277, 1.442695
    %v6586 = vpow.pop %v6585
    %v6587 = vmul.f32 %v6278, 1.442695
    %v6588 = vpow.pop %v6587
    %v6589 = vmul.f32 %v6279, 1.442695
    %v6590 = vpow.pop %v6589
    %v6591 = vmul.f32 %v6280, 1.442695
    %v6592 = vpow.pop %v6591
    %v6593 = vmul.f32 %v6281, 1.442695
    %v6594 = vpow.pop %v6593
    %v6595 = vmul.f32 %v6282, 1.442695
    %v6596 = vpow.pop %v6595
    %v6597 = vmul.f32 %v6283, 1.442695
    %v6598 = vpow.pop %v6597
    %v6599 = vmul.f32 %v6284, 1.442695
    %v6600 = vpow.pop %v6599
    %v6601 = vmul.f32 %v6285, 1.442695
    %v6602 = vpow.pop %v6601
    %v6603 = vmul.f32 %v6286, 1.442695
    %v6604 = vpow.pop %v6603
    %v6605 = vmul.f32 %v6287, 1.442695
    %v6606 = vpow.pop %v6605
    %v6607 = vmul.f32 %v6288, 1.442695
    %v6608 = vpow.pop %v6607
    %v6609 = vmul.f32 %v6289, 1.442695
    %v6610 = vpow.pop %v6609
    %v6611 = vmul.f32 %v6290, 1.442695
    %v6612 = vpow.pop %v6611
    %v6613 = vmul.f32 %v6291, 1.442695
    %v6614 = vpow.pop %v6613
    %v6615 = vmul.f32 %v6292, 1.442695
    %v6616 = vpow.pop %v6615
    %v6617 = vmul.f32 %v6293, 1.442695
    %v6618 = vpow.pop %v6617
    %v6619 = vmul.f32 %v6294, 1.442695
    %v6620 = vpow.pop %v6619
    %v6621 = vmul.f32 %v6295, 1.442695
    %v6622 = vpow.pop %v6621
    %v6623 = vmul.f32 %v6296, 1.442695
    %v6624 = vpow.pop %v6623
    %v6625 = vmul.f32 %v6297, 1.442695
    %v6626 = vpow.pop %v6625
    %v6627 = vmul.f32 %v6298, 1.442695
    %v6628 = vpow.pop %v6627
    %v6629 = vmul.f32 %v6299, 1.442695
    %v6630 = vpow.pop %v6629
    %v6631 = vmul.f32 %v6300, 1.442695
    %v6632 = vpow.pop %v6631
    %v6633 = vmul.f32 %v6301, 1.442695
    %v6634 = vpow.pop %v6633
    %v6635 = vmul.f32 %v6302, 1.442695
    %v6636 = vpow.pop %v6635
    %v6637 = vmul.f32 %v6303, 1.442695
    %v6638 = vpow.pop %v6637
    %v6639 = vmul.f32 %v6304, 1.442695
    %v6640 = vpow.pop %v6639
    %v6641 = vmul.f32 %v6305, 1.442695
    %v6642 = vpow.pop %v6641
    %v6643 = vmul.f32 %v6306, 1.442695
    %v6644 = vpow.pop %v6643
    %v6645 = vmul.f32 %v6307, 1.442695
    %v6646 = vpow.pop %v6645
    %v6647 = vmul.f32 %v6308, 1.442695
    %v6648 = vpow.pop %v6647
    %v6649 = vmul.f32 %v6309, 1.442695
    %v6650 = vpow.pop %v6649
    %v6651 = vmul.f32 %v6310, 1.442695
    %v6652 = vpow.pop %v6651
    %v6653 = vmul.f32 %v6311, 1.442695
    %v6654 = vpow.pop %v6653
    %v6655 = vmul.f32 %v6312, 1.442695
    %v6656 = vpow.pop %v6655
    %v6657 = vmul.f32 %v6313, 1.442695
    %v6658 = vpow.pop %v6657
    %v6659 = vmul.f32 %v6314, 1.442695
    %v6660 = vpow.pop %v6659
    %v6661 = vmul.f32 %v6315, 1.442695
    %v6662 = vpow.pop %v6661
    %v6663 = vmul.f32 %v6316, 1.442695
    %v6664 = vpow.pop %v6663
    %v6665 = vmul.f32 %v6317, 1.442695
    %v6666 = vpow.pop %v6665
    %v6667 = vmul.f32 %v6318, 1.442695
    %v6668 = vpow.pop %v6667
    %v6669 = vmul.f32 %v6319, 1.442695
    %v6670 = vpow.pop %v6669
    %v6671 = vmul.f32 %v6320, 1.442695
    %v6672 = vpow.pop %v6671
    %v6673 = vmul.f32 %v6321, 1.442695
    %v6674 = vpow.pop %v6673
    %v6675 = vmul.f32 %v6322, 1.442695
    %v6676 = vpow.pop %v6675
    %v6677 = vmul.f32 %v6323, 1.442695
    %v6678 = vpow.pop %v6677
    %v6679 = vmul.f32 %v6324, 1.442695
    %v6680 = vpow.pop %v6679
    %v6681 = vmul.f32 %v6325, 1.442695
    %v6682 = vpow.pop %v6681
    %v6683 = vmul.f32 %v6326, 1.442695
    %v6684 = vpow.pop %v6683
    %v6685 = vmul.f32 %v6327, 1.442695
    %v6686 = vpow.pop %v6685
    %v6687 = vmul.f32 %v6328, 1.442695
    %v6688 = vpow.pop %v6687
    %v6689 = vmul.f32 %v6329, 1.442695
    %v6690 = vpow.pop %v6689
    %v6691 = vmul.f32 %v6330, 1.442695
    %v6692 = vpow.pop %v6691
    %v6693 = vmul.f32 %v6331, 1.442695
    %v6694 = vpow.pop %v6693
    %v6695 = vmul.f32 %v6332, 1.442695
    %v6696 = vpow.pop %v6695
    %v6697 = vmul.f32 %v6333, 1.442695
    %v6698 = vpow.pop %v6697
    %v6699 = vmul.f32 %v6334, 1.442695
    %v6700 = vpow.pop %v6699
    %v6701 = vmul.f32 %v6335, 1.442695
    %v6702 = vpow.pop %v6701
    %v6703 = vmul.f32 %v6336, 1.442695
    %v6704 = vpow.pop %v6703
    %v6705 = vmul.f32 %v6337, 1.442695
    %v6706 = vpow.pop %v6705
    %v6707 = vmul.f32 %v6338, 1.442695
    %v6708 = vpow.pop %v6707
    %v6709 = vmul.f32 %v6339, 1.442695
    %v6710 = vpow.pop %v6709
    %v6711 = vmul.f32 %v6340, 1.442695
    %v6712 = vpow.pop %v6711
    %v6713 = vmul.f32 %v6341, 1.442695
    %v6714 = vpow.pop %v6713
    %v6715 = vmul.f32 %v6342, 1.442695
    %v6716 = vpow.pop %v6715
    %v6717 = vmul.f32 %v6343, 1.442695
    %v6718 = vpow.pop %v6717
    %v6719 = vmul.f32 %v6344, 1.442695
    %v6720 = vpow.pop %v6719
    %v6721 = vmul.f32 %v6345, 1.442695
    %v6722 = vpow.pop %v6721
    %v6723 = vmul.f32 %v6346, 1.442695
    %v6724 = vpow.pop %v6723
    %v6725 = vmul.f32 %v6347, 1.442695
    %v6726 = vpow.pop %v6725
    %v6727 = vmul.f32 %v6348, 1.442695
    %v6728 = vpow.pop %v6727
    %v6729 = vmul.f32 %v6349, 1.442695
    %v6730 = vpow.pop %v6729
    %v6731 = vmul.f32 %v6350, 1.442695
    %v6732 = vpow.pop %v6731
    %v6733 = vmul.f32 %v6351, 1.442695
    %v6734 = vpow.pop %v6733
    %v6735 = vmul.f32 %v6352, 1.442695
    %v6736 = vpow.pop %v6735
    %v6737 = vmul.f32 %v6353, 1.442695
    %v6738 = vpow.pop %v6737
    %v6739 = vmul.f32 %v6354, 1.442695
    %v6740 = vpow.pop %v6739
    %v6741 = vmul.f32 %v6355, 1.442695
    %v6742 = vpow.pop %v6741
    %v6743 = vmul.f32 %v6356, 1.442695
    %v6744 = vpow.pop %v6743
    %v6745 = vmul.f32 %v6357, 1.442695
    %v6746 = vpow.pop %v6745
    %v6747 = vmul.f32 %v6358, 1.442695
    %v6748 = vpow.pop %v6747
    %v6749 = vmul.f32 %v6359, 1.442695
    %v6750 = vpow.pop %v6749
    %v6751 = vmul.f32 %v6360, 1.442695
    %v6752 = vpow.pop %v6751
    %v6753 = vmul.f32 %v6361, 1.442695
    %v6754 = vpow.pop %v6753
    %v6755 = vmul.f32 %v6362, 1.442695
    %v6756 = vpow.pop %v6755
    %v6757 = vmul.f32 %v6363, 1.442695
    %v6758 = vpow.pop %v6757
    %v6759 = vmul.f32 %v6364, 1.442695
    %v6760 = vpow.pop %v6759
    %v6761 = vmul.f32 %v6365, 1.442695
    %v6762 = vpow.pop %v6761
    %v6763 = vmul.f32 %v6366, 1.442695
    %v6764 = vpow.pop %v6763
    %v6765 = vmul.f32 %v6367, 1.442695
    %v6766 = vpow.pop %v6765
    %v6767 = vmul.f32 %v6368, 1.442695
    %v6768 = vpow.pop %v6767
    %v6769 = vmul.f32 %v6369, 1.442695
    %v6770 = vpow.pop %v6769
    %v6771 = vmul.f32 %v6370, 1.442695
    %v6772 = vpow.pop %v6771
    %v6773 = vmul.f32 %v6371, 1.442695
    %v6774 = vpow.pop %v6773
    %v6775 = vmul.f32 %v6372, 1.442695
    %v6776 = vpow.pop %v6775
    %v6777 = vmul.f32 %v6373, 1.442695
    %v6778 = vpow.pop %v6777
    %v6779 = vmul.f32 %v6374, 1.442695
    %v6780 = vpow.pop %v6779
    %v6781 = vmul.f32 %v6375, 1.442695
    %v6782 = vpow.pop %v6781
    %v6783 = vmul.f32 %v6376, 1.442695
    %v6784 = vpow.pop %v6783
    %v6785 = vmul.f32 %v6377, 1.442695
    %v6786 = vpow.pop %v6785
    %v6787 = vmul.f32 %v6378, 1.442695
    %v6788 = vpow.pop %v6787
    %v6789 = vmul.f32 %v6379, 1.442695
    %v6790 = vpow.pop %v6789
    %v6791 = vmul.f32 %v6380, 1.442695
    %v6792 = vpow.pop %v6791
    %v6793 = vmul.f32 %v6381, 1.442695
    %v6794 = vpow.pop %v6793
    %v6795 = vmul.f32 %v6382, 1.442695
    %v6796 = vpow.pop %v6795
    %v6797 = vmul.f32 %v6383, 1.442695
    %v6798 = vpow.pop %v6797
    %v6799 = vmul.f32 %v6384, 1.442695
    %v6800 = vpow.pop %v6799
    %v6801 = vmul.f32 %v6385, 1.442695
    %v6802 = vpow.pop %v6801
    %v6803 = vmul.f32 %v6386, 1.442695
    %v6804 = vpow.pop %v6803
    %v6805 = vmul.f32 %v6387, 1.442695
    %v6806 = vpow.pop %v6805
    %v6807 = vmul.f32 %v6388, 1.442695
    %v6808 = vpow.pop %v6807
    %v6809 = vmul.f32 %v6389, 1.442695
    %v6810 = vpow.pop %v6809
    %v6811 = vmul.f32 %v6390, 1.442695
    %v6812 = vpow.pop %v6811
    %v6813 = vmul.f32 %v6391, 1.442695
    %v6814 = vpow.pop %v6813
    %v6815 = vmul.f32 %v6392, 1.442695
    %v6816 = vpow.pop %v6815
    %v6817 = vmul.f32 %v6393, 1.442695
    %v6818 = vpow.pop %v6817
    %v6819 = vmul.f32 %v6394, 1.442695
    %v6820 = vpow.pop %v6819
    %v6821 = vmul.f32 %v6395, 1.442695
    %v6822 = vpow.pop %v6821
    %v6823 = vmul.f32 %v6396, 1.442695
    %v6824 = vpow.pop %v6823
    %v6825 = vmul.f32 %v6397, 1.442695
    %v6826 = vpow.pop %v6825
    %v6827 = vmul.f32 %v6398, 1.442695
    %v6828 = vpow.pop %v6827
    %v6829 = vmul.f32 %v6399, 1.442695
    %v6830 = vpow.pop %v6829
    %v6831 = vmul.f32 %v6400, 1.442695
    %v6832 = vpow.pop %v6831
    %v6833 = vmul.f32 %v6401, 1.442695
    %v6834 = vpow.pop %v6833
    %v6835 = vmul.f32 %v6402, 1.442695
    %v6836 = vpow.pop %v6835
    %v6837 = vmul.f32 %v6403, 1.442695
    %v6838 = vpow.pop %v6837
    %v6839 = vmul.f32 %v6404, 1.442695
    %v6840 = vpow.pop %v6839
    %v6841 = vmul.f32 %v6405, 1.442695
    %v6842 = vpow.pop %v6841
    %v6843 = vmul.f32 %v6406, 1.442695
    %v6844 = vpow.pop %v6843
    %v6845 = vmul.f32 %v6407, 1.442695
    %v6846 = vpow.pop %v6845
    %v6847 = vmul.f32 %v6408, 1.442695
    %v6848 = vpow.pop %v6847
    %v6849 = vmul.f32 %v6409, 1.442695
    %v6850 = vpow.pop %v6849
    %v6851 = vmul.f32 %v6410, 1.442695
    %v6852 = vpow.pop %v6851
    %v6853 = vmul.f32 %v6411, 1.442695
    %v6854 = vpow.pop %v6853
    %v6855 = vmul.f32 %v6412, 1.442695
    %v6856 = vpow.pop %v6855
    %v6857 = vmul.f32 %v6413, 1.442695
    %v6858 = vpow.pop %v6857
    %v6859 = vmul.f32 %v6414, 1.442695
    %v6860 = vpow.pop %v6859
    %v6861 = vmul.f32 %v6415, 1.442695
    %v6862 = vpow.pop %v6861
    %v6863 = vmul.f32 %v6416, 1.442695
    %v6864 = vpow.pop %v6863
    %v6865 = vmul.f32 %v6417, 1.442695
    %v6866 = vpow.pop %v6865
    %v6867 = vmul.f32 %v6418, 1.442695
    %v6868 = vpow.pop %v6867
    %v6869 = vmul.f32 %v6419, 1.442695
    %v6870 = vpow.pop %v6869
    %v6871 = vmul.f32 %v6420, 1.442695
    %v6872 = vpow.pop %v6871
    %v6873 = vmul.f32 %v6421, 1.442695
    %v6874 = vpow.pop %v6873
    %v6875 = vmul.f32 %v6422, 1.442695
    %v6876 = vpow.pop %v6875
    %v6877 = vmul.f32 %v6423, 1.442695
    %v6878 = vpow.pop %v6877
    %v6879 = vmul.f32 %v6424, 1.442695
    %v6880 = vpow.pop %v6879
    %v6881 = vmul.f32 %v6425, 1.442695
    %v6882 = vpow.pop %v6881
    %v6883 = vmul.f32 %v6426, 1.442695
    %v6884 = vpow.pop %v6883
    %v6885 = vmul.f32 %v6427, 1.442695
    %v6886 = vpow.pop %v6885
    %v6887 = vmul.f32 %v6428, 1.442695
    %v6888 = vpow.pop %v6887
    %v6889 = vmul.f32 %v6429, 1.442695
    %v6890 = vpow.pop %v6889
    %v6891 = vmul.f32 %v6430, 1.442695
    %v6892 = vpow.pop %v6891
    %v6893 = vmul.f32 %v6431, 1.442695
    %v6894 = vpow.pop %v6893
    %v6895 = vmul.f32 %v6432, 1.442695
    %v6896 = vpow.pop %v6895
    %v6897 = vmul.f32 %v6433, 1.442695
    %v6898 = vpow.pop %v6897
    %v6899 = vmul.f32 %v6434, 1.442695
    %v6900 = vpow.pop %v6899
    %v6901 = vmul.f32 %v6435, 1.442695
    %v6902 = vpow.pop %v6901
    %v6903 = vmul.f32 %v6436, 1.442695
    %v6904 = vpow.pop %v6903
    %v6905 = vmul.f32 %v6437, 1.442695
    %v6906 = vpow.pop %v6905
    %v6907 = vmul.f32 %v6438, 1.442695
    %v6908 = vpow.pop %v6907
    %v6909 = vmul.f32 %v6439, 1.442695
    %v6910 = vpow.pop %v6909
    %v6911 = vmul.f32 %v6440, 1.442695
    %v6912 = vpow.pop %v6911
    %v6913 = vmul.f32 %v6441, 1.442695
    %v6914 = vpow.pop %v6913
    %v6915 = vmul.f32 %v6442, 1.442695
    %v6916 = vpow.pop %v6915
    %v6917 = vmul.f32 %v6443, 1.442695
    %v6918 = vpow.pop %v6917
    %v6919 = vmul.f32 %v6444, 1.442695
    %v6920 = vpow.pop %v6919
    %v6921 = vmul.f32 %v6445, 1.442695
    %v6922 = vpow.pop %v6921
    %v6923 = vmul.f32 %v6446, 1.442695
    %v6924 = vpow.pop %v6923
    %v6925 = vmul.f32 %v6447, 1.442695
    %v6926 = vpow.pop %v6925
    %v6927 = vmul.f32 %v6448, 1.442695
    %v6928 = vpow.pop %v6927
    %v6929 = vmul.f32 %v6449, 1.442695
    %v6930 = vpow.pop %v6929
    %v6931 = vmul.f32 %v6450, 1.442695
    %v6932 = vpow.pop %v6931
    %v6933 = vmul.f32 %v6451, 1.442695
    %v6934 = vpow.pop %v6933
    %v6935 = vmul.f32 %v6452, 1.442695
    %v6936 = vpow.pop %v6935
    %v6937 = vmul.f32 %v6453, 1.442695
    %v6938 = vpow.pop %v6937
    %v6939 = vmul.f32 %v6454, 1.442695
    %v6940 = vpow.pop %v6939
    %v6941 = vmul.f32 %v6455, 1.442695
    %v6942 = vpow.pop %v6941
    %v6943 = vmul.f32 %v6456, 1.442695
    %v6944 = vpow.pop %v6943
    %v6945 = vmul.f32 %v6457, 1.442695
    %v6946 = vpow.pop %v6945
    %v6947 = vmul.f32 %v6458, 1.442695
    %v6948 = vpow.pop %v6947
    %v6949 = vmul.f32 %v6459, 1.442695
    %v6950 = vpow.pop %v6949
    %v6951 = vmul.f32 %v6460, 1.442695
    %v6952 = vpow.pop %v6951
    %v6953 = vmul.f32 %v6461, 1.442695
    %v6954 = vpow.pop %v6953
    %v6955 = vmul.f32 %v6462, 1.442695
    %v6956 = vpow.pop %v6955
    %v6957 = vmul.f32 %v6463, 1.442695
    %v6958 = vpow.pop %v6957
    %v6959 = vmul.f32 %v6464, 1.442695
    %v6960 = vpow.pop %v6959
    %v6961 = vmul.f32 %v6465, 1.442695
    %v6962 = vpow.pop %v6961
    %v6963 = vmul.f32 %v6466, 1.442695
    %v6964 = vpow.pop %v6963
    %v6965 = vmul.f32 %v6467, 1.442695
    %v6966 = vpow.pop %v6965
    %v6967 = vmul.f32 %v6468, 1.442695
    %v6968 = vpow.pop %v6967
    %v6969 = vmul.f32 %v6469, 1.442695
    %v6970 = vpow.pop %v6969
    %v6971 = vmul.f32 %v6470, 1.442695
    %v6972 = vpow.pop %v6971
    %v6973 = vmul.f32 %v6471, 1.442695
    %v6974 = vpow.pop %v6973
    %v6975 = vmul.f32 %v6472, 1.442695
    %v6976 = vpow.pop %v6975
    %v6977 = vmul.f32 %v6473, 1.442695
    %v6978 = vpow.pop %v6977
    %v6979 = vmul.f32 %v6474, 1.442695
    %v6980 = vpow.pop %v6979
    %v6981 = vmul.f32 %v6475, 1.442695
    %v6982 = vpow.pop %v6981
    %v6983 = vmul.f32 %v6476, 1.442695
    %v6984 = vpow.pop %v6983
    %v6985 = vmul.f32 %v6477, 1.442695
    %v6986 = vpow.pop %v6985
    %v6987 = vmul.f32 %v6478, 1.442695
    %v6988 = vpow.pop %v6987
    %v6989 = vmul.f32 %v6479, 1.442695
    %v6990 = vpow.pop %v6989
    %v6991 = vmul.f32 %v6480, 1.442695
    %v6992 = vpow.pop %v6991
    %v6993 = vadd.f32 %v6482, %v6484
    %6994 = vadd.xlane.f32.xlu0 %v6993
    %v6995 = vpop.xlane.xlu0 %6994
    %v6996 = vadd.f32 %v6486, %v6488
    %6997 = vadd.xlane.f32.xlu0 %v6996
    %v6998 = vpop.xlane.xlu0 %6997
    %v6999 = vadd.f32 %v6490, %v6492
    %7000 = vadd.xlane.f32.xlu0 %v6999
    %v7001 = vpop.xlane.xlu0 %7000
    %v7002 = vadd.f32 %v6494, %v6496
    %7003 = vadd.xlane.f32.xlu0 %v7002
    %v7004 = vpop.xlane.xlu0 %7003
    %v7005 = vadd.f32 %v6498, %v6500
    %7006 = vadd.xlane.f32.xlu0 %v7005
    %v7007 = vpop.xlane.xlu0 %7006
    %v7008 = vadd.f32 %v6502, %v6504
    %7009 = vadd.xlane.f32.xlu0 %v7008
    %v7010 = vpop.xlane.xlu0 %7009
    %v7011 = vadd.f32 %v6506, %v6508
    %7012 = vadd.xlane.f32.xlu0 %v7011
    %v7013 = vpop.xlane.xlu0 %7012
    %v7014 = vadd.f32 %v6510, %v6512
    %7015 = vadd.xlane.f32.xlu0 %v7014
    %v7016 = vpop.xlane.xlu0 %7015
    %v7017 = vadd.f32 %v6514, %v6516
    %7018 = vadd.xlane.f32.xlu0 %v7017
    %v7019 = vpop.xlane.xlu0 %7018
    %v7020 = vadd.f32 %v6518, %v6520
    %7021 = vadd.xlane.f32.xlu0 %v7020
    %v7022 = vpop.xlane.xlu0 %7021
    %v7023 = vadd.f32 %v6522, %v6524
    %7024 = vadd.xlane.f32.xlu0 %v7023
    %v7025 = vpop.xlane.xlu0 %7024
    %v7026 = vadd.f32 %v6526, %v6528
    %7027 = vadd.xlane.f32.xlu0 %v7026
    %v7028 = vpop.xlane.xlu0 %7027
    %v7029 = vadd.f32 %v6530, %v6532
    %7030 = vadd.xlane.f32.xlu0 %v7029
    %v7031 = vpop.xlane.xlu0 %7030
    %v7032 = vadd.f32 %v6534, %v6536
    %7033 = vadd.xlane.f32.xlu0 %v7032
    %v7034 = vpop.xlane.xlu0 %7033
    %v7035 = vadd.f32 %v6538, %v6540
    %7036 = vadd.xlane.f32.xlu0 %v7035
    %v7037 = vpop.xlane.xlu0 %7036
    %v7038 = vadd.f32 %v6542, %v6544
    %7039 = vadd.xlane.f32.xlu0 %v7038
    %v7040 = vpop.xlane.xlu0 %7039
    %v7041 = vadd.f32 %v6546, %v6548
    %7042 = vadd.xlane.f32.xlu0 %v7041
    %v7043 = vpop.xlane.xlu0 %7042
    %v7044 = vadd.f32 %v6550, %v6552
    %7045 = vadd.xlane.f32.xlu0 %v7044
    %v7046 = vpop.xlane.xlu0 %7045
    %v7047 = vadd.f32 %v6554, %v6556
    %7048 = vadd.xlane.f32.xlu0 %v7047
    %v7049 = vpop.xlane.xlu0 %7048
    %v7050 = vadd.f32 %v6558, %v6560
    %7051 = vadd.xlane.f32.xlu0 %v7050
    %v7052 = vpop.xlane.xlu0 %7051
    %v7053 = vadd.f32 %v6562, %v6564
    %7054 = vadd.xlane.f32.xlu0 %v7053
    %v7055 = vpop.xlane.xlu0 %7054
    %v7056 = vadd.f32 %v6566, %v6568
    %7057 = vadd.xlane.f32.xlu0 %v7056
    %v7058 = vpop.xlane.xlu0 %7057
    %v7059 = vadd.f32 %v6570, %v6572
    %7060 = vadd.xlane.f32.xlu0 %v7059
    %v7061 = vpop.xlane.xlu0 %7060
    %v7062 = vadd.f32 %v6574, %v6576
    %7063 = vadd.xlane.f32.xlu0 %v7062
    %v7064 = vpop.xlane.xlu0 %7063
    %v7065 = vadd.f32 %v6578, %v6580
    %7066 = vadd.xlane.f32.xlu0 %v7065
    %v7067 = vpop.xlane.xlu0 %7066
    %v7068 = vadd.f32 %v6582, %v6584
    %7069 = vadd.xlane.f32.xlu0 %v7068
    %v7070 = vpop.xlane.xlu0 %7069
    %v7071 = vadd.f32 %v6586, %v6588
    %7072 = vadd.xlane.f32.xlu0 %v7071
    %v7073 = vpop.xlane.xlu0 %7072
    %v7074 = vadd.f32 %v6590, %v6592
    %7075 = vadd.xlane.f32.xlu0 %v7074
    %v7076 = vpop.xlane.xlu0 %7075
    %v7077 = vadd.f32 %v6594, %v6596
    %7078 = vadd.xlane.f32.xlu0 %v7077
    %v7079 = vpop.xlane.xlu0 %7078
    %v7080 = vadd.f32 %v6598, %v6600
    %7081 = vadd.xlane.f32.xlu0 %v7080
    %v7082 = vpop.xlane.xlu0 %7081
    %v7083 = vadd.f32 %v6602, %v6604
    %7084 = vadd.xlane.f32.xlu0 %v7083
    %v7085 = vpop.xlane.xlu0 %7084
    %v7086 = vadd.f32 %v6606, %v6608
    %7087 = vadd.xlane.f32.xlu0 %v7086
    %v7088 = vpop.xlane.xlu0 %7087
    %v7089 = vadd.f32 %v6610, %v6612
    %7090 = vadd.xlane.f32.xlu0 %v7089
    %v7091 = vpop.xlane.xlu0 %7090
    %v7092 = vadd.f32 %v6614, %v6616
    %7093 = vadd.xlane.f32.xlu0 %v7092
    %v7094 = vpop.xlane.xlu0 %7093
    %v7095 = vadd.f32 %v6618, %v6620
    %7096 = vadd.xlane.f32.xlu0 %v7095
    %v7097 = vpop.xlane.xlu0 %7096
    %v7098 = vadd.f32 %v6622, %v6624
    %7099 = vadd.xlane.f32.xlu0 %v7098
    %v7100 = vpop.xlane.xlu0 %7099
    %v7101 = vadd.f32 %v6626, %v6628
    %7102 = vadd.xlane.f32.xlu0 %v7101
    %v7103 = vpop.xlane.xlu0 %7102
    %v7104 = vadd.f32 %v6630, %v6632
    %7105 = vadd.xlane.f32.xlu0 %v7104
    %v7106 = vpop.xlane.xlu0 %7105
    %v7107 = vadd.f32 %v6634, %v6636
    %7108 = vadd.xlane.f32.xlu0 %v7107
    %v7109 = vpop.xlane.xlu0 %7108
    %v7110 = vadd.f32 %v6638, %v6640
    %7111 = vadd.xlane.f32.xlu0 %v7110
    %v7112 = vpop.xlane.xlu0 %7111
    %v7113 = vadd.f32 %v6642, %v6644
    %7114 = vadd.xlane.f32.xlu0 %v7113
    %v7115 = vpop.xlane.xlu0 %7114
    %v7116 = vadd.f32 %v6646, %v6648
    %7117 = vadd.xlane.f32.xlu0 %v7116
    %v7118 = vpop.xlane.xlu0 %7117
    %v7119 = vadd.f32 %v6650, %v6652
    %7120 = vadd.xlane.f32.xlu0 %v7119
    %v7121 = vpop.xlane.xlu0 %7120
    %v7122 = vadd.f32 %v6654, %v6656
    %7123 = vadd.xlane.f32.xlu0 %v7122
    %v7124 = vpop.xlane.xlu0 %7123
    %v7125 = vadd.f32 %v6658, %v6660
    %7126 = vadd.xlane.f32.xlu0 %v7125
    %v7127 = vpop.xlane.xlu0 %7126
    %v7128 = vadd.f32 %v6662, %v6664
    %7129 = vadd.xlane.f32.xlu0 %v7128
    %v7130 = vpop.xlane.xlu0 %7129
    %v7131 = vadd.f32 %v6666, %v6668
    %7132 = vadd.xlane.f32.xlu0 %v7131
    %v7133 = vpop.xlane.xlu0 %7132
    %v7134 = vadd.f32 %v6670, %v6672
    %7135 = vadd.xlane.f32.xlu0 %v7134
    %v7136 = vpop.xlane.xlu0 %7135
    %v7137 = vadd.f32 %v6674, %v6676
    %7138 = vadd.xlane.f32.xlu0 %v7137
    %v7139 = vpop.xlane.xlu0 %7138
    %v7140 = vadd.f32 %v6678, %v6680
    %7141 = vadd.xlane.f32.xlu0 %v7140
    %v7142 = vpop.xlane.xlu0 %7141
    %v7143 = vadd.f32 %v6682, %v6684
    %7144 = vadd.xlane.f32.xlu0 %v7143
    %v7145 = vpop.xlane.xlu0 %7144
    %v7146 = vadd.f32 %v6686, %v6688
    %7147 = vadd.xlane.f32.xlu0 %v7146
    %v7148 = vpop.xlane.xlu0 %7147
    %v7149 = vadd.f32 %v6690, %v6692
    %7150 = vadd.xlane.f32.xlu0 %v7149
    %v7151 = vpop.xlane.xlu0 %7150
    %v7152 = vadd.f32 %v6694, %v6696
    %7153 = vadd.xlane.f32.xlu0 %v7152
    %v7154 = vpop.xlane.xlu0 %7153
    %v7155 = vadd.f32 %v6698, %v6700
    %7156 = vadd.xlane.f32.xlu0 %v7155
    %v7157 = vpop.xlane.xlu0 %7156
    %v7158 = vadd.f32 %v6702, %v6704
    %7159 = vadd.xlane.f32.xlu0 %v7158
    %v7160 = vpop.xlane.xlu0 %7159
    %v7161 = vadd.f32 %v6706, %v6708
    %7162 = vadd.xlane.f32.xlu0 %v7161
    %v7163 = vpop.xlane.xlu0 %7162
    %v7164 = vadd.f32 %v6710, %v6712
    %7165 = vadd.xlane.f32.xlu0 %v7164
    %v7166 = vpop.xlane.xlu0 %7165
    %v7167 = vadd.f32 %v6714, %v6716
    %7168 = vadd.xlane.f32.xlu0 %v7167
    %v7169 = vpop.xlane.xlu0 %7168
    %v7170 = vadd.f32 %v6718, %v6720
    %7171 = vadd.xlane.f32.xlu0 %v7170
    %v7172 = vpop.xlane.xlu0 %7171
    %v7173 = vadd.f32 %v6722, %v6724
    %7174 = vadd.xlane.f32.xlu0 %v7173
    %v7175 = vpop.xlane.xlu0 %7174
    %v7176 = vadd.f32 %v6726, %v6728
    %7177 = vadd.xlane.f32.xlu0 %v7176
    %v7178 = vpop.xlane.xlu0 %7177
    %v7179 = vadd.f32 %v6730, %v6732
    %7180 = vadd.xlane.f32.xlu0 %v7179
    %v7181 = vpop.xlane.xlu0 %7180
    %v7182 = vadd.f32 %v6734, %v6736
    %7183 = vadd.xlane.f32.xlu0 %v7182
    %v7184 = vpop.xlane.xlu0 %7183
    %v7185 = vadd.f32 %v6738, %v6740
    %7186 = vadd.xlane.f32.xlu0 %v7185
    %v7187 = vpop.xlane.xlu0 %7186
    %v7188 = vadd.f32 %v6742, %v6744
    %7189 = vadd.xlane.f32.xlu0 %v7188
    %v7190 = vpop.xlane.xlu0 %7189
    %v7191 = vadd.f32 %v6746, %v6748
    %7192 = vadd.xlane.f32.xlu0 %v7191
    %v7193 = vpop.xlane.xlu0 %7192
    %v7194 = vadd.f32 %v6750, %v6752
    %7195 = vadd.xlane.f32.xlu0 %v7194
    %v7196 = vpop.xlane.xlu0 %7195
    %v7197 = vadd.f32 %v6754, %v6756
    %7198 = vadd.xlane.f32.xlu0 %v7197
    %v7199 = vpop.xlane.xlu0 %7198
    %v7200 = vadd.f32 %v6758, %v6760
    %7201 = vadd.xlane.f32.xlu0 %v7200
    %v7202 = vpop.xlane.xlu0 %7201
    %v7203 = vadd.f32 %v6762, %v6764
    %7204 = vadd.xlane.f32.xlu0 %v7203
    %v7205 = vpop.xlane.xlu0 %7204
    %v7206 = vadd.f32 %v6766, %v6768
    %7207 = vadd.xlane.f32.xlu0 %v7206
    %v7208 = vpop.xlane.xlu0 %7207
    %v7209 = vadd.f32 %v6770, %v6772
    %7210 = vadd.xlane.f32.xlu0 %v7209
    %v7211 = vpop.xlane.xlu0 %7210
    %v7212 = vadd.f32 %v6774, %v6776
    %7213 = vadd.xlane.f32.xlu0 %v7212
    %v7214 = vpop.xlane.xlu0 %7213
    %v7215 = vadd.f32 %v6778, %v6780
    %7216 = vadd.xlane.f32.xlu0 %v7215
    %v7217 = vpop.xlane.xlu0 %7216
    %v7218 = vadd.f32 %v6782, %v6784
    %7219 = vadd.xlane.f32.xlu0 %v7218
    %v7220 = vpop.xlane.xlu0 %7219
    %v7221 = vadd.f32 %v6786, %v6788
    %7222 = vadd.xlane.f32.xlu0 %v7221
    %v7223 = vpop.xlane.xlu0 %7222
    %v7224 = vadd.f32 %v6790, %v6792
    %7225 = vadd.xlane.f32.xlu0 %v7224
    %v7226 = vpop.xlane.xlu0 %7225
    %v7227 = vadd.f32 %v6794, %v6796
    %7228 = vadd.xlane.f32.xlu0 %v7227
    %v7229 = vpop.xlane.xlu0 %7228
    %v7230 = vadd.f32 %v6798, %v6800
    %7231 = vadd.xlane.f32.xlu0 %v7230
    %v7232 = vpop.xlane.xlu0 %7231
    %v7233 = vadd.f32 %v6802, %v6804
    %7234 = vadd.xlane.f32.xlu0 %v7233
    %v7235 = vpop.xlane.xlu0 %7234
    %v7236 = vadd.f32 %v6806, %v6808
    %7237 = vadd.xlane.f32.xlu0 %v7236
    %v7238 = vpop.xlane.xlu0 %7237
    %v7239 = vadd.f32 %v6810, %v6812
    %7240 = vadd.xlane.f32.xlu0 %v7239
    %v7241 = vpop.xlane.xlu0 %7240
    %v7242 = vadd.f32 %v6814, %v6816
    %7243 = vadd.xlane.f32.xlu0 %v7242
    %v7244 = vpop.xlane.xlu0 %7243
    %v7245 = vadd.f32 %v6818, %v6820
    %7246 = vadd.xlane.f32.xlu0 %v7245
    %v7247 = vpop.xlane.xlu0 %7246
    %v7248 = vadd.f32 %v6822, %v6824
    %7249 = vadd.xlane.f32.xlu0 %v7248
    %v7250 = vpop.xlane.xlu0 %7249
    %v7251 = vadd.f32 %v6826, %v6828
    %7252 = vadd.xlane.f32.xlu0 %v7251
    %v7253 = vpop.xlane.xlu0 %7252
    %v7254 = vadd.f32 %v6830, %v6832
    %7255 = vadd.xlane.f32.xlu0 %v7254
    %v7256 = vpop.xlane.xlu0 %7255
    %v7257 = vadd.f32 %v6834, %v6836
    %7258 = vadd.xlane.f32.xlu0 %v7257
    %v7259 = vpop.xlane.xlu0 %7258
    %v7260 = vadd.f32 %v6838, %v6840
    %7261 = vadd.xlane.f32.xlu0 %v7260
    %v7262 = vpop.xlane.xlu0 %7261
    %v7263 = vadd.f32 %v6842, %v6844
    %7264 = vadd.xlane.f32.xlu0 %v7263
    %v7265 = vpop.xlane.xlu0 %7264
    %v7266 = vadd.f32 %v6846, %v6848
    %7267 = vadd.xlane.f32.xlu0 %v7266
    %v7268 = vpop.xlane.xlu0 %7267
    %v7269 = vadd.f32 %v6850, %v6852
    %7270 = vadd.xlane.f32.xlu0 %v7269
    %v7271 = vpop.xlane.xlu0 %7270
    %v7272 = vadd.f32 %v6854, %v6856
    %7273 = vadd.xlane.f32.xlu0 %v7272
    %v7274 = vpop.xlane.xlu0 %7273
    %v7275 = vadd.f32 %v6858, %v6860
    %7276 = vadd.xlane.f32.xlu0 %v7275
    %v7277 = vpop.xlane.xlu0 %7276
    %v7278 = vadd.f32 %v6862, %v6864
    %7279 = vadd.xlane.f32.xlu0 %v7278
    %v7280 = vpop.xlane.xlu0 %7279
    %v7281 = vadd.f32 %v6866, %v6868
    %7282 = vadd.xlane.f32.xlu0 %v7281
    %v7283 = vpop.xlane.xlu0 %7282
    %v7284 = vadd.f32 %v6870, %v6872
    %7285 = vadd.xlane.f32.xlu0 %v7284
    %v7286 = vpop.xlane.xlu0 %7285
    %v7287 = vadd.f32 %v6874, %v6876
    %7288 = vadd.xlane.f32.xlu0 %v7287
    %v7289 = vpop.xlane.xlu0 %7288
    %v7290 = vadd.f32 %v6878, %v6880
    %7291 = vadd.xlane.f32.xlu0 %v7290
    %v7292 = vpop.xlane.xlu0 %7291
    %v7293 = vadd.f32 %v6882, %v6884
    %7294 = vadd.xlane.f32.xlu0 %v7293
    %v7295 = vpop.xlane.xlu0 %7294
    %v7296 = vadd.f32 %v6886, %v6888
    %7297 = vadd.xlane.f32.xlu0 %v7296
    %v7298 = vpop.xlane.xlu0 %7297
    %v7299 = vadd.f32 %v6890, %v6892
    %7300 = vadd.xlane.f32.xlu0 %v7299
    %v7301 = vpop.xlane.xlu0 %7300
    %v7302 = vadd.f32 %v6894, %v6896
    %7303 = vadd.xlane.f32.xlu0 %v7302
    %v7304 = vpop.xlane.xlu0 %7303
    %v7305 = vadd.f32 %v6898, %v6900
    %7306 = vadd.xlane.f32.xlu0 %v7305
    %v7307 = vpop.xlane.xlu0 %7306
    %v7308 = vadd.f32 %v6902, %v6904
    %7309 = vadd.xlane.f32.xlu0 %v7308
    %v7310 = vpop.xlane.xlu0 %7309
    %v7311 = vadd.f32 %v6906, %v6908
    %7312 = vadd.xlane.f32.xlu0 %v7311
    %v7313 = vpop.xlane.xlu0 %7312
    %v7314 = vadd.f32 %v6910, %v6912
    %7315 = vadd.xlane.f32.xlu0 %v7314
    %v7316 = vpop.xlane.xlu0 %7315
    %v7317 = vadd.f32 %v6914, %v6916
    %7318 = vadd.xlane.f32.xlu0 %v7317
    %v7319 = vpop.xlane.xlu0 %7318
    %v7320 = vadd.f32 %v6918, %v6920
    %7321 = vadd.xlane.f32.xlu0 %v7320
    %v7322 = vpop.xlane.xlu0 %7321
    %v7323 = vadd.f32 %v6922, %v6924
    %7324 = vadd.xlane.f32.xlu0 %v7323
    %v7325 = vpop.xlane.xlu0 %7324
    %v7326 = vadd.f32 %v6926, %v6928
    %7327 = vadd.xlane.f32.xlu0 %v7326
    %v7328 = vpop.xlane.xlu0 %7327
    %v7329 = vadd.f32 %v6930, %v6932
    %7330 = vadd.xlane.f32.xlu0 %v7329
    %v7331 = vpop.xlane.xlu0 %7330
    %v7332 = vadd.f32 %v6934, %v6936
    %7333 = vadd.xlane.f32.xlu0 %v7332
    %v7334 = vpop.xlane.xlu0 %7333
    %v7335 = vadd.f32 %v6938, %v6940
    %7336 = vadd.xlane.f32.xlu0 %v7335
    %v7337 = vpop.xlane.xlu0 %7336
    %v7338 = vadd.f32 %v6942, %v6944
    %7339 = vadd.xlane.f32.xlu0 %v7338
    %v7340 = vpop.xlane.xlu0 %7339
    %v7341 = vadd.f32 %v6946, %v6948
    %7342 = vadd.xlane.f32.xlu0 %v7341
    %v7343 = vpop.xlane.xlu0 %7342
    %v7344 = vadd.f32 %v6950, %v6952
    %7345 = vadd.xlane.f32.xlu0 %v7344
    %v7346 = vpop.xlane.xlu0 %7345
    %v7347 = vadd.f32 %v6954, %v6956
    %7348 = vadd.xlane.f32.xlu0 %v7347
    %v7349 = vpop.xlane.xlu0 %7348
    %v7350 = vadd.f32 %v6958, %v6960
    %7351 = vadd.xlane.f32.xlu0 %v7350
    %v7352 = vpop.xlane.xlu0 %7351
    %v7353 = vadd.f32 %v6962, %v6964
    %7354 = vadd.xlane.f32.xlu0 %v7353
    %v7355 = vpop.xlane.xlu0 %7354
    %v7356 = vadd.f32 %v6966, %v6968
    %7357 = vadd.xlane.f32.xlu0 %v7356
    %v7358 = vpop.xlane.xlu0 %7357
    %v7359 = vadd.f32 %v6970, %v6972
    %7360 = vadd.xlane.f32.xlu0 %v7359
    %v7361 = vpop.xlane.xlu0 %7360
    %v7362 = vadd.f32 %v6974, %v6976
    %7363 = vadd.xlane.f32.xlu0 %v7362
    %v7364 = vpop.xlane.xlu0 %7363
    %v7365 = vadd.f32 %v6978, %v6980
    %7366 = vadd.xlane.f32.xlu0 %v7365
    %v7367 = vpop.xlane.xlu0 %7366
    %v7368 = vadd.f32 %v6982, %v6984
    %7369 = vadd.xlane.f32.xlu0 %v7368
    %v7370 = vpop.xlane.xlu0 %7369
    %v7371 = vadd.f32 %v6986, %v6988
    %7372 = vadd.xlane.f32.xlu0 %v7371
    %v7373 = vpop.xlane.xlu0 %7372
    %v7374 = vadd.f32 %v6990, %v6992
    %7375 = vadd.xlane.f32.xlu0 %v7374
    %v7376 = vpop.xlane.xlu0 %7375
    %v7377 = vrcp.pop %v6995
    %v7378 = vrcp.pop %v6998
    %v7379 = vrcp.pop %v7001
    %v7380 = vrcp.pop %v7004
    %v7381 = vrcp.pop %v7007
    %v7382 = vrcp.pop %v7010
    %v7383 = vrcp.pop %v7013
    %v7384 = vrcp.pop %v7016
    %v7385 = vrcp.pop %v7019
    %v7386 = vrcp.pop %v7022
    %v7387 = vrcp.pop %v7025
    %v7388 = vrcp.pop %v7028
    %v7389 = vrcp.pop %v7031
    %v7390 = vrcp.pop %v7034
    %v7391 = vrcp.pop %v7037
    %v7392 = vrcp.pop %v7040
    %v7393 = vrcp.pop %v7043
    %v7394 = vrcp.pop %v7046
    %v7395 = vrcp.pop %v7049
    %v7396 = vrcp.pop %v7052
    %v7397 = vrcp.pop %v7055
    %v7398 = vrcp.pop %v7058
    %v7399 = vrcp.pop %v7061
    %v7400 = vrcp.pop %v7064
    %v7401 = vrcp.pop %v7067
    %v7402 = vrcp.pop %v7070
    %v7403 = vrcp.pop %v7073
    %v7404 = vrcp.pop %v7076
    %v7405 = vrcp.pop %v7079
    %v7406 = vrcp.pop %v7082
    %v7407 = vrcp.pop %v7085
    %v7408 = vrcp.pop %v7088
    %v7409 = vrcp.pop %v7091
    %v7410 = vrcp.pop %v7094
    %v7411 = vrcp.pop %v7097
    %v7412 = vrcp.pop %v7100
    %v7413 = vrcp.pop %v7103
    %v7414 = vrcp.pop %v7106
    %v7415 = vrcp.pop %v7109
    %v7416 = vrcp.pop %v7112
    %v7417 = vrcp.pop %v7115
    %v7418 = vrcp.pop %v7118
    %v7419 = vrcp.pop %v7121
    %v7420 = vrcp.pop %v7124
    %v7421 = vrcp.pop %v7127
    %v7422 = vrcp.pop %v7130
    %v7423 = vrcp.pop %v7133
    %v7424 = vrcp.pop %v7136
    %v7425 = vrcp.pop %v7139
    %v7426 = vrcp.pop %v7142
    %v7427 = vrcp.pop %v7145
    %v7428 = vrcp.pop %v7148
    %v7429 = vrcp.pop %v7151
    %v7430 = vrcp.pop %v7154
    %v7431 = vrcp.pop %v7157
    %v7432 = vrcp.pop %v7160
    %v7433 = vrcp.pop %v7163
    %v7434 = vrcp.pop %v7166
    %v7435 = vrcp.pop %v7169
    %v7436 = vrcp.pop %v7172
    %v7437 = vrcp.pop %v7175
    %v7438 = vrcp.pop %v7178
    %v7439 = vrcp.pop %v7181
    %v7440 = vrcp.pop %v7184
    %v7441 = vrcp.pop %v7187
    %v7442 = vrcp.pop %v7190
    %v7443 = vrcp.pop %v7193
    %v7444 = vrcp.pop %v7196
    %v7445 = vrcp.pop %v7199
    %v7446 = vrcp.pop %v7202
    %v7447 = vrcp.pop %v7205
    %v7448 = vrcp.pop %v7208
    %v7449 = vrcp.pop %v7211
    %v7450 = vrcp.pop %v7214
    %v7451 = vrcp.pop %v7217
    %v7452 = vrcp.pop %v7220
    %v7453 = vrcp.pop %v7223
    %v7454 = vrcp.pop %v7226
    %v7455 = vrcp.pop %v7229
    %v7456 = vrcp.pop %v7232
    %v7457 = vrcp.pop %v7235
    %v7458 = vrcp.pop %v7238
    %v7459 = vrcp.pop %v7241
    %v7460 = vrcp.pop %v7244
    %v7461 = vrcp.pop %v7247
    %v7462 = vrcp.pop %v7250
    %v7463 = vrcp.pop %v7253
    %v7464 = vrcp.pop %v7256
    %v7465 = vrcp.pop %v7259
    %v7466 = vrcp.pop %v7262
    %v7467 = vrcp.pop %v7265
    %v7468 = vrcp.pop %v7268
    %v7469 = vrcp.pop %v7271
    %v7470 = vrcp.pop %v7274
    %v7471 = vrcp.pop %v7277
    %v7472 = vrcp.pop %v7280
    %v7473 = vrcp.pop %v7283
    %v7474 = vrcp.pop %v7286
    %v7475 = vrcp.pop %v7289
    %v7476 = vrcp.pop %v7292
    %v7477 = vrcp.pop %v7295
    %v7478 = vrcp.pop %v7298
    %v7479 = vrcp.pop %v7301
    %v7480 = vrcp.pop %v7304
    %v7481 = vrcp.pop %v7307
    %v7482 = vrcp.pop %v7310
    %v7483 = vrcp.pop %v7313
    %v7484 = vrcp.pop %v7316
    %v7485 = vrcp.pop %v7319
    %v7486 = vrcp.pop %v7322
    %v7487 = vrcp.pop %v7325
    %v7488 = vrcp.pop %v7328
    %v7489 = vrcp.pop %v7331
    %v7490 = vrcp.pop %v7334
    %v7491 = vrcp.pop %v7337
    %v7492 = vrcp.pop %v7340
    %v7493 = vrcp.pop %v7343
    %v7494 = vrcp.pop %v7346
    %v7495 = vrcp.pop %v7349
    %v7496 = vrcp.pop %v7352
    %v7497 = vrcp.pop %v7355
    %v7498 = vrcp.pop %v7358
    %v7499 = vrcp.pop %v7361
    %v7500 = vrcp.pop %v7364
    %v7501 = vrcp.pop %v7367
    %v7502 = vrcp.pop %v7370
    %v7503 = vrcp.pop %v7373
    %v7504 = vrcp.pop %v7376
    %v7505 = vmul.f32 %v6482, %v7377
    %v7506 = vmul.f32 %v6484, %v7377
    %v7507 = vmul.f32 %v6486, %v7378
    %v7508 = vmul.f32 %v6488, %v7378
    %v7509 = vmul.f32 %v6490, %v7379
    %v7510 = vmul.f32 %v6492, %v7379
    %v7511 = vmul.f32 %v6494, %v7380
    %v7512 = vmul.f32 %v6496, %v7380
    %v7513 = vmul.f32 %v6498, %v7381
    %v7514 = vmul.f32 %v6500, %v7381
    %v7515 = vmul.f32 %v6502, %v7382
    %v7516 = vmul.f32 %v6504, %v7382
    %v7517 = vmul.f32 %v6506, %v7383
    %v7518 = vmul.f32 %v6508, %v7383
    %v7519 = vmul.f32 %v6510, %v7384
    %v7520 = vmul.f32 %v6512, %v7384
    %v7521 = vmul.f32 %v6514, %v7385
    %v7522 = vmul.f32 %v6516, %v7385
    %v7523 = vmul.f32 %v6518, %v7386
    %v7524 = vmul.f32 %v6520, %v7386
    %v7525 = vmul.f32 %v6522, %v7387
    %v7526 = vmul.f32 %v6524, %v7387
    %v7527 = vmul.f32 %v6526, %v7388
    %v7528 = vmul.f32 %v6528, %v7388
    %v7529 = vmul.f32 %v6530, %v7389
    %v7530 = vmul.f32 %v6532, %v7389
    %v7531 = vmul.f32 %v6534, %v7390
    %v7532 = vmul.f32 %v6536, %v7390
    %v7533 = vmul.f32 %v6538, %v7391
    %v7534 = vmul.f32 %v6540, %v7391
    %v7535 = vmul.f32 %v6542, %v7392
    %v7536 = vmul.f32 %v6544, %v7392
    %v7537 = vmul.f32 %v6546, %v7393
    %v7538 = vmul.f32 %v6548, %v7393
    %v7539 = vmul.f32 %v6550, %v7394
    %v7540 = vmul.f32 %v6552, %v7394
    %v7541 = vmul.f32 %v6554, %v7395
    %v7542 = vmul.f32 %v6556, %v7395
    %v7543 = vmul.f32 %v6558, %v7396
    %v7544 = vmul.f32 %v6560, %v7396
    %v7545 = vmul.f32 %v6562, %v7397
    %v7546 = vmul.f32 %v6564, %v7397
    %v7547 = vmul.f32 %v6566, %v7398
    %v7548 = vmul.f32 %v6568, %v7398
    %v7549 = vmul.f32 %v6570, %v7399
    %v7550 = vmul.f32 %v6572, %v7399
    %v7551 = vmul.f32 %v6574, %v7400
    %v7552 = vmul.f32 %v6576, %v7400
    %v7553 = vmul.f32 %v6578, %v7401
    %v7554 = vmul.f32 %v6580, %v7401
    %v7555 = vmul.f32 %v6582, %v7402
    %v7556 = vmul.f32 %v6584, %v7402
    %v7557 = vmul.f32 %v6586, %v7403
    %v7558 = vmul.f32 %v6588, %v7403
    %v7559 = vmul.f32 %v6590, %v7404
    %v7560 = vmul.f32 %v6592, %v7404
    %v7561 = vmul.f32 %v6594, %v7405
    %v7562 = vmul.f32 %v6596, %v7405
    %v7563 = vmul.f32 %v6598, %v7406
    %v7564 = vmul.f32 %v6600, %v7406
    %v7565 = vmul.f32 %v6602, %v7407
    %v7566 = vmul.f32 %v6604, %v7407
    %v7567 = vmul.f32 %v6606, %v7408
    %v7568 = vmul.f32 %v6608, %v7408
    %v7569 = vmul.f32 %v6610, %v7409
    %v7570 = vmul.f32 %v6612, %v7409
    %v7571 = vmul.f32 %v6614, %v7410
    %v7572 = vmul.f32 %v6616, %v7410
    %v7573 = vmul.f32 %v6618, %v7411
    %v7574 = vmul.f32 %v6620, %v7411
    %v7575 = vmul.f32 %v6622, %v7412
    %v7576 = vmul.f32 %v6624, %v7412
    %v7577 = vmul.f32 %v6626, %v7413
    %v7578 = vmul.f32 %v6628, %v7413
    %v7579 = vmul.f32 %v6630, %v7414
    %v7580 = vmul.f32 %v6632, %v7414
    %v7581 = vmul.f32 %v6634, %v7415
    %v7582 = vmul.f32 %v6636, %v7415
    %v7583 = vmul.f32 %v6638, %v7416
    %v7584 = vmul.f32 %v6640, %v7416
    %v7585 = vmul.f32 %v6642, %v7417
    %v7586 = vmul.f32 %v6644, %v7417
    %v7587 = vmul.f32 %v6646, %v7418
    %v7588 = vmul.f32 %v6648, %v7418
    %v7589 = vmul.f32 %v6650, %v7419
    %v7590 = vmul.f32 %v6652, %v7419
    %v7591 = vmul.f32 %v6654, %v7420
    %v7592 = vmul.f32 %v6656, %v7420
    %v7593 = vmul.f32 %v6658, %v7421
    %v7594 = vmul.f32 %v6660, %v7421
    %v7595 = vmul.f32 %v6662, %v7422
    %v7596 = vmul.f32 %v6664, %v7422
    %v7597 = vmul.f32 %v6666, %v7423
    %v7598 = vmul.f32 %v6668, %v7423
    %v7599 = vmul.f32 %v6670, %v7424
    %v7600 = vmul.f32 %v6672, %v7424
    %v7601 = vmul.f32 %v6674, %v7425
    %v7602 = vmul.f32 %v6676, %v7425
    %v7603 = vmul.f32 %v6678, %v7426
    %v7604 = vmul.f32 %v6680, %v7426
    %v7605 = vmul.f32 %v6682, %v7427
    %v7606 = vmul.f32 %v6684, %v7427
    %v7607 = vmul.f32 %v6686, %v7428
    %v7608 = vmul.f32 %v6688, %v7428
    %v7609 = vmul.f32 %v6690, %v7429
    %v7610 = vmul.f32 %v6692, %v7429
    %v7611 = vmul.f32 %v6694, %v7430
    %v7612 = vmul.f32 %v6696, %v7430
    %v7613 = vmul.f32 %v6698, %v7431
    %v7614 = vmul.f32 %v6700, %v7431
    %v7615 = vmul.f32 %v6702, %v7432
    %v7616 = vmul.f32 %v6704, %v7432
    %v7617 = vmul.f32 %v6706, %v7433
    %v7618 = vmul.f32 %v6708, %v7433
    %v7619 = vmul.f32 %v6710, %v7434
    %v7620 = vmul.f32 %v6712, %v7434
    %v7621 = vmul.f32 %v6714, %v7435
    %v7622 = vmul.f32 %v6716, %v7435
    %v7623 = vmul.f32 %v6718, %v7436
    %v7624 = vmul.f32 %v6720, %v7436
    %v7625 = vmul.f32 %v6722, %v7437
    %v7626 = vmul.f32 %v6724, %v7437
    %v7627 = vmul.f32 %v6726, %v7438
    %v7628 = vmul.f32 %v6728, %v7438
    %v7629 = vmul.f32 %v6730, %v7439
    %v7630 = vmul.f32 %v6732, %v7439
    %v7631 = vmul.f32 %v6734, %v7440
    %v7632 = vmul.f32 %v6736, %v7440
    %v7633 = vmul.f32 %v6738, %v7441
    %v7634 = vmul.f32 %v6740, %v7441
    %v7635 = vmul.f32 %v6742, %v7442
    %v7636 = vmul.f32 %v6744, %v7442
    %v7637 = vmul.f32 %v6746, %v7443
    %v7638 = vmul.f32 %v6748, %v7443
    %v7639 = vmul.f32 %v6750, %v7444
    %v7640 = vmul.f32 %v6752, %v7444
    %v7641 = vmul.f32 %v6754, %v7445
    %v7642 = vmul.f32 %v6756, %v7445
    %v7643 = vmul.f32 %v6758, %v7446
    %v7644 = vmul.f32 %v6760, %v7446
    %v7645 = vmul.f32 %v6762, %v7447
    %v7646 = vmul.f32 %v6764, %v7447
    %v7647 = vmul.f32 %v6766, %v7448
    %v7648 = vmul.f32 %v6768, %v7448
    %v7649 = vmul.f32 %v6770, %v7449
    %v7650 = vmul.f32 %v6772, %v7449
    %v7651 = vmul.f32 %v6774, %v7450
    %v7652 = vmul.f32 %v6776, %v7450
    %v7653 = vmul.f32 %v6778, %v7451
    %v7654 = vmul.f32 %v6780, %v7451
    %v7655 = vmul.f32 %v6782, %v7452
    %v7656 = vmul.f32 %v6784, %v7452
    %v7657 = vmul.f32 %v6786, %v7453
    %v7658 = vmul.f32 %v6788, %v7453
    %v7659 = vmul.f32 %v6790, %v7454
    %v7660 = vmul.f32 %v6792, %v7454
    %v7661 = vmul.f32 %v6794, %v7455
    %v7662 = vmul.f32 %v6796, %v7455
    %v7663 = vmul.f32 %v6798, %v7456
    %v7664 = vmul.f32 %v6800, %v7456
    %v7665 = vmul.f32 %v6802, %v7457
    %v7666 = vmul.f32 %v6804, %v7457
    %v7667 = vmul.f32 %v6806, %v7458
    %v7668 = vmul.f32 %v6808, %v7458
    %v7669 = vmul.f32 %v6810, %v7459
    %v7670 = vmul.f32 %v6812, %v7459
    %v7671 = vmul.f32 %v6814, %v7460
    %v7672 = vmul.f32 %v6816, %v7460
    %v7673 = vmul.f32 %v6818, %v7461
    %v7674 = vmul.f32 %v6820, %v7461
    %v7675 = vmul.f32 %v6822, %v7462
    %v7676 = vmul.f32 %v6824, %v7462
    %v7677 = vmul.f32 %v6826, %v7463
    %v7678 = vmul.f32 %v6828, %v7463
    %v7679 = vmul.f32 %v6830, %v7464
    %v7680 = vmul.f32 %v6832, %v7464
    %v7681 = vmul.f32 %v6834, %v7465
    %v7682 = vmul.f32 %v6836, %v7465
    %v7683 = vmul.f32 %v6838, %v7466
    %v7684 = vmul.f32 %v6840, %v7466
    %v7685 = vmul.f32 %v6842, %v7467
    %v7686 = vmul.f32 %v6844, %v7467
    %v7687 = vmul.f32 %v6846, %v7468
    %v7688 = vmul.f32 %v6848, %v7468
    %v7689 = vmul.f32 %v6850, %v7469
    %v7690 = vmul.f32 %v6852, %v7469
    %v7691 = vmul.f32 %v6854, %v7470
    %v7692 = vmul.f32 %v6856, %v7470
    %v7693 = vmul.f32 %v6858, %v7471
    %v7694 = vmul.f32 %v6860, %v7471
    %v7695 = vmul.f32 %v6862, %v7472
    %v7696 = vmul.f32 %v6864, %v7472
    %v7697 = vmul.f32 %v6866, %v7473
    %v7698 = vmul.f32 %v6868, %v7473
    %v7699 = vmul.f32 %v6870, %v7474
    %v7700 = vmul.f32 %v6872, %v7474
    %v7701 = vmul.f32 %v6874, %v7475
    %v7702 = vmul.f32 %v6876, %v7475
    %v7703 = vmul.f32 %v6878, %v7476
    %v7704 = vmul.f32 %v6880, %v7476
    %v7705 = vmul.f32 %v6882, %v7477
    %v7706 = vmul.f32 %v6884, %v7477
    %v7707 = vmul.f32 %v6886, %v7478
    %v7708 = vmul.f32 %v6888, %v7478
    %v7709 = vmul.f32 %v6890, %v7479
    %v7710 = vmul.f32 %v6892, %v7479
    %v7711 = vmul.f32 %v6894, %v7480
    %v7712 = vmul.f32 %v6896, %v7480
    %v7713 = vmul.f32 %v6898, %v7481
    %v7714 = vmul.f32 %v6900, %v7481
    %v7715 = vmul.f32 %v6902, %v7482
    %v7716 = vmul.f32 %v6904, %v7482
    %v7717 = vmul.f32 %v6906, %v7483
    %v7718 = vmul.f32 %v6908, %v7483
    %v7719 = vmul.f32 %v6910, %v7484
    %v7720 = vmul.f32 %v6912, %v7484
    %v7721 = vmul.f32 %v6914, %v7485
    %v7722 = vmul.f32 %v6916, %v7485
    %v7723 = vmul.f32 %v6918, %v7486
    %v7724 = vmul.f32 %v6920, %v7486
    %v7725 = vmul.f32 %v6922, %v7487
    %v7726 = vmul.f32 %v6924, %v7487
    %v7727 = vmul.f32 %v6926, %v7488
    %v7728 = vmul.f32 %v6928, %v7488
    %v7729 = vmul.f32 %v6930, %v7489
    %v7730 = vmul.f32 %v6932, %v7489
    %v7731 = vmul.f32 %v6934, %v7490
    %v7732 = vmul.f32 %v6936, %v7490
    %v7733 = vmul.f32 %v6938, %v7491
    %v7734 = vmul.f32 %v6940, %v7491
    %v7735 = vmul.f32 %v6942, %v7492
    %v7736 = vmul.f32 %v6944, %v7492
    %v7737 = vmul.f32 %v6946, %v7493
    %v7738 = vmul.f32 %v6948, %v7493
    %v7739 = vmul.f32 %v6950, %v7494
    %v7740 = vmul.f32 %v6952, %v7494
    %v7741 = vmul.f32 %v6954, %v7495
    %v7742 = vmul.f32 %v6956, %v7495
    %v7743 = vmul.f32 %v6958, %v7496
    %v7744 = vmul.f32 %v6960, %v7496
    %v7745 = vmul.f32 %v6962, %v7497
    %v7746 = vmul.f32 %v6964, %v7497
    %v7747 = vmul.f32 %v6966, %v7498
    %v7748 = vmul.f32 %v6968, %v7498
    %v7749 = vmul.f32 %v6970, %v7499
    %v7750 = vmul.f32 %v6972, %v7499
    %v7751 = vmul.f32 %v6974, %v7500
    %v7752 = vmul.f32 %v6976, %v7500
    %v7753 = vmul.f32 %v6978, %v7501
    %v7754 = vmul.f32 %v6980, %v7501
    %v7755 = vmul.f32 %v6982, %v7502
    %v7756 = vmul.f32 %v6984, %v7502
    %v7757 = vmul.f32 %v6986, %v7503
    %v7758 = vmul.f32 %v6988, %v7503
    %v7759 = vmul.f32 %v6990, %v7504
    %v7760 = vmul.f32 %v6992, %v7504
    %v7761 = vpack.c.bf16 %v7506, %v7505
    %v7762 = vpack.c.bf16 %v7508, %v7507
    %v7763 = vpack.c.bf16 %v7510, %v7509
    %v7764 = vpack.c.bf16 %v7512, %v7511
    %v7765 = vpack.c.bf16 %v7514, %v7513
    %v7766 = vpack.c.bf16 %v7516, %v7515
    %v7767 = vpack.c.bf16 %v7518, %v7517
    %v7768 = vpack.c.bf16 %v7520, %v7519
    %v7769 = vpack.c.bf16 %v7522, %v7521
    %v7770 = vpack.c.bf16 %v7524, %v7523
    %v7771 = vpack.c.bf16 %v7526, %v7525
    %v7772 = vpack.c.bf16 %v7528, %v7527
    %v7773 = vpack.c.bf16 %v7530, %v7529
    %v7774 = vpack.c.bf16 %v7532, %v7531
    %v7775 = vpack.c.bf16 %v7534, %v7533
    %v7776 = vpack.c.bf16 %v7536, %v7535
    %v7777 = vpack.c.bf16 %v7538, %v7537
    %v7778 = vpack.c.bf16 %v7540, %v7539
    %v7779 = vpack.c.bf16 %v7542, %v7541
    %v7780 = vpack.c.bf16 %v7544, %v7543
    %v7781 = vpack.c.bf16 %v7546, %v7545
    %v7782 = vpack.c.bf16 %v7548, %v7547
    %v7783 = vpack.c.bf16 %v7550, %v7549
    %v7784 = vpack.c.bf16 %v7552, %v7551
    %v7785 = vpack.c.bf16 %v7554, %v7553
    %v7786 = vpack.c.bf16 %v7556, %v7555
    %v7787 = vpack.c.bf16 %v7558, %v7557
    %v7788 = vpack.c.bf16 %v7560, %v7559
    %v7789 = vpack.c.bf16 %v7562, %v7561
    %v7790 = vpack.c.bf16 %v7564, %v7563
    %v7791 = vpack.c.bf16 %v7566, %v7565
    %v7792 = vpack.c.bf16 %v7568, %v7567
    %v7793 = vpack.c.bf16 %v7570, %v7569
    %v7794 = vpack.c.bf16 %v7572, %v7571
    %v7795 = vpack.c.bf16 %v7574, %v7573
    %v7796 = vpack.c.bf16 %v7576, %v7575
    %v7797 = vpack.c.bf16 %v7578, %v7577
    %v7798 = vpack.c.bf16 %v7580, %v7579
    %v7799 = vpack.c.bf16 %v7582, %v7581
    %v7800 = vpack.c.bf16 %v7584, %v7583
    %v7801 = vpack.c.bf16 %v7586, %v7585
    %v7802 = vpack.c.bf16 %v7588, %v7587
    %v7803 = vpack.c.bf16 %v7590, %v7589
    %v7804 = vpack.c.bf16 %v7592, %v7591
    %v7805 = vpack.c.bf16 %v7594, %v7593
    %v7806 = vpack.c.bf16 %v7596, %v7595
    %v7807 = vpack.c.bf16 %v7598, %v7597
    %v7808 = vpack.c.bf16 %v7600, %v7599
    %v7809 = vpack.c.bf16 %v7602, %v7601
    %v7810 = vpack.c.bf16 %v7604, %v7603
    %v7811 = vpack.c.bf16 %v7606, %v7605
    %v7812 = vpack.c.bf16 %v7608, %v7607
    %v7813 = vpack.c.bf16 %v7610, %v7609
    %v7814 = vpack.c.bf16 %v7612, %v7611
    %v7815 = vpack.c.bf16 %v7614, %v7613
    %v7816 = vpack.c.bf16 %v7616, %v7615
    %v7817 = vpack.c.bf16 %v7618, %v7617
    %v7818 = vpack.c.bf16 %v7620, %v7619
    %v7819 = vpack.c.bf16 %v7622, %v7621
    %v7820 = vpack.c.bf16 %v7624, %v7623
    %v7821 = vpack.c.bf16 %v7626, %v7625
    %v7822 = vpack.c.bf16 %v7628, %v7627
    %v7823 = vpack.c.bf16 %v7630, %v7629
    %v7824 = vpack.c.bf16 %v7632, %v7631
    %v7825 = vpack.c.bf16 %v7634, %v7633
    %v7826 = vpack.c.bf16 %v7636, %v7635
    %v7827 = vpack.c.bf16 %v7638, %v7637
    %v7828 = vpack.c.bf16 %v7640, %v7639
    %v7829 = vpack.c.bf16 %v7642, %v7641
    %v7830 = vpack.c.bf16 %v7644, %v7643
    %v7831 = vpack.c.bf16 %v7646, %v7645
    %v7832 = vpack.c.bf16 %v7648, %v7647
    %v7833 = vpack.c.bf16 %v7650, %v7649
    %v7834 = vpack.c.bf16 %v7652, %v7651
    %v7835 = vpack.c.bf16 %v7654, %v7653
    %v7836 = vpack.c.bf16 %v7656, %v7655
    %v7837 = vpack.c.bf16 %v7658, %v7657
    %v7838 = vpack.c.bf16 %v7660, %v7659
    %v7839 = vpack.c.bf16 %v7662, %v7661
    %v7840 = vpack.c.bf16 %v7664, %v7663
    %v7841 = vpack.c.bf16 %v7666, %v7665
    %v7842 = vpack.c.bf16 %v7668, %v7667
    %v7843 = vpack.c.bf16 %v7670, %v7669
    %v7844 = vpack.c.bf16 %v7672, %v7671
    %v7845 = vpack.c.bf16 %v7674, %v7673
    %v7846 = vpack.c.bf16 %v7676, %v7675
    %v7847 = vpack.c.bf16 %v7678, %v7677
    %v7848 = vpack.c.bf16 %v7680, %v7679
    %v7849 = vpack.c.bf16 %v7682, %v7681
    %v7850 = vpack.c.bf16 %v7684, %v7683
    %v7851 = vpack.c.bf16 %v7686, %v7685
    %v7852 = vpack.c.bf16 %v7688, %v7687
    %v7853 = vpack.c.bf16 %v7690, %v7689
    %v7854 = vpack.c.bf16 %v7692, %v7691
    %v7855 = vpack.c.bf16 %v7694, %v7693
    %v7856 = vpack.c.bf16 %v7696, %v7695
    %v7857 = vpack.c.bf16 %v7698, %v7697
    %v7858 = vpack.c.bf16 %v7700, %v7699
    %v7859 = vpack.c.bf16 %v7702, %v7701
    %v7860 = vpack.c.bf16 %v7704, %v7703
    %v7861 = vpack.c.bf16 %v7706, %v7705
    %v7862 = vpack.c.bf16 %v7708, %v7707
    %v7863 = vpack.c.bf16 %v7710, %v7709
    %v7864 = vpack.c.bf16 %v7712, %v7711
    %v7865 = vpack.c.bf16 %v7714, %v7713
    %v7866 = vpack.c.bf16 %v7716, %v7715
    %v7867 = vpack.c.bf16 %v7718, %v7717
    %v7868 = vpack.c.bf16 %v7720, %v7719
    %v7869 = vpack.c.bf16 %v7722, %v7721
    %v7870 = vpack.c.bf16 %v7724, %v7723
    %v7871 = vpack.c.bf16 %v7726, %v7725
    %v7872 = vpack.c.bf16 %v7728, %v7727
    %v7873 = vpack.c.bf16 %v7730, %v7729
    %v7874 = vpack.c.bf16 %v7732, %v7731
    %v7875 = vpack.c.bf16 %v7734, %v7733
    %v7876 = vpack.c.bf16 %v7736, %v7735
    %v7877 = vpack.c.bf16 %v7738, %v7737
    %v7878 = vpack.c.bf16 %v7740, %v7739
    %v7879 = vpack.c.bf16 %v7742, %v7741
    %v7880 = vpack.c.bf16 %v7744, %v7743
    %v7881 = vpack.c.bf16 %v7746, %v7745
    %v7882 = vpack.c.bf16 %v7748, %v7747
    %v7883 = vpack.c.bf16 %v7750, %v7749
    %v7884 = vpack.c.bf16 %v7752, %v7751
    %v7885 = vpack.c.bf16 %v7754, %v7753
    %v7886 = vpack.c.bf16 %v7756, %v7755
    %v7887 = vpack.c.bf16 %v7758, %v7757
    %v7888 = vpack.c.bf16 %v7760, %v7759
    %v7921 = vunpack.c.l.b16 %v7761
    %v7922 = vunpack.c.h.b16 %v7761
    %v7923 = vunpack.c.l.b16 %v7762
    %v7924 = vunpack.c.h.b16 %v7762
    %v7925 = vunpack.c.l.b16 %v7763
    %v7926 = vunpack.c.h.b16 %v7763
    %v7927 = vunpack.c.l.b16 %v7764
    %v7928 = vunpack.c.h.b16 %v7764
    %v7929 = vunpack.c.l.b16 %v7765
    %v7930 = vunpack.c.h.b16 %v7765
    %v7931 = vunpack.c.l.b16 %v7766
    %v7932 = vunpack.c.h.b16 %v7766
    %v7933 = vunpack.c.l.b16 %v7767
    %v7934 = vunpack.c.h.b16 %v7767
    %v7935 = vunpack.c.l.b16 %v7768
    %v7936 = vunpack.c.h.b16 %v7768
    %v7937 = vunpack.c.l.b16 %v7769
    %v7938 = vunpack.c.h.b16 %v7769
    %v7939 = vunpack.c.l.b16 %v7770
    %v7940 = vunpack.c.h.b16 %v7770
    %v7941 = vunpack.c.l.b16 %v7771
    %v7942 = vunpack.c.h.b16 %v7771
    %v7943 = vunpack.c.l.b16 %v7772
    %v7944 = vunpack.c.h.b16 %v7772
    %v7945 = vunpack.c.l.b16 %v7773
    %v7946 = vunpack.c.h.b16 %v7773
    %v7947 = vunpack.c.l.b16 %v7774
    %v7948 = vunpack.c.h.b16 %v7774
    %v7949 = vunpack.c.l.b16 %v7775
    %v7950 = vunpack.c.h.b16 %v7775
    %v7951 = vunpack.c.l.b16 %v7776
    %v7952 = vunpack.c.h.b16 %v7776
    %v7953 = vunpack.c.l.b16 %v7777
    %v7954 = vunpack.c.h.b16 %v7777
    %v7955 = vunpack.c.l.b16 %v7778
    %v7956 = vunpack.c.h.b16 %v7778
    %v7957 = vunpack.c.l.b16 %v7779
    %v7958 = vunpack.c.h.b16 %v7779
    %v7959 = vunpack.c.l.b16 %v7780
    %v7960 = vunpack.c.h.b16 %v7780
    %v7961 = vunpack.c.l.b16 %v7781
    %v7962 = vunpack.c.h.b16 %v7781
    %v7963 = vunpack.c.l.b16 %v7782
    %v7964 = vunpack.c.h.b16 %v7782
    %v7965 = vunpack.c.l.b16 %v7783
    %v7966 = vunpack.c.h.b16 %v7783
    %v7967 = vunpack.c.l.b16 %v7784
    %v7968 = vunpack.c.h.b16 %v7784
    %v7969 = vunpack.c.l.b16 %v7785
    %v7970 = vunpack.c.h.b16 %v7785
    %v7971 = vunpack.c.l.b16 %v7786
    %v7972 = vunpack.c.h.b16 %v7786
    %v7973 = vunpack.c.l.b16 %v7787
    %v7974 = vunpack.c.h.b16 %v7787
    %v7975 = vunpack.c.l.b16 %v7788
    %v7976 = vunpack.c.h.b16 %v7788
    %v7977 = vunpack.c.l.b16 %v7789
    %v7978 = vunpack.c.h.b16 %v7789
    %v7979 = vunpack.c.l.b16 %v7790
    %v7980 = vunpack.c.h.b16 %v7790
    %v7981 = vunpack.c.l.b16 %v7791
    %v7982 = vunpack.c.h.b16 %v7791
    %v7983 = vunpack.c.l.b16 %v7792
    %v7984 = vunpack.c.h.b16 %v7792
    %v7985 = vpack.c.b16 %v7923, %v7921
    %v7986 = vpack.c.b16 %v7924, %v7922
    %v7987 = vpack.c.b16 %v7927, %v7925
    %v7988 = vpack.c.b16 %v7928, %v7926
    %v7989 = vpack.c.b16 %v7931, %v7929
    %v7990 = vpack.c.b16 %v7932, %v7930
    %v7991 = vpack.c.b16 %v7935, %v7933
    %v7992 = vpack.c.b16 %v7936, %v7934
    %v7993 = vpack.c.b16 %v7939, %v7937
    %v7994 = vpack.c.b16 %v7940, %v7938
    %v7995 = vpack.c.b16 %v7943, %v7941
    %v7996 = vpack.c.b16 %v7944, %v7942
    %v7997 = vpack.c.b16 %v7947, %v7945
    %v7998 = vpack.c.b16 %v7948, %v7946
    %v7999 = vpack.c.b16 %v7951, %v7949
    %v8000 = vpack.c.b16 %v7952, %v7950
    %v8001 = vpack.c.b16 %v7955, %v7953
    %v8002 = vpack.c.b16 %v7956, %v7954
    %v8003 = vpack.c.b16 %v7959, %v7957
    %v8004 = vpack.c.b16 %v7960, %v7958
    %v8005 = vpack.c.b16 %v7963, %v7961
    %v8006 = vpack.c.b16 %v7964, %v7962
    %v8007 = vpack.c.b16 %v7967, %v7965
    %v8008 = vpack.c.b16 %v7968, %v7966
    %v8009 = vpack.c.b16 %v7971, %v7969
    %v8010 = vpack.c.b16 %v7972, %v7970
    %v8011 = vpack.c.b16 %v7975, %v7973
    %v8012 = vpack.c.b16 %v7976, %v7974
    %v8013 = vpack.c.b16 %v7979, %v7977
    %v8014 = vpack.c.b16 %v7980, %v7978
    %v8015 = vpack.c.b16 %v7983, %v7981
    %v8016 = vpack.c.b16 %v7984, %v7982
    %v8081 = vunpack.c.l.b16 %v3960
    %v8082 = vunpack.c.l.b16 %v3961
    %v8083 = vunpack.c.l.b16 %v3962
    %v8084 = vunpack.c.l.b16 %v3963
    %v8085 = vunpack.c.l.b16 %v3964
    %v8086 = vunpack.c.l.b16 %v3965
    %v8087 = vunpack.c.l.b16 %v3966
    %v8088 = vunpack.c.l.b16 %v3967
    %v8089 = vunpack.c.l.b16 %v3968
    %v8090 = vunpack.c.l.b16 %v3969
    %v8091 = vunpack.c.l.b16 %v3970
    %v8092 = vunpack.c.l.b16 %v3971
    %v8093 = vunpack.c.l.b16 %v3972
    %v8094 = vunpack.c.l.b16 %v3973
    %v8095 = vunpack.c.l.b16 %v3974
    %v8096 = vunpack.c.l.b16 %v3975
    %v8097 = vunpack.c.l.b16 %v3976
    %v8098 = vunpack.c.l.b16 %v3977
    %v8099 = vunpack.c.l.b16 %v3978
    %v8100 = vunpack.c.l.b16 %v3979
    %v8101 = vunpack.c.l.b16 %v3980
    %v8102 = vunpack.c.l.b16 %v3981
    %v8103 = vunpack.c.l.b16 %v3982
    %v8104 = vunpack.c.l.b16 %v3983
    %v8105 = vunpack.c.l.b16 %v3984
    %v8106 = vunpack.c.l.b16 %v3985
    %v8107 = vunpack.c.l.b16 %v3986
    %v8108 = vunpack.c.l.b16 %v3987
    %v8109 = vunpack.c.l.b16 %v3988
    %v8110 = vunpack.c.l.b16 %v3989
    %v8111 = vunpack.c.l.b16 %v3990
    %v8112 = vunpack.c.l.b16 %v3991
    %v8113 = vpack.c.b16 %v8082, %v8081
    %v8114 = vpack.c.b16 %v8084, %v8083
    %v8115 = vpack.c.b16 %v8086, %v8085
    %v8116 = vpack.c.b16 %v8088, %v8087
    %v8117 = vpack.c.b16 %v8090, %v8089
    %v8118 = vpack.c.b16 %v8092, %v8091
    %v8119 = vpack.c.b16 %v8094, %v8093
    %v8120 = vpack.c.b16 %v8096, %v8095
    %v8121 = vpack.c.b16 %v8098, %v8097
    %v8122 = vpack.c.b16 %v8100, %v8099
    %v8123 = vpack.c.b16 %v8102, %v8101
    %v8124 = vpack.c.b16 %v8104, %v8103
    %v8125 = vpack.c.b16 %v8106, %v8105
    %v8126 = vpack.c.b16 %v8108, %v8107
    %v8127 = vpack.c.b16 %v8110, %v8109
    %v8128 = vpack.c.b16 %v8112, %v8111
    %8145 = vmatpush.bf16.msra.mxu0 %v8120
    %8146 = vmatpush.bf16.msra.mxu0 %v8119
    %8147 = vmatpush.bf16.msra.mxu0 %v8118
    %8148 = vmatpush.bf16.msra.mxu0 %v8117
    %8149 = vmatpush.bf16.msra.mxu0 %v8116
    %8150 = vmatpush.bf16.msra.mxu0 %v8115
    %8151 = vmatpush.bf16.msra.mxu0 %v8114
    %8152 = vmatpush.bf16.msra.mxu0 %v8113
    %8153 = vmatmul.bf16.gmra.mxu0 %v7985
    %v8154 = vpop.f32.mrf.mxu0
    %v8155 = vadd.f32 0.0, %v8154
    %v8156 = vpop.f32.mrf.mxu0
    %v8157 = vadd.f32 0.0, %v8156
    %8158 = vmatmul.bf16.gmra.mxu0 %v7987
    %v8159 = vpop.f32.mrf.mxu0
    %v8160 = vadd.f32 0.0, %v8159
    %v8161 = vpop.f32.mrf.mxu0
    %v8162 = vadd.f32 0.0, %v8161
    %8163 = vmatmul.bf16.gmra.mxu0 %v7989
    %v8164 = vpop.f32.mrf.mxu0
    %v8165 = vadd.f32 0.0, %v8164
    %v8166 = vpop.f32.mrf.mxu0
    %v8167 = vadd.f32 0.0, %v8166
    %8168 = vmatmul.bf16.gmra.mxu0 %v7991
    %v8169 = vpop.f32.mrf.mxu0
    %v8170 = vadd.f32 0.0, %v8169
    %v8171 = vpop.f32.mrf.mxu0
    %v8172 = vadd.f32 0.0, %v8171
    %8173 = vmatmul.bf16.gmra.mxu0 %v7993
    %v8174 = vpop.f32.mrf.mxu0
    %v8175 = vadd.f32 0.0, %v8174
    %v8176 = vpop.f32.mrf.mxu0
    %v8177 = vadd.f32 0.0, %v8176
    %8178 = vmatmul.bf16.gmra.mxu0 %v7995
    %v8179 = vpop.f32.mrf.mxu0
    %v8180 = vadd.f32 0.0, %v8179
    %v8181 = vpop.f32.mrf.mxu0
    %v8182 = vadd.f32 0.0, %v8181
    %8183 = vmatmul.bf16.gmra.mxu0 %v7997
    %v8184 = vpop.f32.mrf.mxu0
    %v8185 = vadd.f32 0.0, %v8184
    %v8186 = vpop.f32.mrf.mxu0
    %v8187 = vadd.f32 0.0, %v8186
    %8188 = vmatmul.bf16.gmra.mxu0 %v7999
    %v8189 = vpop.f32.mrf.mxu0
    %v8190 = vadd.f32 0.0, %v8189
    %v8191 = vpop.f32.mrf.mxu0
    %v8192 = vadd.f32 0.0, %v8191
    %8193 = vmatmul.bf16.gmra.mxu0 %v8001
    %v8194 = vpop.f32.mrf.mxu0
    %v8195 = vadd.f32 0.0, %v8194
    %v8196 = vpop.f32.mrf.mxu0
    %v8197 = vadd.f32 0.0, %v8196
    %8198 = vmatmul.bf16.gmra.mxu0 %v8003
    %v8199 = vpop.f32.mrf.mxu0
    %v8200 = vadd.f32 0.0, %v8199
    %v8201 = vpop.f32.mrf.mxu0
    %v8202 = vadd.f32 0.0, %v8201
    %8203 = vmatmul.bf16.gmra.mxu0 %v8005
    %v8204 = vpop.f32.mrf.mxu0
    %v8205 = vadd.f32 0.0, %v8204
    %v8206 = vpop.f32.mrf.mxu0
    %v8207 = vadd.f32 0.0, %v8206
    %8208 = vmatmul.bf16.gmra.mxu0 %v8007
    %v8209 = vpop.f32.mrf.mxu0
    %v8210 = vadd.f32 0.0, %v8209
    %v8211 = vpop.f32.mrf.mxu0
    %v8212 = vadd.f32 0.0, %v8211
    %8213 = vmatmul.bf16.gmra.mxu0 %v8009
    %v8214 = vpop.f32.mrf.mxu0
    %v8215 = vadd.f32 0.0, %v8214
    %v8216 = vpop.f32.mrf.mxu0
    %v8217 = vadd.f32 0.0, %v8216
    %8218 = vmatmul.bf16.gmra.mxu0 %v8011
    %v8219 = vpop.f32.mrf.mxu0
    %v8220 = vadd.f32 0.0, %v8219
    %v8221 = vpop.f32.mrf.mxu0
    %v8222 = vadd.f32 0.0, %v8221
    %8223 = vmatmul.bf16.gmra.mxu0 %v8013
    %v8224 = vpop.f32.mrf.mxu0
    %v8225 = vadd.f32 0.0, %v8224
    %v8226 = vpop.f32.mrf.mxu0
    %v8227 = vadd.f32 0.0, %v8226
    %8228 = vmatmul.bf16.gmra.mxu0 %v8015
    %v8229 = vpop.f32.mrf.mxu0
    %v8230 = vadd.f32 0.0, %v8229
    %v8231 = vpop.f32.mrf.mxu0
    %v8232 = vadd.f32 0.0, %v8231
    %8233 = vdwg.mxu0
    %8234 = vmatpush.bf16.msra.mxu0 %v8128
    %8235 = vmatpush.bf16.msra.mxu0 %v8127
    %8236 = vmatpush.bf16.msra.mxu0 %v8126
    %8237 = vmatpush.bf16.msra.mxu0 %v8125
    %8238 = vmatpush.bf16.msra.mxu0 %v8124
    %8239 = vmatpush.bf16.msra.mxu0 %v8123
    %8240 = vmatpush.bf16.msra.mxu0 %v8122
    %8241 = vmatpush.bf16.msra.mxu0 %v8121
    %8242 = vmatmul.bf16.gmra.mxu0 %v7986
    %v8243 = vpop.f32.mrf.mxu0
    %v8244 = vadd.f32 %v8155, %v8243
    %v8245 = vpop.f32.mrf.mxu0
    %v8246 = vadd.f32 %v8157, %v8245
    %8247 = vmatmul.bf16.gmra.mxu0 %v7988
    %v8248 = vpop.f32.mrf.mxu0
    %v8249 = vadd.f32 %v8160, %v8248
    %v8250 = vpop.f32.mrf.mxu0
    %v8251 = vadd.f32 %v8162, %v8250
    %8252 = vmatmul.bf16.gmra.mxu0 %v7990
    %v8253 = vpop.f32.mrf.mxu0
    %v8254 = vadd.f32 %v8165, %v8253
    %v8255 = vpop.f32.mrf.mxu0
    %v8256 = vadd.f32 %v8167, %v8255
    %8257 = vmatmul.bf16.gmra.mxu0 %v7992
    %v8258 = vpop.f32.mrf.mxu0
    %v8259 = vadd.f32 %v8170, %v8258
    %v8260 = vpop.f32.mrf.mxu0
    %v8261 = vadd.f32 %v8172, %v8260
    %8262 = vmatmul.bf16.gmra.mxu0 %v7994
    %v8263 = vpop.f32.mrf.mxu0
    %v8264 = vadd.f32 %v8175, %v8263
    %v8265 = vpop.f32.mrf.mxu0
    %v8266 = vadd.f32 %v8177, %v8265
    %8267 = vmatmul.bf16.gmra.mxu0 %v7996
    %v8268 = vpop.f32.mrf.mxu0
    %v8269 = vadd.f32 %v8180, %v8268
    %v8270 = vpop.f32.mrf.mxu0
    %v8271 = vadd.f32 %v8182, %v8270
    %8272 = vmatmul.bf16.gmra.mxu0 %v7998
    %v8273 = vpop.f32.mrf.mxu0
    %v8274 = vadd.f32 %v8185, %v8273
    %v8275 = vpop.f32.mrf.mxu0
    %v8276 = vadd.f32 %v8187, %v8275
    %8277 = vmatmul.bf16.gmra.mxu0 %v8000
    %v8278 = vpop.f32.mrf.mxu0
    %v8279 = vadd.f32 %v8190, %v8278
    %v8280 = vpop.f32.mrf.mxu0
    %v8281 = vadd.f32 %v8192, %v8280
    %8282 = vmatmul.bf16.gmra.mxu0 %v8002
    %v8283 = vpop.f32.mrf.mxu0
    %v8284 = vadd.f32 %v8195, %v8283
    %v8285 = vpop.f32.mrf.mxu0
    %v8286 = vadd.f32 %v8197, %v8285
    %8287 = vmatmul.bf16.gmra.mxu0 %v8004
    %v8288 = vpop.f32.mrf.mxu0
    %v8289 = vadd.f32 %v8200, %v8288
    %v8290 = vpop.f32.mrf.mxu0
    %v8291 = vadd.f32 %v8202, %v8290
    %8292 = vmatmul.bf16.gmra.mxu0 %v8006
    %v8293 = vpop.f32.mrf.mxu0
    %v8294 = vadd.f32 %v8205, %v8293
    %v8295 = vpop.f32.mrf.mxu0
    %v8296 = vadd.f32 %v8207, %v8295
    %8297 = vmatmul.bf16.gmra.mxu0 %v8008
    %v8298 = vpop.f32.mrf.mxu0
    %v8299 = vadd.f32 %v8210, %v8298
    %v8300 = vpop.f32.mrf.mxu0
    %v8301 = vadd.f32 %v8212, %v8300
    %8302 = vmatmul.bf16.gmra.mxu0 %v8010
    %v8303 = vpop.f32.mrf.mxu0
    %v8304 = vadd.f32 %v8215, %v8303
    %v8305 = vpop.f32.mrf.mxu0
    %v8306 = vadd.f32 %v8217, %v8305
    %8307 = vmatmul.bf16.gmra.mxu0 %v8012
    %v8308 = vpop.f32.mrf.mxu0
    %v8309 = vadd.f32 %v8220, %v8308
    %v8310 = vpop.f32.mrf.mxu0
    %v8311 = vadd.f32 %v8222, %v8310
    %8312 = vmatmul.bf16.gmra.mxu0 %v8014
    %v8313 = vpop.f32.mrf.mxu0
    %v8314 = vadd.f32 %v8225, %v8313
    %v8315 = vpop.f32.mrf.mxu0
    %v8316 = vadd.f32 %v8227, %v8315
    %8317 = vmatmul.bf16.gmra.mxu0 %v8016
    %v8318 = vpop.f32.mrf.mxu0
    %v8319 = vadd.f32 %v8230, %v8318
    %v8320 = vpop.f32.mrf.mxu0
    %v8321 = vadd.f32 %v8232, %v8320
    %8322 = vdwg.mxu0
    %v8355 = vunpack.c.l.b16 %v7793
    %v8356 = vunpack.c.h.b16 %v7793
    %v8357 = vunpack.c.l.b16 %v7794
    %v8358 = vunpack.c.h.b16 %v7794
    %v8359 = vunpack.c.l.b16 %v7795
    %v8360 = vunpack.c.h.b16 %v7795
    %v8361 = vunpack.c.l.b16 %v7796
    %v8362 = vunpack.c.h.b16 %v7796
    %v8363 = vunpack.c.l.b16 %v7797
    %v8364 = vunpack.c.h.b16 %v7797
    %v8365 = vunpack.c.l.b16 %v7798
    %v8366 = vunpack.c.h.b16 %v7798
    %v8367 = vunpack.c.l.b16 %v7799
    %v8368 = vunpack.c.h.b16 %v7799
    %v8369 = vunpack.c.l.b16 %v7800
    %v8370 = vunpack.c.h.b16 %v7800
    %v8371 = vunpack.c.l.b16 %v7801
    %v8372 = vunpack.c.h.b16 %v7801
    %v8373 = vunpack.c.l.b16 %v7802
    %v8374 = vunpack.c.h.b16 %v7802
    %v8375 = vunpack.c.l.b16 %v7803
    %v8376 = vunpack.c.h.b16 %v7803
    %v8377 = vunpack.c.l.b16 %v7804
    %v8378 = vunpack.c.h.b16 %v7804
    %v8379 = vunpack.c.l.b16 %v7805
    %v8380 = vunpack.c.h.b16 %v7805
    %v8381 = vunpack.c.l.b16 %v7806
    %v8382 = vunpack.c.h.b16 %v7806
    %v8383 = vunpack.c.l.b16 %v7807
    %v8384 = vunpack.c.h.b16 %v7807
    %v8385 = vunpack.c.l.b16 %v7808
    %v8386 = vunpack.c.h.b16 %v7808
    %v8387 = vunpack.c.l.b16 %v7809
    %v8388 = vunpack.c.h.b16 %v7809
    %v8389 = vunpack.c.l.b16 %v7810
    %v8390 = vunpack.c.h.b16 %v7810
    %v8391 = vunpack.c.l.b16 %v7811
    %v8392 = vunpack.c.h.b16 %v7811
    %v8393 = vunpack.c.l.b16 %v7812
    %v8394 = vunpack.c.h.b16 %v7812
    %v8395 = vunpack.c.l.b16 %v7813
    %v8396 = vunpack.c.h.b16 %v7813
    %v8397 = vunpack.c.l.b16 %v7814
    %v8398 = vunpack.c.h.b16 %v7814
    %v8399 = vunpack.c.l.b16 %v7815
    %v8400 = vunpack.c.h.b16 %v7815
    %v8401 = vunpack.c.l.b16 %v7816
    %v8402 = vunpack.c.h.b16 %v7816
    %v8403 = vunpack.c.l.b16 %v7817
    %v8404 = vunpack.c.h.b16 %v7817
    %v8405 = vunpack.c.l.b16 %v7818
    %v8406 = vunpack.c.h.b16 %v7818
    %v8407 = vunpack.c.l.b16 %v7819
    %v8408 = vunpack.c.h.b16 %v7819
    %v8409 = vunpack.c.l.b16 %v7820
    %v8410 = vunpack.c.h.b16 %v7820
    %v8411 = vunpack.c.l.b16 %v7821
    %v8412 = vunpack.c.h.b16 %v7821
    %v8413 = vunpack.c.l.b16 %v7822
    %v8414 = vunpack.c.h.b16 %v7822
    %v8415 = vunpack.c.l.b16 %v7823
    %v8416 = vunpack.c.h.b16 %v7823
    %v8417 = vunpack.c.l.b16 %v7824
    %v8418 = vunpack.c.h.b16 %v7824
    %v8419 = vpack.c.b16 %v8357, %v8355
    %v8420 = vpack.c.b16 %v8358, %v8356
    %v8421 = vpack.c.b16 %v8361, %v8359
    %v8422 = vpack.c.b16 %v8362, %v8360
    %v8423 = vpack.c.b16 %v8365, %v8363
    %v8424 = vpack.c.b16 %v8366, %v8364
    %v8425 = vpack.c.b16 %v8369, %v8367
    %v8426 = vpack.c.b16 %v8370, %v8368
    %v8427 = vpack.c.b16 %v8373, %v8371
    %v8428 = vpack.c.b16 %v8374, %v8372
    %v8429 = vpack.c.b16 %v8377, %v8375
    %v8430 = vpack.c.b16 %v8378, %v8376
    %v8431 = vpack.c.b16 %v8381, %v8379
    %v8432 = vpack.c.b16 %v8382, %v8380
    %v8433 = vpack.c.b16 %v8385, %v8383
    %v8434 = vpack.c.b16 %v8386, %v8384
    %v8435 = vpack.c.b16 %v8389, %v8387
    %v8436 = vpack.c.b16 %v8390, %v8388
    %v8437 = vpack.c.b16 %v8393, %v8391
    %v8438 = vpack.c.b16 %v8394, %v8392
    %v8439 = vpack.c.b16 %v8397, %v8395
    %v8440 = vpack.c.b16 %v8398, %v8396
    %v8441 = vpack.c.b16 %v8401, %v8399
    %v8442 = vpack.c.b16 %v8402, %v8400
    %v8443 = vpack.c.b16 %v8405, %v8403
    %v8444 = vpack.c.b16 %v8406, %v8404
    %v8445 = vpack.c.b16 %v8409, %v8407
    %v8446 = vpack.c.b16 %v8410, %v8408
    %v8447 = vpack.c.b16 %v8413, %v8411
    %v8448 = vpack.c.b16 %v8414, %v8412
    %v8449 = vpack.c.b16 %v8417, %v8415
    %v8450 = vpack.c.b16 %v8418, %v8416
    %v8515 = vunpack.c.l.b16 %v3992
    %v8516 = vunpack.c.l.b16 %v3993
    %v8517 = vunpack.c.l.b16 %v3994
    %v8518 = vunpack.c.l.b16 %v3995
    %v8519 = vunpack.c.l.b16 %v3996
    %v8520 = vunpack.c.l.b16 %v3997
    %v8521 = vunpack.c.l.b16 %v3998
    %v8522 = vunpack.c.l.b16 %v3999
    %v8523 = vunpack.c.l.b16 %v4000
    %v8524 = vunpack.c.l.b16 %v4001
    %v8525 = vunpack.c.l.b16 %v4002
    %v8526 = vunpack.c.l.b16 %v4003
    %v8527 = vunpack.c.l.b16 %v4004
    %v8528 = vunpack.c.l.b16 %v4005
    %v8529 = vunpack.c.l.b16 %v4006
    %v8530 = vunpack.c.l.b16 %v4007
    %v8531 = vunpack.c.l.b16 %v4008
    %v8532 = vunpack.c.l.b16 %v4009
    %v8533 = vunpack.c.l.b16 %v4010
    %v8534 = vunpack.c.l.b16 %v4011
    %v8535 = vunpack.c.l.b16 %v4012
    %v8536 = vunpack.c.l.b16 %v4013
    %v8537 = vunpack.c.l.b16 %v4014
    %v8538 = vunpack.c.l.b16 %v4015
    %v8539 = vunpack.c.l.b16 %v4016
    %v8540 = vunpack.c.l.b16 %v4017
    %v8541 = vunpack.c.l.b16 %v4018
    %v8542 = vunpack.c.l.b16 %v4019
    %v8543 = vunpack.c.l.b16 %v4020
    %v8544 = vunpack.c.l.b16 %v4021
    %v8545 = vunpack.c.l.b16 %v4022
    %v8546 = vunpack.c.l.b16 %v4023
    %v8547 = vpack.c.b16 %v8516, %v8515
    %v8548 = vpack.c.b16 %v8518, %v8517
    %v8549 = vpack.c.b16 %v8520, %v8519
    %v8550 = vpack.c.b16 %v8522, %v8521
    %v8551 = vpack.c.b16 %v8524, %v8523
    %v8552 = vpack.c.b16 %v8526, %v8525
    %v8553 = vpack.c.b16 %v8528, %v8527
    %v8554 = vpack.c.b16 %v8530, %v8529
    %v8555 = vpack.c.b16 %v8532, %v8531
    %v8556 = vpack.c.b16 %v8534, %v8533
    %v8557 = vpack.c.b16 %v8536, %v8535
    %v8558 = vpack.c.b16 %v8538, %v8537
    %v8559 = vpack.c.b16 %v8540, %v8539
    %v8560 = vpack.c.b16 %v8542, %v8541
    %v8561 = vpack.c.b16 %v8544, %v8543
    %v8562 = vpack.c.b16 %v8546, %v8545
    %8579 = vmatpush.bf16.msra.mxu0 %v8554
    %8580 = vmatpush.bf16.msra.mxu0 %v8553
    %8581 = vmatpush.bf16.msra.mxu0 %v8552
    %8582 = vmatpush.bf16.msra.mxu0 %v8551
    %8583 = vmatpush.bf16.msra.mxu0 %v8550
    %8584 = vmatpush.bf16.msra.mxu0 %v8549
    %8585 = vmatpush.bf16.msra.mxu0 %v8548
    %8586 = vmatpush.bf16.msra.mxu0 %v8547
    %8587 = vmatmul.bf16.gmra.mxu0 %v8419
    %v8588 = vpop.f32.mrf.mxu0
    %v8589 = vadd.f32 0.0, %v8588
    %v8590 = vpop.f32.mrf.mxu0
    %v8591 = vadd.f32 0.0, %v8590
    %8592 = vmatmul.bf16.gmra.mxu0 %v8421
    %v8593 = vpop.f32.mrf.mxu0
    %v8594 = vadd.f32 0.0, %v8593
    %v8595 = vpop.f32.mrf.mxu0
    %v8596 = vadd.f32 0.0, %v8595
    %8597 = vmatmul.bf16.gmra.mxu0 %v8423
    %v8598 = vpop.f32.mrf.mxu0
    %v8599 = vadd.f32 0.0, %v8598
    %v8600 = vpop.f32.mrf.mxu0
    %v8601 = vadd.f32 0.0, %v8600
    %8602 = vmatmul.bf16.gmra.mxu0 %v8425
    %v8603 = vpop.f32.mrf.mxu0
    %v8604 = vadd.f32 0.0, %v8603
    %v8605 = vpop.f32.mrf.mxu0
    %v8606 = vadd.f32 0.0, %v8605
    %8607 = vmatmul.bf16.gmra.mxu0 %v8427
    %v8608 = vpop.f32.mrf.mxu0
    %v8609 = vadd.f32 0.0, %v8608
    %v8610 = vpop.f32.mrf.mxu0
    %v8611 = vadd.f32 0.0, %v8610
    %8612 = vmatmul.bf16.gmra.mxu0 %v8429
    %v8613 = vpop.f32.mrf.mxu0
    %v8614 = vadd.f32 0.0, %v8613
    %v8615 = vpop.f32.mrf.mxu0
    %v8616 = vadd.f32 0.0, %v8615
    %8617 = vmatmul.bf16.gmra.mxu0 %v8431
    %v8618 = vpop.f32.mrf.mxu0
    %v8619 = vadd.f32 0.0, %v8618
    %v8620 = vpop.f32.mrf.mxu0
    %v8621 = vadd.f32 0.0, %v8620
    %8622 = vmatmul.bf16.gmra.mxu0 %v8433
    %v8623 = vpop.f32.mrf.mxu0
    %v8624 = vadd.f32 0.0, %v8623
    %v8625 = vpop.f32.mrf.mxu0
    %v8626 = vadd.f32 0.0, %v8625
    %8627 = vmatmul.bf16.gmra.mxu0 %v8435
    %v8628 = vpop.f32.mrf.mxu0
    %v8629 = vadd.f32 0.0, %v8628
    %v8630 = vpop.f32.mrf.mxu0
    %v8631 = vadd.f32 0.0, %v8630
    %8632 = vmatmul.bf16.gmra.mxu0 %v8437
    %v8633 = vpop.f32.mrf.mxu0
    %v8634 = vadd.f32 0.0, %v8633
    %v8635 = vpop.f32.mrf.mxu0
    %v8636 = vadd.f32 0.0, %v8635
    %8637 = vmatmul.bf16.gmra.mxu0 %v8439
    %v8638 = vpop.f32.mrf.mxu0
    %v8639 = vadd.f32 0.0, %v8638
    %v8640 = vpop.f32.mrf.mxu0
    %v8641 = vadd.f32 0.0, %v8640
    %8642 = vmatmul.bf16.gmra.mxu0 %v8441
    %v8643 = vpop.f32.mrf.mxu0
    %v8644 = vadd.f32 0.0, %v8643
    %v8645 = vpop.f32.mrf.mxu0
    %v8646 = vadd.f32 0.0, %v8645
    %8647 = vmatmul.bf16.gmra.mxu0 %v8443
    %v8648 = vpop.f32.mrf.mxu0
    %v8649 = vadd.f32 0.0, %v8648
    %v8650 = vpop.f32.mrf.mxu0
    %v8651 = vadd.f32 0.0, %v8650
    %8652 = vmatmul.bf16.gmra.mxu0 %v8445
    %v8653 = vpop.f32.mrf.mxu0
    %v8654 = vadd.f32 0.0, %v8653
    %v8655 = vpop.f32.mrf.mxu0
    %v8656 = vadd.f32 0.0, %v8655
    %8657 = vmatmul.bf16.gmra.mxu0 %v8447
    %v8658 = vpop.f32.mrf.mxu0
    %v8659 = vadd.f32 0.0, %v8658
    %v8660 = vpop.f32.mrf.mxu0
    %v8661 = vadd.f32 0.0, %v8660
    %8662 = vmatmul.bf16.gmra.mxu0 %v8449
    %v8663 = vpop.f32.mrf.mxu0
    %v8664 = vadd.f32 0.0, %v8663
    %v8665 = vpop.f32.mrf.mxu0
    %v8666 = vadd.f32 0.0, %v8665
    %8667 = vdwg.mxu0
    %8668 = vmatpush.bf16.msra.mxu0 %v8562
    %8669 = vmatpush.bf16.msra.mxu0 %v8561
    %8670 = vmatpush.bf16.msra.mxu0 %v8560
    %8671 = vmatpush.bf16.msra.mxu0 %v8559
    %8672 = vmatpush.bf16.msra.mxu0 %v8558
    %8673 = vmatpush.bf16.msra.mxu0 %v8557
    %8674 = vmatpush.bf16.msra.mxu0 %v8556
    %8675 = vmatpush.bf16.msra.mxu0 %v8555
    %8676 = vmatmul.bf16.gmra.mxu0 %v8420
    %v8677 = vpop.f32.mrf.mxu0
    %v8678 = vadd.f32 %v8589, %v8677
    %v8679 = vpop.f32.mrf.mxu0
    %v8680 = vadd.f32 %v8591, %v8679
    %8681 = vmatmul.bf16.gmra.mxu0 %v8422
    %v8682 = vpop.f32.mrf.mxu0
    %v8683 = vadd.f32 %v8594, %v8682
    %v8684 = vpop.f32.mrf.mxu0
    %v8685 = vadd.f32 %v8596, %v8684
    %8686 = vmatmul.bf16.gmra.mxu0 %v8424
    %v8687 = vpop.f32.mrf.mxu0
    %v8688 = vadd.f32 %v8599, %v8687
    %v8689 = vpop.f32.mrf.mxu0
    %v8690 = vadd.f32 %v8601, %v8689
    %8691 = vmatmul.bf16.gmra.mxu0 %v8426
    %v8692 = vpop.f32.mrf.mxu0
    %v8693 = vadd.f32 %v8604, %v8692
    %v8694 = vpop.f32.mrf.mxu0
    %v8695 = vadd.f32 %v8606, %v8694
    %8696 = vmatmul.bf16.gmra.mxu0 %v8428
    %v8697 = vpop.f32.mrf.mxu0
    %v8698 = vadd.f32 %v8609, %v8697
    %v8699 = vpop.f32.mrf.mxu0
    %v8700 = vadd.f32 %v8611, %v8699
    %8701 = vmatmul.bf16.gmra.mxu0 %v8430
    %v8702 = vpop.f32.mrf.mxu0
    %v8703 = vadd.f32 %v8614, %v8702
    %v8704 = vpop.f32.mrf.mxu0
    %v8705 = vadd.f32 %v8616, %v8704
    %8706 = vmatmul.bf16.gmra.mxu0 %v8432
    %v8707 = vpop.f32.mrf.mxu0
    %v8708 = vadd.f32 %v8619, %v8707
    %v8709 = vpop.f32.mrf.mxu0
    %v8710 = vadd.f32 %v8621, %v8709
    %8711 = vmatmul.bf16.gmra.mxu0 %v8434
    %v8712 = vpop.f32.mrf.mxu0
    %v8713 = vadd.f32 %v8624, %v8712
    %v8714 = vpop.f32.mrf.mxu0
    %v8715 = vadd.f32 %v8626, %v8714
    %8716 = vmatmul.bf16.gmra.mxu0 %v8436
    %v8717 = vpop.f32.mrf.mxu0
    %v8718 = vadd.f32 %v8629, %v8717
    %v8719 = vpop.f32.mrf.mxu0
    %v8720 = vadd.f32 %v8631, %v8719
    %8721 = vmatmul.bf16.gmra.mxu0 %v8438
    %v8722 = vpop.f32.mrf.mxu0
    %v8723 = vadd.f32 %v8634, %v8722
    %v8724 = vpop.f32.mrf.mxu0
    %v8725 = vadd.f32 %v8636, %v8724
    %8726 = vmatmul.bf16.gmra.mxu0 %v8440
    %v8727 = vpop.f32.mrf.mxu0
    %v8728 = vadd.f32 %v8639, %v8727
    %v8729 = vpop.f32.mrf.mxu0
    %v8730 = vadd.f32 %v8641, %v8729
    %8731 = vmatmul.bf16.gmra.mxu0 %v8442
    %v8732 = vpop.f32.mrf.mxu0
    %v8733 = vadd.f32 %v8644, %v8732
    %v8734 = vpop.f32.mrf.mxu0
    %v8735 = vadd.f32 %v8646, %v8734
    %8736 = vmatmul.bf16.gmra.mxu0 %v8444
    %v8737 = vpop.f32.mrf.mxu0
    %v8738 = vadd.f32 %v8649, %v8737
    %v8739 = vpop.f32.mrf.mxu0
    %v8740 = vadd.f32 %v8651, %v8739
    %8741 = vmatmul.bf16.gmra.mxu0 %v8446
    %v8742 = vpop.f32.mrf.mxu0
    %v8743 = vadd.f32 %v8654, %v8742
    %v8744 = vpop.f32.mrf.mxu0
    %v8745 = vadd.f32 %v8656, %v8744
    %8746 = vmatmul.bf16.gmra.mxu0 %v8448
    %v8747 = vpop.f32.mrf.mxu0
    %v8748 = vadd.f32 %v8659, %v8747
    %v8749 = vpop.f32.mrf.mxu0
    %v8750 = vadd.f32 %v8661, %v8749
    %8751 = vmatmul.bf16.gmra.mxu0 %v8450
    %v8752 = vpop.f32.mrf.mxu0
    %v8753 = vadd.f32 %v8664, %v8752
    %v8754 = vpop.f32.mrf.mxu0
    %v8755 = vadd.f32 %v8666, %v8754
    %8756 = vdwg.mxu0
    %v8789 = vunpack.c.l.b16 %v7825
    %v8790 = vunpack.c.h.b16 %v7825
    %v8791 = vunpack.c.l.b16 %v7826
    %v8792 = vunpack.c.h.b16 %v7826
    %v8793 = vunpack.c.l.b16 %v7827
    %v8794 = vunpack.c.h.b16 %v7827
    %v8795 = vunpack.c.l.b16 %v7828
    %v8796 = vunpack.c.h.b16 %v7828
    %v8797 = vunpack.c.l.b16 %v7829
    %v8798 = vunpack.c.h.b16 %v7829
    %v8799 = vunpack.c.l.b16 %v7830
    %v8800 = vunpack.c.h.b16 %v7830
    %v8801 = vunpack.c.l.b16 %v7831
    %v8802 = vunpack.c.h.b16 %v7831
    %v8803 = vunpack.c.l.b16 %v7832
    %v8804 = vunpack.c.h.b16 %v7832
    %v8805 = vunpack.c.l.b16 %v7833
    %v8806 = vunpack.c.h.b16 %v7833
    %v8807 = vunpack.c.l.b16 %v7834
    %v8808 = vunpack.c.h.b16 %v7834
    %v8809 = vunpack.c.l.b16 %v7835
    %v8810 = vunpack.c.h.b16 %v7835
    %v8811 = vunpack.c.l.b16 %v7836
    %v8812 = vunpack.c.h.b16 %v7836
    %v8813 = vunpack.c.l.b16 %v7837
    %v8814 = vunpack.c.h.b16 %v7837
    %v8815 = vunpack.c.l.b16 %v7838
    %v8816 = vunpack.c.h.b16 %v7838
    %v8817 = vunpack.c.l.b16 %v7839
    %v8818 = vunpack.c.h.b16 %v7839
    %v8819 = vunpack.c.l.b16 %v7840
    %v8820 = vunpack.c.h.b16 %v7840
    %v8821 = vunpack.c.l.b16 %v7841
    %v8822 = vunpack.c.h.b16 %v7841
    %v8823 = vunpack.c.l.b16 %v7842
    %v8824 = vunpack.c.h.b16 %v7842
    %v8825 = vunpack.c.l.b16 %v7843
    %v8826 = vunpack.c.h.b16 %v7843
    %v8827 = vunpack.c.l.b16 %v7844
    %v8828 = vunpack.c.h.b16 %v7844
    %v8829 = vunpack.c.l.b16 %v7845
    %v8830 = vunpack.c.h.b16 %v7845
    %v8831 = vunpack.c.l.b16 %v7846
    %v8832 = vunpack.c.h.b16 %v7846
    %v8833 = vunpack.c.l.b16 %v7847
    %v8834 = vunpack.c.h.b16 %v7847
    %v8835 = vunpack.c.l.b16 %v7848
    %v8836 = vunpack.c.h.b16 %v7848
    %v8837 = vunpack.c.l.b16 %v7849
    %v8838 = vunpack.c.h.b16 %v7849
    %v8839 = vunpack.c.l.b16 %v7850
    %v8840 = vunpack.c.h.b16 %v7850
    %v8841 = vunpack.c.l.b16 %v7851
    %v8842 = vunpack.c.h.b16 %v7851
    %v8843 = vunpack.c.l.b16 %v7852
    %v8844 = vunpack.c.h.b16 %v7852
    %v8845 = vunpack.c.l.b16 %v7853
    %v8846 = vunpack.c.h.b16 %v7853
    %v8847 = vunpack.c.l.b16 %v7854
    %v8848 = vunpack.c.h.b16 %v7854
    %v8849 = vunpack.c.l.b16 %v7855
    %v8850 = vunpack.c.h.b16 %v7855
    %v8851 = vunpack.c.l.b16 %v7856
    %v8852 = vunpack.c.h.b16 %v7856
    %v8853 = vpack.c.b16 %v8791, %v8789
    %v8854 = vpack.c.b16 %v8792, %v8790
    %v8855 = vpack.c.b16 %v8795, %v8793
    %v8856 = vpack.c.b16 %v8796, %v8794
    %v8857 = vpack.c.b16 %v8799, %v8797
    %v8858 = vpack.c.b16 %v8800, %v8798
    %v8859 = vpack.c.b16 %v8803, %v8801
    %v8860 = vpack.c.b16 %v8804, %v8802
    %v8861 = vpack.c.b16 %v8807, %v8805
    %v8862 = vpack.c.b16 %v8808, %v8806
    %v8863 = vpack.c.b16 %v8811, %v8809
    %v8864 = vpack.c.b16 %v8812, %v8810
    %v8865 = vpack.c.b16 %v8815, %v8813
    %v8866 = vpack.c.b16 %v8816, %v8814
    %v8867 = vpack.c.b16 %v8819, %v8817
    %v8868 = vpack.c.b16 %v8820, %v8818
    %v8869 = vpack.c.b16 %v8823, %v8821
    %v8870 = vpack.c.b16 %v8824, %v8822
    %v8871 = vpack.c.b16 %v8827, %v8825
    %v8872 = vpack.c.b16 %v8828, %v8826
    %v8873 = vpack.c.b16 %v8831, %v8829
    %v8874 = vpack.c.b16 %v8832, %v8830
    %v8875 = vpack.c.b16 %v8835, %v8833
    %v8876 = vpack.c.b16 %v8836, %v8834
    %v8877 = vpack.c.b16 %v8839, %v8837
    %v8878 = vpack.c.b16 %v8840, %v8838
    %v8879 = vpack.c.b16 %v8843, %v8841
    %v8880 = vpack.c.b16 %v8844, %v8842
    %v8881 = vpack.c.b16 %v8847, %v8845
    %v8882 = vpack.c.b16 %v8848, %v8846
    %v8883 = vpack.c.b16 %v8851, %v8849
    %v8884 = vpack.c.b16 %v8852, %v8850
    %v8949 = vunpack.c.l.b16 %v4024
    %v8950 = vunpack.c.l.b16 %v4025
    %v8951 = vunpack.c.l.b16 %v4026
    %v8952 = vunpack.c.l.b16 %v4027
    %v8953 = vunpack.c.l.b16 %v4028
    %v8954 = vunpack.c.l.b16 %v4029
    %v8955 = vunpack.c.l.b16 %v4030
    %v8956 = vunpack.c.l.b16 %v4031
    %v8957 = vunpack.c.l.b16 %v4032
    %v8958 = vunpack.c.l.b16 %v4033
    %v8959 = vunpack.c.l.b16 %v4034
    %v8960 = vunpack.c.l.b16 %v4035
    %v8961 = vunpack.c.l.b16 %v4036
    %v8962 = vunpack.c.l.b16 %v4037
    %v8963 = vunpack.c.l.b16 %v4038
    %v8964 = vunpack.c.l.b16 %v4039
    %v8965 = vunpack.c.l.b16 %v4040
    %v8966 = vunpack.c.l.b16 %v4041
    %v8967 = vunpack.c.l.b16 %v4042
    %v8968 = vunpack.c.l.b16 %v4043
    %v8969 = vunpack.c.l.b16 %v4044
    %v8970 = vunpack.c.l.b16 %v4045
    %v8971 = vunpack.c.l.b16 %v4046
    %v8972 = vunpack.c.l.b16 %v4047
    %v8973 = vunpack.c.l.b16 %v4048
    %v8974 = vunpack.c.l.b16 %v4049
    %v8975 = vunpack.c.l.b16 %v4050
    %v8976 = vunpack.c.l.b16 %v4051
    %v8977 = vunpack.c.l.b16 %v4052
    %v8978 = vunpack.c.l.b16 %v4053
    %v8979 = vunpack.c.l.b16 %v4054
    %v8980 = vunpack.c.l.b16 %v4055
    %v8981 = vpack.c.b16 %v8950, %v8949
    %v8982 = vpack.c.b16 %v8952, %v8951
    %v8983 = vpack.c.b16 %v8954, %v8953
    %v8984 = vpack.c.b16 %v8956, %v8955
    %v8985 = vpack.c.b16 %v8958, %v8957
    %v8986 = vpack.c.b16 %v8960, %v8959
    %v8987 = vpack.c.b16 %v8962, %v8961
    %v8988 = vpack.c.b16 %v8964, %v8963
    %v8989 = vpack.c.b16 %v8966, %v8965
    %v8990 = vpack.c.b16 %v8968, %v8967
    %v8991 = vpack.c.b16 %v8970, %v8969
    %v8992 = vpack.c.b16 %v8972, %v8971
    %v8993 = vpack.c.b16 %v8974, %v8973
    %v8994 = vpack.c.b16 %v8976, %v8975
    %v8995 = vpack.c.b16 %v8978, %v8977
    %v8996 = vpack.c.b16 %v8980, %v8979
    %9013 = vmatpush.bf16.msra.mxu0 %v8988
    %9014 = vmatpush.bf16.msra.mxu0 %v8987
    %9015 = vmatpush.bf16.msra.mxu0 %v8986
    %9016 = vmatpush.bf16.msra.mxu0 %v8985
    %9017 = vmatpush.bf16.msra.mxu0 %v8984
    %9018 = vmatpush.bf16.msra.mxu0 %v8983
    %9019 = vmatpush.bf16.msra.mxu0 %v8982
    %9020 = vmatpush.bf16.msra.mxu0 %v8981
    %9021 = vmatmul.bf16.gmra.mxu0 %v8853
    %v9022 = vpop.f32.mrf.mxu0
    %v9023 = vadd.f32 0.0, %v9022
    %v9024 = vpop.f32.mrf.mxu0
    %v9025 = vadd.f32 0.0, %v9024
    %9026 = vmatmul.bf16.gmra.mxu0 %v8855
    %v9027 = vpop.f32.mrf.mxu0
    %v9028 = vadd.f32 0.0, %v9027
    %v9029 = vpop.f32.mrf.mxu0
    %v9030 = vadd.f32 0.0, %v9029
    %9031 = vmatmul.bf16.gmra.mxu0 %v8857
    %v9032 = vpop.f32.mrf.mxu0
    %v9033 = vadd.f32 0.0, %v9032
    %v9034 = vpop.f32.mrf.mxu0
    %v9035 = vadd.f32 0.0, %v9034
    %9036 = vmatmul.bf16.gmra.mxu0 %v8859
    %v9037 = vpop.f32.mrf.mxu0
    %v9038 = vadd.f32 0.0, %v9037
    %v9039 = vpop.f32.mrf.mxu0
    %v9040 = vadd.f32 0.0, %v9039
    %9041 = vmatmul.bf16.gmra.mxu0 %v8861
    %v9042 = vpop.f32.mrf.mxu0
    %v9043 = vadd.f32 0.0, %v9042
    %v9044 = vpop.f32.mrf.mxu0
    %v9045 = vadd.f32 0.0, %v9044
    %9046 = vmatmul.bf16.gmra.mxu0 %v8863
    %v9047 = vpop.f32.mrf.mxu0
    %v9048 = vadd.f32 0.0, %v9047
    %v9049 = vpop.f32.mrf.mxu0
    %v9050 = vadd.f32 0.0, %v9049
    %9051 = vmatmul.bf16.gmra.mxu0 %v8865
    %v9052 = vpop.f32.mrf.mxu0
    %v9053 = vadd.f32 0.0, %v9052
    %v9054 = vpop.f32.mrf.mxu0
    %v9055 = vadd.f32 0.0, %v9054
    %9056 = vmatmul.bf16.gmra.mxu0 %v8867
    %v9057 = vpop.f32.mrf.mxu0
    %v9058 = vadd.f32 0.0, %v9057
    %v9059 = vpop.f32.mrf.mxu0
    %v9060 = vadd.f32 0.0, %v9059
    %9061 = vmatmul.bf16.gmra.mxu0 %v8869
    %v9062 = vpop.f32.mrf.mxu0
    %v9063 = vadd.f32 0.0, %v9062
    %v9064 = vpop.f32.mrf.mxu0
    %v9065 = vadd.f32 0.0, %v9064
    %9066 = vmatmul.bf16.gmra.mxu0 %v8871
    %v9067 = vpop.f32.mrf.mxu0
    %v9068 = vadd.f32 0.0, %v9067
    %v9069 = vpop.f32.mrf.mxu0
    %v9070 = vadd.f32 0.0, %v9069
    %9071 = vmatmul.bf16.gmra.mxu0 %v8873
    %v9072 = vpop.f32.mrf.mxu0
    %v9073 = vadd.f32 0.0, %v9072
    %v9074 = vpop.f32.mrf.mxu0
    %v9075 = vadd.f32 0.0, %v9074
    %9076 = vmatmul.bf16.gmra.mxu0 %v8875
    %v9077 = vpop.f32.mrf.mxu0
    %v9078 = vadd.f32 0.0, %v9077
    %v9079 = vpop.f32.mrf.mxu0
    %v9080 = vadd.f32 0.0, %v9079
    %9081 = vmatmul.bf16.gmra.mxu0 %v8877
    %v9082 = vpop.f32.mrf.mxu0
    %v9083 = vadd.f32 0.0, %v9082
    %v9084 = vpop.f32.mrf.mxu0
    %v9085 = vadd.f32 0.0, %v9084
    %9086 = vmatmul.bf16.gmra.mxu0 %v8879
    %v9087 = vpop.f32.mrf.mxu0
    %v9088 = vadd.f32 0.0, %v9087
    %v9089 = vpop.f32.mrf.mxu0
    %v9090 = vadd.f32 0.0, %v9089
    %9091 = vmatmul.bf16.gmra.mxu0 %v8881
    %v9092 = vpop.f32.mrf.mxu0
    %v9093 = vadd.f32 0.0, %v9092
    %v9094 = vpop.f32.mrf.mxu0
    %v9095 = vadd.f32 0.0, %v9094
    %9096 = vmatmul.bf16.gmra.mxu0 %v8883
    %v9097 = vpop.f32.mrf.mxu0
    %v9098 = vadd.f32 0.0, %v9097
    %v9099 = vpop.f32.mrf.mxu0
    %v9100 = vadd.f32 0.0, %v9099
    %9101 = vdwg.mxu0
    %9102 = vmatpush.bf16.msra.mxu0 %v8996
    %9103 = vmatpush.bf16.msra.mxu0 %v8995
    %9104 = vmatpush.bf16.msra.mxu0 %v8994
    %9105 = vmatpush.bf16.msra.mxu0 %v8993
    %9106 = vmatpush.bf16.msra.mxu0 %v8992
    %9107 = vmatpush.bf16.msra.mxu0 %v8991
    %9108 = vmatpush.bf16.msra.mxu0 %v8990
    %9109 = vmatpush.bf16.msra.mxu0 %v8989
    %9110 = vmatmul.bf16.gmra.mxu0 %v8854
    %v9111 = vpop.f32.mrf.mxu0
    %v9112 = vadd.f32 %v9023, %v9111
    %v9113 = vpop.f32.mrf.mxu0
    %v9114 = vadd.f32 %v9025, %v9113
    %9115 = vmatmul.bf16.gmra.mxu0 %v8856
    %v9116 = vpop.f32.mrf.mxu0
    %v9117 = vadd.f32 %v9028, %v9116
    %v9118 = vpop.f32.mrf.mxu0
    %v9119 = vadd.f32 %v9030, %v9118
    %9120 = vmatmul.bf16.gmra.mxu0 %v8858
    %v9121 = vpop.f32.mrf.mxu0
    %v9122 = vadd.f32 %v9033, %v9121
    %v9123 = vpop.f32.mrf.mxu0
    %v9124 = vadd.f32 %v9035, %v9123
    %9125 = vmatmul.bf16.gmra.mxu0 %v8860
    %v9126 = vpop.f32.mrf.mxu0
    %v9127 = vadd.f32 %v9038, %v9126
    %v9128 = vpop.f32.mrf.mxu0
    %v9129 = vadd.f32 %v9040, %v9128
    %9130 = vmatmul.bf16.gmra.mxu0 %v8862
    %v9131 = vpop.f32.mrf.mxu0
    %v9132 = vadd.f32 %v9043, %v9131
    %v9133 = vpop.f32.mrf.mxu0
    %v9134 = vadd.f32 %v9045, %v9133
    %9135 = vmatmul.bf16.gmra.mxu0 %v8864
    %v9136 = vpop.f32.mrf.mxu0
    %v9137 = vadd.f32 %v9048, %v9136
    %v9138 = vpop.f32.mrf.mxu0
    %v9139 = vadd.f32 %v9050, %v9138
    %9140 = vmatmul.bf16.gmra.mxu0 %v8866
    %v9141 = vpop.f32.mrf.mxu0
    %v9142 = vadd.f32 %v9053, %v9141
    %v9143 = vpop.f32.mrf.mxu0
    %v9144 = vadd.f32 %v9055, %v9143
    %9145 = vmatmul.bf16.gmra.mxu0 %v8868
    %v9146 = vpop.f32.mrf.mxu0
    %v9147 = vadd.f32 %v9058, %v9146
    %v9148 = vpop.f32.mrf.mxu0
    %v9149 = vadd.f32 %v9060, %v9148
    %9150 = vmatmul.bf16.gmra.mxu0 %v8870
    %v9151 = vpop.f32.mrf.mxu0
    %v9152 = vadd.f32 %v9063, %v9151
    %v9153 = vpop.f32.mrf.mxu0
    %v9154 = vadd.f32 %v9065, %v9153
    %9155 = vmatmul.bf16.gmra.mxu0 %v8872
    %v9156 = vpop.f32.mrf.mxu0
    %v9157 = vadd.f32 %v9068, %v9156
    %v9158 = vpop.f32.mrf.mxu0
    %v9159 = vadd.f32 %v9070, %v9158
    %9160 = vmatmul.bf16.gmra.mxu0 %v8874
    %v9161 = vpop.f32.mrf.mxu0
    %v9162 = vadd.f32 %v9073, %v9161
    %v9163 = vpop.f32.mrf.mxu0
    %v9164 = vadd.f32 %v9075, %v9163
    %9165 = vmatmul.bf16.gmra.mxu0 %v8876
    %v9166 = vpop.f32.mrf.mxu0
    %v9167 = vadd.f32 %v9078, %v9166
    %v9168 = vpop.f32.mrf.mxu0
    %v9169 = vadd.f32 %v9080, %v9168
    %9170 = vmatmul.bf16.gmra.mxu0 %v8878
    %v9171 = vpop.f32.mrf.mxu0
    %v9172 = vadd.f32 %v9083, %v9171
    %v9173 = vpop.f32.mrf.mxu0
    %v9174 = vadd.f32 %v9085, %v9173
    %9175 = vmatmul.bf16.gmra.mxu0 %v8880
    %v9176 = vpop.f32.mrf.mxu0
    %v9177 = vadd.f32 %v9088, %v9176
    %v9178 = vpop.f32.mrf.mxu0
    %v9179 = vadd.f32 %v9090, %v9178
    %9180 = vmatmul.bf16.gmra.mxu0 %v8882
    %v9181 = vpop.f32.mrf.mxu0
    %v9182 = vadd.f32 %v9093, %v9181
    %v9183 = vpop.f32.mrf.mxu0
    %v9184 = vadd.f32 %v9095, %v9183
    %9185 = vmatmul.bf16.gmra.mxu0 %v8884
    %v9186 = vpop.f32.mrf.mxu0
    %v9187 = vadd.f32 %v9098, %v9186
    %v9188 = vpop.f32.mrf.mxu0
    %v9189 = vadd.f32 %v9100, %v9188
    %9190 = vdwg.mxu0
    %v9223 = vunpack.c.l.b16 %v7857
    %v9224 = vunpack.c.h.b16 %v7857
    %v9225 = vunpack.c.l.b16 %v7858
    %v9226 = vunpack.c.h.b16 %v7858
    %v9227 = vunpack.c.l.b16 %v7859
    %v9228 = vunpack.c.h.b16 %v7859
    %v9229 = vunpack.c.l.b16 %v7860
    %v9230 = vunpack.c.h.b16 %v7860
    %v9231 = vunpack.c.l.b16 %v7861
    %v9232 = vunpack.c.h.b16 %v7861
    %v9233 = vunpack.c.l.b16 %v7862
    %v9234 = vunpack.c.h.b16 %v7862
    %v9235 = vunpack.c.l.b16 %v7863
    %v9236 = vunpack.c.h.b16 %v7863
    %v9237 = vunpack.c.l.b16 %v7864
    %v9238 = vunpack.c.h.b16 %v7864
    %v9239 = vunpack.c.l.b16 %v7865
    %v9240 = vunpack.c.h.b16 %v7865
    %v9241 = vunpack.c.l.b16 %v7866
    %v9242 = vunpack.c.h.b16 %v7866
    %v9243 = vunpack.c.l.b16 %v7867
    %v9244 = vunpack.c.h.b16 %v7867
    %v9245 = vunpack.c.l.b16 %v7868
    %v9246 = vunpack.c.h.b16 %v7868
    %v9247 = vunpack.c.l.b16 %v7869
    %v9248 = vunpack.c.h.b16 %v7869
    %v9249 = vunpack.c.l.b16 %v7870
    %v9250 = vunpack.c.h.b16 %v7870
    %v9251 = vunpack.c.l.b16 %v7871
    %v9252 = vunpack.c.h.b16 %v7871
    %v9253 = vunpack.c.l.b16 %v7872
    %v9254 = vunpack.c.h.b16 %v7872
    %v9255 = vunpack.c.l.b16 %v7873
    %v9256 = vunpack.c.h.b16 %v7873
    %v9257 = vunpack.c.l.b16 %v7874
    %v9258 = vunpack.c.h.b16 %v7874
    %v9259 = vunpack.c.l.b16 %v7875
    %v9260 = vunpack.c.h.b16 %v7875
    %v9261 = vunpack.c.l.b16 %v7876
    %v9262 = vunpack.c.h.b16 %v7876
    %v9263 = vunpack.c.l.b16 %v7877
    %v9264 = vunpack.c.h.b16 %v7877
    %v9265 = vunpack.c.l.b16 %v7878
    %v9266 = vunpack.c.h.b16 %v7878
    %v9267 = vunpack.c.l.b16 %v7879
    %v9268 = vunpack.c.h.b16 %v7879
    %v9269 = vunpack.c.l.b16 %v7880
    %v9270 = vunpack.c.h.b16 %v7880
    %v9271 = vunpack.c.l.b16 %v7881
    %v9272 = vunpack.c.h.b16 %v7881
    %v9273 = vunpack.c.l.b16 %v7882
    %v9274 = vunpack.c.h.b16 %v7882
    %v9275 = vunpack.c.l.b16 %v7883
    %v9276 = vunpack.c.h.b16 %v7883
    %v9277 = vunpack.c.l.b16 %v7884
    %v9278 = vunpack.c.h.b16 %v7884
    %v9279 = vunpack.c.l.b16 %v7885
    %v9280 = vunpack.c.h.b16 %v7885
    %v9281 = vunpack.c.l.b16 %v7886
    %v9282 = vunpack.c.h.b16 %v7886
    %v9283 = vunpack.c.l.b16 %v7887
    %v9284 = vunpack.c.h.b16 %v7887
    %v9285 = vunpack.c.l.b16 %v7888
    %v9286 = vunpack.c.h.b16 %v7888
    %v9287 = vpack.c.b16 %v9225, %v9223
    %v9288 = vpack.c.b16 %v9226, %v9224
    %v9289 = vpack.c.b16 %v9229, %v9227
    %v9290 = vpack.c.b16 %v9230, %v9228
    %v9291 = vpack.c.b16 %v9233, %v9231
    %v9292 = vpack.c.b16 %v9234, %v9232
    %v9293 = vpack.c.b16 %v9237, %v9235
    %v9294 = vpack.c.b16 %v9238, %v9236
    %v9295 = vpack.c.b16 %v9241, %v9239
    %v9296 = vpack.c.b16 %v9242, %v9240
    %v9297 = vpack.c.b16 %v9245, %v9243
    %v9298 = vpack.c.b16 %v9246, %v9244
    %v9299 = vpack.c.b16 %v9249, %v9247
    %v9300 = vpack.c.b16 %v9250, %v9248
    %v9301 = vpack.c.b16 %v9253, %v9251
    %v9302 = vpack.c.b16 %v9254, %v9252
    %v9303 = vpack.c.b16 %v9257, %v9255
    %v9304 = vpack.c.b16 %v9258, %v9256
    %v9305 = vpack.c.b16 %v9261, %v9259
    %v9306 = vpack.c.b16 %v9262, %v9260
    %v9307 = vpack.c.b16 %v9265, %v9263
    %v9308 = vpack.c.b16 %v9266, %v9264
    %v9309 = vpack.c.b16 %v9269, %v9267
    %v9310 = vpack.c.b16 %v9270, %v9268
    %v9311 = vpack.c.b16 %v9273, %v9271
    %v9312 = vpack.c.b16 %v9274, %v9272
    %v9313 = vpack.c.b16 %v9277, %v9275
    %v9314 = vpack.c.b16 %v9278, %v9276
    %v9315 = vpack.c.b16 %v9281, %v9279
    %v9316 = vpack.c.b16 %v9282, %v9280
    %v9317 = vpack.c.b16 %v9285, %v9283
    %v9318 = vpack.c.b16 %v9286, %v9284
    %v9383 = vunpack.c.l.b16 %v4056
    %v9384 = vunpack.c.l.b16 %v4057
    %v9385 = vunpack.c.l.b16 %v4058
    %v9386 = vunpack.c.l.b16 %v4059
    %v9387 = vunpack.c.l.b16 %v4060
    %v9388 = vunpack.c.l.b16 %v4061
    %v9389 = vunpack.c.l.b16 %v4062
    %v9390 = vunpack.c.l.b16 %v4063
    %v9391 = vunpack.c.l.b16 %v4064
    %v9392 = vunpack.c.l.b16 %v4065
    %v9393 = vunpack.c.l.b16 %v4066
    %v9394 = vunpack.c.l.b16 %v4067
    %v9395 = vunpack.c.l.b16 %v4068
    %v9396 = vunpack.c.l.b16 %v4069
    %v9397 = vunpack.c.l.b16 %v4070
    %v9398 = vunpack.c.l.b16 %v4071
    %v9399 = vunpack.c.l.b16 %v4072
    %v9400 = vunpack.c.l.b16 %v4073
    %v9401 = vunpack.c.l.b16 %v4074
    %v9402 = vunpack.c.l.b16 %v4075
    %v9403 = vunpack.c.l.b16 %v4076
    %v9404 = vunpack.c.l.b16 %v4077
    %v9405 = vunpack.c.l.b16 %v4078
    %v9406 = vunpack.c.l.b16 %v4079
    %v9407 = vunpack.c.l.b16 %v4080
    %v9408 = vunpack.c.l.b16 %v4081
    %v9409 = vunpack.c.l.b16 %v4082
    %v9410 = vunpack.c.l.b16 %v4083
    %v9411 = vunpack.c.l.b16 %v4084
    %v9412 = vunpack.c.l.b16 %v4085
    %v9413 = vunpack.c.l.b16 %v4086
    %v9414 = vunpack.c.l.b16 %v4087
    %v9415 = vpack.c.b16 %v9384, %v9383
    %v9416 = vpack.c.b16 %v9386, %v9385
    %v9417 = vpack.c.b16 %v9388, %v9387
    %v9418 = vpack.c.b16 %v9390, %v9389
    %v9419 = vpack.c.b16 %v9392, %v9391
    %v9420 = vpack.c.b16 %v9394, %v9393
    %v9421 = vpack.c.b16 %v9396, %v9395
    %v9422 = vpack.c.b16 %v9398, %v9397
    %v9423 = vpack.c.b16 %v9400, %v9399
    %v9424 = vpack.c.b16 %v9402, %v9401
    %v9425 = vpack.c.b16 %v9404, %v9403
    %v9426 = vpack.c.b16 %v9406, %v9405
    %v9427 = vpack.c.b16 %v9408, %v9407
    %v9428 = vpack.c.b16 %v9410, %v9409
    %v9429 = vpack.c.b16 %v9412, %v9411
    %v9430 = vpack.c.b16 %v9414, %v9413
    %9447 = vmatpush.bf16.msra.mxu0 %v9422
    %9448 = vmatpush.bf16.msra.mxu0 %v9421
    %9449 = vmatpush.bf16.msra.mxu0 %v9420
    %9450 = vmatpush.bf16.msra.mxu0 %v9419
    %9451 = vmatpush.bf16.msra.mxu0 %v9418
    %9452 = vmatpush.bf16.msra.mxu0 %v9417
    %9453 = vmatpush.bf16.msra.mxu0 %v9416
    %9454 = vmatpush.bf16.msra.mxu0 %v9415
    %9455 = vmatmul.bf16.gmra.mxu0 %v9287
    %v9456 = vpop.f32.mrf.mxu0
    %v9457 = vadd.f32 0.0, %v9456
    %v9458 = vpop.f32.mrf.mxu0
    %v9459 = vadd.f32 0.0, %v9458
    %9460 = vmatmul.bf16.gmra.mxu0 %v9289
    %v9461 = vpop.f32.mrf.mxu0
    %v9462 = vadd.f32 0.0, %v9461
    %v9463 = vpop.f32.mrf.mxu0
    %v9464 = vadd.f32 0.0, %v9463
    %9465 = vmatmul.bf16.gmra.mxu0 %v9291
    %v9466 = vpop.f32.mrf.mxu0
    %v9467 = vadd.f32 0.0, %v9466
    %v9468 = vpop.f32.mrf.mxu0
    %v9469 = vadd.f32 0.0, %v9468
    %9470 = vmatmul.bf16.gmra.mxu0 %v9293
    %v9471 = vpop.f32.mrf.mxu0
    %v9472 = vadd.f32 0.0, %v9471
    %v9473 = vpop.f32.mrf.mxu0
    %v9474 = vadd.f32 0.0, %v9473
    %9475 = vmatmul.bf16.gmra.mxu0 %v9295
    %v9476 = vpop.f32.mrf.mxu0
    %v9477 = vadd.f32 0.0, %v9476
    %v9478 = vpop.f32.mrf.mxu0
    %v9479 = vadd.f32 0.0, %v9478
    %9480 = vmatmul.bf16.gmra.mxu0 %v9297
    %v9481 = vpop.f32.mrf.mxu0
    %v9482 = vadd.f32 0.0, %v9481
    %v9483 = vpop.f32.mrf.mxu0
    %v9484 = vadd.f32 0.0, %v9483
    %9485 = vmatmul.bf16.gmra.mxu0 %v9299
    %v9486 = vpop.f32.mrf.mxu0
    %v9487 = vadd.f32 0.0, %v9486
    %v9488 = vpop.f32.mrf.mxu0
    %v9489 = vadd.f32 0.0, %v9488
    %9490 = vmatmul.bf16.gmra.mxu0 %v9301
    %v9491 = vpop.f32.mrf.mxu0
    %v9492 = vadd.f32 0.0, %v9491
    %v9493 = vpop.f32.mrf.mxu0
    %v9494 = vadd.f32 0.0, %v9493
    %9495 = vmatmul.bf16.gmra.mxu0 %v9303
    %v9496 = vpop.f32.mrf.mxu0
    %v9497 = vadd.f32 0.0, %v9496
    %v9498 = vpop.f32.mrf.mxu0
    %v9499 = vadd.f32 0.0, %v9498
    %9500 = vmatmul.bf16.gmra.mxu0 %v9305
    %v9501 = vpop.f32.mrf.mxu0
    %v9502 = vadd.f32 0.0, %v9501
    %v9503 = vpop.f32.mrf.mxu0
    %v9504 = vadd.f32 0.0, %v9503
    %9505 = vmatmul.bf16.gmra.mxu0 %v9307
    %v9506 = vpop.f32.mrf.mxu0
    %v9507 = vadd.f32 0.0, %v9506
    %v9508 = vpop.f32.mrf.mxu0
    %v9509 = vadd.f32 0.0, %v9508
    %9510 = vmatmul.bf16.gmra.mxu0 %v9309
    %v9511 = vpop.f32.mrf.mxu0
    %v9512 = vadd.f32 0.0, %v9511
    %v9513 = vpop.f32.mrf.mxu0
    %v9514 = vadd.f32 0.0, %v9513
    %9515 = vmatmul.bf16.gmra.mxu0 %v9311
    %v9516 = vpop.f32.mrf.mxu0
    %v9517 = vadd.f32 0.0, %v9516
    %v9518 = vpop.f32.mrf.mxu0
    %v9519 = vadd.f32 0.0, %v9518
    %9520 = vmatmul.bf16.gmra.mxu0 %v9313
    %v9521 = vpop.f32.mrf.mxu0
    %v9522 = vadd.f32 0.0, %v9521
    %v9523 = vpop.f32.mrf.mxu0
    %v9524 = vadd.f32 0.0, %v9523
    %9525 = vmatmul.bf16.gmra.mxu0 %v9315
    %v9526 = vpop.f32.mrf.mxu0
    %v9527 = vadd.f32 0.0, %v9526
    %v9528 = vpop.f32.mrf.mxu0
    %v9529 = vadd.f32 0.0, %v9528
    %9530 = vmatmul.bf16.gmra.mxu0 %v9317
    %v9531 = vpop.f32.mrf.mxu0
    %v9532 = vadd.f32 0.0, %v9531
    %v9533 = vpop.f32.mrf.mxu0
    %v9534 = vadd.f32 0.0, %v9533
    %9535 = vdwg.mxu0
    %9536 = vmatpush.bf16.msra.mxu0 %v9430
    %9537 = vmatpush.bf16.msra.mxu0 %v9429
    %9538 = vmatpush.bf16.msra.mxu0 %v9428
    %9539 = vmatpush.bf16.msra.mxu0 %v9427
    %9540 = vmatpush.bf16.msra.mxu0 %v9426
    %9541 = vmatpush.bf16.msra.mxu0 %v9425
    %9542 = vmatpush.bf16.msra.mxu0 %v9424
    %9543 = vmatpush.bf16.msra.mxu0 %v9423
    %9544 = vmatmul.bf16.gmra.mxu0 %v9288
    %v9545 = vpop.f32.mrf.mxu0
    %v9546 = vadd.f32 %v9457, %v9545
    %v9547 = vpop.f32.mrf.mxu0
    %v9548 = vadd.f32 %v9459, %v9547
    %9549 = vmatmul.bf16.gmra.mxu0 %v9290
    %v9550 = vpop.f32.mrf.mxu0
    %v9551 = vadd.f32 %v9462, %v9550
    %v9552 = vpop.f32.mrf.mxu0
    %v9553 = vadd.f32 %v9464, %v9552
    %9554 = vmatmul.bf16.gmra.mxu0 %v9292
    %v9555 = vpop.f32.mrf.mxu0
    %v9556 = vadd.f32 %v9467, %v9555
    %v9557 = vpop.f32.mrf.mxu0
    %v9558 = vadd.f32 %v9469, %v9557
    %9559 = vmatmul.bf16.gmra.mxu0 %v9294
    %v9560 = vpop.f32.mrf.mxu0
    %v9561 = vadd.f32 %v9472, %v9560
    %v9562 = vpop.f32.mrf.mxu0
    %v9563 = vadd.f32 %v9474, %v9562
    %9564 = vmatmul.bf16.gmra.mxu0 %v9296
    %v9565 = vpop.f32.mrf.mxu0
    %v9566 = vadd.f32 %v9477, %v9565
    %v9567 = vpop.f32.mrf.mxu0
    %v9568 = vadd.f32 %v9479, %v9567
    %9569 = vmatmul.bf16.gmra.mxu0 %v9298
    %v9570 = vpop.f32.mrf.mxu0
    %v9571 = vadd.f32 %v9482, %v9570
    %v9572 = vpop.f32.mrf.mxu0
    %v9573 = vadd.f32 %v9484, %v9572
    %9574 = vmatmul.bf16.gmra.mxu0 %v9300
    %v9575 = vpop.f32.mrf.mxu0
    %v9576 = vadd.f32 %v9487, %v9575
    %v9577 = vpop.f32.mrf.mxu0
    %v9578 = vadd.f32 %v9489, %v9577
    %9579 = vmatmul.bf16.gmra.mxu0 %v9302
    %v9580 = vpop.f32.mrf.mxu0
    %v9581 = vadd.f32 %v9492, %v9580
    %v9582 = vpop.f32.mrf.mxu0
    %v9583 = vadd.f32 %v9494, %v9582
    %9584 = vmatmul.bf16.gmra.mxu0 %v9304
    %v9585 = vpop.f32.mrf.mxu0
    %v9586 = vadd.f32 %v9497, %v9585
    %v9587 = vpop.f32.mrf.mxu0
    %v9588 = vadd.f32 %v9499, %v9587
    %9589 = vmatmul.bf16.gmra.mxu0 %v9306
    %v9590 = vpop.f32.mrf.mxu0
    %v9591 = vadd.f32 %v9502, %v9590
    %v9592 = vpop.f32.mrf.mxu0
    %v9593 = vadd.f32 %v9504, %v9592
    %9594 = vmatmul.bf16.gmra.mxu0 %v9308
    %v9595 = vpop.f32.mrf.mxu0
    %v9596 = vadd.f32 %v9507, %v9595
    %v9597 = vpop.f32.mrf.mxu0
    %v9598 = vadd.f32 %v9509, %v9597
    %9599 = vmatmul.bf16.gmra.mxu0 %v9310
    %v9600 = vpop.f32.mrf.mxu0
    %v9601 = vadd.f32 %v9512, %v9600
    %v9602 = vpop.f32.mrf.mxu0
    %v9603 = vadd.f32 %v9514, %v9602
    %9604 = vmatmul.bf16.gmra.mxu0 %v9312
    %v9605 = vpop.f32.mrf.mxu0
    %v9606 = vadd.f32 %v9517, %v9605
    %v9607 = vpop.f32.mrf.mxu0
    %v9608 = vadd.f32 %v9519, %v9607
    %9609 = vmatmul.bf16.gmra.mxu0 %v9314
    %v9610 = vpop.f32.mrf.mxu0
    %v9611 = vadd.f32 %v9522, %v9610
    %v9612 = vpop.f32.mrf.mxu0
    %v9613 = vadd.f32 %v9524, %v9612
    %9614 = vmatmul.bf16.gmra.mxu0 %v9316
    %v9615 = vpop.f32.mrf.mxu0
    %v9616 = vadd.f32 %v9527, %v9615
    %v9617 = vpop.f32.mrf.mxu0
    %v9618 = vadd.f32 %v9529, %v9617
    %9619 = vmatmul.bf16.gmra.mxu0 %v9318
    %v9620 = vpop.f32.mrf.mxu0
    %v9621 = vadd.f32 %v9532, %v9620
    %v9622 = vpop.f32.mrf.mxu0
    %v9623 = vadd.f32 %v9534, %v9622
    %9624 = vdwg.mxu0
    %v9625 = vpack.c.bf16 %v8244, %v8244
    %v9626 = vpack.c.bf16 %v8246, %v8246
    %v9627 = vpack.c.bf16 %v8249, %v8249
    %v9628 = vpack.c.bf16 %v8251, %v8251
    %v9629 = vpack.c.bf16 %v8254, %v8254
    %v9630 = vpack.c.bf16 %v8256, %v8256
    %v9631 = vpack.c.bf16 %v8259, %v8259
    %v9632 = vpack.c.bf16 %v8261, %v8261
    %v9633 = vpack.c.bf16 %v8264, %v8264
    %v9634 = vpack.c.bf16 %v8266, %v8266
    %v9635 = vpack.c.bf16 %v8269, %v8269
    %v9636 = vpack.c.bf16 %v8271, %v8271
    %v9637 = vpack.c.bf16 %v8274, %v8274
    %v9638 = vpack.c.bf16 %v8276, %v8276
    %v9639 = vpack.c.bf16 %v8279, %v8279
    %v9640 = vpack.c.bf16 %v8281, %v8281
    %v9641 = vpack.c.bf16 %v8284, %v8284
    %v9642 = vpack.c.bf16 %v8286, %v8286
    %v9643 = vpack.c.bf16 %v8289, %v8289
    %v9644 = vpack.c.bf16 %v8291, %v8291
    %v9645 = vpack.c.bf16 %v8294, %v8294
    %v9646 = vpack.c.bf16 %v8296, %v8296
    %v9647 = vpack.c.bf16 %v8299, %v8299
    %v9648 = vpack.c.bf16 %v8301, %v8301
    %v9649 = vpack.c.bf16 %v8304, %v8304
    %v9650 = vpack.c.bf16 %v8306, %v8306
    %v9651 = vpack.c.bf16 %v8309, %v8309
    %v9652 = vpack.c.bf16 %v8311, %v8311
    %v9653 = vpack.c.bf16 %v8314, %v8314
    %v9654 = vpack.c.bf16 %v8316, %v8316
    %v9655 = vpack.c.bf16 %v8319, %v8319
    %v9656 = vpack.c.bf16 %v8321, %v8321
    %v9657 = vpack.c.bf16 %v8678, %v8678
    %v9658 = vpack.c.bf16 %v8680, %v8680
    %v9659 = vpack.c.bf16 %v8683, %v8683
    %v9660 = vpack.c.bf16 %v8685, %v8685
    %v9661 = vpack.c.bf16 %v8688, %v8688
    %v9662 = vpack.c.bf16 %v8690, %v8690
    %v9663 = vpack.c.bf16 %v8693, %v8693
    %v9664 = vpack.c.bf16 %v8695, %v8695
    %v9665 = vpack.c.bf16 %v8698, %v8698
    %v9666 = vpack.c.bf16 %v8700, %v8700
    %v9667 = vpack.c.bf16 %v8703, %v8703
    %v9668 = vpack.c.bf16 %v8705, %v8705
    %v9669 = vpack.c.bf16 %v8708, %v8708
    %v9670 = vpack.c.bf16 %v8710, %v8710
    %v9671 = vpack.c.bf16 %v8713, %v8713
    %v9672 = vpack.c.bf16 %v8715, %v8715
    %v9673 = vpack.c.bf16 %v8718, %v8718
    %v9674 = vpack.c.bf16 %v8720, %v8720
    %v9675 = vpack.c.bf16 %v8723, %v8723
    %v9676 = vpack.c.bf16 %v8725, %v8725
    %v9677 = vpack.c.bf16 %v8728, %v8728
    %v9678 = vpack.c.bf16 %v8730, %v8730
    %v9679 = vpack.c.bf16 %v8733, %v8733
    %v9680 = vpack.c.bf16 %v8735, %v8735
    %v9681 = vpack.c.bf16 %v8738, %v8738
    %v9682 = vpack.c.bf16 %v8740, %v8740
    %v9683 = vpack.c.bf16 %v8743, %v8743
    %v9684 = vpack.c.bf16 %v8745, %v8745
    %v9685 = vpack.c.bf16 %v8748, %v8748
    %v9686 = vpack.c.bf16 %v8750, %v8750
    %v9687 = vpack.c.bf16 %v8753, %v8753
    %v9688 = vpack.c.bf16 %v8755, %v8755
    %v9689 = vpack.c.bf16 %v9112, %v9112
    %v9690 = vpack.c.bf16 %v9114, %v9114
    %v9691 = vpack.c.bf16 %v9117, %v9117
    %v9692 = vpack.c.bf16 %v9119, %v9119
    %v9693 = vpack.c.bf16 %v9122, %v9122
    %v9694 = vpack.c.bf16 %v9124, %v9124
    %v9695 = vpack.c.bf16 %v9127, %v9127
    %v9696 = vpack.c.bf16 %v9129, %v9129
    %v9697 = vpack.c.bf16 %v9132, %v9132
    %v9698 = vpack.c.bf16 %v9134, %v9134
    %v9699 = vpack.c.bf16 %v9137, %v9137
    %v9700 = vpack.c.bf16 %v9139, %v9139
    %v9701 = vpack.c.bf16 %v9142, %v9142
    %v9702 = vpack.c.bf16 %v9144, %v9144
    %v9703 = vpack.c.bf16 %v9147, %v9147
    %v9704 = vpack.c.bf16 %v9149, %v9149
    %v9705 = vpack.c.bf16 %v9152, %v9152
    %v9706 = vpack.c.bf16 %v9154, %v9154
    %v9707 = vpack.c.bf16 %v9157, %v9157
    %v9708 = vpack.c.bf16 %v9159, %v9159
    %v9709 = vpack.c.bf16 %v9162, %v9162
    %v9710 = vpack.c.bf16 %v9164, %v9164
    %v9711 = vpack.c.bf16 %v9167, %v9167
    %v9712 = vpack.c.bf16 %v9169, %v9169
    %v9713 = vpack.c.bf16 %v9172, %v9172
    %v9714 = vpack.c.bf16 %v9174, %v9174
    %v9715 = vpack.c.bf16 %v9177, %v9177
    %v9716 = vpack.c.bf16 %v9179, %v9179
    %v9717 = vpack.c.bf16 %v9182, %v9182
    %v9718 = vpack.c.bf16 %v9184, %v9184
    %v9719 = vpack.c.bf16 %v9187, %v9187
    %v9720 = vpack.c.bf16 %v9189, %v9189
    %v9721 = vpack.c.bf16 %v9546, %v9546
    %v9722 = vpack.c.bf16 %v9548, %v9548
    %v9723 = vpack.c.bf16 %v9551, %v9551
    %v9724 = vpack.c.bf16 %v9553, %v9553
    %v9725 = vpack.c.bf16 %v9556, %v9556
    %v9726 = vpack.c.bf16 %v9558, %v9558
    %v9727 = vpack.c.bf16 %v9561, %v9561
    %v9728 = vpack.c.bf16 %v9563, %v9563
    %v9729 = vpack.c.bf16 %v9566, %v9566
    %v9730 = vpack.c.bf16 %v9568, %v9568
    %v9731 = vpack.c.bf16 %v9571, %v9571
    %v9732 = vpack.c.bf16 %v9573, %v9573
    %v9733 = vpack.c.bf16 %v9576, %v9576
    %v9734 = vpack.c.bf16 %v9578, %v9578
    %v9735 = vpack.c.bf16 %v9581, %v9581
    %v9736 = vpack.c.bf16 %v9583, %v9583
    %v9737 = vpack.c.bf16 %v9586, %v9586
    %v9738 = vpack.c.bf16 %v9588, %v9588
    %v9739 = vpack.c.bf16 %v9591, %v9591
    %v9740 = vpack.c.bf16 %v9593, %v9593
    %v9741 = vpack.c.bf16 %v9596, %v9596
    %v9742 = vpack.c.bf16 %v9598, %v9598
    %v9743 = vpack.c.bf16 %v9601, %v9601
    %v9744 = vpack.c.bf16 %v9603, %v9603
    %v9745 = vpack.c.bf16 %v9606, %v9606
    %v9746 = vpack.c.bf16 %v9608, %v9608
    %v9747 = vpack.c.bf16 %v9611, %v9611
    %v9748 = vpack.c.bf16 %v9613, %v9613
    %v9749 = vpack.c.bf16 %v9616, %v9616
    %v9750 = vpack.c.bf16 %v9618, %v9618
    %v9751 = vpack.c.bf16 %v9621, %v9621
    %v9752 = vpack.c.bf16 %v9623, %v9623
    %v9754 = vperm.slane %v4104, 0
    %v9884 = vunpack.c.l.b16 %v9625
    %v9885 = vunpack.c.l.b16 %v9626
    %v9886 = vunpack.c.l.b16 %v9627
    %v9887 = vunpack.c.l.b16 %v9628
    %v9888 = vunpack.c.l.b16 %v9629
    %v9889 = vunpack.c.l.b16 %v9630
    %v9890 = vunpack.c.l.b16 %v9631
    %v9891 = vunpack.c.l.b16 %v9632
    %v9892 = vunpack.c.l.b16 %v9633
    %v9893 = vunpack.c.l.b16 %v9634
    %v9894 = vunpack.c.l.b16 %v9635
    %v9895 = vunpack.c.l.b16 %v9636
    %v9896 = vunpack.c.l.b16 %v9637
    %v9897 = vunpack.c.l.b16 %v9638
    %v9898 = vunpack.c.l.b16 %v9639
    %v9899 = vunpack.c.l.b16 %v9640
    %v9900 = vunpack.c.l.b16 %v9641
    %v9901 = vunpack.c.l.b16 %v9642
    %v9902 = vunpack.c.l.b16 %v9643
    %v9903 = vunpack.c.l.b16 %v9644
    %v9904 = vunpack.c.l.b16 %v9645
    %v9905 = vunpack.c.l.b16 %v9646
    %v9906 = vunpack.c.l.b16 %v9647
    %v9907 = vunpack.c.l.b16 %v9648
    %v9908 = vunpack.c.l.b16 %v9649
    %v9909 = vunpack.c.l.b16 %v9650
    %v9910 = vunpack.c.l.b16 %v9651
    %v9911 = vunpack.c.l.b16 %v9652
    %v9912 = vunpack.c.l.b16 %v9653
    %v9913 = vunpack.c.l.b16 %v9654
    %v9914 = vunpack.c.l.b16 %v9655
    %v9915 = vunpack.c.l.b16 %v9656
    %v9916 = vunpack.c.l.b16 %v9657
    %v9917 = vunpack.c.l.b16 %v9658
    %v9918 = vunpack.c.l.b16 %v9659
    %v9919 = vunpack.c.l.b16 %v9660
    %v9920 = vunpack.c.l.b16 %v9661
    %v9921 = vunpack.c.l.b16 %v9662
    %v9922 = vunpack.c.l.b16 %v9663
    %v9923 = vunpack.c.l.b16 %v9664
    %v9924 = vunpack.c.l.b16 %v9665
    %v9925 = vunpack.c.l.b16 %v9666
    %v9926 = vunpack.c.l.b16 %v9667
    %v9927 = vunpack.c.l.b16 %v9668
    %v9928 = vunpack.c.l.b16 %v9669
    %v9929 = vunpack.c.l.b16 %v9670
    %v9930 = vunpack.c.l.b16 %v9671
    %v9931 = vunpack.c.l.b16 %v9672
    %v9932 = vunpack.c.l.b16 %v9673
    %v9933 = vunpack.c.l.b16 %v9674
    %v9934 = vunpack.c.l.b16 %v9675
    %v9935 = vunpack.c.l.b16 %v9676
    %v9936 = vunpack.c.l.b16 %v9677
    %v9937 = vunpack.c.l.b16 %v9678
    %v9938 = vunpack.c.l.b16 %v9679
    %v9939 = vunpack.c.l.b16 %v9680
    %v9940 = vunpack.c.l.b16 %v9681
    %v9941 = vunpack.c.l.b16 %v9682
    %v9942 = vunpack.c.l.b16 %v9683
    %v9943 = vunpack.c.l.b16 %v9684
    %v9944 = vunpack.c.l.b16 %v9685
    %v9945 = vunpack.c.l.b16 %v9686
    %v9946 = vunpack.c.l.b16 %v9687
    %v9947 = vunpack.c.l.b16 %v9688
    %v9948 = vunpack.c.l.b16 %v9689
    %v9949 = vunpack.c.l.b16 %v9690
    %v9950 = vunpack.c.l.b16 %v9691
    %v9951 = vunpack.c.l.b16 %v9692
    %v9952 = vunpack.c.l.b16 %v9693
    %v9953 = vunpack.c.l.b16 %v9694
    %v9954 = vunpack.c.l.b16 %v9695
    %v9955 = vunpack.c.l.b16 %v9696
    %v9956 = vunpack.c.l.b16 %v9697
    %v9957 = vunpack.c.l.b16 %v9698
    %v9958 = vunpack.c.l.b16 %v9699
    %v9959 = vunpack.c.l.b16 %v9700
    %v9960 = vunpack.c.l.b16 %v9701
    %v9961 = vunpack.c.l.b16 %v9702
    %v9962 = vunpack.c.l.b16 %v9703
    %v9963 = vunpack.c.l.b16 %v9704
    %v9964 = vunpack.c.l.b16 %v9705
    %v9965 = vunpack.c.l.b16 %v9706
    %v9966 = vunpack.c.l.b16 %v9707
    %v9967 = vunpack.c.l.b16 %v9708
    %v9968 = vunpack.c.l.b16 %v9709
    %v9969 = vunpack.c.l.b16 %v9710
    %v9970 = vunpack.c.l.b16 %v9711
    %v9971 = vunpack.c.l.b16 %v9712
    %v9972 = vunpack.c.l.b16 %v9713
    %v9973 = vunpack.c.l.b16 %v9714
    %v9974 = vunpack.c.l.b16 %v9715
    %v9975 = vunpack.c.l.b16 %v9716
    %v9976 = vunpack.c.l.b16 %v9717
    %v9977 = vunpack.c.l.b16 %v9718
    %v9978 = vunpack.c.l.b16 %v9719
    %v9979 = vunpack.c.l.b16 %v9720
    %v9980 = vunpack.c.l.b16 %v9721
    %v9981 = vunpack.c.l.b16 %v9722
    %v9982 = vunpack.c.l.b16 %v9723
    %v9983 = vunpack.c.l.b16 %v9724
    %v9984 = vunpack.c.l.b16 %v9725
    %v9985 = vunpack.c.l.b16 %v9726
    %v9986 = vunpack.c.l.b16 %v9727
    %v9987 = vunpack.c.l.b16 %v9728
    %v9988 = vunpack.c.l.b16 %v9729
    %v9989 = vunpack.c.l.b16 %v9730
    %v9990 = vunpack.c.l.b16 %v9731
    %v9991 = vunpack.c.l.b16 %v9732
    %v9992 = vunpack.c.l.b16 %v9733
    %v9993 = vunpack.c.l.b16 %v9734
    %v9994 = vunpack.c.l.b16 %v9735
    %v9995 = vunpack.c.l.b16 %v9736
    %v9996 = vunpack.c.l.b16 %v9737
    %v9997 = vunpack.c.l.b16 %v9738
    %v9998 = vunpack.c.l.b16 %v9739
    %v9999 = vunpack.c.l.b16 %v9740
    %v10000 = vunpack.c.l.b16 %v9741
    %v10001 = vunpack.c.l.b16 %v9742
    %v10002 = vunpack.c.l.b16 %v9743
    %v10003 = vunpack.c.l.b16 %v9744
    %v10004 = vunpack.c.l.b16 %v9745
    %v10005 = vunpack.c.l.b16 %v9746
    %v10006 = vunpack.c.l.b16 %v9747
    %v10007 = vunpack.c.l.b16 %v9748
    %v10008 = vunpack.c.l.b16 %v9749
    %v10009 = vunpack.c.l.b16 %v9750
    %v10010 = vunpack.c.l.b16 %v9751
    %v10011 = vunpack.c.l.b16 %v9752
    %v10012 = vpack.c.b16 %v9885, %v9884
    %v10013 = vpack.c.b16 %v9887, %v9886
    %v10014 = vpack.c.b16 %v9889, %v9888
    %v10015 = vpack.c.b16 %v9891, %v9890
    %v10016 = vpack.c.b16 %v9893, %v9892
    %v10017 = vpack.c.b16 %v9895, %v9894
    %v10018 = vpack.c.b16 %v9897, %v9896
    %v10019 = vpack.c.b16 %v9899, %v9898
    %v10020 = vpack.c.b16 %v9901, %v9900
    %v10021 = vpack.c.b16 %v9903, %v9902
    %v10022 = vpack.c.b16 %v9905, %v9904
    %v10023 = vpack.c.b16 %v9907, %v9906
    %v10024 = vpack.c.b16 %v9909, %v9908
    %v10025 = vpack.c.b16 %v9911, %v9910
    %v10026 = vpack.c.b16 %v9913, %v9912
    %v10027 = vpack.c.b16 %v9915, %v9914
    %v10028 = vpack.c.b16 %v9917, %v9916
    %v10029 = vpack.c.b16 %v9919, %v9918
    %v10030 = vpack.c.b16 %v9921, %v9920
    %v10031 = vpack.c.b16 %v9923, %v9922
    %v10032 = vpack.c.b16 %v9925, %v9924
    %v10033 = vpack.c.b16 %v9927, %v9926
    %v10034 = vpack.c.b16 %v9929, %v9928
    %v10035 = vpack.c.b16 %v9931, %v9930
    %v10036 = vpack.c.b16 %v9933, %v9932
    %v10037 = vpack.c.b16 %v9935, %v9934
    %v10038 = vpack.c.b16 %v9937, %v9936
    %v10039 = vpack.c.b16 %v9939, %v9938
    %v10040 = vpack.c.b16 %v9941, %v9940
    %v10041 = vpack.c.b16 %v9943, %v9942
    %v10042 = vpack.c.b16 %v9945, %v9944
    %v10043 = vpack.c.b16 %v9947, %v9946
    %v10044 = vpack.c.b16 %v9949, %v9948
    %v10045 = vpack.c.b16 %v9951, %v9950
    %v10046 = vpack.c.b16 %v9953, %v9952
    %v10047 = vpack.c.b16 %v9955, %v9954
    %v10048 = vpack.c.b16 %v9957, %v9956
    %v10049 = vpack.c.b16 %v9959, %v9958
    %v10050 = vpack.c.b16 %v9961, %v9960
    %v10051 = vpack.c.b16 %v9963, %v9962
    %v10052 = vpack.c.b16 %v9965, %v9964
    %v10053 = vpack.c.b16 %v9967, %v9966
    %v10054 = vpack.c.b16 %v9969, %v9968
    %v10055 = vpack.c.b16 %v9971, %v9970
    %v10056 = vpack.c.b16 %v9973, %v9972
    %v10057 = vpack.c.b16 %v9975, %v9974
    %v10058 = vpack.c.b16 %v9977, %v9976
    %v10059 = vpack.c.b16 %v9979, %v9978
    %v10060 = vpack.c.b16 %v9981, %v9980
    %v10061 = vpack.c.b16 %v9983, %v9982
    %v10062 = vpack.c.b16 %v9985, %v9984
    %v10063 = vpack.c.b16 %v9987, %v9986
    %v10064 = vpack.c.b16 %v9989, %v9988
    %v10065 = vpack.c.b16 %v9991, %v9990
    %v10066 = vpack.c.b16 %v9993, %v9992
    %v10067 = vpack.c.b16 %v9995, %v9994
    %v10068 = vpack.c.b16 %v9997, %v9996
    %v10069 = vpack.c.b16 %v9999, %v9998
    %v10070 = vpack.c.b16 %v10001, %v10000
    %v10071 = vpack.c.b16 %v10003, %v10002
    %v10072 = vpack.c.b16 %v10005, %v10004
    %v10073 = vpack.c.b16 %v10007, %v10006
    %v10074 = vpack.c.b16 %v10009, %v10008
    %v10075 = vpack.c.b16 %v10011, %v10010
    %v10156 = vunpack.c.l.b16 %v4088
    %v10157 = vunpack.c.l.b16 %v4089
    %v10158 = vunpack.c.l.b16 %v4090
    %v10159 = vunpack.c.l.b16 %v4091
    %v10160 = vunpack.c.l.b16 %v4092
    %v10161 = vunpack.c.l.b16 %v4093
    %v10162 = vunpack.c.l.b16 %v4094
    %v10163 = vunpack.c.l.b16 %v4095
    %v10164 = vunpack.c.l.b16 %v4096
    %v10165 = vunpack.c.l.b16 %v4097
    %v10166 = vunpack.c.l.b16 %v4098
    %v10167 = vunpack.c.l.b16 %v4099
    %v10168 = vunpack.c.l.b16 %v4100
    %v10169 = vunpack.c.l.b16 %v4101
    %v10170 = vunpack.c.l.b16 %v4102
    %v10171 = vunpack.c.l.b16 %v4103
    %v10172 = vpack.c.b16 %v10157, %v10156
    %v10173 = vpack.c.b16 %v10159, %v10158
    %v10174 = vpack.c.b16 %v10161, %v10160
    %v10175 = vpack.c.b16 %v10163, %v10162
    %v10176 = vpack.c.b16 %v10165, %v10164
    %v10177 = vpack.c.b16 %v10167, %v10166
    %v10178 = vpack.c.b16 %v10169, %v10168
    %v10179 = vpack.c.b16 %v10171, %v10170
    %10188 = vmatpush.bf16.msra.mxu0 %v10179
    %10189 = vmatpush.bf16.msra.mxu0 %v10178
    %10190 = vmatpush.bf16.msra.mxu0 %v10177
    %10191 = vmatpush.bf16.msra.mxu0 %v10176
    %10192 = vmatpush.bf16.msra.mxu0 %v10175
    %10193 = vmatpush.bf16.msra.mxu0 %v10174
    %10194 = vmatpush.bf16.msra.mxu0 %v10173
    %10195 = vmatpush.bf16.msra.mxu0 %v10172
    %10196 = vmatmul.bf16.gmra.mxu0 %v10012
    %v10197 = vpop.f32.mrf.mxu0
    %v10198 = vadd.f32 %v9754, %v10197
    %v10199 = vpop.f32.mrf.mxu0
    %v10200 = vadd.f32 %v9754, %v10199
    %10201 = vmatmul.bf16.gmra.mxu0 %v10013
    %v10202 = vpop.f32.mrf.mxu0
    %v10203 = vadd.f32 %v9754, %v10202
    %v10204 = vpop.f32.mrf.mxu0
    %v10205 = vadd.f32 %v9754, %v10204
    %10206 = vmatmul.bf16.gmra.mxu0 %v10014
    %v10207 = vpop.f32.mrf.mxu0
    %v10208 = vadd.f32 %v9754, %v10207
    %v10209 = vpop.f32.mrf.mxu0
    %v10210 = vadd.f32 %v9754, %v10209
    %10211 = vmatmul.bf16.gmra.mxu0 %v10015
    %v10212 = vpop.f32.mrf.mxu0
    %v10213 = vadd.f32 %v9754, %v10212
    %v10214 = vpop.f32.mrf.mxu0
    %v10215 = vadd.f32 %v9754, %v10214
    %10216 = vmatmul.bf16.gmra.mxu0 %v10016
    %v10217 = vpop.f32.mrf.mxu0
    %v10218 = vadd.f32 %v9754, %v10217
    %v10219 = vpop.f32.mrf.mxu0
    %v10220 = vadd.f32 %v9754, %v10219
    %10221 = vmatmul.bf16.gmra.mxu0 %v10017
    %v10222 = vpop.f32.mrf.mxu0
    %v10223 = vadd.f32 %v9754, %v10222
    %v10224 = vpop.f32.mrf.mxu0
    %v10225 = vadd.f32 %v9754, %v10224
    %10226 = vmatmul.bf16.gmra.mxu0 %v10018
    %v10227 = vpop.f32.mrf.mxu0
    %v10228 = vadd.f32 %v9754, %v10227
    %v10229 = vpop.f32.mrf.mxu0
    %v10230 = vadd.f32 %v9754, %v10229
    %10231 = vmatmul.bf16.gmra.mxu0 %v10019
    %v10232 = vpop.f32.mrf.mxu0
    %v10233 = vadd.f32 %v9754, %v10232
    %v10234 = vpop.f32.mrf.mxu0
    %v10235 = vadd.f32 %v9754, %v10234
    %10236 = vmatmul.bf16.gmra.mxu0 %v10020
    %v10237 = vpop.f32.mrf.mxu0
    %v10238 = vadd.f32 %v9754, %v10237
    %v10239 = vpop.f32.mrf.mxu0
    %v10240 = vadd.f32 %v9754, %v10239
    %10241 = vmatmul.bf16.gmra.mxu0 %v10021
    %v10242 = vpop.f32.mrf.mxu0
    %v10243 = vadd.f32 %v9754, %v10242
    %v10244 = vpop.f32.mrf.mxu0
    %v10245 = vadd.f32 %v9754, %v10244
    %10246 = vmatmul.bf16.gmra.mxu0 %v10022
    %v10247 = vpop.f32.mrf.mxu0
    %v10248 = vadd.f32 %v9754, %v10247
    %v10249 = vpop.f32.mrf.mxu0
    %v10250 = vadd.f32 %v9754, %v10249
    %10251 = vmatmul.bf16.gmra.mxu0 %v10023
    %v10252 = vpop.f32.mrf.mxu0
    %v10253 = vadd.f32 %v9754, %v10252
    %v10254 = vpop.f32.mrf.mxu0
    %v10255 = vadd.f32 %v9754, %v10254
    %10256 = vmatmul.bf16.gmra.mxu0 %v10024
    %v10257 = vpop.f32.mrf.mxu0
    %v10258 = vadd.f32 %v9754, %v10257
    %v10259 = vpop.f32.mrf.mxu0
    %v10260 = vadd.f32 %v9754, %v10259
    %10261 = vmatmul.bf16.gmra.mxu0 %v10025
    %v10262 = vpop.f32.mrf.mxu0
    %v10263 = vadd.f32 %v9754, %v10262
    %v10264 = vpop.f32.mrf.mxu0
    %v10265 = vadd.f32 %v9754, %v10264
    %10266 = vmatmul.bf16.gmra.mxu0 %v10026
    %v10267 = vpop.f32.mrf.mxu0
    %v10268 = vadd.f32 %v9754, %v10267
    %v10269 = vpop.f32.mrf.mxu0
    %v10270 = vadd.f32 %v9754, %v10269
    %10271 = vmatmul.bf16.gmra.mxu0 %v10027
    %v10272 = vpop.f32.mrf.mxu0
    %v10273 = vadd.f32 %v9754, %v10272
    %v10274 = vpop.f32.mrf.mxu0
    %v10275 = vadd.f32 %v9754, %v10274
    %10276 = vmatmul.bf16.gmra.mxu0 %v10028
    %v10277 = vpop.f32.mrf.mxu0
    %v10278 = vadd.f32 %v9754, %v10277
    %v10279 = vpop.f32.mrf.mxu0
    %v10280 = vadd.f32 %v9754, %v10279
    %10281 = vmatmul.bf16.gmra.mxu0 %v10029
    %v10282 = vpop.f32.mrf.mxu0
    %v10283 = vadd.f32 %v9754, %v10282
    %v10284 = vpop.f32.mrf.mxu0
    %v10285 = vadd.f32 %v9754, %v10284
    %10286 = vmatmul.bf16.gmra.mxu0 %v10030
    %v10287 = vpop.f32.mrf.mxu0
    %v10288 = vadd.f32 %v9754, %v10287
    %v10289 = vpop.f32.mrf.mxu0
    %v10290 = vadd.f32 %v9754, %v10289
    %10291 = vmatmul.bf16.gmra.mxu0 %v10031
    %v10292 = vpop.f32.mrf.mxu0
    %v10293 = vadd.f32 %v9754, %v10292
    %v10294 = vpop.f32.mrf.mxu0
    %v10295 = vadd.f32 %v9754, %v10294
    %10296 = vmatmul.bf16.gmra.mxu0 %v10032
    %v10297 = vpop.f32.mrf.mxu0
    %v10298 = vadd.f32 %v9754, %v10297
    %v10299 = vpop.f32.mrf.mxu0
    %v10300 = vadd.f32 %v9754, %v10299
    %10301 = vmatmul.bf16.gmra.mxu0 %v10033
    %v10302 = vpop.f32.mrf.mxu0
    %v10303 = vadd.f32 %v9754, %v10302
    %v10304 = vpop.f32.mrf.mxu0
    %v10305 = vadd.f32 %v9754, %v10304
    %10306 = vmatmul.bf16.gmra.mxu0 %v10034
    %v10307 = vpop.f32.mrf.mxu0
    %v10308 = vadd.f32 %v9754, %v10307
    %v10309 = vpop.f32.mrf.mxu0
    %v10310 = vadd.f32 %v9754, %v10309
    %10311 = vmatmul.bf16.gmra.mxu0 %v10035
    %v10312 = vpop.f32.mrf.mxu0
    %v10313 = vadd.f32 %v9754, %v10312
    %v10314 = vpop.f32.mrf.mxu0
    %v10315 = vadd.f32 %v9754, %v10314
    %10316 = vmatmul.bf16.gmra.mxu0 %v10036
    %v10317 = vpop.f32.mrf.mxu0
    %v10318 = vadd.f32 %v9754, %v10317
    %v10319 = vpop.f32.mrf.mxu0
    %v10320 = vadd.f32 %v9754, %v10319
    %10321 = vmatmul.bf16.gmra.mxu0 %v10037
    %v10322 = vpop.f32.mrf.mxu0
    %v10323 = vadd.f32 %v9754, %v10322
    %v10324 = vpop.f32.mrf.mxu0
    %v10325 = vadd.f32 %v9754, %v10324
    %10326 = vmatmul.bf16.gmra.mxu0 %v10038
    %v10327 = vpop.f32.mrf.mxu0
    %v10328 = vadd.f32 %v9754, %v10327
    %v10329 = vpop.f32.mrf.mxu0
    %v10330 = vadd.f32 %v9754, %v10329
    %10331 = vmatmul.bf16.gmra.mxu0 %v10039
    %v10332 = vpop.f32.mrf.mxu0
    %v10333 = vadd.f32 %v9754, %v10332
    %v10334 = vpop.f32.mrf.mxu0
    %v10335 = vadd.f32 %v9754, %v10334
    %10336 = vmatmul.bf16.gmra.mxu0 %v10040
    %v10337 = vpop.f32.mrf.mxu0
    %v10338 = vadd.f32 %v9754, %v10337
    %v10339 = vpop.f32.mrf.mxu0
    %v10340 = vadd.f32 %v9754, %v10339
    %10341 = vmatmul.bf16.gmra.mxu0 %v10041
    %v10342 = vpop.f32.mrf.mxu0
    %v10343 = vadd.f32 %v9754, %v10342
    %v10344 = vpop.f32.mrf.mxu0
    %v10345 = vadd.f32 %v9754, %v10344
    %10346 = vmatmul.bf16.gmra.mxu0 %v10042
    %v10347 = vpop.f32.mrf.mxu0
    %v10348 = vadd.f32 %v9754, %v10347
    %v10349 = vpop.f32.mrf.mxu0
    %v10350 = vadd.f32 %v9754, %v10349
    %10351 = vmatmul.bf16.gmra.mxu0 %v10043
    %v10352 = vpop.f32.mrf.mxu0
    %v10353 = vadd.f32 %v9754, %v10352
    %v10354 = vpop.f32.mrf.mxu0
    %v10355 = vadd.f32 %v9754, %v10354
    %10356 = vmatmul.bf16.gmra.mxu0 %v10044
    %v10357 = vpop.f32.mrf.mxu0
    %v10358 = vadd.f32 %v9754, %v10357
    %v10359 = vpop.f32.mrf.mxu0
    %v10360 = vadd.f32 %v9754, %v10359
    %10361 = vmatmul.bf16.gmra.mxu0 %v10045
    %v10362 = vpop.f32.mrf.mxu0
    %v10363 = vadd.f32 %v9754, %v10362
    %v10364 = vpop.f32.mrf.mxu0
    %v10365 = vadd.f32 %v9754, %v10364
    %10366 = vmatmul.bf16.gmra.mxu0 %v10046
    %v10367 = vpop.f32.mrf.mxu0
    %v10368 = vadd.f32 %v9754, %v10367
    %v10369 = vpop.f32.mrf.mxu0
    %v10370 = vadd.f32 %v9754, %v10369
    %10371 = vmatmul.bf16.gmra.mxu0 %v10047
    %v10372 = vpop.f32.mrf.mxu0
    %v10373 = vadd.f32 %v9754, %v10372
    %v10374 = vpop.f32.mrf.mxu0
    %v10375 = vadd.f32 %v9754, %v10374
    %10376 = vmatmul.bf16.gmra.mxu0 %v10048
    %v10377 = vpop.f32.mrf.mxu0
    %v10378 = vadd.f32 %v9754, %v10377
    %v10379 = vpop.f32.mrf.mxu0
    %v10380 = vadd.f32 %v9754, %v10379
    %10381 = vmatmul.bf16.gmra.mxu0 %v10049
    %v10382 = vpop.f32.mrf.mxu0
    %v10383 = vadd.f32 %v9754, %v10382
    %v10384 = vpop.f32.mrf.mxu0
    %v10385 = vadd.f32 %v9754, %v10384
    %10386 = vmatmul.bf16.gmra.mxu0 %v10050
    %v10387 = vpop.f32.mrf.mxu0
    %v10388 = vadd.f32 %v9754, %v10387
    %v10389 = vpop.f32.mrf.mxu0
    %v10390 = vadd.f32 %v9754, %v10389
    %10391 = vmatmul.bf16.gmra.mxu0 %v10051
    %v10392 = vpop.f32.mrf.mxu0
    %v10393 = vadd.f32 %v9754, %v10392
    %v10394 = vpop.f32.mrf.mxu0
    %v10395 = vadd.f32 %v9754, %v10394
    %10396 = vmatmul.bf16.gmra.mxu0 %v10052
    %v10397 = vpop.f32.mrf.mxu0
    %v10398 = vadd.f32 %v9754, %v10397
    %v10399 = vpop.f32.mrf.mxu0
    %v10400 = vadd.f32 %v9754, %v10399
    %10401 = vmatmul.bf16.gmra.mxu0 %v10053
    %v10402 = vpop.f32.mrf.mxu0
    %v10403 = vadd.f32 %v9754, %v10402
    %v10404 = vpop.f32.mrf.mxu0
    %v10405 = vadd.f32 %v9754, %v10404
    %10406 = vmatmul.bf16.gmra.mxu0 %v10054
    %v10407 = vpop.f32.mrf.mxu0
    %v10408 = vadd.f32 %v9754, %v10407
    %v10409 = vpop.f32.mrf.mxu0
    %v10410 = vadd.f32 %v9754, %v10409
    %10411 = vmatmul.bf16.gmra.mxu0 %v10055
    %v10412 = vpop.f32.mrf.mxu0
    %v10413 = vadd.f32 %v9754, %v10412
    %v10414 = vpop.f32.mrf.mxu0
    %v10415 = vadd.f32 %v9754, %v10414
    %10416 = vmatmul.bf16.gmra.mxu0 %v10056
    %v10417 = vpop.f32.mrf.mxu0
    %v10418 = vadd.f32 %v9754, %v10417
    %v10419 = vpop.f32.mrf.mxu0
    %v10420 = vadd.f32 %v9754, %v10419
    %10421 = vmatmul.bf16.gmra.mxu0 %v10057
    %v10422 = vpop.f32.mrf.mxu0
    %v10423 = vadd.f32 %v9754, %v10422
    %v10424 = vpop.f32.mrf.mxu0
    %v10425 = vadd.f32 %v9754, %v10424
    %10426 = vmatmul.bf16.gmra.mxu0 %v10058
    %v10427 = vpop.f32.mrf.mxu0
    %v10428 = vadd.f32 %v9754, %v10427
    %v10429 = vpop.f32.mrf.mxu0
    %v10430 = vadd.f32 %v9754, %v10429
    %10431 = vmatmul.bf16.gmra.mxu0 %v10059
    %v10432 = vpop.f32.mrf.mxu0
    %v10433 = vadd.f32 %v9754, %v10432
    %v10434 = vpop.f32.mrf.mxu0
    %v10435 = vadd.f32 %v9754, %v10434
    %10436 = vmatmul.bf16.gmra.mxu0 %v10060
    %v10437 = vpop.f32.mrf.mxu0
    %v10438 = vadd.f32 %v9754, %v10437
    %v10439 = vpop.f32.mrf.mxu0
    %v10440 = vadd.f32 %v9754, %v10439
    %10441 = vmatmul.bf16.gmra.mxu0 %v10061
    %v10442 = vpop.f32.mrf.mxu0
    %v10443 = vadd.f32 %v9754, %v10442
    %v10444 = vpop.f32.mrf.mxu0
    %v10445 = vadd.f32 %v9754, %v10444
    %10446 = vmatmul.bf16.gmra.mxu0 %v10062
    %v10447 = vpop.f32.mrf.mxu0
    %v10448 = vadd.f32 %v9754, %v10447
    %v10449 = vpop.f32.mrf.mxu0
    %v10450 = vadd.f32 %v9754, %v10449
    %10451 = vmatmul.bf16.gmra.mxu0 %v10063
    %v10452 = vpop.f32.mrf.mxu0
    %v10453 = vadd.f32 %v9754, %v10452
    %v10454 = vpop.f32.mrf.mxu0
    %v10455 = vadd.f32 %v9754, %v10454
    %10456 = vmatmul.bf16.gmra.mxu0 %v10064
    %v10457 = vpop.f32.mrf.mxu0
    %v10458 = vadd.f32 %v9754, %v10457
    %v10459 = vpop.f32.mrf.mxu0
    %v10460 = vadd.f32 %v9754, %v10459
    %10461 = vmatmul.bf16.gmra.mxu0 %v10065
    %v10462 = vpop.f32.mrf.mxu0
    %v10463 = vadd.f32 %v9754, %v10462
    %v10464 = vpop.f32.mrf.mxu0
    %v10465 = vadd.f32 %v9754, %v10464
    %10466 = vmatmul.bf16.gmra.mxu0 %v10066
    %v10467 = vpop.f32.mrf.mxu0
    %v10468 = vadd.f32 %v9754, %v10467
    %v10469 = vpop.f32.mrf.mxu0
    %v10470 = vadd.f32 %v9754, %v10469
    %10471 = vmatmul.bf16.gmra.mxu0 %v10067
    %v10472 = vpop.f32.mrf.mxu0
    %v10473 = vadd.f32 %v9754, %v10472
    %v10474 = vpop.f32.mrf.mxu0
    %v10475 = vadd.f32 %v9754, %v10474
    %10476 = vmatmul.bf16.gmra.mxu0 %v10068
    %v10477 = vpop.f32.mrf.mxu0
    %v10478 = vadd.f32 %v9754, %v10477
    %v10479 = vpop.f32.mrf.mxu0
    %v10480 = vadd.f32 %v9754, %v10479
    %10481 = vmatmul.bf16.gmra.mxu0 %v10069
    %v10482 = vpop.f32.mrf.mxu0
    %v10483 = vadd.f32 %v9754, %v10482
    %v10484 = vpop.f32.mrf.mxu0
    %v10485 = vadd.f32 %v9754, %v10484
    %10486 = vmatmul.bf16.gmra.mxu0 %v10070
    %v10487 = vpop.f32.mrf.mxu0
    %v10488 = vadd.f32 %v9754, %v10487
    %v10489 = vpop.f32.mrf.mxu0
    %v10490 = vadd.f32 %v9754, %v10489
    %10491 = vmatmul.bf16.gmra.mxu0 %v10071
    %v10492 = vpop.f32.mrf.mxu0
    %v10493 = vadd.f32 %v9754, %v10492
    %v10494 = vpop.f32.mrf.mxu0
    %v10495 = vadd.f32 %v9754, %v10494
    %10496 = vmatmul.bf16.gmra.mxu0 %v10072
    %v10497 = vpop.f32.mrf.mxu0
    %v10498 = vadd.f32 %v9754, %v10497
    %v10499 = vpop.f32.mrf.mxu0
    %v10500 = vadd.f32 %v9754, %v10499
    %10501 = vmatmul.bf16.gmra.mxu0 %v10073
    %v10502 = vpop.f32.mrf.mxu0
    %v10503 = vadd.f32 %v9754, %v10502
    %v10504 = vpop.f32.mrf.mxu0
    %v10505 = vadd.f32 %v9754, %v10504
    %10506 = vmatmul.bf16.gmra.mxu0 %v10074
    %v10507 = vpop.f32.mrf.mxu0
    %v10508 = vadd.f32 %v9754, %v10507
    %v10509 = vpop.f32.mrf.mxu0
    %v10510 = vadd.f32 %v9754, %v10509
    %10511 = vmatmul.bf16.gmra.mxu0 %v10075
    %v10512 = vpop.f32.mrf.mxu0
    %v10513 = vadd.f32 %v9754, %v10512
    %v10514 = vpop.f32.mrf.mxu0
    %v10515 = vadd.f32 %v9754, %v10514
    %10516 = vdwg.mxu0
    %v10517 = vadd.f32 %v10198, %v141
    %v10518 = vadd.f32 %v10200, %v142
    %v10519 = vadd.f32 %v10203, %v143
    %v10520 = vadd.f32 %v10205, %v144
    %v10521 = vadd.f32 %v10208, %v145
    %v10522 = vadd.f32 %v10210, %v146
    %v10523 = vadd.f32 %v10213, %v147
    %v10524 = vadd.f32 %v10215, %v148
    %v10525 = vadd.f32 %v10218, %v149
    %v10526 = vadd.f32 %v10220, %v150
    %v10527 = vadd.f32 %v10223, %v151
    %v10528 = vadd.f32 %v10225, %v152
    %v10529 = vadd.f32 %v10228, %v153
    %v10530 = vadd.f32 %v10230, %v154
    %v10531 = vadd.f32 %v10233, %v155
    %v10532 = vadd.f32 %v10235, %v156
    %v10533 = vadd.f32 %v10238, %v157
    %v10534 = vadd.f32 %v10240, %v158
    %v10535 = vadd.f32 %v10243, %v159
    %v10536 = vadd.f32 %v10245, %v160
    %v10537 = vadd.f32 %v10248, %v161
    %v10538 = vadd.f32 %v10250, %v162
    %v10539 = vadd.f32 %v10253, %v163
    %v10540 = vadd.f32 %v10255, %v164
    %v10541 = vadd.f32 %v10258, %v165
    %v10542 = vadd.f32 %v10260, %v166
    %v10543 = vadd.f32 %v10263, %v167
    %v10544 = vadd.f32 %v10265, %v168
    %v10545 = vadd.f32 %v10268, %v169
    %v10546 = vadd.f32 %v10270, %v170
    %v10547 = vadd.f32 %v10273, %v171
    %v10548 = vadd.f32 %v10275, %v172
    %v10549 = vadd.f32 %v10278, %v173
    %v10550 = vadd.f32 %v10280, %v174
    %v10551 = vadd.f32 %v10283, %v175
    %v10552 = vadd.f32 %v10285, %v176
    %v10553 = vadd.f32 %v10288, %v177
    %v10554 = vadd.f32 %v10290, %v178
    %v10555 = vadd.f32 %v10293, %v179
    %v10556 = vadd.f32 %v10295, %v180
    %v10557 = vadd.f32 %v10298, %v181
    %v10558 = vadd.f32 %v10300, %v182
    %v10559 = vadd.f32 %v10303, %v183
    %v10560 = vadd.f32 %v10305, %v184
    %v10561 = vadd.f32 %v10308, %v185
    %v10562 = vadd.f32 %v10310, %v186
    %v10563 = vadd.f32 %v10313, %v187
    %v10564 = vadd.f32 %v10315, %v188
    %v10565 = vadd.f32 %v10318, %v189
    %v10566 = vadd.f32 %v10320, %v190
    %v10567 = vadd.f32 %v10323, %v191
    %v10568 = vadd.f32 %v10325, %v192
    %v10569 = vadd.f32 %v10328, %v193
    %v10570 = vadd.f32 %v10330, %v194
    %v10571 = vadd.f32 %v10333, %v195
    %v10572 = vadd.f32 %v10335, %v196
    %v10573 = vadd.f32 %v10338, %v197
    %v10574 = vadd.f32 %v10340, %v198
    %v10575 = vadd.f32 %v10343, %v199
    %v10576 = vadd.f32 %v10345, %v200
    %v10577 = vadd.f32 %v10348, %v201
    %v10578 = vadd.f32 %v10350, %v202
    %v10579 = vadd.f32 %v10353, %v203
    %v10580 = vadd.f32 %v10355, %v204
    %v10581 = vadd.f32 %v10358, %v205
    %v10582 = vadd.f32 %v10360, %v206
    %v10583 = vadd.f32 %v10363, %v207
    %v10584 = vadd.f32 %v10365, %v208
    %v10585 = vadd.f32 %v10368, %v209
    %v10586 = vadd.f32 %v10370, %v210
    %v10587 = vadd.f32 %v10373, %v211
    %v10588 = vadd.f32 %v10375, %v212
    %v10589 = vadd.f32 %v10378, %v213
    %v10590 = vadd.f32 %v10380, %v214
    %v10591 = vadd.f32 %v10383, %v215
    %v10592 = vadd.f32 %v10385, %v216
    %v10593 = vadd.f32 %v10388, %v217
    %v10594 = vadd.f32 %v10390, %v218
    %v10595 = vadd.f32 %v10393, %v219
    %v10596 = vadd.f32 %v10395, %v220
    %v10597 = vadd.f32 %v10398, %v221
    %v10598 = vadd.f32 %v10400, %v222
    %v10599 = vadd.f32 %v10403, %v223
    %v10600 = vadd.f32 %v10405, %v224
    %v10601 = vadd.f32 %v10408, %v225
    %v10602 = vadd.f32 %v10410, %v226
    %v10603 = vadd.f32 %v10413, %v227
    %v10604 = vadd.f32 %v10415, %v228
    %v10605 = vadd.f32 %v10418, %v229
    %v10606 = vadd.f32 %v10420, %v230
    %v10607 = vadd.f32 %v10423, %v231
    %v10608 = vadd.f32 %v10425, %v232
    %v10609 = vadd.f32 %v10428, %v233
    %v10610 = vadd.f32 %v10430, %v234
    %v10611 = vadd.f32 %v10433, %v235
    %v10612 = vadd.f32 %v10435, %v236
    %v10613 = vadd.f32 %v10438, %v237
    %v10614 = vadd.f32 %v10440, %v238
    %v10615 = vadd.f32 %v10443, %v239
    %v10616 = vadd.f32 %v10445, %v240
    %v10617 = vadd.f32 %v10448, %v241
    %v10618 = vadd.f32 %v10450, %v242
    %v10619 = vadd.f32 %v10453, %v243
    %v10620 = vadd.f32 %v10455, %v244
    %v10621 = vadd.f32 %v10458, %v245
    %v10622 = vadd.f32 %v10460, %v246
    %v10623 = vadd.f32 %v10463, %v247
    %v10624 = vadd.f32 %v10465, %v248
    %v10625 = vadd.f32 %v10468, %v249
    %v10626 = vadd.f32 %v10470, %v250
    %v10627 = vadd.f32 %v10473, %v251
    %v10628 = vadd.f32 %v10475, %v252
    %v10629 = vadd.f32 %v10478, %v253
    %v10630 = vadd.f32 %v10480, %v254
    %v10631 = vadd.f32 %v10483, %v255
    %v10632 = vadd.f32 %v10485, %v256
    %v10633 = vadd.f32 %v10488, %v257
    %v10634 = vadd.f32 %v10490, %v258
    %v10635 = vadd.f32 %v10493, %v259
    %v10636 = vadd.f32 %v10495, %v260
    %v10637 = vadd.f32 %v10498, %v261
    %v10638 = vadd.f32 %v10500, %v262
    %v10639 = vadd.f32 %v10503, %v263
    %v10640 = vadd.f32 %v10505, %v264
    %v10641 = vadd.f32 %v10508, %v265
    %v10642 = vadd.f32 %v10510, %v266
    %v10643 = vadd.f32 %v10513, %v267
    %v10644 = vadd.f32 %v10515, %v268
    %10645 = vst [vmem:[#allocation14] sm:$0xff] %v10517
    %10646 = vst [vmem:[#allocation14 + $0x8] sm:$0xff] %v10518
    %10647 = vst [vmem:[#allocation14 + $0x10] sm:$0xff] %v10519
    %10648 = vst [vmem:[#allocation14 + $0x18] sm:$0xff] %v10520
    %10649 = vst [vmem:[#allocation14 + $0x20] sm:$0xff] %v10521
    %10650 = vst [vmem:[#allocation14 + $0x28] sm:$0xff] %v10522
    %10651 = vst [vmem:[#allocation14 + $0x30] sm:$0xff] %v10523
    %10652 = vst [vmem:[#allocation14 + $0x38] sm:$0xff] %v10524
    %10653 = vst [vmem:[#allocation14 + $0x40] sm:$0xff] %v10525
    %10654 = vst [vmem:[#allocation14 + $0x48] sm:$0xff] %v10526
    %10655 = vst [vmem:[#allocation14 + $0x50] sm:$0xff] %v10527
    %10656 = vst [vmem:[#allocation14 + $0x58] sm:$0xff] %v10528
    %10657 = vst [vmem:[#allocation14 + $0x60] sm:$0xff] %v10529
    %10658 = vst [vmem:[#allocation14 + $0x68] sm:$0xff] %v10530
    %10659 = vst [vmem:[#allocation14 + $0x70] sm:$0xff] %v10531
    %10660 = vst [vmem:[#allocation14 + $0x78] sm:$0xff] %v10532
    %10661 = vst [vmem:[#allocation14 + $0x80] sm:$0xff] %v10533
    %10662 = vst [vmem:[#allocation14 + $0x88] sm:$0xff] %v10534
    %10663 = vst [vmem:[#allocation14 + $0x90] sm:$0xff] %v10535
    %10664 = vst [vmem:[#allocation14 + $0x98] sm:$0xff] %v10536
    %10665 = vst [vmem:[#allocation14 + $0xa0] sm:$0xff] %v10537
    %10666 = vst [vmem:[#allocation14 + $0xa8] sm:$0xff] %v10538
    %10667 = vst [vmem:[#allocation14 + $0xb0] sm:$0xff] %v10539
    %10668 = vst [vmem:[#allocation14 + $0xb8] sm:$0xff] %v10540
    %10669 = vst [vmem:[#allocation14 + $0xc0] sm:$0xff] %v10541
    %10670 = vst [vmem:[#allocation14 + $0xc8] sm:$0xff] %v10542
    %10671 = vst [vmem:[#allocation14 + $0xd0] sm:$0xff] %v10543
    %10672 = vst [vmem:[#allocation14 + $0xd8] sm:$0xff] %v10544
    %10673 = vst [vmem:[#allocation14 + $0xe0] sm:$0xff] %v10545
    %10674 = vst [vmem:[#allocation14 + $0xe8] sm:$0xff] %v10546
    %10675 = vst [vmem:[#allocation14 + $0xf0] sm:$0xff] %v10547
    %10676 = vst [vmem:[#allocation14 + $0xf8] sm:$0xff] %v10548
    %10677 = vst [vmem:[#allocation14 + $0x100] sm:$0xff] %v10549
    %10678 = vst [vmem:[#allocation14 + $0x108] sm:$0xff] %v10550
    %10679 = vst [vmem:[#allocation14 + $0x110] sm:$0xff] %v10551
    %10680 = vst [vmem:[#allocation14 + $0x118] sm:$0xff] %v10552
    %10681 = vst [vmem:[#allocation14 + $0x120] sm:$0xff] %v10553
    %10682 = vst [vmem:[#allocation14 + $0x128] sm:$0xff] %v10554
    %10683 = vst [vmem:[#allocation14 + $0x130] sm:$0xff] %v10555
    %10684 = vst [vmem:[#allocation14 + $0x138] sm:$0xff] %v10556
    %10685 = vst [vmem:[#allocation14 + $0x140] sm:$0xff] %v10557
    %10686 = vst [vmem:[#allocation14 + $0x148] sm:$0xff] %v10558
    %10687 = vst [vmem:[#allocation14 + $0x150] sm:$0xff] %v10559
    %10688 = vst [vmem:[#allocation14 + $0x158] sm:$0xff] %v10560
    %10689 = vst [vmem:[#allocation14 + $0x160] sm:$0xff] %v10561
    %10690 = vst [vmem:[#allocation14 + $0x168] sm:$0xff] %v10562
    %10691 = vst [vmem:[#allocation14 + $0x170] sm:$0xff] %v10563
    %10692 = vst [vmem:[#allocation14 + $0x178] sm:$0xff] %v10564
    %10693 = vst [vmem:[#allocation14 + $0x180] sm:$0xff] %v10565
    %10694 = vst [vmem:[#allocation14 + $0x188] sm:$0xff] %v10566
    %10695 = vst [vmem:[#allocation14 + $0x190] sm:$0xff] %v10567
    %10696 = vst [vmem:[#allocation14 + $0x198] sm:$0xff] %v10568
    %10697 = vst [vmem:[#allocation14 + $0x1a0] sm:$0xff] %v10569
    %10698 = vst [vmem:[#allocation14 + $0x1a8] sm:$0xff] %v10570
    %10699 = vst [vmem:[#allocation14 + $0x1b0] sm:$0xff] %v10571
    %10700 = vst [vmem:[#allocation14 + $0x1b8] sm:$0xff] %v10572
    %10701 = vst [vmem:[#allocation14 + $0x1c0] sm:$0xff] %v10573
    %10702 = vst [vmem:[#allocation14 + $0x1c8] sm:$0xff] %v10574
    %10703 = vst [vmem:[#allocation14 + $0x1d0] sm:$0xff] %v10575
    %10704 = vst [vmem:[#allocation14 + $0x1d8] sm:$0xff] %v10576
    %10705 = vst [vmem:[#allocation14 + $0x1e0] sm:$0xff] %v10577
    %10706 = vst [vmem:[#allocation14 + $0x1e8] sm:$0xff] %v10578
    %10707 = vst [vmem:[#allocation14 + $0x1f0] sm:$0xff] %v10579
    %10708 = vst [vmem:[#allocation14 + $0x1f8] sm:$0xff] %v10580
    %10709 = vst [vmem:[#allocation14 + $0x200] sm:$0xff] %v10581
    %10710 = vst [vmem:[#allocation14 + $0x208] sm:$0xff] %v10582
    %10711 = vst [vmem:[#allocation14 + $0x210] sm:$0xff] %v10583
    %10712 = vst [vmem:[#allocation14 + $0x218] sm:$0xff] %v10584
    %10713 = vst [vmem:[#allocation14 + $0x220] sm:$0xff] %v10585
    %10714 = vst [vmem:[#allocation14 + $0x228] sm:$0xff] %v10586
    %10715 = vst [vmem:[#allocation14 + $0x230] sm:$0xff] %v10587
    %10716 = vst [vmem:[#allocation14 + $0x238] sm:$0xff] %v10588
    %10717 = vst [vmem:[#allocation14 + $0x240] sm:$0xff] %v10589
    %10718 = vst [vmem:[#allocation14 + $0x248] sm:$0xff] %v10590
    %10719 = vst [vmem:[#allocation14 + $0x250] sm:$0xff] %v10591
    %10720 = vst [vmem:[#allocation14 + $0x258] sm:$0xff] %v10592
    %10721 = vst [vmem:[#allocation14 + $0x260] sm:$0xff] %v10593
    %10722 = vst [vmem:[#allocation14 + $0x268] sm:$0xff] %v10594
    %10723 = vst [vmem:[#allocation14 + $0x270] sm:$0xff] %v10595
    %10724 = vst [vmem:[#allocation14 + $0x278] sm:$0xff] %v10596
    %10725 = vst [vmem:[#allocation14 + $0x280] sm:$0xff] %v10597
    %10726 = vst [vmem:[#allocation14 + $0x288] sm:$0xff] %v10598
    %10727 = vst [vmem:[#allocation14 + $0x290] sm:$0xff] %v10599
    %10728 = vst [vmem:[#allocation14 + $0x298] sm:$0xff] %v10600
    %10729 = vst [vmem:[#allocation14 + $0x2a0] sm:$0xff] %v10601
    %10730 = vst [vmem:[#allocation14 + $0x2a8] sm:$0xff] %v10602
    %10731 = vst [vmem:[#allocation14 + $0x2b0] sm:$0xff] %v10603
    %10732 = vst [vmem:[#allocation14 + $0x2b8] sm:$0xff] %v10604
    %10733 = vst [vmem:[#allocation14 + $0x2c0] sm:$0xff] %v10605
    %10734 = vst [vmem:[#allocation14 + $0x2c8] sm:$0xff] %v10606
    %10735 = vst [vmem:[#allocation14 + $0x2d0] sm:$0xff] %v10607
    %10736 = vst [vmem:[#allocation14 + $0x2d8] sm:$0xff] %v10608
    %10737 = vst [vmem:[#allocation14 + $0x2e0] sm:$0xff] %v10609
    %10738 = vst [vmem:[#allocation14 + $0x2e8] sm:$0xff] %v10610
    %10739 = vst [vmem:[#allocation14 + $0x2f0] sm:$0xff] %v10611
    %10740 = vst [vmem:[#allocation14 + $0x2f8] sm:$0xff] %v10612
    %10741 = vst [vmem:[#allocation14 + $0x300] sm:$0xff] %v10613
    %10742 = vst [vmem:[#allocation14 + $0x308] sm:$0xff] %v10614
    %10743 = vst [vmem:[#allocation14 + $0x310] sm:$0xff] %v10615
    %10744 = vst [vmem:[#allocation14 + $0x318] sm:$0xff] %v10616
    %10745 = vst [vmem:[#allocation14 + $0x320] sm:$0xff] %v10617
    %10746 = vst [vmem:[#allocation14 + $0x328] sm:$0xff] %v10618
    %10747 = vst [vmem:[#allocation14 + $0x330] sm:$0xff] %v10619
    %10748 = vst [vmem:[#allocation14 + $0x338] sm:$0xff] %v10620
    %10749 = vst [vmem:[#allocation14 + $0x340] sm:$0xff] %v10621
    %10750 = vst [vmem:[#allocation14 + $0x348] sm:$0xff] %v10622
    %10751 = vst [vmem:[#allocation14 + $0x350] sm:$0xff] %v10623
    %10752 = vst [vmem:[#allocation14 + $0x358] sm:$0xff] %v10624
    %10753 = vst [vmem:[#allocation14 + $0x360] sm:$0xff] %v10625
    %10754 = vst [vmem:[#allocation14 + $0x368] sm:$0xff] %v10626
    %10755 = vst [vmem:[#allocation14 + $0x370] sm:$0xff] %v10627
    %10756 = vst [vmem:[#allocation14 + $0x378] sm:$0xff] %v10628
    %10757 = vst [vmem:[#allocation14 + $0x380] sm:$0xff] %v10629
    %10758 = vst [vmem:[#allocation14 + $0x388] sm:$0xff] %v10630
    %10759 = vst [vmem:[#allocation14 + $0x390] sm:$0xff] %v10631
    %10760 = vst [vmem:[#allocation14 + $0x398] sm:$0xff] %v10632
    %10761 = vst [vmem:[#allocation14 + $0x3a0] sm:$0xff] %v10633
    %10762 = vst [vmem:[#allocation14 + $0x3a8] sm:$0xff] %v10634
    %10763 = vst [vmem:[#allocation14 + $0x3b0] sm:$0xff] %v10635
    %10764 = vst [vmem:[#allocation14 + $0x3b8] sm:$0xff] %v10636
    %10765 = vst [vmem:[#allocation14 + $0x3c0] sm:$0xff] %v10637
    %10766 = vst [vmem:[#allocation14 + $0x3c8] sm:$0xff] %v10638
    %10767 = vst [vmem:[#allocation14 + $0x3d0] sm:$0xff] %v10639
    %10768 = vst [vmem:[#allocation14 + $0x3d8] sm:$0xff] %v10640
    %10769 = vst [vmem:[#allocation14 + $0x3e0] sm:$0xff] %v10641
    %10770 = vst [vmem:[#allocation14 + $0x3e8] sm:$0xff] %v10642
    %10771 = vst [vmem:[#allocation14 + $0x3f0] sm:$0xff] %v10643
    %10772 = vst [vmem:[#allocation14 + $0x3f8] sm:$0xff] %v10644
    // Predicated region
    $region70: #{_lambda_.1} parent=1 // pred_check
      _
    $region71: #{_lambda_.1} parent=1 // pred_check_branch
      %10774 = sbr.rel (0) target = $region73
    $region72: #{_lambda_.1} parent=1 // pred_region
      %10776 = vsyncadd [#allocation4], 0
      %s10777 = sshll.u32 [#allocation14], 4
      %s10778 = int_to_ptr.vmem [resolvable:$true] %s10777
      %s10779 = sshll.u32 %s10, 4
      %s10780 = int_to_ptr.hbm [resolvable:$true] %s10779
      %10785 = dma.vmem_to_hbm [thread:$0]  %s10778, 16384, %s10780, [#allocation4], 128, 128, 8
    $region73: #{_lambda_.1} parent=1 // pred_fallthru
      _
    // Predicated region
    $region74: #{_lambda_.1} parent=1 // pred_check
      _
    $region75: #{_lambda_.1} parent=1 // pred_check_branch
      %10787 = sbr.rel (0) target = $region77
    $region76: #{_lambda_.1} parent=1 // pred_region
      %10789 = dma.done [#allocation4], 16384
    $region77: #{_lambda_.1} parent=1 // pred_fallthru
      _
    %10790 = vsyncpa [#allocation3], 1
    %10791 = vsyncpa [#allocation6], 1
    %10792 = vsyncpa [#allocation9], 1
    %10793 = vsyncpa [#allocation12], 1
    %10794 = vsyncpa [#allocation4], 1

</llo_original>
